<compile_context>
chip_gen: v6e
topology: v6e:2x2x1
jax: 0.10.0
libtpu: 0.0.40
codegen_flags: <defaults>
</compile_context>

<pallas_src>
import jax
import jax.numpy as jnp
from jax import lax
from jax.experimental import pallas as pl
from jax.experimental.pallas import tpu as pltpu

MID = 64  # self.mid_channels in the PyTorch module


def _round_up(x, m):
    return (x + m - 1) // m * m


# ---------------------------------------------------------------------------
# Fused Pallas kernel: conv1..conv7 + residual, one batch element per step.
# ---------------------------------------------------------------------------
def _hyperpnn_fused_kernel(hrhs_ref, pan9_ref,
                           w1_ref, b1_ref, w2_ref, b2_ref,
                           w3_ref, w3p_ref, b3_ref,
                           w4_ref, b4_ref,
                           w5_ref, b5_ref,
                           w6_ref, b6_ref,
                           w7_ref, b7_ref,
                           o_ref,
                           pad_ref):
    _, H, W, _ = pan9_ref.shape          # PAN window tensor gives the spatial size
    mid = w2_ref.shape[0]
    Hp2, Wpad, _ = pad_ref.shape         # (H+2, round_up(W+2, 8), mid)

    # Zero only the 1-pixel halo strips (interior is fully rewritten below).
    # Done every grid step so each core's scratch is valid under "parallel".
    zrow = jnp.zeros((1, Wpad, mid), jnp.float32)
    pad_ref[0:1] = zrow
    pad_ref[H + 1:H + 2] = zrow
    pad_ref[:, 0:1, :] = jnp.zeros((Hp2, 1, mid), jnp.float32)
    pad_ref[:, W + 1:, :] = jnp.zeros((Hp2, Wpad - (W + 1), mid), jnp.float32)

    # conv1 / conv2: 1x1 convs == channel matmuls (+ bias + ReLU).
    # HS input arrives channel-major (C_hs, H*W); one small 2-D transpose
    # brings it to pixel-major for the matmuls.
    x = hrhs_ref[0].T                                            # (H*W, C_hs)
    x = jnp.maximum(jnp.dot(x, w1_ref[...],
                            preferred_element_type=jnp.float32) + b1_ref[0], 0.0)
    x = jnp.maximum(jnp.dot(x, w2_ref[...],
                            preferred_element_type=jnp.float32) + b2_ref[0], 0.0)

    def conv3x3_relu(x_hwc, w_ref, b_ref, acc0):
        # Stage the input activation into the zero-halo scratch interior.
        pad_ref[1:H + 1, 1:W + 1, :] = x_hwc
        acc = acc0
        for dy in range(3):
            # Row-contiguous slab: reshape is layout-free (Wpad % 8 == 0),
            # no materialized window copies.
            slab = pad_ref[dy:dy + H].reshape(H * Wpad, mid)
            # One widened matmul per dy: N = 3*mid (all dx taps at once).
            r = jnp.dot(slab, w_ref[dy], preferred_element_type=jnp.float32)
            r = r.reshape(H, Wpad, 3 * mid)
            for dx in range(3):
                # dx shift handled on the output accumulate.
                acc = acc + r[:, dx:dx + W, dx * mid:(dx + 1) * mid]
        return jnp.maximum(acc + b_ref[0], 0.0)

    # PAN contribution to conv3 as one small MXU matmul: (H*W, 9) @ (9, mid).
    pan_c = jnp.dot(pan9_ref[0].reshape(H * W, 9), w3p_ref[...],
                    preferred_element_type=jnp.float32).reshape(H, W, mid)

    x = conv3x3_relu(x.reshape(H, W, mid), w3_ref, b3_ref, pan_c)   # conv3
    zero_acc = jnp.zeros((H, W, mid), jnp.float32)
    x = conv3x3_relu(x, w4_ref, b4_ref, zero_acc)                   # conv4
    x = conv3x3_relu(x, w5_ref, b5_ref, zero_acc)                   # conv5

    # conv6 (1x1 + ReLU), conv7 (1x1) + residual add with HRHS.
    x = x.reshape(H * W, mid)
    x = jnp.maximum(jnp.dot(x, w6_ref[...],
                            preferred_element_type=jnp.float32) + b6_ref[0], 0.0)
    y = jnp.dot(x, w7_ref[...], preferred_element_type=jnp.float32) + b7_ref[0]
    # Store channel-major (lane-dense output block) + residual.
    o_ref[0] = y.T + hrhs_ref[0]


# ---------------------------------------------------------------------------
# Bilinear upsampling (matches F.interpolate(mode='bilinear',
# align_corners=False) half-pixel semantics) -- plain JAX glue, NCHW.
# ---------------------------------------------------------------------------
def _half_pixel_coords(out_size, in_size):
    scale = in_size / out_size
    src = (jnp.arange(out_size, dtype=jnp.float32) + 0.5) * scale - 0.5
    src = jnp.clip(src, 0.0, in_size - 1)
    i0 = jnp.floor(src).astype(jnp.int32)
    i1 = jnp.minimum(i0 + 1, in_size - 1)
    w1 = src - i0.astype(jnp.float32)
    return i0, i1, 1.0 - w1, w1


def bilinear_upsample_nchw(x, out_h, out_w):
    _, _, h, w = x.shape
    y0, y1, wy0, wy1 = _half_pixel_coords(out_h, h)
    x0, x1, wx0, wx1 = _half_pixel_coords(out_w, w)
    rows = (x[:, :, y0, :] * wy0[None, None, :, None]
            + x[:, :, y1, :] * wy1[None, None, :, None])      # (B, C, out_h, w)
    out = (rows[:, :, :, x0] * wx0[None, None, None, :]
           + rows[:, :, :, x1] * wx1[None, None, None, :])    # (B, C, out_h, out_w)
    return out


def _vmem_limit_bytes(H, W, w_pad, C_hs, mid):
    """Derive a per-shape scoped-VMEM budget (instead of hardcoding 32 MiB)."""
    f32 = 4
    lanes = 128                                   # minor dims < 128 pad to 128
    pad_scratch = (H + 2) * w_pad * max(mid, lanes) * f32
    act = H * _round_up(W, 8) * max(mid, lanes) * f32          # one live activation
    rbuf = H * w_pad * _round_up(3 * mid, lanes) * f32         # widened matmul result
    hs_io = 2 * 2 * C_hs * _round_up(H * W, lanes) * f32       # in+out, double-buffered
    pan = 2 * H * _round_up(W, 8) * lanes * f32                # pan9 block (9->128 lanes)
    weights = (3 * 3 * mid * 3 * mid + 2 * mid * mid
               + 2 * C_hs * mid + 9 * mid) * f32
    est = pad_scratch + 4 * act + rbuf + hs_io + pan + 2 * weights + (8 << 20)
    cap = 100 << 20                               # headroom on 128 MiB parts
    try:                                          # tighter cap on v7x (64 MiB)
        cap = min(cap, int(pltpu.get_tpu_info().vmem_capacity_bytes) * 3 // 4)
    except Exception:
        pass
    return int(max(32 << 20, min(est, cap)))


# ---------------------------------------------------------------------------
# HyperPNN forward (fused Pallas kernel + JAX glue)
# ---------------------------------------------------------------------------
def hyperpnn_forward(params, lrhs_nchw, pan_nchw):
    # TODO(synk): the reference forward uses PAN.shape[1] (the NCHW channel
    # dim == 1) as the interpolation size, which would break the later concat;
    # we follow the evident intent and resize to PAN's spatial size.
    B, C_hs, _, _ = lrhs_nchw.shape
    H, W = pan_nchw.shape[2], pan_nchw.shape[3]
    mid = MID
    HW = H * W
    w_pad = _round_up(W + 2, 8)                    # scratch width, 8-aligned

    hrhs = bilinear_upsample_nchw(lrhs_nchw, H, W)           # (B, C_hs, H, W)
    hrhs_cm = hrhs.reshape(B, C_hs, HW)                      # lane-dense HS I/O

    # 9 shifted PAN windows gathered in the wrapper (single channel -> cheap);
    # consumed in-kernel by one (H*W, 9) @ (9, mid) matmul.
    pan_p = jnp.pad(pan_nchw[:, 0], ((0, 0), (1, 1), (1, 1)))  # (B, H+2, W+2)
    pan9 = jnp.stack([pan_p[:, dy:dy + H, dx:dx + W]
                      for dy in range(3) for dx in range(3)], axis=-1)  # (B,H,W,9)

    def widen(w):  # (3,3,mid,mid) -> (3, mid, 3*mid): dx taps concatenated on N
        return jnp.transpose(w, (0, 2, 1, 3)).reshape(3, mid, 3 * mid)

    w3_hs = widen(params["w3"][:, :, :mid, :])
    w3_pan = params["w3"][:, :, mid, :].reshape(9, mid)
    w4r = widen(params["w4"])
    w5r = widen(params["w5"])
    b = {k: params[k].reshape(1, -1)
         for k in ("b1", "b2", "b3", "b4", "b5", "b6", "b7")}

    def full(shape):
        return pl.BlockSpec(shape, lambda bi, n=len(shape): (0,) * n)

    out_cm = pl.pallas_call(
        _hyperpnn_fused_kernel,
        out_shape=jax.ShapeDtypeStruct((B, C_hs, HW), jnp.float32),
        grid=(B,),
        in_specs=[
            pl.BlockSpec((1, C_hs, HW), lambda bi: (bi, 0, 0)),       # HRHS (lane-dense)
            pl.BlockSpec((1, H, W, 9), lambda bi: (bi, 0, 0, 0)),     # PAN windows
            full((C_hs, mid)), full((1, mid)),                        # conv1
            full((mid, mid)), full((1, mid)),                         # conv2
            full((3, mid, 3 * mid)), full((9, mid)), full((1, mid)),  # conv3 (HS + PAN)
            full((3, mid, 3 * mid)), full((1, mid)),                  # conv4
            full((3, mid, 3 * mid)), full((1, mid)),                  # conv5
            full((mid, mid)), full((1, mid)),                         # conv6
            full((mid, C_hs)), full((1, C_hs)),                       # conv7
        ],
        out_specs=pl.BlockSpec((1, C_hs, HW), lambda bi: (bi, 0, 0)),
        scratch_shapes=[pltpu.VMEM((H + 2, w_pad, mid), jnp.float32)],
        compiler_params=pltpu.CompilerParams(
            dimension_semantics=("parallel",),
            vmem_limit_bytes=_vmem_limit_bytes(H, W, w_pad, C_hs, mid)),
    )(hrhs_cm, pan9,
      params["w1"], b["b1"], params["w2"], b["b2"],
      w3_hs, w3_pan, b["b3"],
      w4r, b["b4"], w5r, b["b5"],
      params["w6"], b["b6"], params["w7"], b["b7"])

    return out_cm.reshape(B, C_hs, H, W)                       # NCHW output


# ---------------------------------------------------------------------------
# Pure-JAX reference (lax.conv) for correctness checking
# ---------------------------------------------------------------------------
def ref_forward(params, lrhs_nchw, pan_nchw):
    H, W = pan_nchw.shape[2], pan_nchw.shape[3]
    hrhs = jnp.transpose(bilinear_upsample_nchw(lrhs_nchw, H, W), (0, 2, 3, 1))
    pan = jnp.transpose(pan_nchw, (0, 2, 3, 1))
    dn = ("NHWC", "HWIO", "NHWC")

    def conv(x, w, bias):
        if w.ndim == 2:
            w = w.reshape(1, 1, *w.shape)
        return lax.conv_general_dilated(x, w, (1, 1), "SAME",
                                        dimension_numbers=dn) + bias

    x = jax.nn.relu(conv(hrhs, params["w1"], params["b1"]))
    x = jax.nn.relu(conv(x, params["w2"], params["b2"]))
    x = jnp.concatenate([x, pan], axis=-1)
    x = jax.nn.relu(conv(x, params["w3"], params["b3"]))
    x = jax.nn.relu(conv(x, params["w4"], params["b4"]))
    x = jax.nn.relu(conv(x, params["w5"], params["b5"]))
    x = jax.nn.relu(conv(x, params["w6"], params["b6"]))
    x = conv(x, params["w7"], params["b7"]) + hrhs
    return jnp.transpose(x, (0, 3, 1, 2))


# ---------------------------------------------------------------------------
# Deterministic parameter init (synthetic; weights stored HWIO / (Cin, Cout))
# ---------------------------------------------------------------------------
def init_params(key, hs_channels):
    mid = MID
    w_shapes = {
        "w1": (hs_channels, mid),
        "w2": (mid, mid),
        "w3": (3, 3, mid + 1, mid),   # conv3 sees mid + PANchannels(=1) inputs
        "w4": (3, 3, mid, mid),
        "w5": (3, 3, mid, mid),
        "w6": (mid, mid),
        "w7": (mid, hs_channels),
    }
    b_sizes = {"b1": mid, "b2": mid, "b3": mid, "b4": mid, "b5": mid,
               "b6": mid, "b7": hs_channels}
    params = {}
    keys = jax.random.split(key, len(w_shapes) + len(b_sizes))
    for k, (name, shp) in zip(keys[:len(w_shapes)], sorted(w_shapes.items())):
        params[name] = 0.05 * jax.random.normal(k, shp, jnp.float32)
    for k, (name, n) in zip(keys[len(w_shapes):], sorted(b_sizes.items())):
        params[name] = 0.01 * jax.random.normal(k, (n,), jnp.float32)
    return params


if __name__ == "__main__":
    hs_channels = 8
    B = 2
    lr_spatial = 8     # low-res hyperspectral spatial size
    hr_spatial = 16    # PAN spatial size (square)

    key = jax.random.PRNGKey(0)
    k_lrhs, k_pan, k_params = jax.random.split(key, 3)
    lrhs = jax.random.normal(k_lrhs, (B, hs_channels, lr_spatial, lr_spatial),
                             jnp.float32)
    pan = jax.random.normal(k_pan, (B, 1, hr_spatial, hr_spatial), jnp.float32)
    params = init_params(k_params, hs_channels)

    out = jax.jit(hyperpnn_forward)(params, lrhs, pan)
    out = jax.block_until_ready(out)

    assert out.shape == (B, hs_channels, hr_spatial, hr_spatial), out.shape
    ref = ref_forward(params, lrhs, pan)
    assert jnp.allclose(out, ref, atol=1e-3, rtol=1e-3), (
        float(jnp.max(jnp.abs(out - ref))))

    print("KERNEL_OK")
</pallas_src>

<mosaic_0001>
module attributes {stable_mosaic.version = 11 : i64} {
  func.func @_hyperpnn_fused_kernel(%arg0: i32, %arg1: memref<1x8x256xf32, #tpu.memory_space<vmem>>, %arg2: memref<1x16x16x9xf32, #tpu.memory_space<vmem>>, %arg3: memref<8x64xf32, #tpu.memory_space<vmem>>, %arg4: memref<1x64xf32, #tpu.memory_space<vmem>>, %arg5: memref<64x64xf32, #tpu.memory_space<vmem>>, %arg6: memref<1x64xf32, #tpu.memory_space<vmem>>, %arg7: memref<3x64x192xf32, #tpu.memory_space<vmem>>, %arg8: memref<9x64xf32, #tpu.memory_space<vmem>>, %arg9: memref<1x64xf32, #tpu.memory_space<vmem>>, %arg10: memref<3x64x192xf32, #tpu.memory_space<vmem>>, %arg11: memref<1x64xf32, #tpu.memory_space<vmem>>, %arg12: memref<3x64x192xf32, #tpu.memory_space<vmem>>, %arg13: memref<1x64xf32, #tpu.memory_space<vmem>>, %arg14: memref<64x64xf32, #tpu.memory_space<vmem>>, %arg15: memref<1x64xf32, #tpu.memory_space<vmem>>, %arg16: memref<64x8xf32, #tpu.memory_space<vmem>>, %arg17: memref<1x8xf32, #tpu.memory_space<vmem>>, %arg18: memref<1x8x256xf32, #tpu.memory_space<vmem>>, %arg19: memref<18x24x64xf32, #tpu.memory_space<vmem>>) attributes {dimension_semantics = [#tpu.dimension_semantics<parallel>], iteration_bounds = array<i64: 2>, scalar_prefetch = 0 : i64, scratch_operands = 1 : i64, tpu.core_type = #tpu.core_type<tc>, window_params = [{transform_indices = @transform_0, window_bounds = array<i64: 1, 8, 256>}, {transform_indices = @transform_1, window_bounds = array<i64: 1, 16, 16, 9>}, {pipeline_mode = #tpu.pipeline_mode<synchronous>, transform_indices = @transform_2, window_bounds = array<i64: 8, 64>}, {pipeline_mode = #tpu.pipeline_mode<synchronous>, transform_indices = @transform_3, window_bounds = array<i64: 1, 64>}, {pipeline_mode = #tpu.pipeline_mode<synchronous>, transform_indices = @transform_4, window_bounds = array<i64: 64, 64>}, {pipeline_mode = #tpu.pipeline_mode<synchronous>, transform_indices = @transform_5, window_bounds = array<i64: 1, 64>}, {pipeline_mode = #tpu.pipeline_mode<synchronous>, transform_indices = @transform_6, window_bounds = array<i64: 3, 64, 192>}, {pipeline_mode = #tpu.pipeline_mode<synchronous>, transform_indices = @transform_7, window_bounds = array<i64: 9, 64>}, {pipeline_mode = #tpu.pipeline_mode<synchronous>, transform_indices = @transform_8, window_bounds = array<i64: 1, 64>}, {pipeline_mode = #tpu.pipeline_mode<synchronous>, transform_indices = @transform_9, window_bounds = array<i64: 3, 64, 192>}, {pipeline_mode = #tpu.pipeline_mode<synchronous>, transform_indices = @transform_10, window_bounds = array<i64: 1, 64>}, {pipeline_mode = #tpu.pipeline_mode<synchronous>, transform_indices = @transform_11, window_bounds = array<i64: 3, 64, 192>}, {pipeline_mode = #tpu.pipeline_mode<synchronous>, transform_indices = @transform_12, window_bounds = array<i64: 1, 64>}, {pipeline_mode = #tpu.pipeline_mode<synchronous>, transform_indices = @transform_13, window_bounds = array<i64: 64, 64>}, {pipeline_mode = #tpu.pipeline_mode<synchronous>, transform_indices = @transform_14, window_bounds = array<i64: 1, 64>}, {pipeline_mode = #tpu.pipeline_mode<synchronous>, transform_indices = @transform_15, window_bounds = array<i64: 64, 8>}, {pipeline_mode = #tpu.pipeline_mode<synchronous>, transform_indices = @transform_16, window_bounds = array<i64: 1, 8>}, {transform_indices = @transform_17, window_bounds = array<i64: 1, 8, 256>}]} {
    %cst = arith.constant 0.000000e+00 : f32
    %0 = vector.broadcast %cst : f32 to vector<1x24x64xf32>
    %c0 = arith.constant 0 : index
    %c0_0 = arith.constant 0 : index
    %c0_1 = arith.constant 0 : index
    %1 = vector.load %arg19[%c0, %c0_0, %c0_1] : memref<18x24x64xf32, #tpu.memory_space<vmem>>, vector<1x24x64xf32>
    tpu.vector_store %arg19[%c0, %c0_0, %c0_1], %0 {strides = array<i32>} : memref<18x24x64xf32, #tpu.memory_space<vmem>>, vector<1x24x64xf32>,
    %c17 = arith.constant 17 : index
    %c0_2 = arith.constant 0 : index
    %c0_3 = arith.constant 0 : index
    %2 = vector.load %arg19[%c17, %c0_2, %c0_3] : memref<18x24x64xf32, #tpu.memory_space<vmem>>, vector<1x24x64xf32>
    tpu.vector_store %arg19[%c17, %c0_2, %c0_3], %0 {strides = array<i32>} : memref<18x24x64xf32, #tpu.memory_space<vmem>>, vector<1x24x64xf32>,
    %cst_4 = arith.constant 0.000000e+00 : f32
    %3 = vector.broadcast %cst_4 : f32 to vector<18x1x64xf32>
    %c0_5 = arith.constant 0 : index
    %c0_6 = arith.constant 0 : index
    %c0_7 = arith.constant 0 : index
    %4 = vector.load %arg19[%c0_5, %c0_6, %c0_7] : memref<18x24x64xf32, #tpu.memory_space<vmem>>, vector<18x1x64xf32>
    tpu.vector_store %arg19[%c0_5, %c0_6, %c0_7], %3 {strides = array<i32>} : memref<18x24x64xf32, #tpu.memory_space<vmem>>, vector<18x1x64xf32>,
    %cst_8 = arith.constant 0.000000e+00 : f32
    %5 = vector.broadcast %cst_8 : f32 to vector<18x7x64xf32>
    %c0_9 = arith.constant 0 : index
    %c17_10 = arith.constant 17 : index
    %c0_11 = arith.constant 0 : index
    %6 = vector.load %arg19[%c0_9, %c17_10, %c0_11] : memref<18x24x64xf32, #tpu.memory_space<vmem>>, vector<18x7x64xf32>
    tpu.vector_store %arg19[%c0_9, %c17_10, %c0_11], %5 {strides = array<i32>} : memref<18x24x64xf32, #tpu.memory_space<vmem>>, vector<18x7x64xf32>,
    %c0_12 = arith.constant 0 : index
    %c0_13 = arith.constant 0 : index
    %c0_14 = arith.constant 0 : index
    %7 = vector.load %arg1[%c0_12, %c0_13, %c0_14] : memref<1x8x256xf32, #tpu.memory_space<vmem>>, vector<1x8x256xf32>
    %8 = vector.shape_cast %7 : vector<1x8x256xf32> to vector<8x256xf32>
    %9 = tpu.transpose %8, [1, 0] : vector<8x256xf32> -> vector<256x8xf32>
    %c0_15 = arith.constant 0 : index
    %c0_16 = arith.constant 0 : index
    %10 = vector.load %arg3[%c0_15, %c0_16] : memref<8x64xf32, #tpu.memory_space<vmem>>, vector<8x64xf32>
    %cst_17 = arith.constant dense<0.000000e+00> : vector<256x64xf32>
    %11 = tpu.matmul %9, %10, %cst_17 {dimension_numbers = #tpu.dot_dimension_numbers<[1], [0], [0], [1], [0, 0, 1, 1], [], []>} : vector<256x8xf32>, vector<8x64xf32>, vector<256x64xf32> -> vector<256x64xf32>
    %c0_18 = arith.constant 0 : index
    %c0_19 = arith.constant 0 : index
    %12 = vector.load %arg4[%c0_18, %c0_19] : memref<1x64xf32, #tpu.memory_space<vmem>>, vector<1x64xf32>
    %13 = vector.shape_cast %12 : vector<1x64xf32> to vector<64xf32>
    %14 = vector.shape_cast %13 : vector<64xf32> to vector<1x64xf32>
    %15 = vector.broadcast %14 : vector<1x64xf32> to vector<256x64xf32>
    %16 = arith.addf %11, %15 : vector<256x64xf32>
    %cst_20 = arith.constant 0.000000e+00 : f32
    %17 = vector.broadcast %cst_20 : f32 to vector<256x64xf32>
    %18 = arith.maximumf %16, %17 : vector<256x64xf32>
    %c0_21 = arith.constant 0 : index
    %c0_22 = arith.constant 0 : index
    %19 = vector.load %arg5[%c0_21, %c0_22] : memref<64x64xf32, #tpu.memory_space<vmem>>, vector<64x64xf32>
    %cst_23 = arith.constant dense<0.000000e+00> : vector<256x64xf32>
    %20 = tpu.matmul %18, %19, %cst_23 {dimension_numbers = #tpu.dot_dimension_numbers<[1], [0], [0], [1], [0, 0, 1, 1], [], []>} : vector<256x64xf32>, vector<64x64xf32>, vector<256x64xf32> -> vector<256x64xf32>
    %c0_24 = arith.constant 0 : index
    %c0_25 = arith.constant 0 : index
    %21 = vector.load %arg6[%c0_24, %c0_25] : memref<1x64xf32, #tpu.memory_space<vmem>>, vector<1x64xf32>
    %22 = vector.shape_cast %21 : vector<1x64xf32> to vector<64xf32>
    %23 = vector.shape_cast %22 : vector<64xf32> to vector<1x64xf32>
    %24 = vector.broadcast %23 : vector<1x64xf32> to vector<256x64xf32>
    %25 = arith.addf %20, %24 : vector<256x64xf32>
    %cst_26 = arith.constant 0.000000e+00 : f32
    %26 = vector.broadcast %cst_26 : f32 to vector<256x64xf32>
    %27 = arith.maximumf %25, %26 : vector<256x64xf32>
    %c0_27 = arith.constant 0 : index
    %c0_28 = arith.constant 0 : index
    %c0_29 = arith.constant 0 : index
    %c0_30 = arith.constant 0 : index
    %28 = vector.load %arg2[%c0_27, %c0_28, %c0_29, %c0_30] : memref<1x16x16x9xf32, #tpu.memory_space<vmem>>, vector<1x16x16x9xf32>
    %29 = vector.shape_cast %28 : vector<1x16x16x9xf32> to vector<16x16x9xf32>
    %30 = vector.shape_cast %29 : vector<16x16x9xf32> to vector<256x9xf32>
    %c0_31 = arith.constant 0 : index
    %c0_32 = arith.constant 0 : index
    %31 = vector.load %arg8[%c0_31, %c0_32] : memref<9x64xf32, #tpu.memory_space<vmem>>, vector<9x64xf32>
    %cst_33 = arith.constant dense<0.000000e+00> : vector<256x64xf32>
    %32 = tpu.matmul %30, %31, %cst_33 {dimension_numbers = #tpu.dot_dimension_numbers<[1], [0], [0], [1], [0, 0, 1, 1], [], []>} : vector<256x9xf32>, vector<9x64xf32>, vector<256x64xf32> -> vector<256x64xf32>
    %33 = vector.shape_cast %32 : vector<256x64xf32> to vector<16x16x64xf32>
    %34 = vector.shape_cast %27 : vector<256x64xf32> to vector<16x16x64xf32>
    %c1 = arith.constant 1 : index
    %c1_34 = arith.constant 1 : index
    %c0_35 = arith.constant 0 : index
    %35 = vector.load %arg19[%c1, %c1_34, %c0_35] : memref<18x24x64xf32, #tpu.memory_space<vmem>>, vector<16x16x64xf32>
    tpu.vector_store %arg19[%c1, %c1_34, %c0_35], %34 {strides = array<i32>} : memref<18x24x64xf32, #tpu.memory_space<vmem>>, vector<16x16x64xf32>,
    %c0_36 = arith.constant 0 : index
    %c0_37 = arith.constant 0 : index
    %c0_38 = arith.constant 0 : index
    %36 = vector.load %arg19[%c0_36, %c0_37, %c0_38] : memref<18x24x64xf32, #tpu.memory_space<vmem>>, vector<16x24x64xf32>
    %37 = vector.shape_cast %36 : vector<16x24x64xf32> to vector<384x64xf32>
    %c0_39 = arith.constant 0 : index
    %c0_40 = arith.constant 0 : index
    %c0_41 = arith.constant 0 : index
    %38 = vector.load %arg7[%c0_39, %c0_40, %c0_41] : memref<3x64x192xf32, #tpu.memory_space<vmem>>, vector<1x64x192xf32>
    %39 = vector.shape_cast %38 : vector<1x64x192xf32> to vector<64x192xf32>
    %cst_42 = arith.constant dense<0.000000e+00> : vector<384x192xf32>
    %40 = tpu.matmul %37, %39, %cst_42 {dimension_numbers = #tpu.dot_dimension_numbers<[1], [0], [0], [1], [0, 0, 1, 1], [], []>} : vector<384x64xf32>, vector<64x192xf32>, vector<384x192xf32> -> vector<384x192xf32>
    %41 = vector.shape_cast %40 : vector<384x192xf32> to vector<16x24x192xf32>
    %42 = vector.extract_strided_slice %41 {offsets = [0, 0, 0], sizes = [16, 16, 64], strides = [1, 1, 1]} : vector<16x24x192xf32> to vector<16x16x64xf32>
    %43 = arith.addf %33, %42 : vector<16x16x64xf32>
    %44 = vector.extract_strided_slice %41 {offsets = [0, 1, 64], sizes = [16, 16, 64], strides = [1, 1, 1]} : vector<16x24x192xf32> to vector<16x16x64xf32>
    %45 = arith.addf %43, %44 : vector<16x16x64xf32>
    %46 = vector.extract_strided_slice %41 {offsets = [0, 2, 128], sizes = [16, 16, 64], strides = [1, 1, 1]} : vector<16x24x192xf32> to vector<16x16x64xf32>
    %47 = arith.addf %45, %46 : vector<16x16x64xf32>
    %c1_43 = arith.constant 1 : index
    %c0_44 = arith.constant 0 : index
    %c0_45 = arith.constant 0 : index
    %48 = vector.load %arg19[%c1_43, %c0_44, %c0_45] : memref<18x24x64xf32, #tpu.memory_space<vmem>>, vector<16x24x64xf32>
    %49 = vector.shape_cast %48 : vector<16x24x64xf32> to vector<384x64xf32>
    %c1_46 = arith.constant 1 : index
    %c0_47 = arith.constant 0 : index
    %c0_48 = arith.constant 0 : index
    %50 = vector.load %arg7[%c1_46, %c0_47, %c0_48] : memref<3x64x192xf32, #tpu.memory_space<vmem>>, vector<1x64x192xf32>
    %51 = vector.shape_cast %50 : vector<1x64x192xf32> to vector<64x192xf32>
    %cst_49 = arith.constant dense<0.000000e+00> : vector<384x192xf32>
    %52 = tpu.matmul %49, %51, %cst_49 {dimension_numbers = #tpu.dot_dimension_numbers<[1], [0], [0], [1], [0, 0, 1, 1], [], []>} : vector<384x64xf32>, vector<64x192xf32>, vector<384x192xf32> -> vector<384x192xf32>
    %53 = vector.shape_cast %52 : vector<384x192xf32> to vector<16x24x192xf32>
    %54 = vector.extract_strided_slice %53 {offsets = [0, 0, 0], sizes = [16, 16, 64], strides = [1, 1, 1]} : vector<16x24x192xf32> to vector<16x16x64xf32>
    %55 = arith.addf %47, %54 : vector<16x16x64xf32>
    %56 = vector.extract_strided_slice %53 {offsets = [0, 1, 64], sizes = [16, 16, 64], strides = [1, 1, 1]} : vector<16x24x192xf32> to vector<16x16x64xf32>
    %57 = arith.addf %55, %56 : vector<16x16x64xf32>
    %58 = vector.extract_strided_slice %53 {offsets = [0, 2, 128], sizes = [16, 16, 64], strides = [1, 1, 1]} : vector<16x24x192xf32> to vector<16x16x64xf32>
    %59 = arith.addf %57, %58 : vector<16x16x64xf32>
    %c2 = arith.constant 2 : index
    %c0_50 = arith.constant 0 : index
    %c0_51 = arith.constant 0 : index
    %60 = vector.load %arg19[%c2, %c0_50, %c0_51] : memref<18x24x64xf32, #tpu.memory_space<vmem>>, vector<16x24x64xf32>
    %61 = vector.shape_cast %60 : vector<16x24x64xf32> to vector<384x64xf32>
    %c2_52 = arith.constant 2 : index
    %c0_53 = arith.constant 0 : index
    %c0_54 = arith.constant 0 : index
    %62 = vector.load %arg7[%c2_52, %c0_53, %c0_54] : memref<3x64x192xf32, #tpu.memory_space<vmem>>, vector<1x64x192xf32>
    %63 = vector.shape_cast %62 : vector<1x64x192xf32> to vector<64x192xf32>
    %cst_55 = arith.constant dense<0.000000e+00> : vector<384x192xf32>
    %64 = tpu.matmul %61, %63, %cst_55 {dimension_numbers = #tpu.dot_dimension_numbers<[1], [0], [0], [1], [0, 0, 1, 1], [], []>} : vector<384x64xf32>, vector<64x192xf32>, vector<384x192xf32> -> vector<384x192xf32>
    %65 = vector.shape_cast %64 : vector<384x192xf32> to vector<16x24x192xf32>
    %66 = vector.extract_strided_slice %65 {offsets = [0, 0, 0], sizes = [16, 16, 64], strides = [1, 1, 1]} : vector<16x24x192xf32> to vector<16x16x64xf32>
    %67 = arith.addf %59, %66 : vector<16x16x64xf32>
    %68 = vector.extract_strided_slice %65 {offsets = [0, 1, 64], sizes = [16, 16, 64], strides = [1, 1, 1]} : vector<16x24x192xf32> to vector<16x16x64xf32>
    %69 = arith.addf %67, %68 : vector<16x16x64xf32>
    %70 = vector.extract_strided_slice %65 {offsets = [0, 2, 128], sizes = [16, 16, 64], strides = [1, 1, 1]} : vector<16x24x192xf32> to vector<16x16x64xf32>
    %71 = arith.addf %69, %70 : vector<16x16x64xf32>
    %c0_56 = arith.constant 0 : index
    %c0_57 = arith.constant 0 : index
    %72 = vector.load %arg9[%c0_56, %c0_57] : memref<1x64xf32, #tpu.memory_space<vmem>>, vector<1x64xf32>
    %73 = vector.shape_cast %72 : vector<1x64xf32> to vector<64xf32>
    %74 = vector.shape_cast %73 : vector<64xf32> to vector<1x1x64xf32>
    %75 = vector.broadcast %74 : vector<1x1x64xf32> to vector<16x16x64xf32>
    %76 = arith.addf %71, %75 : vector<16x16x64xf32>
    %cst_58 = arith.constant 0.000000e+00 : f32
    %77 = vector.broadcast %cst_58 : f32 to vector<16x16x64xf32>
    %78 = arith.maximumf %76, %77 : vector<16x16x64xf32>
    %cst_59 = arith.constant 0.000000e+00 : f32
    %79 = vector.broadcast %cst_59 : f32 to vector<16x16x64xf32>
    %c1_60 = arith.constant 1 : index
    %c1_61 = arith.constant 1 : index
    %c0_62 = arith.constant 0 : index
    %80 = vector.load %arg19[%c1_60, %c1_61, %c0_62] : memref<18x24x64xf32, #tpu.memory_space<vmem>>, vector<16x16x64xf32>
    tpu.vector_store %arg19[%c1_60, %c1_61, %c0_62], %78 {strides = array<i32>} : memref<18x24x64xf32, #tpu.memory_space<vmem>>, vector<16x16x64xf32>,
    %c0_63 = arith.constant 0 : index
    %c0_64 = arith.constant 0 : index
    %c0_65 = arith.constant 0 : index
    %81 = vector.load %arg19[%c0_63, %c0_64, %c0_65] : memref<18x24x64xf32, #tpu.memory_space<vmem>>, vector<16x24x64xf32>
    %82 = vector.shape_cast %81 : vector<16x24x64xf32> to vector<384x64xf32>
    %c0_66 = arith.constant 0 : index
    %c0_67 = arith.constant 0 : index
    %c0_68 = arith.constant 0 : index
    %83 = vector.load %arg10[%c0_66, %c0_67, %c0_68] : memref<3x64x192xf32, #tpu.memory_space<vmem>>, vector<1x64x192xf32>
    %84 = vector.shape_cast %83 : vector<1x64x192xf32> to vector<64x192xf32>
    %cst_69 = arith.constant dense<0.000000e+00> : vector<384x192xf32>
    %85 = tpu.matmul %82, %84, %cst_69 {dimension_numbers = #tpu.dot_dimension_numbers<[1], [0], [0], [1], [0, 0, 1, 1], [], []>} : vector<384x64xf32>, vector<64x192xf32>, vector<384x192xf32> -> vector<384x192xf32>
    %86 = vector.shape_cast %85 : vector<384x192xf32> to vector<16x24x192xf32>
    %87 = vector.extract_strided_slice %86 {offsets = [0, 0, 0], sizes = [16, 16, 64], strides = [1, 1, 1]} : vector<16x24x192xf32> to vector<16x16x64xf32>
    %88 = arith.addf %79, %87 : vector<16x16x64xf32>
    %89 = vector.extract_strided_slice %86 {offsets = [0, 1, 64], sizes = [16, 16, 64], strides = [1, 1, 1]} : vector<16x24x192xf32> to vector<16x16x64xf32>
    %90 = arith.addf %88, %89 : vector<16x16x64xf32>
    %91 = vector.extract_strided_slice %86 {offsets = [0, 2, 128], sizes = [16, 16, 64], strides = [1, 1, 1]} : vector<16x24x192xf32> to vector<16x16x64xf32>
    %92 = arith.addf %90, %91 : vector<16x16x64xf32>
    %c1_70 = arith.constant 1 : index
    %c0_71 = arith.constant 0 : index
    %c0_72 = arith.constant 0 : index
    %93 = vector.load %arg19[%c1_70, %c0_71, %c0_72] : memref<18x24x64xf32, #tpu.memory_space<vmem>>, vector<16x24x64xf32>
    %94 = vector.shape_cast %93 : vector<16x24x64xf32> to vector<384x64xf32>
    %c1_73 = arith.constant 1 : index
    %c0_74 = arith.constant 0 : index
    %c0_75 = arith.constant 0 : index
    %95 = vector.load %arg10[%c1_73, %c0_74, %c0_75] : memref<3x64x192xf32, #tpu.memory_space<vmem>>, vector<1x64x192xf32>
    %96 = vector.shape_cast %95 : vector<1x64x192xf32> to vector<64x192xf32>
    %cst_76 = arith.constant dense<0.000000e+00> : vector<384x192xf32>
    %97 = tpu.matmul %94, %96, %cst_76 {dimension_numbers = #tpu.dot_dimension_numbers<[1], [0], [0], [1], [0, 0, 1, 1], [], []>} : vector<384x64xf32>, vector<64x192xf32>, vector<384x192xf32> -> vector<384x192xf32>
    %98 = vector.shape_cast %97 : vector<384x192xf32> to vector<16x24x192xf32>
    %99 = vector.extract_strided_slice %98 {offsets = [0, 0, 0], sizes = [16, 16, 64], strides = [1, 1, 1]} : vector<16x24x192xf32> to vector<16x16x64xf32>
    %100 = arith.addf %92, %99 : vector<16x16x64xf32>
    %101 = vector.extract_strided_slice %98 {offsets = [0, 1, 64], sizes = [16, 16, 64], strides = [1, 1, 1]} : vector<16x24x192xf32> to vector<16x16x64xf32>
    %102 = arith.addf %100, %101 : vector<16x16x64xf32>
    %103 = vector.extract_strided_slice %98 {offsets = [0, 2, 128], sizes = [16, 16, 64], strides = [1, 1, 1]} : vector<16x24x192xf32> to vector<16x16x64xf32>
    %104 = arith.addf %102, %103 : vector<16x16x64xf32>
    %c2_77 = arith.constant 2 : index
    %c0_78 = arith.constant 0 : index
    %c0_79 = arith.constant 0 : index
    %105 = vector.load %arg19[%c2_77, %c0_78, %c0_79] : memref<18x24x64xf32, #tpu.memory_space<vmem>>, vector<16x24x64xf32>
    %106 = vector.shape_cast %105 : vector<16x24x64xf32> to vector<384x64xf32>
    %c2_80 = arith.constant 2 : index
    %c0_81 = arith.constant 0 : index
    %c0_82 = arith.constant 0 : index
    %107 = vector.load %arg10[%c2_80, %c0_81, %c0_82] : memref<3x64x192xf32, #tpu.memory_space<vmem>>, vector<1x64x192xf32>
    %108 = vector.shape_cast %107 : vector<1x64x192xf32> to vector<64x192xf32>
    %cst_83 = arith.constant dense<0.000000e+00> : vector<384x192xf32>
    %109 = tpu.matmul %106, %108, %cst_83 {dimension_numbers = #tpu.dot_dimension_numbers<[1], [0], [0], [1], [0, 0, 1, 1], [], []>} : vector<384x64xf32>, vector<64x192xf32>, vector<384x192xf32> -> vector<384x192xf32>
    %110 = vector.shape_cast %109 : vector<384x192xf32> to vector<16x24x192xf32>
    %111 = vector.extract_strided_slice %110 {offsets = [0, 0, 0], sizes = [16, 16, 64], strides = [1, 1, 1]} : vector<16x24x192xf32> to vector<16x16x64xf32>
    %112 = arith.addf %104, %111 : vector<16x16x64xf32>
    %113 = vector.extract_strided_slice %110 {offsets = [0, 1, 64], sizes = [16, 16, 64], strides = [1, 1, 1]} : vector<16x24x192xf32> to vector<16x16x64xf32>
    %114 = arith.addf %112, %113 : vector<16x16x64xf32>
    %115 = vector.extract_strided_slice %110 {offsets = [0, 2, 128], sizes = [16, 16, 64], strides = [1, 1, 1]} : vector<16x24x192xf32> to vector<16x16x64xf32>
    %116 = arith.addf %114, %115 : vector<16x16x64xf32>
    %c0_84 = arith.constant 0 : index
    %c0_85 = arith.constant 0 : index
    %117 = vector.load %arg11[%c0_84, %c0_85] : memref<1x64xf32, #tpu.memory_space<vmem>>, vector<1x64xf32>
    %118 = vector.shape_cast %117 : vector<1x64xf32> to vector<64xf32>
    %119 = vector.shape_cast %118 : vector<64xf32> to vector<1x1x64xf32>
    %120 = vector.broadcast %119 : vector<1x1x64xf32> to vector<16x16x64xf32>
    %121 = arith.addf %116, %120 : vector<16x16x64xf32>
    %cst_86 = arith.constant 0.000000e+00 : f32
    %122 = vector.broadcast %cst_86 : f32 to vector<16x16x64xf32>
    %123 = arith.maximumf %121, %122 : vector<16x16x64xf32>
    %c1_87 = arith.constant 1 : index
    %c1_88 = arith.constant 1 : index
    %c0_89 = arith.constant 0 : index
    %124 = vector.load %arg19[%c1_87, %c1_88, %c0_89] : memref<18x24x64xf32, #tpu.memory_space<vmem>>, vector<16x16x64xf32>
    tpu.vector_store %arg19[%c1_87, %c1_88, %c0_89], %123 {strides = array<i32>} : memref<18x24x64xf32, #tpu.memory_space<vmem>>, vector<16x16x64xf32>,
    %c0_90 = arith.constant 0 : index
    %c0_91 = arith.constant 0 : index
    %c0_92 = arith.constant 0 : index
    %125 = vector.load %arg19[%c0_90, %c0_91, %c0_92] : memref<18x24x64xf32, #tpu.memory_space<vmem>>, vector<16x24x64xf32>
    %126 = vector.shape_cast %125 : vector<16x24x64xf32> to vector<384x64xf32>
    %c0_93 = arith.constant 0 : index
    %c0_94 = arith.constant 0 : index
    %c0_95 = arith.constant 0 : index
    %127 = vector.load %arg12[%c0_93, %c0_94, %c0_95] : memref<3x64x192xf32, #tpu.memory_space<vmem>>, vector<1x64x192xf32>
    %128 = vector.shape_cast %127 : vector<1x64x192xf32> to vector<64x192xf32>
    %cst_96 = arith.constant dense<0.000000e+00> : vector<384x192xf32>
    %129 = tpu.matmul %126, %128, %cst_96 {dimension_numbers = #tpu.dot_dimension_numbers<[1], [0], [0], [1], [0, 0, 1, 1], [], []>} : vector<384x64xf32>, vector<64x192xf32>, vector<384x192xf32> -> vector<384x192xf32>
    %130 = vector.shape_cast %129 : vector<384x192xf32> to vector<16x24x192xf32>
    %131 = vector.extract_strided_slice %130 {offsets = [0, 0, 0], sizes = [16, 16, 64], strides = [1, 1, 1]} : vector<16x24x192xf32> to vector<16x16x64xf32>
    %132 = arith.addf %79, %131 : vector<16x16x64xf32>
    %133 = vector.extract_strided_slice %130 {offsets = [0, 1, 64], sizes = [16, 16, 64], strides = [1, 1, 1]} : vector<16x24x192xf32> to vector<16x16x64xf32>
    %134 = arith.addf %132, %133 : vector<16x16x64xf32>
    %135 = vector.extract_strided_slice %130 {offsets = [0, 2, 128], sizes = [16, 16, 64], strides = [1, 1, 1]} : vector<16x24x192xf32> to vector<16x16x64xf32>
    %136 = arith.addf %134, %135 : vector<16x16x64xf32>
    %c1_97 = arith.constant 1 : index
    %c0_98 = arith.constant 0 : index
    %c0_99 = arith.constant 0 : index
    %137 = vector.load %arg19[%c1_97, %c0_98, %c0_99] : memref<18x24x64xf32, #tpu.memory_space<vmem>>, vector<16x24x64xf32>
    %138 = vector.shape_cast %137 : vector<16x24x64xf32> to vector<384x64xf32>
    %c1_100 = arith.constant 1 : index
    %c0_101 = arith.constant 0 : index
    %c0_102 = arith.constant 0 : index
    %139 = vector.load %arg12[%c1_100, %c0_101, %c0_102] : memref<3x64x192xf32, #tpu.memory_space<vmem>>, vector<1x64x192xf32>
    %140 = vector.shape_cast %139 : vector<1x64x192xf32> to vector<64x192xf32>
    %cst_103 = arith.constant dense<0.000000e+00> : vector<384x192xf32>
    %141 = tpu.matmul %138, %140, %cst_103 {dimension_numbers = #tpu.dot_dimension_numbers<[1], [0], [0], [1], [0, 0, 1, 1], [], []>} : vector<384x64xf32>, vector<64x192xf32>, vector<384x192xf32> -> vector<384x192xf32>
    %142 = vector.shape_cast %141 : vector<384x192xf32> to vector<16x24x192xf32>
    %143 = vector.extract_strided_slice %142 {offsets = [0, 0, 0], sizes = [16, 16, 64], strides = [1, 1, 1]} : vector<16x24x192xf32> to vector<16x16x64xf32>
    %144 = arith.addf %136, %143 : vector<16x16x64xf32>
    %145 = vector.extract_strided_slice %142 {offsets = [0, 1, 64], sizes = [16, 16, 64], strides = [1, 1, 1]} : vector<16x24x192xf32> to vector<16x16x64xf32>
    %146 = arith.addf %144, %145 : vector<16x16x64xf32>
    %147 = vector.extract_strided_slice %142 {offsets = [0, 2, 128], sizes = [16, 16, 64], strides = [1, 1, 1]} : vector<16x24x192xf32> to vector<16x16x64xf32>
    %148 = arith.addf %146, %147 : vector<16x16x64xf32>
    %c2_104 = arith.constant 2 : index
    %c0_105 = arith.constant 0 : index
    %c0_106 = arith.constant 0 : index
    %149 = vector.load %arg19[%c2_104, %c0_105, %c0_106] : memref<18x24x64xf32, #tpu.memory_space<vmem>>, vector<16x24x64xf32>
    %150 = vector.shape_cast %149 : vector<16x24x64xf32> to vector<384x64xf32>
    %c2_107 = arith.constant 2 : index
    %c0_108 = arith.constant 0 : index
    %c0_109 = arith.constant 0 : index
    %151 = vector.load %arg12[%c2_107, %c0_108, %c0_109] : memref<3x64x192xf32, #tpu.memory_space<vmem>>, vector<1x64x192xf32>
    %152 = vector.shape_cast %151 : vector<1x64x192xf32> to vector<64x192xf32>
    %cst_110 = arith.constant dense<0.000000e+00> : vector<384x192xf32>
    %153 = tpu.matmul %150, %152, %cst_110 {dimension_numbers = #tpu.dot_dimension_numbers<[1], [0], [0], [1], [0, 0, 1, 1], [], []>} : vector<384x64xf32>, vector<64x192xf32>, vector<384x192xf32> -> vector<384x192xf32>
    %154 = vector.shape_cast %153 : vector<384x192xf32> to vector<16x24x192xf32>
    %155 = vector.extract_strided_slice %154 {offsets = [0, 0, 0], sizes = [16, 16, 64], strides = [1, 1, 1]} : vector<16x24x192xf32> to vector<16x16x64xf32>
    %156 = arith.addf %148, %155 : vector<16x16x64xf32>
    %157 = vector.extract_strided_slice %154 {offsets = [0, 1, 64], sizes = [16, 16, 64], strides = [1, 1, 1]} : vector<16x24x192xf32> to vector<16x16x64xf32>
    %158 = arith.addf %156, %157 : vector<16x16x64xf32>
    %159 = vector.extract_strided_slice %154 {offsets = [0, 2, 128], sizes = [16, 16, 64], strides = [1, 1, 1]} : vector<16x24x192xf32> to vector<16x16x64xf32>
    %160 = arith.addf %158, %159 : vector<16x16x64xf32>
    %c0_111 = arith.constant 0 : index
    %c0_112 = arith.constant 0 : index
    %161 = vector.load %arg13[%c0_111, %c0_112] : memref<1x64xf32, #tpu.memory_space<vmem>>, vector<1x64xf32>
    %162 = vector.shape_cast %161 : vector<1x64xf32> to vector<64xf32>
    %163 = vector.shape_cast %162 : vector<64xf32> to vector<1x1x64xf32>
    %164 = vector.broadcast %163 : vector<1x1x64xf32> to vector<16x16x64xf32>
    %165 = arith.addf %160, %164 : vector<16x16x64xf32>
    %cst_113 = arith.constant 0.000000e+00 : f32
    %166 = vector.broadcast %cst_113 : f32 to vector<16x16x64xf32>
    %167 = arith.maximumf %165, %166 : vector<16x16x64xf32>
    %168 = vector.shape_cast %167 : vector<16x16x64xf32> to vector<256x64xf32>
    %c0_114 = arith.constant 0 : index
    %c0_115 = arith.constant 0 : index
    %169 = vector.load %arg14[%c0_114, %c0_115] : memref<64x64xf32, #tpu.memory_space<vmem>>, vector<64x64xf32>
    %cst_116 = arith.constant dense<0.000000e+00> : vector<256x64xf32>
    %170 = tpu.matmul %168, %169, %cst_116 {dimension_numbers = #tpu.dot_dimension_numbers<[1], [0], [0], [1], [0, 0, 1, 1], [], []>} : vector<256x64xf32>, vector<64x64xf32>, vector<256x64xf32> -> vector<256x64xf32>
    %c0_117 = arith.constant 0 : index
    %c0_118 = arith.constant 0 : index
    %171 = vector.load %arg15[%c0_117, %c0_118] : memref<1x64xf32, #tpu.memory_space<vmem>>, vector<1x64xf32>
    %172 = vector.shape_cast %171 : vector<1x64xf32> to vector<64xf32>
    %173 = vector.shape_cast %172 : vector<64xf32> to vector<1x64xf32>
    %174 = vector.broadcast %173 : vector<1x64xf32> to vector<256x64xf32>
    %175 = arith.addf %170, %174 : vector<256x64xf32>
    %cst_119 = arith.constant 0.000000e+00 : f32
    %176 = vector.broadcast %cst_119 : f32 to vector<256x64xf32>
    %177 = arith.maximumf %175, %176 : vector<256x64xf32>
    %c0_120 = arith.constant 0 : index
    %c0_121 = arith.constant 0 : index
    %178 = vector.load %arg16[%c0_120, %c0_121] : memref<64x8xf32, #tpu.memory_space<vmem>>, vector<64x8xf32>
    %cst_122 = arith.constant dense<0.000000e+00> : vector<256x8xf32>
    %179 = tpu.matmul %177, %178, %cst_122 {dimension_numbers = #tpu.dot_dimension_numbers<[1], [0], [0], [1], [0, 0, 1, 1], [], []>} : vector<256x64xf32>, vector<64x8xf32>, vector<256x8xf32> -> vector<256x8xf32>
    %c0_123 = arith.constant 0 : index
    %c0_124 = arith.constant 0 : index
    %180 = vector.load %arg17[%c0_123, %c0_124] : memref<1x8xf32, #tpu.memory_space<vmem>>, vector<1x8xf32>
    %181 = vector.shape_cast %180 : vector<1x8xf32> to vector<8xf32>
    %182 = vector.shape_cast %181 : vector<8xf32> to vector<1x8xf32>
    %183 = vector.broadcast %182 : vector<1x8xf32> to vector<256x8xf32>
    %184 = arith.addf %179, %183 : vector<256x8xf32>
    %185 = tpu.transpose %184, [1, 0] : vector<256x8xf32> -> vector<8x256xf32>
    %c0_125 = arith.constant 0 : index
    %c0_126 = arith.constant 0 : index
    %c0_127 = arith.constant 0 : index
    %186 = vector.load %arg1[%c0_125, %c0_126, %c0_127] : memref<1x8x256xf32, #tpu.memory_space<vmem>>, vector<1x8x256xf32>
    %187 = vector.shape_cast %186 : vector<1x8x256xf32> to vector<8x256xf32>
    %188 = arith.addf %185, %187 : vector<8x256xf32>
    %c0_128 = arith.constant 0 : index
    %c0_129 = arith.constant 0 : index
    %c0_130 = arith.constant 0 : index
    %189 = vector.load %arg18[%c0_128, %c0_129, %c0_130] : memref<1x8x256xf32, #tpu.memory_space<vmem>>, vector<1x8x256xf32>
    %190 = vector.shape_cast %189 : vector<1x8x256xf32> to vector<8x256xf32>
    %191 = vector.shape_cast %188 : vector<8x256xf32> to vector<1x8x256xf32>
    tpu.vector_store %arg18[%c0_128, %c0_129, %c0_130], %191 {strides = array<i32>} : memref<1x8x256xf32, #tpu.memory_space<vmem>>, vector<1x8x256xf32>,
    return
  }
  func.func @transform_0(%arg0: i32) -> (i32, i32, i32) {
    %c0_i32 = arith.constant 0 : i32
    %c0_i32_0 = arith.constant 0 : i32
    %c0_i32_1 = arith.constant 0 : i32
    return %arg0, %c0_i32, %c0_i32_0 : i32, i32, i32
  }
  func.func @transform_1(%arg0: i32) -> (i32, i32, i32, i32) {
    %c0_i32 = arith.constant 0 : i32
    %c0_i32_0 = arith.constant 0 : i32
    %c0_i32_1 = arith.constant 0 : i32
    %c0_i32_2 = arith.constant 0 : i32
    return %arg0, %c0_i32, %c0_i32_0, %c0_i32_1 : i32, i32, i32, i32
  }
  func.func @transform_2(%arg0: i32) -> (i32, i32) {
    %c0_i32 = arith.constant 0 : i32
    %c0_i32_0 = arith.constant 0 : i32
    %c0_i32_1 = arith.constant 0 : i32
    return %c0_i32, %c0_i32_0 : i32, i32
  }
  func.func @transform_3(%arg0: i32) -> (i32, i32) {
    %c0_i32 = arith.constant 0 : i32
    %c0_i32_0 = arith.constant 0 : i32
    %c0_i32_1 = arith.constant 0 : i32
    return %c0_i32, %c0_i32_0 : i32, i32
  }
  func.func @transform_4(%arg0: i32) -> (i32, i32) {
    %c0_i32 = arith.constant 0 : i32
    %c0_i32_0 = arith.constant 0 : i32
    %c0_i32_1 = arith.constant 0 : i32
    return %c0_i32, %c0_i32_0 : i32, i32
  }
  func.func @transform_5(%arg0: i32) -> (i32, i32) {
    %c0_i32 = arith.constant 0 : i32
    %c0_i32_0 = arith.constant 0 : i32
    %c0_i32_1 = arith.constant 0 : i32
    return %c0_i32, %c0_i32_0 : i32, i32
  }
  func.func @transform_6(%arg0: i32) -> (i32, i32, i32) {
    %c0_i32 = arith.constant 0 : i32
    %c0_i32_0 = arith.constant 0 : i32
    %c0_i32_1 = arith.constant 0 : i32
    %c0_i32_2 = arith.constant 0 : i32
    return %c0_i32, %c0_i32_0, %c0_i32_1 : i32, i32, i32
  }
  func.func @transform_7(%arg0: i32) -> (i32, i32) {
    %c0_i32 = arith.constant 0 : i32
    %c0_i32_0 = arith.constant 0 : i32
    %c0_i32_1 = arith.constant 0 : i32
    return %c0_i32, %c0_i32_0 : i32, i32
  }
  func.func @transform_8(%arg0: i32) -> (i32, i32) {
    %c0_i32 = arith.constant 0 : i32
    %c0_i32_0 = arith.constant 0 : i32
    %c0_i32_1 = arith.constant 0 : i32
    return %c0_i32, %c0_i32_0 : i32, i32
  }
  func.func @transform_9(%arg0: i32) -> (i32, i32, i32) {
    %c0_i32 = arith.constant 0 : i32
    %c0_i32_0 = arith.constant 0 : i32
    %c0_i32_1 = arith.constant 0 : i32
    %c0_i32_2 = arith.constant 0 : i32
    return %c0_i32, %c0_i32_0, %c0_i32_1 : i32, i32, i32
  }
  func.func @transform_10(%arg0: i32) -> (i32, i32) {
    %c0_i32 = arith.constant 0 : i32
    %c0_i32_0 = arith.constant 0 : i32
    %c0_i32_1 = arith.constant 0 : i32
    return %c0_i32, %c0_i32_0 : i32, i32
  }
  func.func @transform_11(%arg0: i32) -> (i32, i32, i32) {
    %c0_i32 = arith.constant 0 : i32
    %c0_i32_0 = arith.constant 0 : i32
    %c0_i32_1 = arith.constant 0 : i32
    %c0_i32_2 = arith.constant 0 : i32
    return %c0_i32, %c0_i32_0, %c0_i32_1 : i32, i32, i32
  }
  func.func @transform_12(%arg0: i32) -> (i32, i32) {
    %c0_i32 = arith.constant 0 : i32
    %c0_i32_0 = arith.constant 0 : i32
    %c0_i32_1 = arith.constant 0 : i32
    return %c0_i32, %c0_i32_0 : i32, i32
  }
  func.func @transform_13(%arg0: i32) -> (i32, i32) {
    %c0_i32 = arith.constant 0 : i32
    %c0_i32_0 = arith.constant 0 : i32
    %c0_i32_1 = arith.constant 0 : i32
    return %c0_i32, %c0_i32_0 : i32, i32
  }
  func.func @transform_14(%arg0: i32) -> (i32, i32) {
    %c0_i32 = arith.constant 0 : i32
    %c0_i32_0 = arith.constant 0 : i32
    %c0_i32_1 = arith.constant 0 : i32
    return %c0_i32, %c0_i32_0 : i32, i32
  }
  func.func @transform_15(%arg0: i32) -> (i32, i32) {
    %c0_i32 = arith.constant 0 : i32
    %c0_i32_0 = arith.constant 0 : i32
    %c0_i32_1 = arith.constant 0 : i32
    return %c0_i32, %c0_i32_0 : i32, i32
  }
  func.func @transform_16(%arg0: i32) -> (i32, i32) {
    %c0_i32 = arith.constant 0 : i32
    %c0_i32_0 = arith.constant 0 : i32
    %c0_i32_1 = arith.constant 0 : i32
    return %c0_i32, %c0_i32_0 : i32, i32
  }
  func.func @transform_17(%arg0: i32) -> (i32, i32, i32) {
    %c0_i32 = arith.constant 0 : i32
    %c0_i32_0 = arith.constant 0 : i32
    %c0_i32_1 = arith.constant 0 : i32
    return %arg0, %c0_i32, %c0_i32_0 : i32, i32, i32
  }
}

</mosaic_0001>

<llo_original>
// kernel: squeeze.3
$region0: #{squeeze.3}
  %s0 = inlined_call_operand.vmem [shape: f32[3,3,64], index: 0, kind: input, shape index: {}]
  %s1 = inlined_call_operand.vmem [shape: f32[9,64], index: 1, kind: output, shape index: {}]
  $region1: #{squeeze.3} parent=0
    #allocation0 [shape = 'u8[12288]{0}', space=vmem, size = 0x3000, scoped, tag = 'scoped mem for input reshape']
    %s3 = sshll.u32 1, 4
    %s4 = ssub.s32 %s3, 1
    %s5 = smul.addr 4, 2
    %s6 = scalar_lea.vmem %s0, %s5
    %v7 = vld [vmem:[%s6] sm:%s4]
    %s8 = scalar_lea.vmem [#allocation0], 16
    %9 = vst [vmem:[%s8] sm:%s4] %v7
    %s10 = scalar_lea.vmem %s0, 4
    %v11 = vld [vmem:[%s10] sm:%s4]
    %s12 = scalar_lea.vmem [#allocation0], 8
    %13 = vst [vmem:[%s12] sm:%s4] %v11
    %v14 = vld [vmem:[%s0] sm:%s4]
    %15 = vst [vmem:[#allocation0] sm:%s4] %v14
    %v16 = vld [vmem:[#allocation0] sm:$0x7]
    %vm17 = vcmask 523264
    %18 = vst.msk [vmem:[%s1] sm:$0x7] %vm17, %v16
    %s19 = scalar_lea.vmem [#allocation0], 8
    %v20 = vld [vmem:[%s19] sm:$0x7]
    %vm21 = vcmask 523264
    %s22 = scalar_lea.vmem %s1, 3
    %23 = vst.msk [vmem:[%s22] sm:$0x7] %vm21, %v20
    %s24 = scalar_lea.vmem [#allocation0], 16
    %v25 = vld [vmem:[%s24] sm:$0x7]
    %vm26 = vcmask 523264
    %s27 = scalar_lea.vmem %s1, 6
    %28 = vst.msk [vmem:[%s27] sm:$0x7] %vm26, %v25

// kernel: hyperpnn_forward.1
$region0: #{hyperpnn_forward.1}
  #allocation0 [shape = 'u32[]', space=smem, size = 0x4, offset = 0x4, fixed_abs, tag = 'smem constant byte address 0x4 - core index']
  #allocation1 [shape = 'u32[144,128]{1,0:T(1,128)}', space=vmem, size = 0x12000, scoped, tag = 'internal scratch']
  #allocation2 [shape = 'f32[18,24,64]{2,1,0:T(8,128)}', space=vmem, size = 0x36000, scoped, tag = 'scratch operand']
  %s0 = inlined_call_operand.vmem [shape: f32[2,8,256], index: 0, kind: input, shape index: {}]
  %s1 = inlined_call_operand.vmem [shape: f32[2,16,16,9], index: 1, kind: input, shape index: {}]
  %s2 = inlined_call_operand.vmem [shape: f32[8,64], index: 2, kind: input, shape index: {}]
  %s3 = inlined_call_operand.vmem [shape: f32[1,64], index: 3, kind: input, shape index: {}]
  %s4 = inlined_call_operand.vmem [shape: f32[64,64], index: 4, kind: input, shape index: {}]
  %s5 = inlined_call_operand.vmem [shape: f32[1,64], index: 5, kind: input, shape index: {}]
  %s6 = inlined_call_operand.vmem [shape: f32[3,64,192], index: 6, kind: input, shape index: {}]
  %s7 = inlined_call_operand.vmem [shape: f32[9,64], index: 7, kind: input, shape index: {}]
  %s8 = inlined_call_operand.vmem [shape: f32[1,64], index: 8, kind: input, shape index: {}]
  %s9 = inlined_call_operand.vmem [shape: f32[3,64,192], index: 9, kind: input, shape index: {}]
  %s10 = inlined_call_operand.vmem [shape: f32[1,64], index: 10, kind: input, shape index: {}]
  %s11 = inlined_call_operand.vmem [shape: f32[3,64,192], index: 11, kind: input, shape index: {}]
  %s12 = inlined_call_operand.vmem [shape: f32[1,64], index: 12, kind: input, shape index: {}]
  %s13 = inlined_call_operand.vmem [shape: f32[64,64], index: 13, kind: input, shape index: {}]
  %s14 = inlined_call_operand.vmem [shape: f32[1,64], index: 14, kind: input, shape index: {}]
  %s15 = inlined_call_operand.vmem [shape: f32[64,8], index: 15, kind: input, shape index: {}]
  %s16 = inlined_call_operand.vmem [shape: f32[1,8], index: 16, kind: input, shape index: {}]
  %s17 = inlined_call_operand.vmem [shape: f32[2,8,256], index: 17, kind: output, shape index: {}]
  %s18 = sld [smem:[#allocation0]]
  $region101: #{hyperpnn_forward.1} parent=0
    _
  %s20 = ssub.s32 1, %s18
  %s21 = scalar_select 0, %s20, %s18
  loop: start=0, step=1, limit=4
  $region2: #{hyperpnn_forward.1} parent=0 // loop_pre_header
    _
  $region3: #{hyperpnn_forward.1} parent=0 // loop_header
    %s23 = sphi 0, %s27
    %p24 = scmp.ge.s32.totalorder %s23, 4
    %s33 = sphi 0, %s35
    %s36 = sphi 0, %s33
    %s37 = sphi 0, %s36
    %s53 = sphi 0, %s37
    %s59 = sphi 0, %s61
    %s62 = sphi 0, %s59
    %s63 = sphi 0, %s62
    %s79 = sphi 0, %s63
    %s83 = sphi 0, %s83
    %s85 = sphi 0, %s83
    %s86 = sphi 0, %s85
    %s100 = sphi 0, %s86
    %s104 = sphi 0, %s104
    %s106 = sphi 0, %s104
    %s107 = sphi 0, %s106
    %s121 = sphi 0, %s107
    %s125 = sphi 0, %s125
    %s127 = sphi 0, %s125
    %s128 = sphi 0, %s127
    %s142 = sphi 0, %s128
    %s146 = sphi 0, %s146
    %s148 = sphi 0, %s146
    %s149 = sphi 0, %s148
    %s163 = sphi 0, %s149
    %s167 = sphi 0, %s167
    %s169 = sphi 0, %s167
    %s170 = sphi 0, %s169
    %s184 = sphi 0, %s170
    %s188 = sphi 0, %s188
    %s190 = sphi 0, %s188
    %s191 = sphi 0, %s190
    %s205 = sphi 0, %s191
    %s209 = sphi 0, %s209
    %s211 = sphi 0, %s209
    %s212 = sphi 0, %s211
    %s226 = sphi 0, %s212
    %s230 = sphi 0, %s230
    %s232 = sphi 0, %s230
    %s233 = sphi 0, %s232
    %s247 = sphi 0, %s233
    %s251 = sphi 0, %s251
    %s253 = sphi 0, %s251
    %s254 = sphi 0, %s253
    %s268 = sphi 0, %s254
    %s272 = sphi 0, %s272
    %s274 = sphi 0, %s272
    %s275 = sphi 0, %s274
    %s289 = sphi 0, %s275
    %s293 = sphi 0, %s293
    %s295 = sphi 0, %s293
    %s296 = sphi 0, %s295
    %s310 = sphi 0, %s296
    %s314 = sphi 0, %s314
    %s316 = sphi 0, %s314
    %s317 = sphi 0, %s316
    %s331 = sphi 0, %s317
    %s335 = sphi 0, %s335
    %s337 = sphi 0, %s335
    %s338 = sphi 0, %s337
    %s352 = sphi 0, %s338
    %s356 = sphi 0, %s356
    %s358 = sphi 0, %s356
    %s359 = sphi 0, %s358
    %s373 = sphi 0, %s359
    %s377 = sphi 0, %s377
    %s379 = sphi 0, %s377
    %s380 = sphi 0, %s379
    %s394 = sphi 0, %s380
    %s400 = sphi 0, %s402
    %s403 = sphi 0, %s400
    %s404 = sphi 0, %s403
    %s420 = sphi 0, %s404
  $region4: #{hyperpnn_forward.1} parent=0 // loop_header_branch
    %26 = sbr.rel (%p24) target = $region8
  $region5: #{hyperpnn_forward.1} parent=0 // loop_body
    %s28 = ssub.s32 %s23, 1
    %s29 = ssub.s32 %s23, 2
    %s30 = sadd.s32 %s23, 1
    %s31 = ssub.s32 %s23, %s30
    %p32 = scmp.eq.s32.totalorder %s31, 0
    %s34 = sadd.s32 %s33, 1
    %s35 = scalar_select %p32, %s33, %s34
    %p38 = pneg %p32
    %p39 = scmp.eq.s32.totalorder %s23, 1
    %p40 = por %p38, %p39
    %p41 = scmp.ne.s32.totalorder %s33, %s36
    %p42 = scmp.eq.s32.totalorder %s23, 0
    %p43 = por %p41, %p42
    %p44 = scmp.ne.s32.totalorder %s33, %s36
    %p45 = scmp.eq.s32.totalorder %s28, 1
    %p46 = por %p44, %p45
    %p47 = scmp.ne.s32.totalorder %s36, %s37
    %p48 = scmp.eq.s32.totalorder %s28, 0
    %p49 = por %p47, %p48
    %p50 = scmp.ne.s32.totalorder %s36, %s37
    %p51 = scmp.eq.s32.totalorder %s29, 1
    %p52 = por %p50, %p51
    %p54 = scmp.ne.s32.totalorder %s37, %s53
    %p55 = scmp.eq.s32.totalorder %s29, 0
    %p56 = por %p54, %p55
    %s57 = ssub.s32 %s23, %s30
    %p58 = scmp.eq.s32.totalorder %s57, 0
    %s60 = sadd.s32 %s59, 1
    %s61 = scalar_select %p58, %s59, %s60
    %p64 = pneg %p58
    %p65 = scmp.eq.s32.totalorder %s23, 1
    %p66 = por %p64, %p65
    %p67 = scmp.ne.s32.totalorder %s59, %s62
    %p68 = scmp.eq.s32.totalorder %s23, 0
    %p69 = por %p67, %p68
    %p70 = scmp.ne.s32.totalorder %s59, %s62
    %p71 = scmp.eq.s32.totalorder %s28, 1
    %p72 = por %p70, %p71
    %p73 = scmp.ne.s32.totalorder %s62, %s63
    %p74 = scmp.eq.s32.totalorder %s28, 0
    %p75 = por %p73, %p74
    %p76 = scmp.ne.s32.totalorder %s62, %s63
    %p77 = scmp.eq.s32.totalorder %s29, 1
    %p78 = por %p76, %p77
    %p80 = scmp.ne.s32.totalorder %s63, %s79
    %p81 = scmp.eq.s32.totalorder %s29, 0
    %p82 = por %p80, %p81
    %s84 = sadd.s32 %s83, 1
    %p87 = scmp.eq.s32.totalorder %s23, 1
    %p88 = scmp.ne.s32.totalorder %s83, %s85
    %p89 = scmp.eq.s32.totalorder %s23, 0
    %p90 = por %p88, %p89
    %p91 = scmp.ne.s32.totalorder %s83, %s85
    %p92 = scmp.eq.s32.totalorder %s28, 1
    %p93 = por %p91, %p92
    %p94 = scmp.ne.s32.totalorder %s85, %s86
    %p95 = scmp.eq.s32.totalorder %s28, 0
    %p96 = por %p94, %p95
    %p97 = scmp.ne.s32.totalorder %s85, %s86
    %p98 = scmp.eq.s32.totalorder %s29, 1
    %p99 = por %p97, %p98
    %p101 = scmp.ne.s32.totalorder %s86, %s100
    %p102 = scmp.eq.s32.totalorder %s29, 0
    %p103 = por %p101, %p102
    %s105 = sadd.s32 %s104, 1
    %p108 = scmp.eq.s32.totalorder %s23, 1
    %p109 = scmp.ne.s32.totalorder %s104, %s106
    %p110 = scmp.eq.s32.totalorder %s23, 0
    %p111 = por %p109, %p110
    %p112 = scmp.ne.s32.totalorder %s104, %s106
    %p113 = scmp.eq.s32.totalorder %s28, 1
    %p114 = por %p112, %p113
    %p115 = scmp.ne.s32.totalorder %s106, %s107
    %p116 = scmp.eq.s32.totalorder %s28, 0
    %p117 = por %p115, %p116
    %p118 = scmp.ne.s32.totalorder %s106, %s107
    %p119 = scmp.eq.s32.totalorder %s29, 1
    %p120 = por %p118, %p119
    %p122 = scmp.ne.s32.totalorder %s107, %s121
    %p123 = scmp.eq.s32.totalorder %s29, 0
    %p124 = por %p122, %p123
    %s126 = sadd.s32 %s125, 1
    %p129 = scmp.eq.s32.totalorder %s23, 1
    %p130 = scmp.ne.s32.totalorder %s125, %s127
    %p131 = scmp.eq.s32.totalorder %s23, 0
    %p132 = por %p130, %p131
    %p133 = scmp.ne.s32.totalorder %s125, %s127
    %p134 = scmp.eq.s32.totalorder %s28, 1
    %p135 = por %p133, %p134
    %p136 = scmp.ne.s32.totalorder %s127, %s128
    %p137 = scmp.eq.s32.totalorder %s28, 0
    %p138 = por %p136, %p137
    %p139 = scmp.ne.s32.totalorder %s127, %s128
    %p140 = scmp.eq.s32.totalorder %s29, 1
    %p141 = por %p139, %p140
    %p143 = scmp.ne.s32.totalorder %s128, %s142
    %p144 = scmp.eq.s32.totalorder %s29, 0
    %p145 = por %p143, %p144
    %s147 = sadd.s32 %s146, 1
    %p150 = scmp.eq.s32.totalorder %s23, 1
    %p151 = scmp.ne.s32.totalorder %s146, %s148
    %p152 = scmp.eq.s32.totalorder %s23, 0
    %p153 = por %p151, %p152
    %p154 = scmp.ne.s32.totalorder %s146, %s148
    %p155 = scmp.eq.s32.totalorder %s28, 1
    %p156 = por %p154, %p155
    %p157 = scmp.ne.s32.totalorder %s148, %s149
    %p158 = scmp.eq.s32.totalorder %s28, 0
    %p159 = por %p157, %p158
    %p160 = scmp.ne.s32.totalorder %s148, %s149
    %p161 = scmp.eq.s32.totalorder %s29, 1
    %p162 = por %p160, %p161
    %p164 = scmp.ne.s32.totalorder %s149, %s163
    %p165 = scmp.eq.s32.totalorder %s29, 0
    %p166 = por %p164, %p165
    %s168 = sadd.s32 %s167, 1
    %p171 = scmp.eq.s32.totalorder %s23, 1
    %p172 = scmp.ne.s32.totalorder %s167, %s169
    %p173 = scmp.eq.s32.totalorder %s23, 0
    %p174 = por %p172, %p173
    %p175 = scmp.ne.s32.totalorder %s167, %s169
    %p176 = scmp.eq.s32.totalorder %s28, 1
    %p177 = por %p175, %p176
    %p178 = scmp.ne.s32.totalorder %s169, %s170
    %p179 = scmp.eq.s32.totalorder %s28, 0
    %p180 = por %p178, %p179
    %p181 = scmp.ne.s32.totalorder %s169, %s170
    %p182 = scmp.eq.s32.totalorder %s29, 1
    %p183 = por %p181, %p182
    %p185 = scmp.ne.s32.totalorder %s170, %s184
    %p186 = scmp.eq.s32.totalorder %s29, 0
    %p187 = por %p185, %p186
    %s189 = sadd.s32 %s188, 1
    %p192 = scmp.eq.s32.totalorder %s23, 1
    %p193 = scmp.ne.s32.totalorder %s188, %s190
    %p194 = scmp.eq.s32.totalorder %s23, 0
    %p195 = por %p193, %p194
    %p196 = scmp.ne.s32.totalorder %s188, %s190
    %p197 = scmp.eq.s32.totalorder %s28, 1
    %p198 = por %p196, %p197
    %p199 = scmp.ne.s32.totalorder %s190, %s191
    %p200 = scmp.eq.s32.totalorder %s28, 0
    %p201 = por %p199, %p200
    %p202 = scmp.ne.s32.totalorder %s190, %s191
    %p203 = scmp.eq.s32.totalorder %s29, 1
    %p204 = por %p202, %p203
    %p206 = scmp.ne.s32.totalorder %s191, %s205
    %p207 = scmp.eq.s32.totalorder %s29, 0
    %p208 = por %p206, %p207
    %s210 = sadd.s32 %s209, 1
    %p213 = scmp.eq.s32.totalorder %s23, 1
    %p214 = scmp.ne.s32.totalorder %s209, %s211
    %p215 = scmp.eq.s32.totalorder %s23, 0
    %p216 = por %p214, %p215
    %p217 = scmp.ne.s32.totalorder %s209, %s211
    %p218 = scmp.eq.s32.totalorder %s28, 1
    %p219 = por %p217, %p218
    %p220 = scmp.ne.s32.totalorder %s211, %s212
    %p221 = scmp.eq.s32.totalorder %s28, 0
    %p222 = por %p220, %p221
    %p223 = scmp.ne.s32.totalorder %s211, %s212
    %p224 = scmp.eq.s32.totalorder %s29, 1
    %p225 = por %p223, %p224
    %p227 = scmp.ne.s32.totalorder %s212, %s226
    %p228 = scmp.eq.s32.totalorder %s29, 0
    %p229 = por %p227, %p228
    %s231 = sadd.s32 %s230, 1
    %p234 = scmp.eq.s32.totalorder %s23, 1
    %p235 = scmp.ne.s32.totalorder %s230, %s232
    %p236 = scmp.eq.s32.totalorder %s23, 0
    %p237 = por %p235, %p236
    %p238 = scmp.ne.s32.totalorder %s230, %s232
    %p239 = scmp.eq.s32.totalorder %s28, 1
    %p240 = por %p238, %p239
    %p241 = scmp.ne.s32.totalorder %s232, %s233
    %p242 = scmp.eq.s32.totalorder %s28, 0
    %p243 = por %p241, %p242
    %p244 = scmp.ne.s32.totalorder %s232, %s233
    %p245 = scmp.eq.s32.totalorder %s29, 1
    %p246 = por %p244, %p245
    %p248 = scmp.ne.s32.totalorder %s233, %s247
    %p249 = scmp.eq.s32.totalorder %s29, 0
    %p250 = por %p248, %p249
    %s252 = sadd.s32 %s251, 1
    %p255 = scmp.eq.s32.totalorder %s23, 1
    %p256 = scmp.ne.s32.totalorder %s251, %s253
    %p257 = scmp.eq.s32.totalorder %s23, 0
    %p258 = por %p256, %p257
    %p259 = scmp.ne.s32.totalorder %s251, %s253
    %p260 = scmp.eq.s32.totalorder %s28, 1
    %p261 = por %p259, %p260
    %p262 = scmp.ne.s32.totalorder %s253, %s254
    %p263 = scmp.eq.s32.totalorder %s28, 0
    %p264 = por %p262, %p263
    %p265 = scmp.ne.s32.totalorder %s253, %s254
    %p266 = scmp.eq.s32.totalorder %s29, 1
    %p267 = por %p265, %p266
    %p269 = scmp.ne.s32.totalorder %s254, %s268
    %p270 = scmp.eq.s32.totalorder %s29, 0
    %p271 = por %p269, %p270
    %s273 = sadd.s32 %s272, 1
    %p276 = scmp.eq.s32.totalorder %s23, 1
    %p277 = scmp.ne.s32.totalorder %s272, %s274
    %p278 = scmp.eq.s32.totalorder %s23, 0
    %p279 = por %p277, %p278
    %p280 = scmp.ne.s32.totalorder %s272, %s274
    %p281 = scmp.eq.s32.totalorder %s28, 1
    %p282 = por %p280, %p281
    %p283 = scmp.ne.s32.totalorder %s274, %s275
    %p284 = scmp.eq.s32.totalorder %s28, 0
    %p285 = por %p283, %p284
    %p286 = scmp.ne.s32.totalorder %s274, %s275
    %p287 = scmp.eq.s32.totalorder %s29, 1
    %p288 = por %p286, %p287
    %p290 = scmp.ne.s32.totalorder %s275, %s289
    %p291 = scmp.eq.s32.totalorder %s29, 0
    %p292 = por %p290, %p291
    %s294 = sadd.s32 %s293, 1
    %p297 = scmp.eq.s32.totalorder %s23, 1
    %p298 = scmp.ne.s32.totalorder %s293, %s295
    %p299 = scmp.eq.s32.totalorder %s23, 0
    %p300 = por %p298, %p299
    %p301 = scmp.ne.s32.totalorder %s293, %s295
    %p302 = scmp.eq.s32.totalorder %s28, 1
    %p303 = por %p301, %p302
    %p304 = scmp.ne.s32.totalorder %s295, %s296
    %p305 = scmp.eq.s32.totalorder %s28, 0
    %p306 = por %p304, %p305
    %p307 = scmp.ne.s32.totalorder %s295, %s296
    %p308 = scmp.eq.s32.totalorder %s29, 1
    %p309 = por %p307, %p308
    %p311 = scmp.ne.s32.totalorder %s296, %s310
    %p312 = scmp.eq.s32.totalorder %s29, 0
    %p313 = por %p311, %p312
    %s315 = sadd.s32 %s314, 1
    %p318 = scmp.eq.s32.totalorder %s23, 1
    %p319 = scmp.ne.s32.totalorder %s314, %s316
    %p320 = scmp.eq.s32.totalorder %s23, 0
    %p321 = por %p319, %p320
    %p322 = scmp.ne.s32.totalorder %s314, %s316
    %p323 = scmp.eq.s32.totalorder %s28, 1
    %p324 = por %p322, %p323
    %p325 = scmp.ne.s32.totalorder %s316, %s317
    %p326 = scmp.eq.s32.totalorder %s28, 0
    %p327 = por %p325, %p326
    %p328 = scmp.ne.s32.totalorder %s316, %s317
    %p329 = scmp.eq.s32.totalorder %s29, 1
    %p330 = por %p328, %p329
    %p332 = scmp.ne.s32.totalorder %s317, %s331
    %p333 = scmp.eq.s32.totalorder %s29, 0
    %p334 = por %p332, %p333
    %s336 = sadd.s32 %s335, 1
    %p339 = scmp.eq.s32.totalorder %s23, 1
    %p340 = scmp.ne.s32.totalorder %s335, %s337
    %p341 = scmp.eq.s32.totalorder %s23, 0
    %p342 = por %p340, %p341
    %p343 = scmp.ne.s32.totalorder %s335, %s337
    %p344 = scmp.eq.s32.totalorder %s28, 1
    %p345 = por %p343, %p344
    %p346 = scmp.ne.s32.totalorder %s337, %s338
    %p347 = scmp.eq.s32.totalorder %s28, 0
    %p348 = por %p346, %p347
    %p349 = scmp.ne.s32.totalorder %s337, %s338
    %p350 = scmp.eq.s32.totalorder %s29, 1
    %p351 = por %p349, %p350
    %p353 = scmp.ne.s32.totalorder %s338, %s352
    %p354 = scmp.eq.s32.totalorder %s29, 0
    %p355 = por %p353, %p354
    %s357 = sadd.s32 %s356, 1
    %p360 = scmp.eq.s32.totalorder %s23, 1
    %p361 = scmp.ne.s32.totalorder %s356, %s358
    %p362 = scmp.eq.s32.totalorder %s23, 0
    %p363 = por %p361, %p362
    %p364 = scmp.ne.s32.totalorder %s356, %s358
    %p365 = scmp.eq.s32.totalorder %s28, 1
    %p366 = por %p364, %p365
    %p367 = scmp.ne.s32.totalorder %s358, %s359
    %p368 = scmp.eq.s32.totalorder %s28, 0
    %p369 = por %p367, %p368
    %p370 = scmp.ne.s32.totalorder %s358, %s359
    %p371 = scmp.eq.s32.totalorder %s29, 1
    %p372 = por %p370, %p371
    %p374 = scmp.ne.s32.totalorder %s359, %s373
    %p375 = scmp.eq.s32.totalorder %s29, 0
    %p376 = por %p374, %p375
    %s378 = sadd.s32 %s377, 1
    %p381 = scmp.eq.s32.totalorder %s23, 1
    %p382 = scmp.ne.s32.totalorder %s377, %s379
    %p383 = scmp.eq.s32.totalorder %s23, 0
    %p384 = por %p382, %p383
    %p385 = scmp.ne.s32.totalorder %s377, %s379
    %p386 = scmp.eq.s32.totalorder %s28, 1
    %p387 = por %p385, %p386
    %p388 = scmp.ne.s32.totalorder %s379, %s380
    %p389 = scmp.eq.s32.totalorder %s28, 0
    %p390 = por %p388, %p389
    %p391 = scmp.ne.s32.totalorder %s379, %s380
    %p392 = scmp.eq.s32.totalorder %s29, 1
    %p393 = por %p391, %p392
    %p395 = scmp.ne.s32.totalorder %s380, %s394
    %p396 = scmp.eq.s32.totalorder %s29, 0
    %p397 = por %p395, %p396
    %s398 = ssub.s32 %s23, %s30
    %p399 = scmp.eq.s32.totalorder %s398, 0
    %s401 = sadd.s32 %s400, 1
    %s402 = scalar_select %p399, %s400, %s401
    %p405 = pneg %p399
    %p406 = scmp.eq.s32.totalorder %s23, 1
    %p407 = por %p405, %p406
    %p408 = scmp.ne.s32.totalorder %s400, %s403
    %p409 = scmp.eq.s32.totalorder %s23, 0
    %p410 = por %p408, %p409
    %p411 = scmp.ne.s32.totalorder %s400, %s403
    %p412 = scmp.eq.s32.totalorder %s28, 1
    %p413 = por %p411, %p412
    %p414 = scmp.ne.s32.totalorder %s403, %s404
    %p415 = scmp.eq.s32.totalorder %s28, 0
    %p416 = por %p414, %p415
    %p417 = scmp.ne.s32.totalorder %s403, %s404
    %p418 = scmp.eq.s32.totalorder %s29, 1
    %p419 = por %p417, %p418
    %p421 = scmp.ne.s32.totalorder %s404, %s420
    %p422 = scmp.eq.s32.totalorder %s29, 0
    %p423 = por %p421, %p422
    %p424 = scmp.le.s32.totalorder 1, %s23
    %p425 = scmp.lt.s32.totalorder %s23, 3
    %p426 = pnand %p424, %p425
    %p427 = pneg %p426
    // Predicated region
    $region9: #{hyperpnn_forward.1} parent=5 // pred_check
      _
    $region10: #{hyperpnn_forward.1} parent=5 // pred_check_branch
      %429 = sbr.rel (%p426) target = $region12
    $region11: #{hyperpnn_forward.1} parent=5 // pred_region
      %s430 = ssub.s32 %s23, 1
      // Predicated region
      $region13: #{hyperpnn_forward.1} parent=11 // pred_check
        %p431 = pneg %p96
      $region14: #{hyperpnn_forward.1} parent=11 // pred_check_branch
        %433 = sbr.rel (%p431) target = $region16
      $region15: #{hyperpnn_forward.1} parent=11 // pred_region
        _
      $region16: #{hyperpnn_forward.1} parent=11 // pred_fallthru
        _
      // Predicated region
      $region17: #{hyperpnn_forward.1} parent=11 // pred_check
        %p434 = pneg %p117
      $region18: #{hyperpnn_forward.1} parent=11 // pred_check_branch
        %436 = sbr.rel (%p434) target = $region20
      $region19: #{hyperpnn_forward.1} parent=11 // pred_region
        _
      $region20: #{hyperpnn_forward.1} parent=11 // pred_fallthru
        _
      // Predicated region
      $region21: #{hyperpnn_forward.1} parent=11 // pred_check
        %p437 = pneg %p138
      $region22: #{hyperpnn_forward.1} parent=11 // pred_check_branch
        %439 = sbr.rel (%p437) target = $region24
      $region23: #{hyperpnn_forward.1} parent=11 // pred_region
        _
      $region24: #{hyperpnn_forward.1} parent=11 // pred_fallthru
        _
      // Predicated region
      $region25: #{hyperpnn_forward.1} parent=11 // pred_check
        %p440 = pneg %p159
      $region26: #{hyperpnn_forward.1} parent=11 // pred_check_branch
        %442 = sbr.rel (%p440) target = $region28
      $region27: #{hyperpnn_forward.1} parent=11 // pred_region
        _
      $region28: #{hyperpnn_forward.1} parent=11 // pred_fallthru
        _
      // Predicated region
      $region29: #{hyperpnn_forward.1} parent=11 // pred_check
        %p443 = pneg %p180
      $region30: #{hyperpnn_forward.1} parent=11 // pred_check_branch
        %445 = sbr.rel (%p443) target = $region32
      $region31: #{hyperpnn_forward.1} parent=11 // pred_region
        _
      $region32: #{hyperpnn_forward.1} parent=11 // pred_fallthru
        _
      // Predicated region
      $region33: #{hyperpnn_forward.1} parent=11 // pred_check
        %p446 = pneg %p201
      $region34: #{hyperpnn_forward.1} parent=11 // pred_check_branch
        %448 = sbr.rel (%p446) target = $region36
      $region35: #{hyperpnn_forward.1} parent=11 // pred_region
        _
      $region36: #{hyperpnn_forward.1} parent=11 // pred_fallthru
        _
      // Predicated region
      $region37: #{hyperpnn_forward.1} parent=11 // pred_check
        %p449 = pneg %p222
      $region38: #{hyperpnn_forward.1} parent=11 // pred_check_branch
        %451 = sbr.rel (%p449) target = $region40
      $region39: #{hyperpnn_forward.1} parent=11 // pred_region
        _
      $region40: #{hyperpnn_forward.1} parent=11 // pred_fallthru
        _
      // Predicated region
      $region41: #{hyperpnn_forward.1} parent=11 // pred_check
        %p452 = pneg %p243
      $region42: #{hyperpnn_forward.1} parent=11 // pred_check_branch
        %454 = sbr.rel (%p452) target = $region44
      $region43: #{hyperpnn_forward.1} parent=11 // pred_region
        _
      $region44: #{hyperpnn_forward.1} parent=11 // pred_fallthru
        _
      // Predicated region
      $region45: #{hyperpnn_forward.1} parent=11 // pred_check
        %p455 = pneg %p264
      $region46: #{hyperpnn_forward.1} parent=11 // pred_check_branch
        %457 = sbr.rel (%p455) target = $region48
      $region47: #{hyperpnn_forward.1} parent=11 // pred_region
        _
      $region48: #{hyperpnn_forward.1} parent=11 // pred_fallthru
        _
      // Predicated region
      $region49: #{hyperpnn_forward.1} parent=11 // pred_check
        %p458 = pneg %p285
      $region50: #{hyperpnn_forward.1} parent=11 // pred_check_branch
        %460 = sbr.rel (%p458) target = $region52
      $region51: #{hyperpnn_forward.1} parent=11 // pred_region
        _
      $region52: #{hyperpnn_forward.1} parent=11 // pred_fallthru
        _
      // Predicated region
      $region53: #{hyperpnn_forward.1} parent=11 // pred_check
        %p461 = pneg %p306
      $region54: #{hyperpnn_forward.1} parent=11 // pred_check_branch
        %463 = sbr.rel (%p461) target = $region56
      $region55: #{hyperpnn_forward.1} parent=11 // pred_region
        _
      $region56: #{hyperpnn_forward.1} parent=11 // pred_fallthru
        _
      // Predicated region
      $region57: #{hyperpnn_forward.1} parent=11 // pred_check
        %p464 = pneg %p327
      $region58: #{hyperpnn_forward.1} parent=11 // pred_check_branch
        %466 = sbr.rel (%p464) target = $region60
      $region59: #{hyperpnn_forward.1} parent=11 // pred_region
        _
      $region60: #{hyperpnn_forward.1} parent=11 // pred_fallthru
        _
      // Predicated region
      $region61: #{hyperpnn_forward.1} parent=11 // pred_check
        %p467 = pneg %p348
      $region62: #{hyperpnn_forward.1} parent=11 // pred_check_branch
        %469 = sbr.rel (%p467) target = $region64
      $region63: #{hyperpnn_forward.1} parent=11 // pred_region
        _
      $region64: #{hyperpnn_forward.1} parent=11 // pred_fallthru
        _
      // Predicated region
      $region65: #{hyperpnn_forward.1} parent=11 // pred_check
        %p470 = pneg %p369
      $region66: #{hyperpnn_forward.1} parent=11 // pred_check_branch
        %472 = sbr.rel (%p470) target = $region68
      $region67: #{hyperpnn_forward.1} parent=11 // pred_region
        _
      $region68: #{hyperpnn_forward.1} parent=11 // pred_fallthru
        _
      // Predicated region
      $region69: #{hyperpnn_forward.1} parent=11 // pred_check
        %p473 = pneg %p390
      $region70: #{hyperpnn_forward.1} parent=11 // pred_check_branch
        %475 = sbr.rel (%p473) target = $region72
      $region71: #{hyperpnn_forward.1} parent=11 // pred_region
        _
      $region72: #{hyperpnn_forward.1} parent=11 // pred_fallthru
        _
    $region12: #{hyperpnn_forward.1} parent=5 // pred_fallthru
      _
    %p476 = scmp.lt.s32.totalorder %s23, 2
    // Predicated region
    $region73: #{hyperpnn_forward.1} parent=5 // pred_check
      %p477 = pneg %p476
    $region74: #{hyperpnn_forward.1} parent=5 // pred_check_branch
      %479 = sbr.rel (%p477) target = $region76
    $region75: #{hyperpnn_forward.1} parent=5 // pred_region
      // Predicated region
      $region77: #{hyperpnn_forward.1} parent=75 // pred_check
        %p480 = pneg %p43
      $region78: #{hyperpnn_forward.1} parent=75 // pred_check_branch
        %482 = sbr.rel (%p480) target = $region80
      $region79: #{hyperpnn_forward.1} parent=75 // pred_region
        %p483 = scmp.lt.s32.totalorder %s23, 1
        %s484 = scalar_select %p483, %s23, 1
        %s485 = smul.addr %s484, 2
        %s486 = smul.addr %s485, 8
        %s487 = scalar_lea.vmem %s0, %s486
      $region80: #{hyperpnn_forward.1} parent=75 // pred_fallthru
        _
      // Predicated region
      $region81: #{hyperpnn_forward.1} parent=75 // pred_check
        %p488 = pneg %p69
      $region82: #{hyperpnn_forward.1} parent=75 // pred_check_branch
        %490 = sbr.rel (%p488) target = $region84
      $region83: #{hyperpnn_forward.1} parent=75 // pred_region
        %p491 = scmp.lt.s32.totalorder %s23, 1
        %s492 = scalar_select %p491, %s23, 1
        %s493 = smul.addr %s492, 32
        %s494 = smul.addr %s493, 8
        %s495 = scalar_lea.vmem %s1, %s494
      $region84: #{hyperpnn_forward.1} parent=75 // pred_fallthru
        _
    $region76: #{hyperpnn_forward.1} parent=5 // pred_fallthru
      _
    %p496 = scmp.le.s32.totalorder 1, %s23
    %p497 = scmp.lt.s32.totalorder %s23, 3
    %p498 = pnand %p496, %p497
    %p499 = pneg %p498
    // Predicated region
    $region85: #{hyperpnn_forward.1} parent=5 // pred_check
      _
    $region86: #{hyperpnn_forward.1} parent=5 // pred_check_branch
      %501 = sbr.rel (%p498) target = $region88
    $region87: #{hyperpnn_forward.1} parent=5 // pred_region
      %s502 = ssub.s32 %s23, 1
      %p503 = scmp.lt.s32.totalorder %s28, 1
      %s504 = scalar_select %p503, %s28, 1
      %s505 = smul.addr %s504, 2
      %s506 = smul.addr %s505, 8
      %s507 = scalar_lea.vmem %s0, %s506
      %p508 = pneg %p49
      %p509 = pneg %p46
      %p510 = scmp.lt.s32.totalorder %s28, 1
      %s511 = scalar_select %p510, %s28, 1
      %s512 = smul.addr %s511, 32
      %s513 = smul.addr %s512, 8
      %s514 = scalar_lea.vmem %s1, %s513
      %p515 = pneg %p75
      %p516 = pneg %p72
      %p517 = pneg %p96
      %p518 = pneg %p93
      %p519 = pneg %p117
      %p520 = pneg %p114
      %p521 = pneg %p138
      %p522 = pneg %p135
      %p523 = pneg %p159
      %p524 = pneg %p156
      %p525 = pneg %p180
      %p526 = pneg %p177
      %p527 = pneg %p201
      %p528 = pneg %p198
      %p529 = pneg %p222
      %p530 = pneg %p219
      %p531 = pneg %p243
      %p532 = pneg %p240
      %p533 = pneg %p264
      %p534 = pneg %p261
      %p535 = pneg %p285
      %p536 = pneg %p282
      %p537 = pneg %p306
      %p538 = pneg %p303
      %p539 = pneg %p327
      %p540 = pneg %p324
      %p541 = pneg %p348
      %p542 = pneg %p345
      %p543 = pneg %p369
      %p544 = pneg %p366
      %p545 = pneg %p390
      %p546 = pneg %p387
      %p547 = pneg %p416
      %p548 = pneg %p413
      %p549 = scmp.lt.s32.totalorder %s28, 1
      %s550 = scalar_select %p549, %s28, 1
      %s551 = smul.addr %s550, 2
      %s552 = smul.addr %s551, 8
      %s553 = scalar_lea.vmem %s17, %s552
      %p554 = scmp.lt.s32.totalorder %s28, 1
      %s555 = scalar_select %p554, %s28, 1
      %s556 = smul.addr %s555, 2
      %s557 = smul.addr %s556, 8
      %s558 = scalar_lea.vmem %s0, %s557
      %p559 = scmp.lt.s32.totalorder %s28, 1
      %s560 = scalar_select %p559, %s28, 1
      %s561 = smul.addr %s560, 32
      %s562 = smul.addr %s561, 8
      %s563 = scalar_lea.vmem %s1, %s562
      %p564 = scmp.lt.s32.totalorder %s28, 1
      %s565 = scalar_select %p564, %s28, 1
      %s566 = smul.addr %s565, 2
      %s567 = smul.addr %s566, 8
      %s568 = scalar_lea.vmem %s17, %s567
      %vm569 = vcmask 523264
      %570 = vst.msk [vmem:[#allocation2] sm:$0xff] %vm569, 0.0
      %571 = vst.msk [vmem:[#allocation2 + $0x8] sm:$0xff] %vm569, 0.0
      %572 = vst.msk [vmem:[#allocation2 + $0x10] sm:$0xff] %vm569, 0.0
      %s573 = scalar_lea.vmem [#allocation2], 408
      %574 = vst.msk [vmem:[%s573] sm:$0xff] %vm569, 0.0
      %575 = vst.msk [vmem:[%s573 + $0x8] sm:$0xff] %vm569, 0.0
      %576 = vst.msk [vmem:[%s573 + $0x10] sm:$0xff] %vm569, 0.0
      %vm577 = vcmask 516096
      %578 = vst.msk [vmem:[#allocation2] sm:$0x1] %vm577, 0.0
      %579 = vst.msk [vmem:[#allocation2 + $0x18] sm:$0x1] %vm577, 0.0
      %580 = vst.msk [vmem:[#allocation2 + $0x30] sm:$0x1] %vm577, 0.0
      %581 = vst.msk [vmem:[#allocation2 + $0x48] sm:$0x1] %vm577, 0.0
      %582 = vst.msk [vmem:[#allocation2 + $0x60] sm:$0x1] %vm577, 0.0
      %583 = vst.msk [vmem:[#allocation2 + $0x78] sm:$0x1] %vm577, 0.0
      %584 = vst.msk [vmem:[#allocation2 + $0x90] sm:$0x1] %vm577, 0.0
      %585 = vst.msk [vmem:[#allocation2 + $0xa8] sm:$0x1] %vm577, 0.0
      %586 = vst.msk [vmem:[#allocation2 + $0xc0] sm:$0x1] %vm577, 0.0
      %587 = vst.msk [vmem:[#allocation2 + $0xd8] sm:$0x1] %vm577, 0.0
      %588 = vst.msk [vmem:[#allocation2 + $0xf0] sm:$0x1] %vm577, 0.0
      %589 = vst.msk [vmem:[#allocation2 + $0x108] sm:$0x1] %vm577, 0.0
      %590 = vst.msk [vmem:[#allocation2 + $0x120] sm:$0x1] %vm577, 0.0
      %591 = vst.msk [vmem:[#allocation2 + $0x138] sm:$0x1] %vm577, 0.0
      %592 = vst.msk [vmem:[#allocation2 + $0x150] sm:$0x1] %vm577, 0.0
      %593 = vst.msk [vmem:[#allocation2 + $0x168] sm:$0x1] %vm577, 0.0
      %594 = vst.msk [vmem:[#allocation2 + $0x180] sm:$0x1] %vm577, 0.0
      %595 = vst.msk [vmem:[#allocation2 + $0x198] sm:$0x1] %vm577, 0.0
      %vm596 = vcmask 522240
      %597 = vst.msk [vmem:[#allocation2 + $0x11] sm:$0x7f] %vm596, 0.0
      %598 = vst.msk [vmem:[#allocation2 + $0x29] sm:$0x7f] %vm596, 0.0
      %599 = vst.msk [vmem:[#allocation2 + $0x41] sm:$0x7f] %vm596, 0.0
      %600 = vst.msk [vmem:[#allocation2 + $0x59] sm:$0x7f] %vm596, 0.0
      %601 = vst.msk [vmem:[#allocation2 + $0x71] sm:$0x7f] %vm596, 0.0
      %602 = vst.msk [vmem:[#allocation2 + $0x89] sm:$0x7f] %vm596, 0.0
      %603 = vst.msk [vmem:[#allocation2 + $0xa1] sm:$0x7f] %vm596, 0.0
      %604 = vst.msk [vmem:[#allocation2 + $0xb9] sm:$0x7f] %vm596, 0.0
      %605 = vst.msk [vmem:[#allocation2 + $0xd1] sm:$0x7f] %vm596, 0.0
      %606 = vst.msk [vmem:[#allocation2 + $0xe9] sm:$0x7f] %vm596, 0.0
      %607 = vst.msk [vmem:[#allocation2 + $0x101] sm:$0x7f] %vm596, 0.0
      %608 = vst.msk [vmem:[#allocation2 + $0x119] sm:$0x7f] %vm596, 0.0
      %609 = vst.msk [vmem:[#allocation2 + $0x131] sm:$0x7f] %vm596, 0.0
      %610 = vst.msk [vmem:[#allocation2 + $0x149] sm:$0x7f] %vm596, 0.0
      %611 = vst.msk [vmem:[#allocation2 + $0x161] sm:$0x7f] %vm596, 0.0
      %612 = vst.msk [vmem:[#allocation2 + $0x179] sm:$0x7f] %vm596, 0.0
      %613 = vst.msk [vmem:[#allocation2 + $0x191] sm:$0x7f] %vm596, 0.0
      %614 = vst.msk [vmem:[#allocation2 + $0x1a9] sm:$0x7f] %vm596, 0.0
      %v615 = vld [vmem:[%s558] sm:$0xff]
      %v616 = vld [vmem:[%s558 + $0x8] sm:$0xff]
      %617 = vxpose.xlu0.b32.start [1/16] %v615, 128
      %618 = vxpose.xlu0.b32.cont [2/16] 0.0, 128
      %619 = vxpose.xlu0.b32.cont [3/16] 0.0, 128
      %620 = vxpose.xlu0.b32.cont [4/16] 0.0, 128
      %621 = vxpose.xlu0.b32.cont [5/16] 0.0, 128
      %622 = vxpose.xlu0.b32.cont [6/16] 0.0, 128
      %623 = vxpose.xlu0.b32.cont [7/16] 0.0, 128
      %624 = vxpose.xlu0.b32.cont [8/16] 0.0, 128
      %625 = vxpose.xlu0.b32.cont [9/16] 0.0, 128
      %626 = vxpose.xlu0.b32.cont [10/16] 0.0, 128
      %627 = vxpose.xlu0.b32.cont [11/16] 0.0, 128
      %628 = vxpose.xlu0.b32.cont [12/16] 0.0, 128
      %629 = vxpose.xlu0.b32.cont [13/16] 0.0, 128
      %630 = vxpose.xlu0.b32.cont [14/16] 0.0, 128
      %631 = vxpose.xlu0.b32.cont [15/16] 0.0, 128
      %632 = vxpose.xlu0.b32.end [16/16] 0.0, 128
      %v633 = vpop.trf.xlu0
      %v634 = vpop.trf.xlu0
      %v635 = vpop.trf.xlu0
      %v636 = vpop.trf.xlu0
      %v637 = vpop.trf.xlu0
      %v638 = vpop.trf.xlu0
      %v639 = vpop.trf.xlu0
      %v640 = vpop.trf.xlu0
      %v641 = vpop.trf.xlu0
      %v642 = vpop.trf.xlu0
      %v643 = vpop.trf.xlu0
      %v644 = vpop.trf.xlu0
      %v645 = vpop.trf.xlu0
      %v646 = vpop.trf.xlu0
      %v647 = vpop.trf.xlu0
      %v648 = vpop.trf.xlu0
      %649 = vxpose.xlu0.b32.start [1/16] %v616, 128
      %650 = vxpose.xlu0.b32.cont [2/16] 0.0, 128
      %651 = vxpose.xlu0.b32.cont [3/16] 0.0, 128
      %652 = vxpose.xlu0.b32.cont [4/16] 0.0, 128
      %653 = vxpose.xlu0.b32.cont [5/16] 0.0, 128
      %654 = vxpose.xlu0.b32.cont [6/16] 0.0, 128
      %655 = vxpose.xlu0.b32.cont [7/16] 0.0, 128
      %656 = vxpose.xlu0.b32.cont [8/16] 0.0, 128
      %657 = vxpose.xlu0.b32.cont [9/16] 0.0, 128
      %658 = vxpose.xlu0.b32.cont [10/16] 0.0, 128
      %659 = vxpose.xlu0.b32.cont [11/16] 0.0, 128
      %660 = vxpose.xlu0.b32.cont [12/16] 0.0, 128
      %661 = vxpose.xlu0.b32.cont [13/16] 0.0, 128
      %662 = vxpose.xlu0.b32.cont [14/16] 0.0, 128
      %663 = vxpose.xlu0.b32.cont [15/16] 0.0, 128
      %664 = vxpose.xlu0.b32.end [16/16] 0.0, 128
      %v665 = vpop.trf.xlu0
      %v666 = vpop.trf.xlu0
      %v667 = vpop.trf.xlu0
      %v668 = vpop.trf.xlu0
      %v669 = vpop.trf.xlu0
      %v670 = vpop.trf.xlu0
      %v671 = vpop.trf.xlu0
      %v672 = vpop.trf.xlu0
      %v673 = vpop.trf.xlu0
      %v674 = vpop.trf.xlu0
      %v675 = vpop.trf.xlu0
      %v676 = vpop.trf.xlu0
      %v677 = vpop.trf.xlu0
      %v678 = vpop.trf.xlu0
      %v679 = vpop.trf.xlu0
      %v680 = vpop.trf.xlu0
      %v681 = vld [vmem:[%s2] sm:$0xff]
      %v682 = vld [vmem:[%s3] sm:$0x1]
      %v684 = vlaneseq
      %v685 = vshrl.u32 %v684, 7
      %v686 = vsub.s32 0, %v685
      %v687 = vrot.slane %v682, %v686
      %vm689 = vcmask 64512
      %v691 = vsel %vm689, %v633, 0
      %v694 = vsel %vm689, %v634, 0
      %v697 = vsel %vm689, %v635, 0
      %v700 = vsel %vm689, %v636, 0
      %v703 = vsel %vm689, %v637, 0
      %v706 = vsel %vm689, %v638, 0
      %v709 = vsel %vm689, %v639, 0
      %v712 = vsel %vm689, %v640, 0
      %v715 = vsel %vm689, %v641, 0
      %v718 = vsel %vm689, %v642, 0
      %v721 = vsel %vm689, %v643, 0
      %v724 = vsel %vm689, %v644, 0
      %v727 = vsel %vm689, %v645, 0
      %v730 = vsel %vm689, %v646, 0
      %v733 = vsel %vm689, %v647, 0
      %v736 = vsel %vm689, %v648, 0
      %v739 = vsel %vm689, %v665, 0
      %v742 = vsel %vm689, %v666, 0
      %v745 = vsel %vm689, %v667, 0
      %v748 = vsel %vm689, %v668, 0
      %v751 = vsel %vm689, %v669, 0
      %v754 = vsel %vm689, %v670, 0
      %v757 = vsel %vm689, %v671, 0
      %v760 = vsel %vm689, %v672, 0
      %v763 = vsel %vm689, %v673, 0
      %v766 = vsel %vm689, %v674, 0
      %v769 = vsel %vm689, %v675, 0
      %v772 = vsel %vm689, %v676, 0
      %v775 = vsel %vm689, %v677, 0
      %v778 = vsel %vm689, %v678, 0
      %v781 = vsel %vm689, %v679, 0
      %v784 = vsel %vm689, %v680, 0
      %786 = vmatprep.subr.mxu0 0.0
      %787 = vmatpush1.msra.mxu0 0.0
      %788 = vmatprep.subr.mxu0 0.0
      %789 = vmatpush1.msra.mxu0 0.0
      %790 = vmatprep.subr.mxu0 0.0
      %791 = vmatpush1.msra.mxu0 0.0
      %792 = vmatprep.subr.mxu0 0.0
      %793 = vmatpush1.msra.mxu0 0.0
      %794 = vmatprep.subr.mxu0 0.0
      %795 = vmatpush1.msra.mxu0 0.0
      %796 = vmatprep.subr.mxu0 0.0
      %797 = vmatpush1.msra.mxu0 0.0
      %798 = vmatprep.subr.mxu0 0.0
      %799 = vmatpush1.msra.mxu0 0.0
      %800 = vmatprep.subr.mxu0 0.0
      %801 = vmatpush1.msra.mxu0 0.0
      %802 = vmatprep.subr.mxu0 0.0
      %803 = vmatpush1.msra.mxu0 0.0
      %804 = vmatprep.subr.mxu0 0.0
      %805 = vmatpush1.msra.mxu0 0.0
      %806 = vmatprep.subr.mxu0 0.0
      %807 = vmatpush1.msra.mxu0 0.0
      %808 = vmatprep.subr.mxu0 0.0
      %809 = vmatpush1.msra.mxu0 0.0
      %810 = vmatprep.subr.mxu0 0.0
      %811 = vmatpush1.msra.mxu0 0.0
      %812 = vmatprep.subr.mxu0 0.0
      %813 = vmatpush1.msra.mxu0 0.0
      %814 = vmatprep.subr.mxu0 0.0
      %815 = vmatpush1.msra.mxu0 0.0
      %816 = vmatprep.subr.mxu0 0.0
      %817 = vmatpush1.msra.mxu0 %v681
      %818 = vmatprep.subr.mxu0 0.0
      %819 = vmatpush2.msra.mxu0 0.0
      %820 = vmatprep.subr.mxu0 0.0
      %821 = vmatpush2.msra.mxu0 0.0
      %822 = vmatprep.subr.mxu0 0.0
      %823 = vmatpush2.msra.mxu0 0.0
      %824 = vmatprep.subr.mxu0 0.0
      %825 = vmatpush2.msra.mxu0 0.0
      %826 = vmatprep.subr.mxu0 0.0
      %827 = vmatpush2.msra.mxu0 0.0
      %828 = vmatprep.subr.mxu0 0.0
      %829 = vmatpush2.msra.mxu0 0.0
      %830 = vmatprep.subr.mxu0 0.0
      %831 = vmatpush2.msra.mxu0 0.0
      %832 = vmatprep.subr.mxu0 0.0
      %833 = vmatpush2.msra.mxu0 0.0
      %834 = vmatprep.subr.mxu0 0.0
      %835 = vmatpush2.msra.mxu0 0.0
      %836 = vmatprep.subr.mxu0 0.0
      %837 = vmatpush2.msra.mxu0 0.0
      %838 = vmatprep.subr.mxu0 0.0
      %839 = vmatpush2.msra.mxu0 0.0
      %840 = vmatprep.subr.mxu0 0.0
      %841 = vmatpush2.msra.mxu0 0.0
      %842 = vmatprep.subr.mxu0 0.0
      %843 = vmatpush2.msra.mxu0 0.0
      %844 = vmatprep.subr.mxu0 0.0
      %845 = vmatpush2.msra.mxu0 0.0
      %846 = vmatprep.subr.mxu0 0.0
      %847 = vmatpush2.msra.mxu0 0.0
      %848 = vmatprep.subr.mxu0 0.0
      %849 = vmatpush2.msra.mxu0 0.0
      %850 = vmatprep.mubr.f32.mxu0 0.0
      %851 = vmatmul.mubr.f32.gmra.mxu0 %v691
      %v852 = vpop.f32.mrf.mxu0
      %v853 = vadd.f32 %v687, %v852
      %v854 = vpop.f32.mrf.mxu0
      %855 = vmatprep.mubr.f32.mxu0 0.0
      %856 = vmatmul.mubr.f32.gmra.mxu0 %v694
      %v857 = vpop.f32.mrf.mxu0
      %v858 = vadd.f32 %v687, %v857
      %v859 = vpop.f32.mrf.mxu0
      %860 = vmatprep.mubr.f32.mxu0 0.0
      %861 = vmatmul.mubr.f32.gmra.mxu0 %v697
      %v862 = vpop.f32.mrf.mxu0
      %v863 = vadd.f32 %v687, %v862
      %v864 = vpop.f32.mrf.mxu0
      %865 = vmatprep.mubr.f32.mxu0 0.0
      %866 = vmatmul.mubr.f32.gmra.mxu0 %v700
      %v867 = vpop.f32.mrf.mxu0
      %v868 = vadd.f32 %v687, %v867
      %v869 = vpop.f32.mrf.mxu0
      %870 = vmatprep.mubr.f32.mxu0 0.0
      %871 = vmatmul.mubr.f32.gmra.mxu0 %v703
      %v872 = vpop.f32.mrf.mxu0
      %v873 = vadd.f32 %v687, %v872
      %v874 = vpop.f32.mrf.mxu0
      %875 = vmatprep.mubr.f32.mxu0 0.0
      %876 = vmatmul.mubr.f32.gmra.mxu0 %v706
      %v877 = vpop.f32.mrf.mxu0
      %v878 = vadd.f32 %v687, %v877
      %v879 = vpop.f32.mrf.mxu0
      %880 = vmatprep.mubr.f32.mxu0 0.0
      %881 = vmatmul.mubr.f32.gmra.mxu0 %v709
      %v882 = vpop.f32.mrf.mxu0
      %v883 = vadd.f32 %v687, %v882
      %v884 = vpop.f32.mrf.mxu0
      %885 = vmatprep.mubr.f32.mxu0 0.0
      %886 = vmatmul.mubr.f32.gmra.mxu0 %v712
      %v887 = vpop.f32.mrf.mxu0
      %v888 = vadd.f32 %v687, %v887
      %v889 = vpop.f32.mrf.mxu0
      %890 = vmatprep.mubr.f32.mxu0 0.0
      %891 = vmatmul.mubr.f32.gmra.mxu0 %v715
      %v892 = vpop.f32.mrf.mxu0
      %v893 = vadd.f32 %v687, %v892
      %v894 = vpop.f32.mrf.mxu0
      %895 = vmatprep.mubr.f32.mxu0 0.0
      %896 = vmatmul.mubr.f32.gmra.mxu0 %v718
      %v897 = vpop.f32.mrf.mxu0
      %v898 = vadd.f32 %v687, %v897
      %v899 = vpop.f32.mrf.mxu0
      %900 = vmatprep.mubr.f32.mxu0 0.0
      %901 = vmatmul.mubr.f32.gmra.mxu0 %v721
      %v902 = vpop.f32.mrf.mxu0
      %v903 = vadd.f32 %v687, %v902
      %v904 = vpop.f32.mrf.mxu0
      %905 = vmatprep.mubr.f32.mxu0 0.0
      %906 = vmatmul.mubr.f32.gmra.mxu0 %v724
      %v907 = vpop.f32.mrf.mxu0
      %v908 = vadd.f32 %v687, %v907
      %v909 = vpop.f32.mrf.mxu0
      %910 = vmatprep.mubr.f32.mxu0 0.0
      %911 = vmatmul.mubr.f32.gmra.mxu0 %v727
      %v912 = vpop.f32.mrf.mxu0
      %v913 = vadd.f32 %v687, %v912
      %v914 = vpop.f32.mrf.mxu0
      %915 = vmatprep.mubr.f32.mxu0 0.0
      %916 = vmatmul.mubr.f32.gmra.mxu0 %v730
      %v917 = vpop.f32.mrf.mxu0
      %v918 = vadd.f32 %v687, %v917
      %v919 = vpop.f32.mrf.mxu0
      %920 = vmatprep.mubr.f32.mxu0 0.0
      %921 = vmatmul.mubr.f32.gmra.mxu0 %v733
      %v922 = vpop.f32.mrf.mxu0
      %v923 = vadd.f32 %v687, %v922
      %v924 = vpop.f32.mrf.mxu0
      %925 = vmatprep.mubr.f32.mxu0 0.0
      %926 = vmatmul.mubr.f32.gmra.mxu0 %v736
      %v927 = vpop.f32.mrf.mxu0
      %v928 = vadd.f32 %v687, %v927
      %v929 = vpop.f32.mrf.mxu0
      %930 = vmatprep.mubr.f32.mxu0 0.0
      %931 = vmatmul.mubr.f32.gmra.mxu0 %v739
      %v932 = vpop.f32.mrf.mxu0
      %v933 = vadd.f32 %v687, %v932
      %v934 = vpop.f32.mrf.mxu0
      %935 = vmatprep.mubr.f32.mxu0 0.0
      %936 = vmatmul.mubr.f32.gmra.mxu0 %v742
      %v937 = vpop.f32.mrf.mxu0
      %v938 = vadd.f32 %v687, %v937
      %v939 = vpop.f32.mrf.mxu0
      %940 = vmatprep.mubr.f32.mxu0 0.0
      %941 = vmatmul.mubr.f32.gmra.mxu0 %v745
      %v942 = vpop.f32.mrf.mxu0
      %v943 = vadd.f32 %v687, %v942
      %v944 = vpop.f32.mrf.mxu0
      %945 = vmatprep.mubr.f32.mxu0 0.0
      %946 = vmatmul.mubr.f32.gmra.mxu0 %v748
      %v947 = vpop.f32.mrf.mxu0
      %v948 = vadd.f32 %v687, %v947
      %v949 = vpop.f32.mrf.mxu0
      %950 = vmatprep.mubr.f32.mxu0 0.0
      %951 = vmatmul.mubr.f32.gmra.mxu0 %v751
      %v952 = vpop.f32.mrf.mxu0
      %v953 = vadd.f32 %v687, %v952
      %v954 = vpop.f32.mrf.mxu0
      %955 = vmatprep.mubr.f32.mxu0 0.0
      %956 = vmatmul.mubr.f32.gmra.mxu0 %v754
      %v957 = vpop.f32.mrf.mxu0
      %v958 = vadd.f32 %v687, %v957
      %v959 = vpop.f32.mrf.mxu0
      %960 = vmatprep.mubr.f32.mxu0 0.0
      %961 = vmatmul.mubr.f32.gmra.mxu0 %v757
      %v962 = vpop.f32.mrf.mxu0
      %v963 = vadd.f32 %v687, %v962
      %v964 = vpop.f32.mrf.mxu0
      %965 = vmatprep.mubr.f32.mxu0 0.0
      %966 = vmatmul.mubr.f32.gmra.mxu0 %v760
      %v967 = vpop.f32.mrf.mxu0
      %v968 = vadd.f32 %v687, %v967
      %v969 = vpop.f32.mrf.mxu0
      %970 = vmatprep.mubr.f32.mxu0 0.0
      %971 = vmatmul.mubr.f32.gmra.mxu0 %v763
      %v972 = vpop.f32.mrf.mxu0
      %v973 = vadd.f32 %v687, %v972
      %v974 = vpop.f32.mrf.mxu0
      %975 = vmatprep.mubr.f32.mxu0 0.0
      %976 = vmatmul.mubr.f32.gmra.mxu0 %v766
      %v977 = vpop.f32.mrf.mxu0
      %v978 = vadd.f32 %v687, %v977
      %v979 = vpop.f32.mrf.mxu0
      %980 = vmatprep.mubr.f32.mxu0 0.0
      %981 = vmatmul.mubr.f32.gmra.mxu0 %v769
      %v982 = vpop.f32.mrf.mxu0
      %v983 = vadd.f32 %v687, %v982
      %v984 = vpop.f32.mrf.mxu0
      %985 = vmatprep.mubr.f32.mxu0 0.0
      %986 = vmatmul.mubr.f32.gmra.mxu0 %v772
      %v987 = vpop.f32.mrf.mxu0
      %v988 = vadd.f32 %v687, %v987
      %v989 = vpop.f32.mrf.mxu0
      %990 = vmatprep.mubr.f32.mxu0 0.0
      %991 = vmatmul.mubr.f32.gmra.mxu0 %v775
      %v992 = vpop.f32.mrf.mxu0
      %v993 = vadd.f32 %v687, %v992
      %v994 = vpop.f32.mrf.mxu0
      %995 = vmatprep.mubr.f32.mxu0 0.0
      %996 = vmatmul.mubr.f32.gmra.mxu0 %v778
      %v997 = vpop.f32.mrf.mxu0
      %v998 = vadd.f32 %v687, %v997
      %v999 = vpop.f32.mrf.mxu0
      %1000 = vmatprep.mubr.f32.mxu0 0.0
      %1001 = vmatmul.mubr.f32.gmra.mxu0 %v781
      %v1002 = vpop.f32.mrf.mxu0
      %v1003 = vadd.f32 %v687, %v1002
      %v1004 = vpop.f32.mrf.mxu0
      %1005 = vmatprep.mubr.f32.mxu0 0.0
      %1006 = vmatmul.mubr.f32.gmra.mxu0 %v784
      %v1007 = vpop.f32.mrf.mxu0
      %v1008 = vadd.f32 %v687, %v1007
      %v1009 = vpop.f32.mrf.mxu0
      %1010 = vdwg.mxu0
      %v1011 = vmax.f32 %v853, 0.0
      %v1012 = vmax.f32 %v858, 0.0
      %v1013 = vmax.f32 %v863, 0.0
      %v1014 = vmax.f32 %v868, 0.0
      %v1015 = vmax.f32 %v873, 0.0
      %v1016 = vmax.f32 %v878, 0.0
      %v1017 = vmax.f32 %v883, 0.0
      %v1018 = vmax.f32 %v888, 0.0
      %v1019 = vmax.f32 %v893, 0.0
      %v1020 = vmax.f32 %v898, 0.0
      %v1021 = vmax.f32 %v903, 0.0
      %v1022 = vmax.f32 %v908, 0.0
      %v1023 = vmax.f32 %v913, 0.0
      %v1024 = vmax.f32 %v918, 0.0
      %v1025 = vmax.f32 %v923, 0.0
      %v1026 = vmax.f32 %v928, 0.0
      %v1027 = vmax.f32 %v933, 0.0
      %v1028 = vmax.f32 %v938, 0.0
      %v1029 = vmax.f32 %v943, 0.0
      %v1030 = vmax.f32 %v948, 0.0
      %v1031 = vmax.f32 %v953, 0.0
      %v1032 = vmax.f32 %v958, 0.0
      %v1033 = vmax.f32 %v963, 0.0
      %v1034 = vmax.f32 %v968, 0.0
      %v1035 = vmax.f32 %v973, 0.0
      %v1036 = vmax.f32 %v978, 0.0
      %v1037 = vmax.f32 %v983, 0.0
      %v1038 = vmax.f32 %v988, 0.0
      %v1039 = vmax.f32 %v993, 0.0
      %v1040 = vmax.f32 %v998, 0.0
      %v1041 = vmax.f32 %v1003, 0.0
      %v1042 = vmax.f32 %v1008, 0.0
      %v1043 = vld [vmem:[%s4] sm:$0xff]
      %v1044 = vld [vmem:[%s4 + $0x8] sm:$0xff]
      %v1045 = vld [vmem:[%s4 + $0x10] sm:$0xff]
      %v1046 = vld [vmem:[%s4 + $0x18] sm:$0xff]
      %v1047 = vld [vmem:[%s4 + $0x20] sm:$0xff]
      %v1048 = vld [vmem:[%s4 + $0x28] sm:$0xff]
      %v1049 = vld [vmem:[%s4 + $0x30] sm:$0xff]
      %v1050 = vld [vmem:[%s4 + $0x38] sm:$0xff]
      %v1051 = vld [vmem:[%s5] sm:$0x1]
      %v1053 = vlaneseq
      %v1054 = vshrl.u32 %v1053, 7
      %v1055 = vsub.s32 0, %v1054
      %v1056 = vrot.slane %v1051, %v1055
      %v1059 = vsel %vm569, %v1011, 0
      %v1062 = vsel %vm569, %v1012, 0
      %v1065 = vsel %vm569, %v1013, 0
      %v1068 = vsel %vm569, %v1014, 0
      %v1071 = vsel %vm569, %v1015, 0
      %v1074 = vsel %vm569, %v1016, 0
      %v1077 = vsel %vm569, %v1017, 0
      %v1080 = vsel %vm569, %v1018, 0
      %v1083 = vsel %vm569, %v1019, 0
      %v1086 = vsel %vm569, %v1020, 0
      %v1089 = vsel %vm569, %v1021, 0
      %v1092 = vsel %vm569, %v1022, 0
      %v1095 = vsel %vm569, %v1023, 0
      %v1098 = vsel %vm569, %v1024, 0
      %v1101 = vsel %vm569, %v1025, 0
      %v1104 = vsel %vm569, %v1026, 0
      %v1107 = vsel %vm569, %v1027, 0
      %v1110 = vsel %vm569, %v1028, 0
      %v1113 = vsel %vm569, %v1029, 0
      %v1116 = vsel %vm569, %v1030, 0
      %v1119 = vsel %vm569, %v1031, 0
      %v1122 = vsel %vm569, %v1032, 0
      %v1125 = vsel %vm569, %v1033, 0
      %v1128 = vsel %vm569, %v1034, 0
      %v1131 = vsel %vm569, %v1035, 0
      %v1134 = vsel %vm569, %v1036, 0
      %v1137 = vsel %vm569, %v1037, 0
      %v1140 = vsel %vm569, %v1038, 0
      %v1143 = vsel %vm569, %v1039, 0
      %v1146 = vsel %vm569, %v1040, 0
      %v1149 = vsel %vm569, %v1041, 0
      %v1152 = vsel %vm569, %v1042, 0
      %1154 = vmatprep.subr.mxu0 0.0
      %1155 = vmatpush1.msra.mxu0 0.0
      %1156 = vmatprep.subr.mxu0 0.0
      %1157 = vmatpush1.msra.mxu0 0.0
      %1158 = vmatprep.subr.mxu0 0.0
      %1159 = vmatpush1.msra.mxu0 0.0
      %1160 = vmatprep.subr.mxu0 0.0
      %1161 = vmatpush1.msra.mxu0 0.0
      %1162 = vmatprep.subr.mxu0 0.0
      %1163 = vmatpush1.msra.mxu0 0.0
      %1164 = vmatprep.subr.mxu0 0.0
      %1165 = vmatpush1.msra.mxu0 0.0
      %1166 = vmatprep.subr.mxu0 0.0
      %1167 = vmatpush1.msra.mxu0 0.0
      %1168 = vmatprep.subr.mxu0 0.0
      %1169 = vmatpush1.msra.mxu0 0.0
      %1170 = vmatprep.subr.mxu0 0.0
      %1171 = vmatpush1.msra.mxu0 %v1050
      %1172 = vmatprep.subr.mxu0 0.0
      %1173 = vmatpush1.msra.mxu0 %v1049
      %1174 = vmatprep.subr.mxu0 0.0
      %1175 = vmatpush1.msra.mxu0 %v1048
      %1176 = vmatprep.subr.mxu0 0.0
      %1177 = vmatpush1.msra.mxu0 %v1047
      %1178 = vmatprep.subr.mxu0 0.0
      %1179 = vmatpush1.msra.mxu0 %v1046
      %1180 = vmatprep.subr.mxu0 0.0
      %1181 = vmatpush1.msra.mxu0 %v1045
      %1182 = vmatprep.subr.mxu0 0.0
      %1183 = vmatpush1.msra.mxu0 %v1044
      %1184 = vmatprep.subr.mxu0 0.0
      %1185 = vmatpush1.msra.mxu0 %v1043
      %1186 = vmatprep.subr.mxu0 0.0
      %1187 = vmatpush2.msra.mxu0 0.0
      %1188 = vmatprep.subr.mxu0 0.0
      %1189 = vmatpush2.msra.mxu0 0.0
      %1190 = vmatprep.subr.mxu0 0.0
      %1191 = vmatpush2.msra.mxu0 0.0
      %1192 = vmatprep.subr.mxu0 0.0
      %1193 = vmatpush2.msra.mxu0 0.0
      %1194 = vmatprep.subr.mxu0 0.0
      %1195 = vmatpush2.msra.mxu0 0.0
      %1196 = vmatprep.subr.mxu0 0.0
      %1197 = vmatpush2.msra.mxu0 0.0
      %1198 = vmatprep.subr.mxu0 0.0
      %1199 = vmatpush2.msra.mxu0 0.0
      %1200 = vmatprep.subr.mxu0 0.0
      %1201 = vmatpush2.msra.mxu0 0.0
      %1202 = vmatprep.subr.mxu0 0.0
      %1203 = vmatpush2.msra.mxu0 0.0
      %1204 = vmatprep.subr.mxu0 0.0
      %1205 = vmatpush2.msra.mxu0 0.0
      %1206 = vmatprep.subr.mxu0 0.0
      %1207 = vmatpush2.msra.mxu0 0.0
      %1208 = vmatprep.subr.mxu0 0.0
      %1209 = vmatpush2.msra.mxu0 0.0
      %1210 = vmatprep.subr.mxu0 0.0
      %1211 = vmatpush2.msra.mxu0 0.0
      %1212 = vmatprep.subr.mxu0 0.0
      %1213 = vmatpush2.msra.mxu0 0.0
      %1214 = vmatprep.subr.mxu0 0.0
      %1215 = vmatpush2.msra.mxu0 0.0
      %1216 = vmatprep.subr.mxu0 0.0
      %1217 = vmatpush2.msra.mxu0 0.0
      %1218 = vmatprep.mubr.f32.mxu0 0.0
      %1219 = vmatmul.mubr.f32.gmra.mxu0 %v1059
      %v1220 = vpop.f32.mrf.mxu0
      %v1221 = vadd.f32 %v1056, %v1220
      %v1222 = vpop.f32.mrf.mxu0
      %1223 = vmatprep.mubr.f32.mxu0 0.0
      %1224 = vmatmul.mubr.f32.gmra.mxu0 %v1062
      %v1225 = vpop.f32.mrf.mxu0
      %v1226 = vadd.f32 %v1056, %v1225
      %v1227 = vpop.f32.mrf.mxu0
      %1228 = vmatprep.mubr.f32.mxu0 0.0
      %1229 = vmatmul.mubr.f32.gmra.mxu0 %v1065
      %v1230 = vpop.f32.mrf.mxu0
      %v1231 = vadd.f32 %v1056, %v1230
      %v1232 = vpop.f32.mrf.mxu0
      %1233 = vmatprep.mubr.f32.mxu0 0.0
      %1234 = vmatmul.mubr.f32.gmra.mxu0 %v1068
      %v1235 = vpop.f32.mrf.mxu0
      %v1236 = vadd.f32 %v1056, %v1235
      %v1237 = vpop.f32.mrf.mxu0
      %1238 = vmatprep.mubr.f32.mxu0 0.0
      %1239 = vmatmul.mubr.f32.gmra.mxu0 %v1071
      %v1240 = vpop.f32.mrf.mxu0
      %v1241 = vadd.f32 %v1056, %v1240
      %v1242 = vpop.f32.mrf.mxu0
      %1243 = vmatprep.mubr.f32.mxu0 0.0
      %1244 = vmatmul.mubr.f32.gmra.mxu0 %v1074
      %v1245 = vpop.f32.mrf.mxu0
      %v1246 = vadd.f32 %v1056, %v1245
      %v1247 = vpop.f32.mrf.mxu0
      %1248 = vmatprep.mubr.f32.mxu0 0.0
      %1249 = vmatmul.mubr.f32.gmra.mxu0 %v1077
      %v1250 = vpop.f32.mrf.mxu0
      %v1251 = vadd.f32 %v1056, %v1250
      %v1252 = vpop.f32.mrf.mxu0
      %1253 = vmatprep.mubr.f32.mxu0 0.0
      %1254 = vmatmul.mubr.f32.gmra.mxu0 %v1080
      %v1255 = vpop.f32.mrf.mxu0
      %v1256 = vadd.f32 %v1056, %v1255
      %v1257 = vpop.f32.mrf.mxu0
      %1258 = vmatprep.mubr.f32.mxu0 0.0
      %1259 = vmatmul.mubr.f32.gmra.mxu0 %v1083
      %v1260 = vpop.f32.mrf.mxu0
      %v1261 = vadd.f32 %v1056, %v1260
      %v1262 = vpop.f32.mrf.mxu0
      %1263 = vmatprep.mubr.f32.mxu0 0.0
      %1264 = vmatmul.mubr.f32.gmra.mxu0 %v1086
      %v1265 = vpop.f32.mrf.mxu0
      %v1266 = vadd.f32 %v1056, %v1265
      %v1267 = vpop.f32.mrf.mxu0
      %1268 = vmatprep.mubr.f32.mxu0 0.0
      %1269 = vmatmul.mubr.f32.gmra.mxu0 %v1089
      %v1270 = vpop.f32.mrf.mxu0
      %v1271 = vadd.f32 %v1056, %v1270
      %v1272 = vpop.f32.mrf.mxu0
      %1273 = vmatprep.mubr.f32.mxu0 0.0
      %1274 = vmatmul.mubr.f32.gmra.mxu0 %v1092
      %v1275 = vpop.f32.mrf.mxu0
      %v1276 = vadd.f32 %v1056, %v1275
      %v1277 = vpop.f32.mrf.mxu0
      %1278 = vmatprep.mubr.f32.mxu0 0.0
      %1279 = vmatmul.mubr.f32.gmra.mxu0 %v1095
      %v1280 = vpop.f32.mrf.mxu0
      %v1281 = vadd.f32 %v1056, %v1280
      %v1282 = vpop.f32.mrf.mxu0
      %1283 = vmatprep.mubr.f32.mxu0 0.0
      %1284 = vmatmul.mubr.f32.gmra.mxu0 %v1098
      %v1285 = vpop.f32.mrf.mxu0
      %v1286 = vadd.f32 %v1056, %v1285
      %v1287 = vpop.f32.mrf.mxu0
      %1288 = vmatprep.mubr.f32.mxu0 0.0
      %1289 = vmatmul.mubr.f32.gmra.mxu0 %v1101
      %v1290 = vpop.f32.mrf.mxu0
      %v1291 = vadd.f32 %v1056, %v1290
      %v1292 = vpop.f32.mrf.mxu0
      %1293 = vmatprep.mubr.f32.mxu0 0.0
      %1294 = vmatmul.mubr.f32.gmra.mxu0 %v1104
      %v1295 = vpop.f32.mrf.mxu0
      %v1296 = vadd.f32 %v1056, %v1295
      %v1297 = vpop.f32.mrf.mxu0
      %1298 = vmatprep.mubr.f32.mxu0 0.0
      %1299 = vmatmul.mubr.f32.gmra.mxu0 %v1107
      %v1300 = vpop.f32.mrf.mxu0
      %v1301 = vadd.f32 %v1056, %v1300
      %v1302 = vpop.f32.mrf.mxu0
      %1303 = vmatprep.mubr.f32.mxu0 0.0
      %1304 = vmatmul.mubr.f32.gmra.mxu0 %v1110
      %v1305 = vpop.f32.mrf.mxu0
      %v1306 = vadd.f32 %v1056, %v1305
      %v1307 = vpop.f32.mrf.mxu0
      %1308 = vmatprep.mubr.f32.mxu0 0.0
      %1309 = vmatmul.mubr.f32.gmra.mxu0 %v1113
      %v1310 = vpop.f32.mrf.mxu0
      %v1311 = vadd.f32 %v1056, %v1310
      %v1312 = vpop.f32.mrf.mxu0
      %1313 = vmatprep.mubr.f32.mxu0 0.0
      %1314 = vmatmul.mubr.f32.gmra.mxu0 %v1116
      %v1315 = vpop.f32.mrf.mxu0
      %v1316 = vadd.f32 %v1056, %v1315
      %v1317 = vpop.f32.mrf.mxu0
      %1318 = vmatprep.mubr.f32.mxu0 0.0
      %1319 = vmatmul.mubr.f32.gmra.mxu0 %v1119
      %v1320 = vpop.f32.mrf.mxu0
      %v1321 = vadd.f32 %v1056, %v1320
      %v1322 = vpop.f32.mrf.mxu0
      %1323 = vmatprep.mubr.f32.mxu0 0.0
      %1324 = vmatmul.mubr.f32.gmra.mxu0 %v1122
      %v1325 = vpop.f32.mrf.mxu0
      %v1326 = vadd.f32 %v1056, %v1325
      %v1327 = vpop.f32.mrf.mxu0
      %1328 = vmatprep.mubr.f32.mxu0 0.0
      %1329 = vmatmul.mubr.f32.gmra.mxu0 %v1125
      %v1330 = vpop.f32.mrf.mxu0
      %v1331 = vadd.f32 %v1056, %v1330
      %v1332 = vpop.f32.mrf.mxu0
      %1333 = vmatprep.mubr.f32.mxu0 0.0
      %1334 = vmatmul.mubr.f32.gmra.mxu0 %v1128
      %v1335 = vpop.f32.mrf.mxu0
      %v1336 = vadd.f32 %v1056, %v1335
      %v1337 = vpop.f32.mrf.mxu0
      %1338 = vmatprep.mubr.f32.mxu0 0.0
      %1339 = vmatmul.mubr.f32.gmra.mxu0 %v1131
      %v1340 = vpop.f32.mrf.mxu0
      %v1341 = vadd.f32 %v1056, %v1340
      %v1342 = vpop.f32.mrf.mxu0
      %1343 = vmatprep.mubr.f32.mxu0 0.0
      %1344 = vmatmul.mubr.f32.gmra.mxu0 %v1134
      %v1345 = vpop.f32.mrf.mxu0
      %v1346 = vadd.f32 %v1056, %v1345
      %v1347 = vpop.f32.mrf.mxu0
      %1348 = vmatprep.mubr.f32.mxu0 0.0
      %1349 = vmatmul.mubr.f32.gmra.mxu0 %v1137
      %v1350 = vpop.f32.mrf.mxu0
      %v1351 = vadd.f32 %v1056, %v1350
      %v1352 = vpop.f32.mrf.mxu0
      %1353 = vmatprep.mubr.f32.mxu0 0.0
      %1354 = vmatmul.mubr.f32.gmra.mxu0 %v1140
      %v1355 = vpop.f32.mrf.mxu0
      %v1356 = vadd.f32 %v1056, %v1355
      %v1357 = vpop.f32.mrf.mxu0
      %1358 = vmatprep.mubr.f32.mxu0 0.0
      %1359 = vmatmul.mubr.f32.gmra.mxu0 %v1143
      %v1360 = vpop.f32.mrf.mxu0
      %v1361 = vadd.f32 %v1056, %v1360
      %v1362 = vpop.f32.mrf.mxu0
      %1363 = vmatprep.mubr.f32.mxu0 0.0
      %1364 = vmatmul.mubr.f32.gmra.mxu0 %v1146
      %v1365 = vpop.f32.mrf.mxu0
      %v1366 = vadd.f32 %v1056, %v1365
      %v1367 = vpop.f32.mrf.mxu0
      %1368 = vmatprep.mubr.f32.mxu0 0.0
      %1369 = vmatmul.mubr.f32.gmra.mxu0 %v1149
      %v1370 = vpop.f32.mrf.mxu0
      %v1371 = vadd.f32 %v1056, %v1370
      %v1372 = vpop.f32.mrf.mxu0
      %1373 = vmatprep.mubr.f32.mxu0 0.0
      %1374 = vmatmul.mubr.f32.gmra.mxu0 %v1152
      %v1375 = vpop.f32.mrf.mxu0
      %v1376 = vadd.f32 %v1056, %v1375
      %v1377 = vpop.f32.mrf.mxu0
      %1378 = vdwg.mxu0
      %v1379 = vmax.f32 %v1221, 0.0
      %v1380 = vmax.f32 %v1226, 0.0
      %v1381 = vmax.f32 %v1231, 0.0
      %v1382 = vmax.f32 %v1236, 0.0
      %v1383 = vmax.f32 %v1241, 0.0
      %v1384 = vmax.f32 %v1246, 0.0
      %v1385 = vmax.f32 %v1251, 0.0
      %v1386 = vmax.f32 %v1256, 0.0
      %v1387 = vmax.f32 %v1261, 0.0
      %v1388 = vmax.f32 %v1266, 0.0
      %v1389 = vmax.f32 %v1271, 0.0
      %v1390 = vmax.f32 %v1276, 0.0
      %v1391 = vmax.f32 %v1281, 0.0
      %v1392 = vmax.f32 %v1286, 0.0
      %v1393 = vmax.f32 %v1291, 0.0
      %v1394 = vmax.f32 %v1296, 0.0
      %v1395 = vmax.f32 %v1301, 0.0
      %v1396 = vmax.f32 %v1306, 0.0
      %v1397 = vmax.f32 %v1311, 0.0
      %v1398 = vmax.f32 %v1316, 0.0
      %v1399 = vmax.f32 %v1321, 0.0
      %v1400 = vmax.f32 %v1326, 0.0
      %v1401 = vmax.f32 %v1331, 0.0
      %v1402 = vmax.f32 %v1336, 0.0
      %v1403 = vmax.f32 %v1341, 0.0
      %v1404 = vmax.f32 %v1346, 0.0
      %v1405 = vmax.f32 %v1351, 0.0
      %v1406 = vmax.f32 %v1356, 0.0
      %v1407 = vmax.f32 %v1361, 0.0
      %v1408 = vmax.f32 %v1366, 0.0
      %v1409 = vmax.f32 %v1371, 0.0
      %v1410 = vmax.f32 %v1376, 0.0
      %v1411 = vld [vmem:[%s563] sm:$0xff]
      %v1412 = vld [vmem:[%s563 + $0x8] sm:$0xff]
      %v1413 = vld [vmem:[%s563 + $0x10] sm:$0xff]
      %v1414 = vld [vmem:[%s563 + $0x18] sm:$0xff]
      %v1415 = vld [vmem:[%s563 + $0x20] sm:$0xff]
      %v1416 = vld [vmem:[%s563 + $0x28] sm:$0xff]
      %v1417 = vld [vmem:[%s563 + $0x30] sm:$0xff]
      %v1418 = vld [vmem:[%s563 + $0x38] sm:$0xff]
      %v1419 = vld [vmem:[%s563 + $0x40] sm:$0xff]
      %v1420 = vld [vmem:[%s563 + $0x48] sm:$0xff]
      %v1421 = vld [vmem:[%s563 + $0x50] sm:$0xff]
      %v1422 = vld [vmem:[%s563 + $0x58] sm:$0xff]
      %v1423 = vld [vmem:[%s563 + $0x60] sm:$0xff]
      %v1424 = vld [vmem:[%s563 + $0x68] sm:$0xff]
      %v1425 = vld [vmem:[%s563 + $0x70] sm:$0xff]
      %v1426 = vld [vmem:[%s563 + $0x78] sm:$0xff]
      %v1427 = vld [vmem:[%s563 + $0x80] sm:$0xff]
      %v1428 = vld [vmem:[%s563 + $0x88] sm:$0xff]
      %v1429 = vld [vmem:[%s563 + $0x90] sm:$0xff]
      %v1430 = vld [vmem:[%s563 + $0x98] sm:$0xff]
      %v1431 = vld [vmem:[%s563 + $0xa0] sm:$0xff]
      %v1432 = vld [vmem:[%s563 + $0xa8] sm:$0xff]
      %v1433 = vld [vmem:[%s563 + $0xb0] sm:$0xff]
      %v1434 = vld [vmem:[%s563 + $0xb8] sm:$0xff]
      %v1435 = vld [vmem:[%s563 + $0xc0] sm:$0xff]
      %v1436 = vld [vmem:[%s563 + $0xc8] sm:$0xff]
      %v1437 = vld [vmem:[%s563 + $0xd0] sm:$0xff]
      %v1438 = vld [vmem:[%s563 + $0xd8] sm:$0xff]
      %v1439 = vld [vmem:[%s563 + $0xe0] sm:$0xff]
      %v1440 = vld [vmem:[%s563 + $0xe8] sm:$0xff]
      %v1441 = vld [vmem:[%s563 + $0xf0] sm:$0xff]
      %v1442 = vld [vmem:[%s563 + $0xf8] sm:$0xff]
      %v1443 = vld [vmem:[%s7] sm:$0xff]
      %v1444 = vld [vmem:[%s7 + $0x8] sm:$0x1]
      %vm1445 = vcmask 72704
      %v1447 = vsel %vm1445, %v1411, 0
      %v1450 = vsel %vm1445, %v1412, 0
      %v1453 = vsel %vm1445, %v1413, 0
      %v1456 = vsel %vm1445, %v1414, 0
      %v1459 = vsel %vm1445, %v1415, 0
      %v1462 = vsel %vm1445, %v1416, 0
      %v1465 = vsel %vm1445, %v1417, 0
      %v1468 = vsel %vm1445, %v1418, 0
      %v1471 = vsel %vm1445, %v1419, 0
      %v1474 = vsel %vm1445, %v1420, 0
      %v1477 = vsel %vm1445, %v1421, 0
      %v1480 = vsel %vm1445, %v1422, 0
      %v1483 = vsel %vm1445, %v1423, 0
      %v1486 = vsel %vm1445, %v1424, 0
      %v1489 = vsel %vm1445, %v1425, 0
      %v1492 = vsel %vm1445, %v1426, 0
      %v1495 = vsel %vm1445, %v1427, 0
      %v1498 = vsel %vm1445, %v1428, 0
      %v1501 = vsel %vm1445, %v1429, 0
      %v1504 = vsel %vm1445, %v1430, 0
      %v1507 = vsel %vm1445, %v1431, 0
      %v1510 = vsel %vm1445, %v1432, 0
      %v1513 = vsel %vm1445, %v1433, 0
      %v1516 = vsel %vm1445, %v1434, 0
      %v1519 = vsel %vm1445, %v1435, 0
      %v1522 = vsel %vm1445, %v1436, 0
      %v1525 = vsel %vm1445, %v1437, 0
      %v1528 = vsel %vm1445, %v1438, 0
      %v1531 = vsel %vm1445, %v1439, 0
      %v1534 = vsel %vm1445, %v1440, 0
      %v1537 = vsel %vm1445, %v1441, 0
      %v1540 = vsel %vm1445, %v1442, 0
      %vm1542 = vcmask 1040384
      %v1544 = vsel %vm1542, %v1444, 0
      %1546 = vmatprep.subr.mxu0 0.0
      %1547 = vmatpush1.msra.mxu0 0.0
      %1548 = vmatprep.subr.mxu0 0.0
      %1549 = vmatpush1.msra.mxu0 0.0
      %1550 = vmatprep.subr.mxu0 0.0
      %1551 = vmatpush1.msra.mxu0 0.0
      %1552 = vmatprep.subr.mxu0 0.0
      %1553 = vmatpush1.msra.mxu0 0.0
      %1554 = vmatprep.subr.mxu0 0.0
      %1555 = vmatpush1.msra.mxu0 0.0
      %1556 = vmatprep.subr.mxu0 0.0
      %1557 = vmatpush1.msra.mxu0 0.0
      %1558 = vmatprep.subr.mxu0 0.0
      %1559 = vmatpush1.msra.mxu0 0.0
      %1560 = vmatprep.subr.mxu0 0.0
      %1561 = vmatpush1.msra.mxu0 0.0
      %1562 = vmatprep.subr.mxu0 0.0
      %1563 = vmatpush1.msra.mxu0 0.0
      %1564 = vmatprep.subr.mxu0 0.0
      %1565 = vmatpush1.msra.mxu0 0.0
      %1566 = vmatprep.subr.mxu0 0.0
      %1567 = vmatpush1.msra.mxu0 0.0
      %1568 = vmatprep.subr.mxu0 0.0
      %1569 = vmatpush1.msra.mxu0 0.0
      %1570 = vmatprep.subr.mxu0 0.0
      %1571 = vmatpush1.msra.mxu0 0.0
      %1572 = vmatprep.subr.mxu0 0.0
      %1573 = vmatpush1.msra.mxu0 0.0
      %1574 = vmatprep.subr.mxu0 0.0
      %1575 = vmatpush1.msra.mxu0 %v1544
      %1576 = vmatprep.subr.mxu0 0.0
      %1577 = vmatpush1.msra.mxu0 %v1443
      %1578 = vmatprep.subr.mxu0 0.0
      %1579 = vmatpush2.msra.mxu0 0.0
      %1580 = vmatprep.subr.mxu0 0.0
      %1581 = vmatpush2.msra.mxu0 0.0
      %1582 = vmatprep.subr.mxu0 0.0
      %1583 = vmatpush2.msra.mxu0 0.0
      %1584 = vmatprep.subr.mxu0 0.0
      %1585 = vmatpush2.msra.mxu0 0.0
      %1586 = vmatprep.subr.mxu0 0.0
      %1587 = vmatpush2.msra.mxu0 0.0
      %1588 = vmatprep.subr.mxu0 0.0
      %1589 = vmatpush2.msra.mxu0 0.0
      %1590 = vmatprep.subr.mxu0 0.0
      %1591 = vmatpush2.msra.mxu0 0.0
      %1592 = vmatprep.subr.mxu0 0.0
      %1593 = vmatpush2.msra.mxu0 0.0
      %1594 = vmatprep.subr.mxu0 0.0
      %1595 = vmatpush2.msra.mxu0 0.0
      %1596 = vmatprep.subr.mxu0 0.0
      %1597 = vmatpush2.msra.mxu0 0.0
      %1598 = vmatprep.subr.mxu0 0.0
      %1599 = vmatpush2.msra.mxu0 0.0
      %1600 = vmatprep.subr.mxu0 0.0
      %1601 = vmatpush2.msra.mxu0 0.0
      %1602 = vmatprep.subr.mxu0 0.0
      %1603 = vmatpush2.msra.mxu0 0.0
      %1604 = vmatprep.subr.mxu0 0.0
      %1605 = vmatpush2.msra.mxu0 0.0
      %1606 = vmatprep.subr.mxu0 0.0
      %1607 = vmatpush2.msra.mxu0 0.0
      %1608 = vmatprep.subr.mxu0 0.0
      %1609 = vmatpush2.msra.mxu0 0.0
      %1610 = vmatprep.mubr.f32.mxu0 0.0
      %1611 = vmatmul.mubr.f32.gmra.mxu0 %v1447
      %v1612 = vpop.f32.mrf.mxu0
      %v1613 = vadd.f32 0.0, %v1612
      %v1614 = vpop.f32.mrf.mxu0
      %1615 = vmatprep.mubr.f32.mxu0 0.0
      %1616 = vmatmul.mubr.f32.gmra.mxu0 %v1450
      %v1617 = vpop.f32.mrf.mxu0
      %v1618 = vadd.f32 0.0, %v1617
      %v1619 = vpop.f32.mrf.mxu0
      %1620 = vmatprep.mubr.f32.mxu0 0.0
      %1621 = vmatmul.mubr.f32.gmra.mxu0 %v1453
      %v1622 = vpop.f32.mrf.mxu0
      %v1623 = vadd.f32 0.0, %v1622
      %v1624 = vpop.f32.mrf.mxu0
      %1625 = vmatprep.mubr.f32.mxu0 0.0
      %1626 = vmatmul.mubr.f32.gmra.mxu0 %v1456
      %v1627 = vpop.f32.mrf.mxu0
      %v1628 = vadd.f32 0.0, %v1627
      %v1629 = vpop.f32.mrf.mxu0
      %1630 = vmatprep.mubr.f32.mxu0 0.0
      %1631 = vmatmul.mubr.f32.gmra.mxu0 %v1459
      %v1632 = vpop.f32.mrf.mxu0
      %v1633 = vadd.f32 0.0, %v1632
      %v1634 = vpop.f32.mrf.mxu0
      %1635 = vmatprep.mubr.f32.mxu0 0.0
      %1636 = vmatmul.mubr.f32.gmra.mxu0 %v1462
      %v1637 = vpop.f32.mrf.mxu0
      %v1638 = vadd.f32 0.0, %v1637
      %v1639 = vpop.f32.mrf.mxu0
      %1640 = vmatprep.mubr.f32.mxu0 0.0
      %1641 = vmatmul.mubr.f32.gmra.mxu0 %v1465
      %v1642 = vpop.f32.mrf.mxu0
      %v1643 = vadd.f32 0.0, %v1642
      %v1644 = vpop.f32.mrf.mxu0
      %1645 = vmatprep.mubr.f32.mxu0 0.0
      %1646 = vmatmul.mubr.f32.gmra.mxu0 %v1468
      %v1647 = vpop.f32.mrf.mxu0
      %v1648 = vadd.f32 0.0, %v1647
      %v1649 = vpop.f32.mrf.mxu0
      %1650 = vmatprep.mubr.f32.mxu0 0.0
      %1651 = vmatmul.mubr.f32.gmra.mxu0 %v1471
      %v1652 = vpop.f32.mrf.mxu0
      %v1653 = vadd.f32 0.0, %v1652
      %v1654 = vpop.f32.mrf.mxu0
      %1655 = vmatprep.mubr.f32.mxu0 0.0
      %1656 = vmatmul.mubr.f32.gmra.mxu0 %v1474
      %v1657 = vpop.f32.mrf.mxu0
      %v1658 = vadd.f32 0.0, %v1657
      %v1659 = vpop.f32.mrf.mxu0
      %1660 = vmatprep.mubr.f32.mxu0 0.0
      %1661 = vmatmul.mubr.f32.gmra.mxu0 %v1477
      %v1662 = vpop.f32.mrf.mxu0
      %v1663 = vadd.f32 0.0, %v1662
      %v1664 = vpop.f32.mrf.mxu0
      %1665 = vmatprep.mubr.f32.mxu0 0.0
      %1666 = vmatmul.mubr.f32.gmra.mxu0 %v1480
      %v1667 = vpop.f32.mrf.mxu0
      %v1668 = vadd.f32 0.0, %v1667
      %v1669 = vpop.f32.mrf.mxu0
      %1670 = vmatprep.mubr.f32.mxu0 0.0
      %1671 = vmatmul.mubr.f32.gmra.mxu0 %v1483
      %v1672 = vpop.f32.mrf.mxu0
      %v1673 = vadd.f32 0.0, %v1672
      %v1674 = vpop.f32.mrf.mxu0
      %1675 = vmatprep.mubr.f32.mxu0 0.0
      %1676 = vmatmul.mubr.f32.gmra.mxu0 %v1486
      %v1677 = vpop.f32.mrf.mxu0
      %v1678 = vadd.f32 0.0, %v1677
      %v1679 = vpop.f32.mrf.mxu0
      %1680 = vmatprep.mubr.f32.mxu0 0.0
      %1681 = vmatmul.mubr.f32.gmra.mxu0 %v1489
      %v1682 = vpop.f32.mrf.mxu0
      %v1683 = vadd.f32 0.0, %v1682
      %v1684 = vpop.f32.mrf.mxu0
      %1685 = vmatprep.mubr.f32.mxu0 0.0
      %1686 = vmatmul.mubr.f32.gmra.mxu0 %v1492
      %v1687 = vpop.f32.mrf.mxu0
      %v1688 = vadd.f32 0.0, %v1687
      %v1689 = vpop.f32.mrf.mxu0
      %1690 = vmatprep.mubr.f32.mxu0 0.0
      %1691 = vmatmul.mubr.f32.gmra.mxu0 %v1495
      %v1692 = vpop.f32.mrf.mxu0
      %v1693 = vadd.f32 0.0, %v1692
      %v1694 = vpop.f32.mrf.mxu0
      %1695 = vmatprep.mubr.f32.mxu0 0.0
      %1696 = vmatmul.mubr.f32.gmra.mxu0 %v1498
      %v1697 = vpop.f32.mrf.mxu0
      %v1698 = vadd.f32 0.0, %v1697
      %v1699 = vpop.f32.mrf.mxu0
      %1700 = vmatprep.mubr.f32.mxu0 0.0
      %1701 = vmatmul.mubr.f32.gmra.mxu0 %v1501
      %v1702 = vpop.f32.mrf.mxu0
      %v1703 = vadd.f32 0.0, %v1702
      %v1704 = vpop.f32.mrf.mxu0
      %1705 = vmatprep.mubr.f32.mxu0 0.0
      %1706 = vmatmul.mubr.f32.gmra.mxu0 %v1504
      %v1707 = vpop.f32.mrf.mxu0
      %v1708 = vadd.f32 0.0, %v1707
      %v1709 = vpop.f32.mrf.mxu0
      %1710 = vmatprep.mubr.f32.mxu0 0.0
      %1711 = vmatmul.mubr.f32.gmra.mxu0 %v1507
      %v1712 = vpop.f32.mrf.mxu0
      %v1713 = vadd.f32 0.0, %v1712
      %v1714 = vpop.f32.mrf.mxu0
      %1715 = vmatprep.mubr.f32.mxu0 0.0
      %1716 = vmatmul.mubr.f32.gmra.mxu0 %v1510
      %v1717 = vpop.f32.mrf.mxu0
      %v1718 = vadd.f32 0.0, %v1717
      %v1719 = vpop.f32.mrf.mxu0
      %1720 = vmatprep.mubr.f32.mxu0 0.0
      %1721 = vmatmul.mubr.f32.gmra.mxu0 %v1513
      %v1722 = vpop.f32.mrf.mxu0
      %v1723 = vadd.f32 0.0, %v1722
      %v1724 = vpop.f32.mrf.mxu0
      %1725 = vmatprep.mubr.f32.mxu0 0.0
      %1726 = vmatmul.mubr.f32.gmra.mxu0 %v1516
      %v1727 = vpop.f32.mrf.mxu0
      %v1728 = vadd.f32 0.0, %v1727
      %v1729 = vpop.f32.mrf.mxu0
      %1730 = vmatprep.mubr.f32.mxu0 0.0
      %1731 = vmatmul.mubr.f32.gmra.mxu0 %v1519
      %v1732 = vpop.f32.mrf.mxu0
      %v1733 = vadd.f32 0.0, %v1732
      %v1734 = vpop.f32.mrf.mxu0
      %1735 = vmatprep.mubr.f32.mxu0 0.0
      %1736 = vmatmul.mubr.f32.gmra.mxu0 %v1522
      %v1737 = vpop.f32.mrf.mxu0
      %v1738 = vadd.f32 0.0, %v1737
      %v1739 = vpop.f32.mrf.mxu0
      %1740 = vmatprep.mubr.f32.mxu0 0.0
      %1741 = vmatmul.mubr.f32.gmra.mxu0 %v1525
      %v1742 = vpop.f32.mrf.mxu0
      %v1743 = vadd.f32 0.0, %v1742
      %v1744 = vpop.f32.mrf.mxu0
      %1745 = vmatprep.mubr.f32.mxu0 0.0
      %1746 = vmatmul.mubr.f32.gmra.mxu0 %v1528
      %v1747 = vpop.f32.mrf.mxu0
      %v1748 = vadd.f32 0.0, %v1747
      %v1749 = vpop.f32.mrf.mxu0
      %1750 = vmatprep.mubr.f32.mxu0 0.0
      %1751 = vmatmul.mubr.f32.gmra.mxu0 %v1531
      %v1752 = vpop.f32.mrf.mxu0
      %v1753 = vadd.f32 0.0, %v1752
      %v1754 = vpop.f32.mrf.mxu0
      %1755 = vmatprep.mubr.f32.mxu0 0.0
      %1756 = vmatmul.mubr.f32.gmra.mxu0 %v1534
      %v1757 = vpop.f32.mrf.mxu0
      %v1758 = vadd.f32 0.0, %v1757
      %v1759 = vpop.f32.mrf.mxu0
      %1760 = vmatprep.mubr.f32.mxu0 0.0
      %1761 = vmatmul.mubr.f32.gmra.mxu0 %v1537
      %v1762 = vpop.f32.mrf.mxu0
      %v1763 = vadd.f32 0.0, %v1762
      %v1764 = vpop.f32.mrf.mxu0
      %1765 = vmatprep.mubr.f32.mxu0 0.0
      %1766 = vmatmul.mubr.f32.gmra.mxu0 %v1540
      %v1767 = vpop.f32.mrf.mxu0
      %v1768 = vadd.f32 0.0, %v1767
      %v1769 = vpop.f32.mrf.mxu0
      %1770 = vdwg.mxu0
      %s1771 = scalar_lea.vmem [#allocation2], 24
      %1772 = vst.msk [vmem:[%s1771 + $0x1] sm:$0xff] %vm569, %v1379
      %1773 = vst.msk [vmem:[%s1771 + $0x9] sm:$0xff] %vm569, %v1380
      %1774 = vst.msk [vmem:[%s1771 + $0x19] sm:$0xff] %vm569, %v1381
      %1775 = vst.msk [vmem:[%s1771 + $0x21] sm:$0xff] %vm569, %v1382
      %1776 = vst.msk [vmem:[%s1771 + $0x31] sm:$0xff] %vm569, %v1383
      %1777 = vst.msk [vmem:[%s1771 + $0x39] sm:$0xff] %vm569, %v1384
      %1778 = vst.msk [vmem:[%s1771 + $0x49] sm:$0xff] %vm569, %v1385
      %1779 = vst.msk [vmem:[%s1771 + $0x51] sm:$0xff] %vm569, %v1386
      %1780 = vst.msk [vmem:[%s1771 + $0x61] sm:$0xff] %vm569, %v1387
      %1781 = vst.msk [vmem:[%s1771 + $0x69] sm:$0xff] %vm569, %v1388
      %1782 = vst.msk [vmem:[%s1771 + $0x79] sm:$0xff] %vm569, %v1389
      %1783 = vst.msk [vmem:[%s1771 + $0x81] sm:$0xff] %vm569, %v1390
      %1784 = vst.msk [vmem:[%s1771 + $0x91] sm:$0xff] %vm569, %v1391
      %1785 = vst.msk [vmem:[%s1771 + $0x99] sm:$0xff] %vm569, %v1392
      %1786 = vst.msk [vmem:[%s1771 + $0xa9] sm:$0xff] %vm569, %v1393
      %1787 = vst.msk [vmem:[%s1771 + $0xb1] sm:$0xff] %vm569, %v1394
      %1788 = vst.msk [vmem:[%s1771 + $0xc1] sm:$0xff] %vm569, %v1395
      %1789 = vst.msk [vmem:[%s1771 + $0xc9] sm:$0xff] %vm569, %v1396
      %1790 = vst.msk [vmem:[%s1771 + $0xd9] sm:$0xff] %vm569, %v1397
      %1791 = vst.msk [vmem:[%s1771 + $0xe1] sm:$0xff] %vm569, %v1398
      %1792 = vst.msk [vmem:[%s1771 + $0xf1] sm:$0xff] %vm569, %v1399
      %1793 = vst.msk [vmem:[%s1771 + $0xf9] sm:$0xff] %vm569, %v1400
      %1794 = vst.msk [vmem:[%s1771 + $0x109] sm:$0xff] %vm569, %v1401
      %1795 = vst.msk [vmem:[%s1771 + $0x111] sm:$0xff] %vm569, %v1402
      %1796 = vst.msk [vmem:[%s1771 + $0x121] sm:$0xff] %vm569, %v1403
      %1797 = vst.msk [vmem:[%s1771 + $0x129] sm:$0xff] %vm569, %v1404
      %1798 = vst.msk [vmem:[%s1771 + $0x139] sm:$0xff] %vm569, %v1405
      %1799 = vst.msk [vmem:[%s1771 + $0x141] sm:$0xff] %vm569, %v1406
      %1800 = vst.msk [vmem:[%s1771 + $0x151] sm:$0xff] %vm569, %v1407
      %1801 = vst.msk [vmem:[%s1771 + $0x159] sm:$0xff] %vm569, %v1408
      %1802 = vst.msk [vmem:[%s1771 + $0x169] sm:$0xff] %vm569, %v1409
      %1803 = vst.msk [vmem:[%s1771 + $0x171] sm:$0xff] %vm569, %v1410
      %v1804 = vld [vmem:[#allocation2] sm:$0xff]
      %v1805 = vld [vmem:[#allocation2 + $0x8] sm:$0xff]
      %v1806 = vld [vmem:[#allocation2 + $0x10] sm:$0xff]
      %v1807 = vld [vmem:[#allocation2 + $0x18] sm:$0xff]
      %v1808 = vld [vmem:[#allocation2 + $0x20] sm:$0xff]
      %v1809 = vld [vmem:[#allocation2 + $0x28] sm:$0xff]
      %v1810 = vld [vmem:[#allocation2 + $0x30] sm:$0xff]
      %v1811 = vld [vmem:[#allocation2 + $0x38] sm:$0xff]
      %v1812 = vld [vmem:[#allocation2 + $0x40] sm:$0xff]
      %v1813 = vld [vmem:[#allocation2 + $0x48] sm:$0xff]
      %v1814 = vld [vmem:[#allocation2 + $0x50] sm:$0xff]
      %v1815 = vld [vmem:[#allocation2 + $0x58] sm:$0xff]
      %v1816 = vld [vmem:[#allocation2 + $0x60] sm:$0xff]
      %v1817 = vld [vmem:[#allocation2 + $0x68] sm:$0xff]
      %v1818 = vld [vmem:[#allocation2 + $0x70] sm:$0xff]
      %v1819 = vld [vmem:[#allocation2 + $0x78] sm:$0xff]
      %v1820 = vld [vmem:[#allocation2 + $0x80] sm:$0xff]
      %v1821 = vld [vmem:[#allocation2 + $0x88] sm:$0xff]
      %v1822 = vld [vmem:[#allocation2 + $0x90] sm:$0xff]
      %v1823 = vld [vmem:[#allocation2 + $0x98] sm:$0xff]
      %v1824 = vld [vmem:[#allocation2 + $0xa0] sm:$0xff]
      %v1825 = vld [vmem:[#allocation2 + $0xa8] sm:$0xff]
      %v1826 = vld [vmem:[#allocation2 + $0xb0] sm:$0xff]
      %v1827 = vld [vmem:[#allocation2 + $0xb8] sm:$0xff]
      %v1828 = vld [vmem:[#allocation2 + $0xc0] sm:$0xff]
      %v1829 = vld [vmem:[#allocation2 + $0xc8] sm:$0xff]
      %v1830 = vld [vmem:[#allocation2 + $0xd0] sm:$0xff]
      %v1831 = vld [vmem:[#allocation2 + $0xd8] sm:$0xff]
      %v1832 = vld [vmem:[#allocation2 + $0xe0] sm:$0xff]
      %v1833 = vld [vmem:[#allocation2 + $0xe8] sm:$0xff]
      %v1834 = vld [vmem:[#allocation2 + $0xf0] sm:$0xff]
      %v1835 = vld [vmem:[#allocation2 + $0xf8] sm:$0xff]
      %v1836 = vld [vmem:[#allocation2 + $0x100] sm:$0xff]
      %v1837 = vld [vmem:[#allocation2 + $0x108] sm:$0xff]
      %v1838 = vld [vmem:[#allocation2 + $0x110] sm:$0xff]
      %v1839 = vld [vmem:[#allocation2 + $0x118] sm:$0xff]
      %v1840 = vld [vmem:[#allocation2 + $0x120] sm:$0xff]
      %v1841 = vld [vmem:[#allocation2 + $0x128] sm:$0xff]
      %v1842 = vld [vmem:[#allocation2 + $0x130] sm:$0xff]
      %v1843 = vld [vmem:[#allocation2 + $0x138] sm:$0xff]
      %v1844 = vld [vmem:[#allocation2 + $0x140] sm:$0xff]
      %v1845 = vld [vmem:[#allocation2 + $0x148] sm:$0xff]
      %v1846 = vld [vmem:[#allocation2 + $0x150] sm:$0xff]
      %v1847 = vld [vmem:[#allocation2 + $0x158] sm:$0xff]
      %v1848 = vld [vmem:[#allocation2 + $0x160] sm:$0xff]
      %v1849 = vld [vmem:[#allocation2 + $0x168] sm:$0xff]
      %v1850 = vld [vmem:[#allocation2 + $0x170] sm:$0xff]
      %v1851 = vld [vmem:[#allocation2 + $0x178] sm:$0xff]
      %v1852 = vld [vmem:[%s6] sm:$0xff]
      %v1853 = vld [vmem:[%s6 + $0x8] sm:$0xff]
      %v1854 = vld [vmem:[%s6 + $0x10] sm:$0xff]
      %v1855 = vld [vmem:[%s6 + $0x18] sm:$0xff]
      %v1856 = vld [vmem:[%s6 + $0x20] sm:$0xff]
      %v1857 = vld [vmem:[%s6 + $0x28] sm:$0xff]
      %v1858 = vld [vmem:[%s6 + $0x30] sm:$0xff]
      %v1859 = vld [vmem:[%s6 + $0x38] sm:$0xff]
      %v1860 = vld [vmem:[%s6 + $0x40] sm:$0xff]
      %v1861 = vld [vmem:[%s6 + $0x48] sm:$0xff]
      %v1862 = vld [vmem:[%s6 + $0x50] sm:$0xff]
      %v1863 = vld [vmem:[%s6 + $0x58] sm:$0xff]
      %v1864 = vld [vmem:[%s6 + $0x60] sm:$0xff]
      %v1865 = vld [vmem:[%s6 + $0x68] sm:$0xff]
      %v1866 = vld [vmem:[%s6 + $0x70] sm:$0xff]
      %v1867 = vld [vmem:[%s6 + $0x78] sm:$0xff]
      %v1869 = vsel %vm569, %v1804, 0
      %v1872 = vsel %vm569, %v1805, 0
      %v1875 = vsel %vm569, %v1806, 0
      %v1878 = vsel %vm569, %v1807, 0
      %v1881 = vsel %vm569, %v1808, 0
      %v1884 = vsel %vm569, %v1809, 0
      %v1887 = vsel %vm569, %v1810, 0
      %v1890 = vsel %vm569, %v1811, 0
      %v1893 = vsel %vm569, %v1812, 0
      %v1896 = vsel %vm569, %v1813, 0
      %v1899 = vsel %vm569, %v1814, 0
      %v1902 = vsel %vm569, %v1815, 0
      %v1905 = vsel %vm569, %v1816, 0
      %v1908 = vsel %vm569, %v1817, 0
      %v1911 = vsel %vm569, %v1818, 0
      %v1914 = vsel %vm569, %v1819, 0
      %v1917 = vsel %vm569, %v1820, 0
      %v1920 = vsel %vm569, %v1821, 0
      %v1923 = vsel %vm569, %v1822, 0
      %v1926 = vsel %vm569, %v1823, 0
      %v1929 = vsel %vm569, %v1824, 0
      %v1932 = vsel %vm569, %v1825, 0
      %v1935 = vsel %vm569, %v1826, 0
      %v1938 = vsel %vm569, %v1827, 0
      %v1941 = vsel %vm569, %v1828, 0
      %v1944 = vsel %vm569, %v1829, 0
      %v1947 = vsel %vm569, %v1830, 0
      %v1950 = vsel %vm569, %v1831, 0
      %v1953 = vsel %vm569, %v1832, 0
      %v1956 = vsel %vm569, %v1833, 0
      %v1959 = vsel %vm569, %v1834, 0
      %v1962 = vsel %vm569, %v1835, 0
      %v1965 = vsel %vm569, %v1836, 0
      %v1968 = vsel %vm569, %v1837, 0
      %v1971 = vsel %vm569, %v1838, 0
      %v1974 = vsel %vm569, %v1839, 0
      %v1977 = vsel %vm569, %v1840, 0
      %v1980 = vsel %vm569, %v1841, 0
      %v1983 = vsel %vm569, %v1842, 0
      %v1986 = vsel %vm569, %v1843, 0
      %v1989 = vsel %vm569, %v1844, 0
      %v1992 = vsel %vm569, %v1845, 0
      %v1995 = vsel %vm569, %v1846, 0
      %v1998 = vsel %vm569, %v1847, 0
      %v2001 = vsel %vm569, %v1848, 0
      %v2004 = vsel %vm569, %v1849, 0
      %v2007 = vsel %vm569, %v1850, 0
      %v2010 = vsel %vm569, %v1851, 0
      %2012 = vmatprep.subr.mxu0 0.0
      %2013 = vmatpush1.msra.mxu0 0.0
      %2014 = vmatprep.subr.mxu0 0.0
      %2015 = vmatpush1.msra.mxu0 0.0
      %2016 = vmatprep.subr.mxu0 0.0
      %2017 = vmatpush1.msra.mxu0 0.0
      %2018 = vmatprep.subr.mxu0 0.0
      %2019 = vmatpush1.msra.mxu0 0.0
      %2020 = vmatprep.subr.mxu0 0.0
      %2021 = vmatpush1.msra.mxu0 0.0
      %2022 = vmatprep.subr.mxu0 0.0
      %2023 = vmatpush1.msra.mxu0 0.0
      %2024 = vmatprep.subr.mxu0 0.0
      %2025 = vmatpush1.msra.mxu0 0.0
      %2026 = vmatprep.subr.mxu0 0.0
      %2027 = vmatpush1.msra.mxu0 0.0
      %2028 = vmatprep.subr.mxu0 %v1867
      %2029 = vmatpush1.msra.mxu0 %v1866
      %2030 = vmatprep.subr.mxu0 %v1865
      %2031 = vmatpush1.msra.mxu0 %v1864
      %2032 = vmatprep.subr.mxu0 %v1863
      %2033 = vmatpush1.msra.mxu0 %v1862
      %2034 = vmatprep.subr.mxu0 %v1861
      %2035 = vmatpush1.msra.mxu0 %v1860
      %2036 = vmatprep.subr.mxu0 %v1859
      %2037 = vmatpush1.msra.mxu0 %v1858
      %2038 = vmatprep.subr.mxu0 %v1857
      %2039 = vmatpush1.msra.mxu0 %v1856
      %2040 = vmatprep.subr.mxu0 %v1855
      %2041 = vmatpush1.msra.mxu0 %v1854
      %2042 = vmatprep.subr.mxu0 %v1853
      %2043 = vmatpush1.msra.mxu0 %v1852
      %2044 = vmatprep.subr.mxu0 0.0
      %2045 = vmatpush2.msra.mxu0 0.0
      %2046 = vmatprep.subr.mxu0 0.0
      %2047 = vmatpush2.msra.mxu0 0.0
      %2048 = vmatprep.subr.mxu0 0.0
      %2049 = vmatpush2.msra.mxu0 0.0
      %2050 = vmatprep.subr.mxu0 0.0
      %2051 = vmatpush2.msra.mxu0 0.0
      %2052 = vmatprep.subr.mxu0 0.0
      %2053 = vmatpush2.msra.mxu0 0.0
      %2054 = vmatprep.subr.mxu0 0.0
      %2055 = vmatpush2.msra.mxu0 0.0
      %2056 = vmatprep.subr.mxu0 0.0
      %2057 = vmatpush2.msra.mxu0 0.0
      %2058 = vmatprep.subr.mxu0 0.0
      %2059 = vmatpush2.msra.mxu0 0.0
      %2060 = vmatprep.subr.mxu0 0.0
      %2061 = vmatpush2.msra.mxu0 0.0
      %2062 = vmatprep.subr.mxu0 0.0
      %2063 = vmatpush2.msra.mxu0 0.0
      %2064 = vmatprep.subr.mxu0 0.0
      %2065 = vmatpush2.msra.mxu0 0.0
      %2066 = vmatprep.subr.mxu0 0.0
      %2067 = vmatpush2.msra.mxu0 0.0
      %2068 = vmatprep.subr.mxu0 0.0
      %2069 = vmatpush2.msra.mxu0 0.0
      %2070 = vmatprep.subr.mxu0 0.0
      %2071 = vmatpush2.msra.mxu0 0.0
      %2072 = vmatprep.subr.mxu0 0.0
      %2073 = vmatpush2.msra.mxu0 0.0
      %2074 = vmatprep.subr.mxu0 0.0
      %2075 = vmatpush2.msra.mxu0 0.0
      %2076 = vmatprep.mubr.f32.mxu0 0.0
      %2077 = vmatmul.mubr.f32.gmra.mxu0 %v1869
      %v2078 = vpop.f32.mrf.mxu0
      %v2079 = vadd.f32 0.0, %v2078
      %v2080 = vpop.f32.mrf.mxu0
      %v2081 = vadd.f32 0.0, %v2080
      %2082 = vmatprep.mubr.f32.mxu0 0.0
      %2083 = vmatmul.mubr.f32.gmra.mxu0 %v1872
      %v2084 = vpop.f32.mrf.mxu0
      %v2085 = vadd.f32 0.0, %v2084
      %v2086 = vpop.f32.mrf.mxu0
      %v2087 = vadd.f32 0.0, %v2086
      %2088 = vmatprep.mubr.f32.mxu0 0.0
      %2089 = vmatmul.mubr.f32.gmra.mxu0 %v1875
      %v2090 = vpop.f32.mrf.mxu0
      %v2091 = vadd.f32 0.0, %v2090
      %v2092 = vpop.f32.mrf.mxu0
      %v2093 = vadd.f32 0.0, %v2092
      %2094 = vmatprep.mubr.f32.mxu0 0.0
      %2095 = vmatmul.mubr.f32.gmra.mxu0 %v1878
      %v2096 = vpop.f32.mrf.mxu0
      %v2097 = vadd.f32 0.0, %v2096
      %v2098 = vpop.f32.mrf.mxu0
      %v2099 = vadd.f32 0.0, %v2098
      %2100 = vmatprep.mubr.f32.mxu0 0.0
      %2101 = vmatmul.mubr.f32.gmra.mxu0 %v1881
      %v2102 = vpop.f32.mrf.mxu0
      %v2103 = vadd.f32 0.0, %v2102
      %v2104 = vpop.f32.mrf.mxu0
      %v2105 = vadd.f32 0.0, %v2104
      %2106 = vmatprep.mubr.f32.mxu0 0.0
      %2107 = vmatmul.mubr.f32.gmra.mxu0 %v1884
      %v2108 = vpop.f32.mrf.mxu0
      %v2109 = vadd.f32 0.0, %v2108
      %v2110 = vpop.f32.mrf.mxu0
      %v2111 = vadd.f32 0.0, %v2110
      %2112 = vmatprep.mubr.f32.mxu0 0.0
      %2113 = vmatmul.mubr.f32.gmra.mxu0 %v1887
      %v2114 = vpop.f32.mrf.mxu0
      %v2115 = vadd.f32 0.0, %v2114
      %v2116 = vpop.f32.mrf.mxu0
      %v2117 = vadd.f32 0.0, %v2116
      %2118 = vmatprep.mubr.f32.mxu0 0.0
      %2119 = vmatmul.mubr.f32.gmra.mxu0 %v1890
      %v2120 = vpop.f32.mrf.mxu0
      %v2121 = vadd.f32 0.0, %v2120
      %v2122 = vpop.f32.mrf.mxu0
      %v2123 = vadd.f32 0.0, %v2122
      %2124 = vmatprep.mubr.f32.mxu0 0.0
      %2125 = vmatmul.mubr.f32.gmra.mxu0 %v1893
      %v2126 = vpop.f32.mrf.mxu0
      %v2127 = vadd.f32 0.0, %v2126
      %v2128 = vpop.f32.mrf.mxu0
      %v2129 = vadd.f32 0.0, %v2128
      %2130 = vmatprep.mubr.f32.mxu0 0.0
      %2131 = vmatmul.mubr.f32.gmra.mxu0 %v1896
      %v2132 = vpop.f32.mrf.mxu0
      %v2133 = vadd.f32 0.0, %v2132
      %v2134 = vpop.f32.mrf.mxu0
      %v2135 = vadd.f32 0.0, %v2134
      %2136 = vmatprep.mubr.f32.mxu0 0.0
      %2137 = vmatmul.mubr.f32.gmra.mxu0 %v1899
      %v2138 = vpop.f32.mrf.mxu0
      %v2139 = vadd.f32 0.0, %v2138
      %v2140 = vpop.f32.mrf.mxu0
      %v2141 = vadd.f32 0.0, %v2140
      %2142 = vmatprep.mubr.f32.mxu0 0.0
      %2143 = vmatmul.mubr.f32.gmra.mxu0 %v1902
      %v2144 = vpop.f32.mrf.mxu0
      %v2145 = vadd.f32 0.0, %v2144
      %v2146 = vpop.f32.mrf.mxu0
      %v2147 = vadd.f32 0.0, %v2146
      %2148 = vmatprep.mubr.f32.mxu0 0.0
      %2149 = vmatmul.mubr.f32.gmra.mxu0 %v1905
      %v2150 = vpop.f32.mrf.mxu0
      %v2151 = vadd.f32 0.0, %v2150
      %v2152 = vpop.f32.mrf.mxu0
      %v2153 = vadd.f32 0.0, %v2152
      %2154 = vmatprep.mubr.f32.mxu0 0.0
      %2155 = vmatmul.mubr.f32.gmra.mxu0 %v1908
      %v2156 = vpop.f32.mrf.mxu0
      %v2157 = vadd.f32 0.0, %v2156
      %v2158 = vpop.f32.mrf.mxu0
      %v2159 = vadd.f32 0.0, %v2158
      %2160 = vmatprep.mubr.f32.mxu0 0.0
      %2161 = vmatmul.mubr.f32.gmra.mxu0 %v1911
      %v2162 = vpop.f32.mrf.mxu0
      %v2163 = vadd.f32 0.0, %v2162
      %v2164 = vpop.f32.mrf.mxu0
      %v2165 = vadd.f32 0.0, %v2164
      %2166 = vmatprep.mubr.f32.mxu0 0.0
      %2167 = vmatmul.mubr.f32.gmra.mxu0 %v1914
      %v2168 = vpop.f32.mrf.mxu0
      %v2169 = vadd.f32 0.0, %v2168
      %v2170 = vpop.f32.mrf.mxu0
      %v2171 = vadd.f32 0.0, %v2170
      %2172 = vmatprep.mubr.f32.mxu0 0.0
      %2173 = vmatmul.mubr.f32.gmra.mxu0 %v1917
      %v2174 = vpop.f32.mrf.mxu0
      %v2175 = vadd.f32 0.0, %v2174
      %v2176 = vpop.f32.mrf.mxu0
      %v2177 = vadd.f32 0.0, %v2176
      %2178 = vmatprep.mubr.f32.mxu0 0.0
      %2179 = vmatmul.mubr.f32.gmra.mxu0 %v1920
      %v2180 = vpop.f32.mrf.mxu0
      %v2181 = vadd.f32 0.0, %v2180
      %v2182 = vpop.f32.mrf.mxu0
      %v2183 = vadd.f32 0.0, %v2182
      %2184 = vmatprep.mubr.f32.mxu0 0.0
      %2185 = vmatmul.mubr.f32.gmra.mxu0 %v1923
      %v2186 = vpop.f32.mrf.mxu0
      %v2187 = vadd.f32 0.0, %v2186
      %v2188 = vpop.f32.mrf.mxu0
      %v2189 = vadd.f32 0.0, %v2188
      %2190 = vmatprep.mubr.f32.mxu0 0.0
      %2191 = vmatmul.mubr.f32.gmra.mxu0 %v1926
      %v2192 = vpop.f32.mrf.mxu0
      %v2193 = vadd.f32 0.0, %v2192
      %v2194 = vpop.f32.mrf.mxu0
      %v2195 = vadd.f32 0.0, %v2194
      %2196 = vmatprep.mubr.f32.mxu0 0.0
      %2197 = vmatmul.mubr.f32.gmra.mxu0 %v1929
      %v2198 = vpop.f32.mrf.mxu0
      %v2199 = vadd.f32 0.0, %v2198
      %v2200 = vpop.f32.mrf.mxu0
      %v2201 = vadd.f32 0.0, %v2200
      %2202 = vmatprep.mubr.f32.mxu0 0.0
      %2203 = vmatmul.mubr.f32.gmra.mxu0 %v1932
      %v2204 = vpop.f32.mrf.mxu0
      %v2205 = vadd.f32 0.0, %v2204
      %v2206 = vpop.f32.mrf.mxu0
      %v2207 = vadd.f32 0.0, %v2206
      %2208 = vmatprep.mubr.f32.mxu0 0.0
      %2209 = vmatmul.mubr.f32.gmra.mxu0 %v1935
      %v2210 = vpop.f32.mrf.mxu0
      %v2211 = vadd.f32 0.0, %v2210
      %v2212 = vpop.f32.mrf.mxu0
      %v2213 = vadd.f32 0.0, %v2212
      %2214 = vmatprep.mubr.f32.mxu0 0.0
      %2215 = vmatmul.mubr.f32.gmra.mxu0 %v1938
      %v2216 = vpop.f32.mrf.mxu0
      %v2217 = vadd.f32 0.0, %v2216
      %v2218 = vpop.f32.mrf.mxu0
      %v2219 = vadd.f32 0.0, %v2218
      %2220 = vmatprep.mubr.f32.mxu0 0.0
      %2221 = vmatmul.mubr.f32.gmra.mxu0 %v1941
      %v2222 = vpop.f32.mrf.mxu0
      %v2223 = vadd.f32 0.0, %v2222
      %v2224 = vpop.f32.mrf.mxu0
      %v2225 = vadd.f32 0.0, %v2224
      %2226 = vmatprep.mubr.f32.mxu0 0.0
      %2227 = vmatmul.mubr.f32.gmra.mxu0 %v1944
      %v2228 = vpop.f32.mrf.mxu0
      %v2229 = vadd.f32 0.0, %v2228
      %v2230 = vpop.f32.mrf.mxu0
      %v2231 = vadd.f32 0.0, %v2230
      %2232 = vmatprep.mubr.f32.mxu0 0.0
      %2233 = vmatmul.mubr.f32.gmra.mxu0 %v1947
      %v2234 = vpop.f32.mrf.mxu0
      %v2235 = vadd.f32 0.0, %v2234
      %v2236 = vpop.f32.mrf.mxu0
      %v2237 = vadd.f32 0.0, %v2236
      %2238 = vmatprep.mubr.f32.mxu0 0.0
      %2239 = vmatmul.mubr.f32.gmra.mxu0 %v1950
      %v2240 = vpop.f32.mrf.mxu0
      %v2241 = vadd.f32 0.0, %v2240
      %v2242 = vpop.f32.mrf.mxu0
      %v2243 = vadd.f32 0.0, %v2242
      %2244 = vmatprep.mubr.f32.mxu0 0.0
      %2245 = vmatmul.mubr.f32.gmra.mxu0 %v1953
      %v2246 = vpop.f32.mrf.mxu0
      %v2247 = vadd.f32 0.0, %v2246
      %v2248 = vpop.f32.mrf.mxu0
      %v2249 = vadd.f32 0.0, %v2248
      %2250 = vmatprep.mubr.f32.mxu0 0.0
      %2251 = vmatmul.mubr.f32.gmra.mxu0 %v1956
      %v2252 = vpop.f32.mrf.mxu0
      %v2253 = vadd.f32 0.0, %v2252
      %v2254 = vpop.f32.mrf.mxu0
      %v2255 = vadd.f32 0.0, %v2254
      %2256 = vmatprep.mubr.f32.mxu0 0.0
      %2257 = vmatmul.mubr.f32.gmra.mxu0 %v1959
      %v2258 = vpop.f32.mrf.mxu0
      %v2259 = vadd.f32 0.0, %v2258
      %v2260 = vpop.f32.mrf.mxu0
      %v2261 = vadd.f32 0.0, %v2260
      %2262 = vmatprep.mubr.f32.mxu0 0.0
      %2263 = vmatmul.mubr.f32.gmra.mxu0 %v1962
      %v2264 = vpop.f32.mrf.mxu0
      %v2265 = vadd.f32 0.0, %v2264
      %v2266 = vpop.f32.mrf.mxu0
      %v2267 = vadd.f32 0.0, %v2266
      %2268 = vmatprep.mubr.f32.mxu0 0.0
      %2269 = vmatmul.mubr.f32.gmra.mxu0 %v1965
      %v2270 = vpop.f32.mrf.mxu0
      %v2271 = vadd.f32 0.0, %v2270
      %v2272 = vpop.f32.mrf.mxu0
      %v2273 = vadd.f32 0.0, %v2272
      %2274 = vmatprep.mubr.f32.mxu0 0.0
      %2275 = vmatmul.mubr.f32.gmra.mxu0 %v1968
      %v2276 = vpop.f32.mrf.mxu0
      %v2277 = vadd.f32 0.0, %v2276
      %v2278 = vpop.f32.mrf.mxu0
      %v2279 = vadd.f32 0.0, %v2278
      %2280 = vmatprep.mubr.f32.mxu0 0.0
      %2281 = vmatmul.mubr.f32.gmra.mxu0 %v1971
      %v2282 = vpop.f32.mrf.mxu0
      %v2283 = vadd.f32 0.0, %v2282
      %v2284 = vpop.f32.mrf.mxu0
      %v2285 = vadd.f32 0.0, %v2284
      %2286 = vmatprep.mubr.f32.mxu0 0.0
      %2287 = vmatmul.mubr.f32.gmra.mxu0 %v1974
      %v2288 = vpop.f32.mrf.mxu0
      %v2289 = vadd.f32 0.0, %v2288
      %v2290 = vpop.f32.mrf.mxu0
      %v2291 = vadd.f32 0.0, %v2290
      %2292 = vmatprep.mubr.f32.mxu0 0.0
      %2293 = vmatmul.mubr.f32.gmra.mxu0 %v1977
      %v2294 = vpop.f32.mrf.mxu0
      %v2295 = vadd.f32 0.0, %v2294
      %v2296 = vpop.f32.mrf.mxu0
      %v2297 = vadd.f32 0.0, %v2296
      %2298 = vmatprep.mubr.f32.mxu0 0.0
      %2299 = vmatmul.mubr.f32.gmra.mxu0 %v1980
      %v2300 = vpop.f32.mrf.mxu0
      %v2301 = vadd.f32 0.0, %v2300
      %v2302 = vpop.f32.mrf.mxu0
      %v2303 = vadd.f32 0.0, %v2302
      %2304 = vmatprep.mubr.f32.mxu0 0.0
      %2305 = vmatmul.mubr.f32.gmra.mxu0 %v1983
      %v2306 = vpop.f32.mrf.mxu0
      %v2307 = vadd.f32 0.0, %v2306
      %v2308 = vpop.f32.mrf.mxu0
      %v2309 = vadd.f32 0.0, %v2308
      %2310 = vmatprep.mubr.f32.mxu0 0.0
      %2311 = vmatmul.mubr.f32.gmra.mxu0 %v1986
      %v2312 = vpop.f32.mrf.mxu0
      %v2313 = vadd.f32 0.0, %v2312
      %v2314 = vpop.f32.mrf.mxu0
      %v2315 = vadd.f32 0.0, %v2314
      %2316 = vmatprep.mubr.f32.mxu0 0.0
      %2317 = vmatmul.mubr.f32.gmra.mxu0 %v1989
      %v2318 = vpop.f32.mrf.mxu0
      %v2319 = vadd.f32 0.0, %v2318
      %v2320 = vpop.f32.mrf.mxu0
      %v2321 = vadd.f32 0.0, %v2320
      %2322 = vmatprep.mubr.f32.mxu0 0.0
      %2323 = vmatmul.mubr.f32.gmra.mxu0 %v1992
      %v2324 = vpop.f32.mrf.mxu0
      %v2325 = vadd.f32 0.0, %v2324
      %v2326 = vpop.f32.mrf.mxu0
      %v2327 = vadd.f32 0.0, %v2326
      %2328 = vmatprep.mubr.f32.mxu0 0.0
      %2329 = vmatmul.mubr.f32.gmra.mxu0 %v1995
      %v2330 = vpop.f32.mrf.mxu0
      %v2331 = vadd.f32 0.0, %v2330
      %v2332 = vpop.f32.mrf.mxu0
      %v2333 = vadd.f32 0.0, %v2332
      %2334 = vmatprep.mubr.f32.mxu0 0.0
      %2335 = vmatmul.mubr.f32.gmra.mxu0 %v1998
      %v2336 = vpop.f32.mrf.mxu0
      %v2337 = vadd.f32 0.0, %v2336
      %v2338 = vpop.f32.mrf.mxu0
      %v2339 = vadd.f32 0.0, %v2338
      %2340 = vmatprep.mubr.f32.mxu0 0.0
      %2341 = vmatmul.mubr.f32.gmra.mxu0 %v2001
      %v2342 = vpop.f32.mrf.mxu0
      %v2343 = vadd.f32 0.0, %v2342
      %v2344 = vpop.f32.mrf.mxu0
      %v2345 = vadd.f32 0.0, %v2344
      %2346 = vmatprep.mubr.f32.mxu0 0.0
      %2347 = vmatmul.mubr.f32.gmra.mxu0 %v2004
      %v2348 = vpop.f32.mrf.mxu0
      %v2349 = vadd.f32 0.0, %v2348
      %v2350 = vpop.f32.mrf.mxu0
      %v2351 = vadd.f32 0.0, %v2350
      %2352 = vmatprep.mubr.f32.mxu0 0.0
      %2353 = vmatmul.mubr.f32.gmra.mxu0 %v2007
      %v2354 = vpop.f32.mrf.mxu0
      %v2355 = vadd.f32 0.0, %v2354
      %v2356 = vpop.f32.mrf.mxu0
      %v2357 = vadd.f32 0.0, %v2356
      %2358 = vmatprep.mubr.f32.mxu0 0.0
      %2359 = vmatmul.mubr.f32.gmra.mxu0 %v2010
      %v2360 = vpop.f32.mrf.mxu0
      %v2361 = vadd.f32 0.0, %v2360
      %v2362 = vpop.f32.mrf.mxu0
      %v2363 = vadd.f32 0.0, %v2362
      %2364 = vdwg.mxu0
      %v2365 = vadd.f32 %v1613, %v2079
      %v2366 = vadd.f32 %v1618, %v2085
      %v2367 = vadd.f32 %v1623, %v2097
      %v2368 = vadd.f32 %v1628, %v2103
      %v2369 = vadd.f32 %v1633, %v2115
      %v2370 = vadd.f32 %v1638, %v2121
      %v2371 = vadd.f32 %v1643, %v2133
      %v2372 = vadd.f32 %v1648, %v2139
      %v2373 = vadd.f32 %v1653, %v2151
      %v2374 = vadd.f32 %v1658, %v2157
      %v2375 = vadd.f32 %v1663, %v2169
      %v2376 = vadd.f32 %v1668, %v2175
      %v2377 = vadd.f32 %v1673, %v2187
      %v2378 = vadd.f32 %v1678, %v2193
      %v2379 = vadd.f32 %v1683, %v2205
      %v2380 = vadd.f32 %v1688, %v2211
      %v2381 = vadd.f32 %v1693, %v2223
      %v2382 = vadd.f32 %v1698, %v2229
      %v2383 = vadd.f32 %v1703, %v2241
      %v2384 = vadd.f32 %v1708, %v2247
      %v2385 = vadd.f32 %v1713, %v2259
      %v2386 = vadd.f32 %v1718, %v2265
      %v2387 = vadd.f32 %v1723, %v2277
      %v2388 = vadd.f32 %v1728, %v2283
      %v2389 = vadd.f32 %v1733, %v2295
      %v2390 = vadd.f32 %v1738, %v2301
      %v2391 = vadd.f32 %v1743, %v2313
      %v2392 = vadd.f32 %v1748, %v2319
      %v2393 = vadd.f32 %v1753, %v2331
      %v2394 = vadd.f32 %v1758, %v2337
      %v2395 = vadd.f32 %v1763, %v2349
      %v2396 = vadd.f32 %v1768, %v2355
      %vm2445 = vcmask 1046528
      %v2446 = vrot.slane %v2079, 1
      %v2447 = vrot.slane %v2085, 1
      %v2448 = vsel %vm2445, %v2446, %v2447
      %v2449 = vrot.slane %v2091, 1
      %v2450 = vsel %vm2445, %v2447, %v2449
      %v2451 = vrot.slane %v2097, 1
      %v2452 = vrot.slane %v2103, 1
      %v2453 = vsel %vm2445, %v2451, %v2452
      %v2454 = vrot.slane %v2109, 1
      %v2455 = vsel %vm2445, %v2452, %v2454
      %v2456 = vrot.slane %v2115, 1
      %v2457 = vrot.slane %v2121, 1
      %v2458 = vsel %vm2445, %v2456, %v2457
      %v2459 = vrot.slane %v2127, 1
      %v2460 = vsel %vm2445, %v2457, %v2459
      %v2461 = vrot.slane %v2133, 1
      %v2462 = vrot.slane %v2139, 1
      %v2463 = vsel %vm2445, %v2461, %v2462
      %v2464 = vrot.slane %v2145, 1
      %v2465 = vsel %vm2445, %v2462, %v2464
      %v2466 = vrot.slane %v2151, 1
      %v2467 = vrot.slane %v2157, 1
      %v2468 = vsel %vm2445, %v2466, %v2467
      %v2469 = vrot.slane %v2163, 1
      %v2470 = vsel %vm2445, %v2467, %v2469
      %v2471 = vrot.slane %v2169, 1
      %v2472 = vrot.slane %v2175, 1
      %v2473 = vsel %vm2445, %v2471, %v2472
      %v2474 = vrot.slane %v2181, 1
      %v2475 = vsel %vm2445, %v2472, %v2474
      %v2476 = vrot.slane %v2187, 1
      %v2477 = vrot.slane %v2193, 1
      %v2478 = vsel %vm2445, %v2476, %v2477
      %v2479 = vrot.slane %v2199, 1
      %v2480 = vsel %vm2445, %v2477, %v2479
      %v2481 = vrot.slane %v2205, 1
      %v2482 = vrot.slane %v2211, 1
      %v2483 = vsel %vm2445, %v2481, %v2482
      %v2484 = vrot.slane %v2217, 1
      %v2485 = vsel %vm2445, %v2482, %v2484
      %v2486 = vrot.slane %v2223, 1
      %v2487 = vrot.slane %v2229, 1
      %v2488 = vsel %vm2445, %v2486, %v2487
      %v2489 = vrot.slane %v2235, 1
      %v2490 = vsel %vm2445, %v2487, %v2489
      %v2491 = vrot.slane %v2241, 1
      %v2492 = vrot.slane %v2247, 1
      %v2493 = vsel %vm2445, %v2491, %v2492
      %v2494 = vrot.slane %v2253, 1
      %v2495 = vsel %vm2445, %v2492, %v2494
      %v2496 = vrot.slane %v2259, 1
      %v2497 = vrot.slane %v2265, 1
      %v2498 = vsel %vm2445, %v2496, %v2497
      %v2499 = vrot.slane %v2271, 1
      %v2500 = vsel %vm2445, %v2497, %v2499
      %v2501 = vrot.slane %v2277, 1
      %v2502 = vrot.slane %v2283, 1
      %v2503 = vsel %vm2445, %v2501, %v2502
      %v2504 = vrot.slane %v2289, 1
      %v2505 = vsel %vm2445, %v2502, %v2504
      %v2506 = vrot.slane %v2295, 1
      %v2507 = vrot.slane %v2301, 1
      %v2508 = vsel %vm2445, %v2506, %v2507
      %v2509 = vrot.slane %v2307, 1
      %v2510 = vsel %vm2445, %v2507, %v2509
      %v2511 = vrot.slane %v2313, 1
      %v2512 = vrot.slane %v2319, 1
      %v2513 = vsel %vm2445, %v2511, %v2512
      %v2514 = vrot.slane %v2325, 1
      %v2515 = vsel %vm2445, %v2512, %v2514
      %v2516 = vrot.slane %v2331, 1
      %v2517 = vrot.slane %v2337, 1
      %v2518 = vsel %vm2445, %v2516, %v2517
      %v2519 = vrot.slane %v2343, 1
      %v2520 = vsel %vm2445, %v2517, %v2519
      %v2521 = vrot.slane %v2349, 1
      %v2522 = vrot.slane %v2355, 1
      %v2523 = vsel %vm2445, %v2521, %v2522
      %v2524 = vrot.slane %v2361, 1
      %v2525 = vsel %vm2445, %v2522, %v2524
      %2526 = vrot.lane.b32.xlu0 %v2448, 64
      %v2527 = vpop.permute.xlu0 %2526
      %2528 = vrot.lane.b32.xlu0 %v2450, 64
      %v2529 = vpop.permute.xlu0 %2528
      %2530 = vrot.lane.b32.xlu0 %v2453, 64
      %v2531 = vpop.permute.xlu0 %2530
      %2532 = vrot.lane.b32.xlu0 %v2455, 64
      %v2533 = vpop.permute.xlu0 %2532
      %2534 = vrot.lane.b32.xlu0 %v2458, 64
      %v2535 = vpop.permute.xlu0 %2534
      %2536 = vrot.lane.b32.xlu0 %v2460, 64
      %v2537 = vpop.permute.xlu0 %2536
      %2538 = vrot.lane.b32.xlu0 %v2463, 64
      %v2539 = vpop.permute.xlu0 %2538
      %2540 = vrot.lane.b32.xlu0 %v2465, 64
      %v2541 = vpop.permute.xlu0 %2540
      %2542 = vrot.lane.b32.xlu0 %v2468, 64
      %v2543 = vpop.permute.xlu0 %2542
      %2544 = vrot.lane.b32.xlu0 %v2470, 64
      %v2545 = vpop.permute.xlu0 %2544
      %2546 = vrot.lane.b32.xlu0 %v2473, 64
      %v2547 = vpop.permute.xlu0 %2546
      %2548 = vrot.lane.b32.xlu0 %v2475, 64
      %v2549 = vpop.permute.xlu0 %2548
      %2550 = vrot.lane.b32.xlu0 %v2478, 64
      %v2551 = vpop.permute.xlu0 %2550
      %2552 = vrot.lane.b32.xlu0 %v2480, 64
      %v2553 = vpop.permute.xlu0 %2552
      %2554 = vrot.lane.b32.xlu0 %v2483, 64
      %v2555 = vpop.permute.xlu0 %2554
      %2556 = vrot.lane.b32.xlu0 %v2485, 64
      %v2557 = vpop.permute.xlu0 %2556
      %2558 = vrot.lane.b32.xlu0 %v2488, 64
      %v2559 = vpop.permute.xlu0 %2558
      %2560 = vrot.lane.b32.xlu0 %v2490, 64
      %v2561 = vpop.permute.xlu0 %2560
      %2562 = vrot.lane.b32.xlu0 %v2493, 64
      %v2563 = vpop.permute.xlu0 %2562
      %2564 = vrot.lane.b32.xlu0 %v2495, 64
      %v2565 = vpop.permute.xlu0 %2564
      %2566 = vrot.lane.b32.xlu0 %v2498, 64
      %v2567 = vpop.permute.xlu0 %2566
      %2568 = vrot.lane.b32.xlu0 %v2500, 64
      %v2569 = vpop.permute.xlu0 %2568
      %2570 = vrot.lane.b32.xlu0 %v2503, 64
      %v2571 = vpop.permute.xlu0 %2570
      %2572 = vrot.lane.b32.xlu0 %v2505, 64
      %v2573 = vpop.permute.xlu0 %2572
      %2574 = vrot.lane.b32.xlu0 %v2508, 64
      %v2575 = vpop.permute.xlu0 %2574
      %2576 = vrot.lane.b32.xlu0 %v2510, 64
      %v2577 = vpop.permute.xlu0 %2576
      %2578 = vrot.lane.b32.xlu0 %v2513, 64
      %v2579 = vpop.permute.xlu0 %2578
      %2580 = vrot.lane.b32.xlu0 %v2515, 64
      %v2581 = vpop.permute.xlu0 %2580
      %2582 = vrot.lane.b32.xlu0 %v2518, 64
      %v2583 = vpop.permute.xlu0 %2582
      %2584 = vrot.lane.b32.xlu0 %v2520, 64
      %v2585 = vpop.permute.xlu0 %2584
      %2586 = vrot.lane.b32.xlu0 %v2523, 64
      %v2587 = vpop.permute.xlu0 %2586
      %2588 = vrot.lane.b32.xlu0 %v2525, 64
      %v2589 = vpop.permute.xlu0 %2588
      %v2622 = vadd.f32 %v2365, %v2527
      %v2623 = vadd.f32 %v2366, %v2529
      %v2624 = vadd.f32 %v2367, %v2531
      %v2625 = vadd.f32 %v2368, %v2533
      %v2626 = vadd.f32 %v2369, %v2535
      %v2627 = vadd.f32 %v2370, %v2537
      %v2628 = vadd.f32 %v2371, %v2539
      %v2629 = vadd.f32 %v2372, %v2541
      %v2630 = vadd.f32 %v2373, %v2543
      %v2631 = vadd.f32 %v2374, %v2545
      %v2632 = vadd.f32 %v2375, %v2547
      %v2633 = vadd.f32 %v2376, %v2549
      %v2634 = vadd.f32 %v2377, %v2551
      %v2635 = vadd.f32 %v2378, %v2553
      %v2636 = vadd.f32 %v2379, %v2555
      %v2637 = vadd.f32 %v2380, %v2557
      %v2638 = vadd.f32 %v2381, %v2559
      %v2639 = vadd.f32 %v2382, %v2561
      %v2640 = vadd.f32 %v2383, %v2563
      %v2641 = vadd.f32 %v2384, %v2565
      %v2642 = vadd.f32 %v2385, %v2567
      %v2643 = vadd.f32 %v2386, %v2569
      %v2644 = vadd.f32 %v2387, %v2571
      %v2645 = vadd.f32 %v2388, %v2573
      %v2646 = vadd.f32 %v2389, %v2575
      %v2647 = vadd.f32 %v2390, %v2577
      %v2648 = vadd.f32 %v2391, %v2579
      %v2649 = vadd.f32 %v2392, %v2581
      %v2650 = vadd.f32 %v2393, %v2583
      %v2651 = vadd.f32 %v2394, %v2585
      %v2652 = vadd.f32 %v2395, %v2587
      %v2653 = vadd.f32 %v2396, %v2589
      %vm2702 = vcmask 1045504
      %v2703 = vrot.slane %v2081, 2
      %v2704 = vrot.slane %v2087, 2
      %v2705 = vsel %vm2702, %v2703, %v2704
      %v2706 = vrot.slane %v2093, 2
      %v2707 = vsel %vm2702, %v2704, %v2706
      %v2708 = vrot.slane %v2099, 2
      %v2709 = vrot.slane %v2105, 2
      %v2710 = vsel %vm2702, %v2708, %v2709
      %v2711 = vrot.slane %v2111, 2
      %v2712 = vsel %vm2702, %v2709, %v2711
      %v2713 = vrot.slane %v2117, 2
      %v2714 = vrot.slane %v2123, 2
      %v2715 = vsel %vm2702, %v2713, %v2714
      %v2716 = vrot.slane %v2129, 2
      %v2717 = vsel %vm2702, %v2714, %v2716
      %v2718 = vrot.slane %v2135, 2
      %v2719 = vrot.slane %v2141, 2
      %v2720 = vsel %vm2702, %v2718, %v2719
      %v2721 = vrot.slane %v2147, 2
      %v2722 = vsel %vm2702, %v2719, %v2721
      %v2723 = vrot.slane %v2153, 2
      %v2724 = vrot.slane %v2159, 2
      %v2725 = vsel %vm2702, %v2723, %v2724
      %v2726 = vrot.slane %v2165, 2
      %v2727 = vsel %vm2702, %v2724, %v2726
      %v2728 = vrot.slane %v2171, 2
      %v2729 = vrot.slane %v2177, 2
      %v2730 = vsel %vm2702, %v2728, %v2729
      %v2731 = vrot.slane %v2183, 2
      %v2732 = vsel %vm2702, %v2729, %v2731
      %v2733 = vrot.slane %v2189, 2
      %v2734 = vrot.slane %v2195, 2
      %v2735 = vsel %vm2702, %v2733, %v2734
      %v2736 = vrot.slane %v2201, 2
      %v2737 = vsel %vm2702, %v2734, %v2736
      %v2738 = vrot.slane %v2207, 2
      %v2739 = vrot.slane %v2213, 2
      %v2740 = vsel %vm2702, %v2738, %v2739
      %v2741 = vrot.slane %v2219, 2
      %v2742 = vsel %vm2702, %v2739, %v2741
      %v2743 = vrot.slane %v2225, 2
      %v2744 = vrot.slane %v2231, 2
      %v2745 = vsel %vm2702, %v2743, %v2744
      %v2746 = vrot.slane %v2237, 2
      %v2747 = vsel %vm2702, %v2744, %v2746
      %v2748 = vrot.slane %v2243, 2
      %v2749 = vrot.slane %v2249, 2
      %v2750 = vsel %vm2702, %v2748, %v2749
      %v2751 = vrot.slane %v2255, 2
      %v2752 = vsel %vm2702, %v2749, %v2751
      %v2753 = vrot.slane %v2261, 2
      %v2754 = vrot.slane %v2267, 2
      %v2755 = vsel %vm2702, %v2753, %v2754
      %v2756 = vrot.slane %v2273, 2
      %v2757 = vsel %vm2702, %v2754, %v2756
      %v2758 = vrot.slane %v2279, 2
      %v2759 = vrot.slane %v2285, 2
      %v2760 = vsel %vm2702, %v2758, %v2759
      %v2761 = vrot.slane %v2291, 2
      %v2762 = vsel %vm2702, %v2759, %v2761
      %v2763 = vrot.slane %v2297, 2
      %v2764 = vrot.slane %v2303, 2
      %v2765 = vsel %vm2702, %v2763, %v2764
      %v2766 = vrot.slane %v2309, 2
      %v2767 = vsel %vm2702, %v2764, %v2766
      %v2768 = vrot.slane %v2315, 2
      %v2769 = vrot.slane %v2321, 2
      %v2770 = vsel %vm2702, %v2768, %v2769
      %v2771 = vrot.slane %v2327, 2
      %v2772 = vsel %vm2702, %v2769, %v2771
      %v2773 = vrot.slane %v2333, 2
      %v2774 = vrot.slane %v2339, 2
      %v2775 = vsel %vm2702, %v2773, %v2774
      %v2776 = vrot.slane %v2345, 2
      %v2777 = vsel %vm2702, %v2774, %v2776
      %v2778 = vrot.slane %v2351, 2
      %v2779 = vrot.slane %v2357, 2
      %v2780 = vsel %vm2702, %v2778, %v2779
      %v2781 = vrot.slane %v2363, 2
      %v2782 = vsel %vm2702, %v2779, %v2781
      %v2815 = vadd.f32 %v2622, %v2705
      %v2816 = vadd.f32 %v2623, %v2707
      %v2817 = vadd.f32 %v2624, %v2710
      %v2818 = vadd.f32 %v2625, %v2712
      %v2819 = vadd.f32 %v2626, %v2715
      %v2820 = vadd.f32 %v2627, %v2717
      %v2821 = vadd.f32 %v2628, %v2720
      %v2822 = vadd.f32 %v2629, %v2722
      %v2823 = vadd.f32 %v2630, %v2725
      %v2824 = vadd.f32 %v2631, %v2727
      %v2825 = vadd.f32 %v2632, %v2730
      %v2826 = vadd.f32 %v2633, %v2732
      %v2827 = vadd.f32 %v2634, %v2735
      %v2828 = vadd.f32 %v2635, %v2737
      %v2829 = vadd.f32 %v2636, %v2740
      %v2830 = vadd.f32 %v2637, %v2742
      %v2831 = vadd.f32 %v2638, %v2745
      %v2832 = vadd.f32 %v2639, %v2747
      %v2833 = vadd.f32 %v2640, %v2750
      %v2834 = vadd.f32 %v2641, %v2752
      %v2835 = vadd.f32 %v2642, %v2755
      %v2836 = vadd.f32 %v2643, %v2757
      %v2837 = vadd.f32 %v2644, %v2760
      %v2838 = vadd.f32 %v2645, %v2762
      %v2839 = vadd.f32 %v2646, %v2765
      %v2840 = vadd.f32 %v2647, %v2767
      %v2841 = vadd.f32 %v2648, %v2770
      %v2842 = vadd.f32 %v2649, %v2772
      %v2843 = vadd.f32 %v2650, %v2775
      %v2844 = vadd.f32 %v2651, %v2777
      %v2845 = vadd.f32 %v2652, %v2780
      %v2846 = vadd.f32 %v2653, %v2782
      %v2847 = vld [vmem:[%s1771] sm:$0xff]
      %v2848 = vld [vmem:[%s1771 + $0x8] sm:$0xff]
      %v2849 = vld [vmem:[%s1771 + $0x10] sm:$0xff]
      %v2850 = vld [vmem:[%s1771 + $0x18] sm:$0xff]
      %v2851 = vld [vmem:[%s1771 + $0x20] sm:$0xff]
      %v2852 = vld [vmem:[%s1771 + $0x28] sm:$0xff]
      %v2853 = vld [vmem:[%s1771 + $0x30] sm:$0xff]
      %v2854 = vld [vmem:[%s1771 + $0x38] sm:$0xff]
      %v2855 = vld [vmem:[%s1771 + $0x40] sm:$0xff]
      %v2856 = vld [vmem:[%s1771 + $0x48] sm:$0xff]
      %v2857 = vld [vmem:[%s1771 + $0x50] sm:$0xff]
      %v2858 = vld [vmem:[%s1771 + $0x58] sm:$0xff]
      %v2859 = vld [vmem:[%s1771 + $0x60] sm:$0xff]
      %v2860 = vld [vmem:[%s1771 + $0x68] sm:$0xff]
      %v2861 = vld [vmem:[%s1771 + $0x70] sm:$0xff]
      %v2862 = vld [vmem:[%s1771 + $0x78] sm:$0xff]
      %v2863 = vld [vmem:[%s1771 + $0x80] sm:$0xff]
      %v2864 = vld [vmem:[%s1771 + $0x88] sm:$0xff]
      %v2865 = vld [vmem:[%s1771 + $0x90] sm:$0xff]
      %v2866 = vld [vmem:[%s1771 + $0x98] sm:$0xff]
      %v2867 = vld [vmem:[%s1771 + $0xa0] sm:$0xff]
      %v2868 = vld [vmem:[%s1771 + $0xa8] sm:$0xff]
      %v2869 = vld [vmem:[%s1771 + $0xb0] sm:$0xff]
      %v2870 = vld [vmem:[%s1771 + $0xb8] sm:$0xff]
      %v2871 = vld [vmem:[%s1771 + $0xc0] sm:$0xff]
      %v2872 = vld [vmem:[%s1771 + $0xc8] sm:$0xff]
      %v2873 = vld [vmem:[%s1771 + $0xd0] sm:$0xff]
      %v2874 = vld [vmem:[%s1771 + $0xd8] sm:$0xff]
      %v2875 = vld [vmem:[%s1771 + $0xe0] sm:$0xff]
      %v2876 = vld [vmem:[%s1771 + $0xe8] sm:$0xff]
      %v2877 = vld [vmem:[%s1771 + $0xf0] sm:$0xff]
      %v2878 = vld [vmem:[%s1771 + $0xf8] sm:$0xff]
      %v2879 = vld [vmem:[%s1771 + $0x100] sm:$0xff]
      %v2880 = vld [vmem:[%s1771 + $0x108] sm:$0xff]
      %v2881 = vld [vmem:[%s1771 + $0x110] sm:$0xff]
      %v2882 = vld [vmem:[%s1771 + $0x118] sm:$0xff]
      %v2883 = vld [vmem:[%s1771 + $0x120] sm:$0xff]
      %v2884 = vld [vmem:[%s1771 + $0x128] sm:$0xff]
      %v2885 = vld [vmem:[%s1771 + $0x130] sm:$0xff]
      %v2886 = vld [vmem:[%s1771 + $0x138] sm:$0xff]
      %v2887 = vld [vmem:[%s1771 + $0x140] sm:$0xff]
      %v2888 = vld [vmem:[%s1771 + $0x148] sm:$0xff]
      %v2889 = vld [vmem:[%s1771 + $0x150] sm:$0xff]
      %v2890 = vld [vmem:[%s1771 + $0x158] sm:$0xff]
      %v2891 = vld [vmem:[%s1771 + $0x160] sm:$0xff]
      %v2892 = vld [vmem:[%s1771 + $0x168] sm:$0xff]
      %v2893 = vld [vmem:[%s1771 + $0x170] sm:$0xff]
      %v2894 = vld [vmem:[%s1771 + $0x178] sm:$0xff]
      %s2895 = scalar_lea.vmem %s6, 128
      %v2896 = vld [vmem:[%s2895] sm:$0xff]
      %v2897 = vld [vmem:[%s2895 + $0x8] sm:$0xff]
      %v2898 = vld [vmem:[%s2895 + $0x10] sm:$0xff]
      %v2899 = vld [vmem:[%s2895 + $0x18] sm:$0xff]
      %v2900 = vld [vmem:[%s2895 + $0x20] sm:$0xff]
      %v2901 = vld [vmem:[%s2895 + $0x28] sm:$0xff]
      %v2902 = vld [vmem:[%s2895 + $0x30] sm:$0xff]
      %v2903 = vld [vmem:[%s2895 + $0x38] sm:$0xff]
      %v2904 = vld [vmem:[%s2895 + $0x40] sm:$0xff]
      %v2905 = vld [vmem:[%s2895 + $0x48] sm:$0xff]
      %v2906 = vld [vmem:[%s2895 + $0x50] sm:$0xff]
      %v2907 = vld [vmem:[%s2895 + $0x58] sm:$0xff]
      %v2908 = vld [vmem:[%s2895 + $0x60] sm:$0xff]
      %v2909 = vld [vmem:[%s2895 + $0x68] sm:$0xff]
      %v2910 = vld [vmem:[%s2895 + $0x70] sm:$0xff]
      %v2911 = vld [vmem:[%s2895 + $0x78] sm:$0xff]
      %v2913 = vsel %vm569, %v2847, 0
      %v2916 = vsel %vm569, %v2848, 0
      %v2919 = vsel %vm569, %v2849, 0
      %v2922 = vsel %vm569, %v2850, 0
      %v2925 = vsel %vm569, %v2851, 0
      %v2928 = vsel %vm569, %v2852, 0
      %v2931 = vsel %vm569, %v2853, 0
      %v2934 = vsel %vm569, %v2854, 0
      %v2937 = vsel %vm569, %v2855, 0
      %v2940 = vsel %vm569, %v2856, 0
      %v2943 = vsel %vm569, %v2857, 0
      %v2946 = vsel %vm569, %v2858, 0
      %v2949 = vsel %vm569, %v2859, 0
      %v2952 = vsel %vm569, %v2860, 0
      %v2955 = vsel %vm569, %v2861, 0
      %v2958 = vsel %vm569, %v2862, 0
      %v2961 = vsel %vm569, %v2863, 0
      %v2964 = vsel %vm569, %v2864, 0
      %v2967 = vsel %vm569, %v2865, 0
      %v2970 = vsel %vm569, %v2866, 0
      %v2973 = vsel %vm569, %v2867, 0
      %v2976 = vsel %vm569, %v2868, 0
      %v2979 = vsel %vm569, %v2869, 0
      %v2982 = vsel %vm569, %v2870, 0
      %v2985 = vsel %vm569, %v2871, 0
      %v2988 = vsel %vm569, %v2872, 0
      %v2991 = vsel %vm569, %v2873, 0
      %v2994 = vsel %vm569, %v2874, 0
      %v2997 = vsel %vm569, %v2875, 0
      %v3000 = vsel %vm569, %v2876, 0
      %v3003 = vsel %vm569, %v2877, 0
      %v3006 = vsel %vm569, %v2878, 0
      %v3009 = vsel %vm569, %v2879, 0
      %v3012 = vsel %vm569, %v2880, 0
      %v3015 = vsel %vm569, %v2881, 0
      %v3018 = vsel %vm569, %v2882, 0
      %v3021 = vsel %vm569, %v2883, 0
      %v3024 = vsel %vm569, %v2884, 0
      %v3027 = vsel %vm569, %v2885, 0
      %v3030 = vsel %vm569, %v2886, 0
      %v3033 = vsel %vm569, %v2887, 0
      %v3036 = vsel %vm569, %v2888, 0
      %v3039 = vsel %vm569, %v2889, 0
      %v3042 = vsel %vm569, %v2890, 0
      %v3045 = vsel %vm569, %v2891, 0
      %v3048 = vsel %vm569, %v2892, 0
      %v3051 = vsel %vm569, %v2893, 0
      %v3054 = vsel %vm569, %v2894, 0
      %3056 = vmatprep.subr.mxu0 0.0
      %3057 = vmatpush1.msra.mxu0 0.0
      %3058 = vmatprep.subr.mxu0 0.0
      %3059 = vmatpush1.msra.mxu0 0.0
      %3060 = vmatprep.subr.mxu0 0.0
      %3061 = vmatpush1.msra.mxu0 0.0
      %3062 = vmatprep.subr.mxu0 0.0
      %3063 = vmatpush1.msra.mxu0 0.0
      %3064 = vmatprep.subr.mxu0 0.0
      %3065 = vmatpush1.msra.mxu0 0.0
      %3066 = vmatprep.subr.mxu0 0.0
      %3067 = vmatpush1.msra.mxu0 0.0
      %3068 = vmatprep.subr.mxu0 0.0
      %3069 = vmatpush1.msra.mxu0 0.0
      %3070 = vmatprep.subr.mxu0 0.0
      %3071 = vmatpush1.msra.mxu0 0.0
      %3072 = vmatprep.subr.mxu0 %v2911
      %3073 = vmatpush1.msra.mxu0 %v2910
      %3074 = vmatprep.subr.mxu0 %v2909
      %3075 = vmatpush1.msra.mxu0 %v2908
      %3076 = vmatprep.subr.mxu0 %v2907
      %3077 = vmatpush1.msra.mxu0 %v2906
      %3078 = vmatprep.subr.mxu0 %v2905
      %3079 = vmatpush1.msra.mxu0 %v2904
      %3080 = vmatprep.subr.mxu0 %v2903
      %3081 = vmatpush1.msra.mxu0 %v2902
      %3082 = vmatprep.subr.mxu0 %v2901
      %3083 = vmatpush1.msra.mxu0 %v2900
      %3084 = vmatprep.subr.mxu0 %v2899
      %3085 = vmatpush1.msra.mxu0 %v2898
      %3086 = vmatprep.subr.mxu0 %v2897
      %3087 = vmatpush1.msra.mxu0 %v2896
      %3088 = vmatprep.subr.mxu0 0.0
      %3089 = vmatpush2.msra.mxu0 0.0
      %3090 = vmatprep.subr.mxu0 0.0
      %3091 = vmatpush2.msra.mxu0 0.0
      %3092 = vmatprep.subr.mxu0 0.0
      %3093 = vmatpush2.msra.mxu0 0.0
      %3094 = vmatprep.subr.mxu0 0.0
      %3095 = vmatpush2.msra.mxu0 0.0
      %3096 = vmatprep.subr.mxu0 0.0
      %3097 = vmatpush2.msra.mxu0 0.0
      %3098 = vmatprep.subr.mxu0 0.0
      %3099 = vmatpush2.msra.mxu0 0.0
      %3100 = vmatprep.subr.mxu0 0.0
      %3101 = vmatpush2.msra.mxu0 0.0
      %3102 = vmatprep.subr.mxu0 0.0
      %3103 = vmatpush2.msra.mxu0 0.0
      %3104 = vmatprep.subr.mxu0 0.0
      %3105 = vmatpush2.msra.mxu0 0.0
      %3106 = vmatprep.subr.mxu0 0.0
      %3107 = vmatpush2.msra.mxu0 0.0
      %3108 = vmatprep.subr.mxu0 0.0
      %3109 = vmatpush2.msra.mxu0 0.0
      %3110 = vmatprep.subr.mxu0 0.0
      %3111 = vmatpush2.msra.mxu0 0.0
      %3112 = vmatprep.subr.mxu0 0.0
      %3113 = vmatpush2.msra.mxu0 0.0
      %3114 = vmatprep.subr.mxu0 0.0
      %3115 = vmatpush2.msra.mxu0 0.0
      %3116 = vmatprep.subr.mxu0 0.0
      %3117 = vmatpush2.msra.mxu0 0.0
      %3118 = vmatprep.subr.mxu0 0.0
      %3119 = vmatpush2.msra.mxu0 0.0
      %3120 = vmatprep.mubr.f32.mxu0 0.0
      %3121 = vmatmul.mubr.f32.gmra.mxu0 %v2913
      %v3122 = vpop.f32.mrf.mxu0
      %v3123 = vadd.f32 0.0, %v3122
      %v3124 = vpop.f32.mrf.mxu0
      %v3125 = vadd.f32 0.0, %v3124
      %3126 = vmatprep.mubr.f32.mxu0 0.0
      %3127 = vmatmul.mubr.f32.gmra.mxu0 %v2916
      %v3128 = vpop.f32.mrf.mxu0
      %v3129 = vadd.f32 0.0, %v3128
      %v3130 = vpop.f32.mrf.mxu0
      %v3131 = vadd.f32 0.0, %v3130
      %3132 = vmatprep.mubr.f32.mxu0 0.0
      %3133 = vmatmul.mubr.f32.gmra.mxu0 %v2919
      %v3134 = vpop.f32.mrf.mxu0
      %v3135 = vadd.f32 0.0, %v3134
      %v3136 = vpop.f32.mrf.mxu0
      %v3137 = vadd.f32 0.0, %v3136
      %3138 = vmatprep.mubr.f32.mxu0 0.0
      %3139 = vmatmul.mubr.f32.gmra.mxu0 %v2922
      %v3140 = vpop.f32.mrf.mxu0
      %v3141 = vadd.f32 0.0, %v3140
      %v3142 = vpop.f32.mrf.mxu0
      %v3143 = vadd.f32 0.0, %v3142
      %3144 = vmatprep.mubr.f32.mxu0 0.0
      %3145 = vmatmul.mubr.f32.gmra.mxu0 %v2925
      %v3146 = vpop.f32.mrf.mxu0
      %v3147 = vadd.f32 0.0, %v3146
      %v3148 = vpop.f32.mrf.mxu0
      %v3149 = vadd.f32 0.0, %v3148
      %3150 = vmatprep.mubr.f32.mxu0 0.0
      %3151 = vmatmul.mubr.f32.gmra.mxu0 %v2928
      %v3152 = vpop.f32.mrf.mxu0
      %v3153 = vadd.f32 0.0, %v3152
      %v3154 = vpop.f32.mrf.mxu0
      %v3155 = vadd.f32 0.0, %v3154
      %3156 = vmatprep.mubr.f32.mxu0 0.0
      %3157 = vmatmul.mubr.f32.gmra.mxu0 %v2931
      %v3158 = vpop.f32.mrf.mxu0
      %v3159 = vadd.f32 0.0, %v3158
      %v3160 = vpop.f32.mrf.mxu0
      %v3161 = vadd.f32 0.0, %v3160
      %3162 = vmatprep.mubr.f32.mxu0 0.0
      %3163 = vmatmul.mubr.f32.gmra.mxu0 %v2934
      %v3164 = vpop.f32.mrf.mxu0
      %v3165 = vadd.f32 0.0, %v3164
      %v3166 = vpop.f32.mrf.mxu0
      %v3167 = vadd.f32 0.0, %v3166
      %3168 = vmatprep.mubr.f32.mxu0 0.0
      %3169 = vmatmul.mubr.f32.gmra.mxu0 %v2937
      %v3170 = vpop.f32.mrf.mxu0
      %v3171 = vadd.f32 0.0, %v3170
      %v3172 = vpop.f32.mrf.mxu0
      %v3173 = vadd.f32 0.0, %v3172
      %3174 = vmatprep.mubr.f32.mxu0 0.0
      %3175 = vmatmul.mubr.f32.gmra.mxu0 %v2940
      %v3176 = vpop.f32.mrf.mxu0
      %v3177 = vadd.f32 0.0, %v3176
      %v3178 = vpop.f32.mrf.mxu0
      %v3179 = vadd.f32 0.0, %v3178
      %3180 = vmatprep.mubr.f32.mxu0 0.0
      %3181 = vmatmul.mubr.f32.gmra.mxu0 %v2943
      %v3182 = vpop.f32.mrf.mxu0
      %v3183 = vadd.f32 0.0, %v3182
      %v3184 = vpop.f32.mrf.mxu0
      %v3185 = vadd.f32 0.0, %v3184
      %3186 = vmatprep.mubr.f32.mxu0 0.0
      %3187 = vmatmul.mubr.f32.gmra.mxu0 %v2946
      %v3188 = vpop.f32.mrf.mxu0
      %v3189 = vadd.f32 0.0, %v3188
      %v3190 = vpop.f32.mrf.mxu0
      %v3191 = vadd.f32 0.0, %v3190
      %3192 = vmatprep.mubr.f32.mxu0 0.0
      %3193 = vmatmul.mubr.f32.gmra.mxu0 %v2949
      %v3194 = vpop.f32.mrf.mxu0
      %v3195 = vadd.f32 0.0, %v3194
      %v3196 = vpop.f32.mrf.mxu0
      %v3197 = vadd.f32 0.0, %v3196
      %3198 = vmatprep.mubr.f32.mxu0 0.0
      %3199 = vmatmul.mubr.f32.gmra.mxu0 %v2952
      %v3200 = vpop.f32.mrf.mxu0
      %v3201 = vadd.f32 0.0, %v3200
      %v3202 = vpop.f32.mrf.mxu0
      %v3203 = vadd.f32 0.0, %v3202
      %3204 = vmatprep.mubr.f32.mxu0 0.0
      %3205 = vmatmul.mubr.f32.gmra.mxu0 %v2955
      %v3206 = vpop.f32.mrf.mxu0
      %v3207 = vadd.f32 0.0, %v3206
      %v3208 = vpop.f32.mrf.mxu0
      %v3209 = vadd.f32 0.0, %v3208
      %3210 = vmatprep.mubr.f32.mxu0 0.0
      %3211 = vmatmul.mubr.f32.gmra.mxu0 %v2958
      %v3212 = vpop.f32.mrf.mxu0
      %v3213 = vadd.f32 0.0, %v3212
      %v3214 = vpop.f32.mrf.mxu0
      %v3215 = vadd.f32 0.0, %v3214
      %3216 = vmatprep.mubr.f32.mxu0 0.0
      %3217 = vmatmul.mubr.f32.gmra.mxu0 %v2961
      %v3218 = vpop.f32.mrf.mxu0
      %v3219 = vadd.f32 0.0, %v3218
      %v3220 = vpop.f32.mrf.mxu0
      %v3221 = vadd.f32 0.0, %v3220
      %3222 = vmatprep.mubr.f32.mxu0 0.0
      %3223 = vmatmul.mubr.f32.gmra.mxu0 %v2964
      %v3224 = vpop.f32.mrf.mxu0
      %v3225 = vadd.f32 0.0, %v3224
      %v3226 = vpop.f32.mrf.mxu0
      %v3227 = vadd.f32 0.0, %v3226
      %3228 = vmatprep.mubr.f32.mxu0 0.0
      %3229 = vmatmul.mubr.f32.gmra.mxu0 %v2967
      %v3230 = vpop.f32.mrf.mxu0
      %v3231 = vadd.f32 0.0, %v3230
      %v3232 = vpop.f32.mrf.mxu0
      %v3233 = vadd.f32 0.0, %v3232
      %3234 = vmatprep.mubr.f32.mxu0 0.0
      %3235 = vmatmul.mubr.f32.gmra.mxu0 %v2970
      %v3236 = vpop.f32.mrf.mxu0
      %v3237 = vadd.f32 0.0, %v3236
      %v3238 = vpop.f32.mrf.mxu0
      %v3239 = vadd.f32 0.0, %v3238
      %3240 = vmatprep.mubr.f32.mxu0 0.0
      %3241 = vmatmul.mubr.f32.gmra.mxu0 %v2973
      %v3242 = vpop.f32.mrf.mxu0
      %v3243 = vadd.f32 0.0, %v3242
      %v3244 = vpop.f32.mrf.mxu0
      %v3245 = vadd.f32 0.0, %v3244
      %3246 = vmatprep.mubr.f32.mxu0 0.0
      %3247 = vmatmul.mubr.f32.gmra.mxu0 %v2976
      %v3248 = vpop.f32.mrf.mxu0
      %v3249 = vadd.f32 0.0, %v3248
      %v3250 = vpop.f32.mrf.mxu0
      %v3251 = vadd.f32 0.0, %v3250
      %3252 = vmatprep.mubr.f32.mxu0 0.0
      %3253 = vmatmul.mubr.f32.gmra.mxu0 %v2979
      %v3254 = vpop.f32.mrf.mxu0
      %v3255 = vadd.f32 0.0, %v3254
      %v3256 = vpop.f32.mrf.mxu0
      %v3257 = vadd.f32 0.0, %v3256
      %3258 = vmatprep.mubr.f32.mxu0 0.0
      %3259 = vmatmul.mubr.f32.gmra.mxu0 %v2982
      %v3260 = vpop.f32.mrf.mxu0
      %v3261 = vadd.f32 0.0, %v3260
      %v3262 = vpop.f32.mrf.mxu0
      %v3263 = vadd.f32 0.0, %v3262
      %3264 = vmatprep.mubr.f32.mxu0 0.0
      %3265 = vmatmul.mubr.f32.gmra.mxu0 %v2985
      %v3266 = vpop.f32.mrf.mxu0
      %v3267 = vadd.f32 0.0, %v3266
      %v3268 = vpop.f32.mrf.mxu0
      %v3269 = vadd.f32 0.0, %v3268
      %3270 = vmatprep.mubr.f32.mxu0 0.0
      %3271 = vmatmul.mubr.f32.gmra.mxu0 %v2988
      %v3272 = vpop.f32.mrf.mxu0
      %v3273 = vadd.f32 0.0, %v3272
      %v3274 = vpop.f32.mrf.mxu0
      %v3275 = vadd.f32 0.0, %v3274
      %3276 = vmatprep.mubr.f32.mxu0 0.0
      %3277 = vmatmul.mubr.f32.gmra.mxu0 %v2991
      %v3278 = vpop.f32.mrf.mxu0
      %v3279 = vadd.f32 0.0, %v3278
      %v3280 = vpop.f32.mrf.mxu0
      %v3281 = vadd.f32 0.0, %v3280
      %3282 = vmatprep.mubr.f32.mxu0 0.0
      %3283 = vmatmul.mubr.f32.gmra.mxu0 %v2994
      %v3284 = vpop.f32.mrf.mxu0
      %v3285 = vadd.f32 0.0, %v3284
      %v3286 = vpop.f32.mrf.mxu0
      %v3287 = vadd.f32 0.0, %v3286
      %3288 = vmatprep.mubr.f32.mxu0 0.0
      %3289 = vmatmul.mubr.f32.gmra.mxu0 %v2997
      %v3290 = vpop.f32.mrf.mxu0
      %v3291 = vadd.f32 0.0, %v3290
      %v3292 = vpop.f32.mrf.mxu0
      %v3293 = vadd.f32 0.0, %v3292
      %3294 = vmatprep.mubr.f32.mxu0 0.0
      %3295 = vmatmul.mubr.f32.gmra.mxu0 %v3000
      %v3296 = vpop.f32.mrf.mxu0
      %v3297 = vadd.f32 0.0, %v3296
      %v3298 = vpop.f32.mrf.mxu0
      %v3299 = vadd.f32 0.0, %v3298
      %3300 = vmatprep.mubr.f32.mxu0 0.0
      %3301 = vmatmul.mubr.f32.gmra.mxu0 %v3003
      %v3302 = vpop.f32.mrf.mxu0
      %v3303 = vadd.f32 0.0, %v3302
      %v3304 = vpop.f32.mrf.mxu0
      %v3305 = vadd.f32 0.0, %v3304
      %3306 = vmatprep.mubr.f32.mxu0 0.0
      %3307 = vmatmul.mubr.f32.gmra.mxu0 %v3006
      %v3308 = vpop.f32.mrf.mxu0
      %v3309 = vadd.f32 0.0, %v3308
      %v3310 = vpop.f32.mrf.mxu0
      %v3311 = vadd.f32 0.0, %v3310
      %3312 = vmatprep.mubr.f32.mxu0 0.0
      %3313 = vmatmul.mubr.f32.gmra.mxu0 %v3009
      %v3314 = vpop.f32.mrf.mxu0
      %v3315 = vadd.f32 0.0, %v3314
      %v3316 = vpop.f32.mrf.mxu0
      %v3317 = vadd.f32 0.0, %v3316
      %3318 = vmatprep.mubr.f32.mxu0 0.0
      %3319 = vmatmul.mubr.f32.gmra.mxu0 %v3012
      %v3320 = vpop.f32.mrf.mxu0
      %v3321 = vadd.f32 0.0, %v3320
      %v3322 = vpop.f32.mrf.mxu0
      %v3323 = vadd.f32 0.0, %v3322
      %3324 = vmatprep.mubr.f32.mxu0 0.0
      %3325 = vmatmul.mubr.f32.gmra.mxu0 %v3015
      %v3326 = vpop.f32.mrf.mxu0
      %v3327 = vadd.f32 0.0, %v3326
      %v3328 = vpop.f32.mrf.mxu0
      %v3329 = vadd.f32 0.0, %v3328
      %3330 = vmatprep.mubr.f32.mxu0 0.0
      %3331 = vmatmul.mubr.f32.gmra.mxu0 %v3018
      %v3332 = vpop.f32.mrf.mxu0
      %v3333 = vadd.f32 0.0, %v3332
      %v3334 = vpop.f32.mrf.mxu0
      %v3335 = vadd.f32 0.0, %v3334
      %3336 = vmatprep.mubr.f32.mxu0 0.0
      %3337 = vmatmul.mubr.f32.gmra.mxu0 %v3021
      %v3338 = vpop.f32.mrf.mxu0
      %v3339 = vadd.f32 0.0, %v3338
      %v3340 = vpop.f32.mrf.mxu0
      %v3341 = vadd.f32 0.0, %v3340
      %3342 = vmatprep.mubr.f32.mxu0 0.0
      %3343 = vmatmul.mubr.f32.gmra.mxu0 %v3024
      %v3344 = vpop.f32.mrf.mxu0
      %v3345 = vadd.f32 0.0, %v3344
      %v3346 = vpop.f32.mrf.mxu0
      %v3347 = vadd.f32 0.0, %v3346
      %3348 = vmatprep.mubr.f32.mxu0 0.0
      %3349 = vmatmul.mubr.f32.gmra.mxu0 %v3027
      %v3350 = vpop.f32.mrf.mxu0
      %v3351 = vadd.f32 0.0, %v3350
      %v3352 = vpop.f32.mrf.mxu0
      %v3353 = vadd.f32 0.0, %v3352
      %3354 = vmatprep.mubr.f32.mxu0 0.0
      %3355 = vmatmul.mubr.f32.gmra.mxu0 %v3030
      %v3356 = vpop.f32.mrf.mxu0
      %v3357 = vadd.f32 0.0, %v3356
      %v3358 = vpop.f32.mrf.mxu0
      %v3359 = vadd.f32 0.0, %v3358
      %3360 = vmatprep.mubr.f32.mxu0 0.0
      %3361 = vmatmul.mubr.f32.gmra.mxu0 %v3033
      %v3362 = vpop.f32.mrf.mxu0
      %v3363 = vadd.f32 0.0, %v3362
      %v3364 = vpop.f32.mrf.mxu0
      %v3365 = vadd.f32 0.0, %v3364
      %3366 = vmatprep.mubr.f32.mxu0 0.0
      %3367 = vmatmul.mubr.f32.gmra.mxu0 %v3036
      %v3368 = vpop.f32.mrf.mxu0
      %v3369 = vadd.f32 0.0, %v3368
      %v3370 = vpop.f32.mrf.mxu0
      %v3371 = vadd.f32 0.0, %v3370
      %3372 = vmatprep.mubr.f32.mxu0 0.0
      %3373 = vmatmul.mubr.f32.gmra.mxu0 %v3039
      %v3374 = vpop.f32.mrf.mxu0
      %v3375 = vadd.f32 0.0, %v3374
      %v3376 = vpop.f32.mrf.mxu0
      %v3377 = vadd.f32 0.0, %v3376
      %3378 = vmatprep.mubr.f32.mxu0 0.0
      %3379 = vmatmul.mubr.f32.gmra.mxu0 %v3042
      %v3380 = vpop.f32.mrf.mxu0
      %v3381 = vadd.f32 0.0, %v3380
      %v3382 = vpop.f32.mrf.mxu0
      %v3383 = vadd.f32 0.0, %v3382
      %3384 = vmatprep.mubr.f32.mxu0 0.0
      %3385 = vmatmul.mubr.f32.gmra.mxu0 %v3045
      %v3386 = vpop.f32.mrf.mxu0
      %v3387 = vadd.f32 0.0, %v3386
      %v3388 = vpop.f32.mrf.mxu0
      %v3389 = vadd.f32 0.0, %v3388
      %3390 = vmatprep.mubr.f32.mxu0 0.0
      %3391 = vmatmul.mubr.f32.gmra.mxu0 %v3048
      %v3392 = vpop.f32.mrf.mxu0
      %v3393 = vadd.f32 0.0, %v3392
      %v3394 = vpop.f32.mrf.mxu0
      %v3395 = vadd.f32 0.0, %v3394
      %3396 = vmatprep.mubr.f32.mxu0 0.0
      %3397 = vmatmul.mubr.f32.gmra.mxu0 %v3051
      %v3398 = vpop.f32.mrf.mxu0
      %v3399 = vadd.f32 0.0, %v3398
      %v3400 = vpop.f32.mrf.mxu0
      %v3401 = vadd.f32 0.0, %v3400
      %3402 = vmatprep.mubr.f32.mxu0 0.0
      %3403 = vmatmul.mubr.f32.gmra.mxu0 %v3054
      %v3404 = vpop.f32.mrf.mxu0
      %v3405 = vadd.f32 0.0, %v3404
      %v3406 = vpop.f32.mrf.mxu0
      %v3407 = vadd.f32 0.0, %v3406
      %3408 = vdwg.mxu0
      %v3409 = vadd.f32 %v2815, %v3123
      %v3410 = vadd.f32 %v2816, %v3129
      %v3411 = vadd.f32 %v2817, %v3141
      %v3412 = vadd.f32 %v2818, %v3147
      %v3413 = vadd.f32 %v2819, %v3159
      %v3414 = vadd.f32 %v2820, %v3165
      %v3415 = vadd.f32 %v2821, %v3177
      %v3416 = vadd.f32 %v2822, %v3183
      %v3417 = vadd.f32 %v2823, %v3195
      %v3418 = vadd.f32 %v2824, %v3201
      %v3419 = vadd.f32 %v2825, %v3213
      %v3420 = vadd.f32 %v2826, %v3219
      %v3421 = vadd.f32 %v2827, %v3231
      %v3422 = vadd.f32 %v2828, %v3237
      %v3423 = vadd.f32 %v2829, %v3249
      %v3424 = vadd.f32 %v2830, %v3255
      %v3425 = vadd.f32 %v2831, %v3267
      %v3426 = vadd.f32 %v2832, %v3273
      %v3427 = vadd.f32 %v2833, %v3285
      %v3428 = vadd.f32 %v2834, %v3291
      %v3429 = vadd.f32 %v2835, %v3303
      %v3430 = vadd.f32 %v2836, %v3309
      %v3431 = vadd.f32 %v2837, %v3321
      %v3432 = vadd.f32 %v2838, %v3327
      %v3433 = vadd.f32 %v2839, %v3339
      %v3434 = vadd.f32 %v2840, %v3345
      %v3435 = vadd.f32 %v2841, %v3357
      %v3436 = vadd.f32 %v2842, %v3363
      %v3437 = vadd.f32 %v2843, %v3375
      %v3438 = vadd.f32 %v2844, %v3381
      %v3439 = vadd.f32 %v2845, %v3393
      %v3440 = vadd.f32 %v2846, %v3399
      %v3489 = vrot.slane %v3123, 1
      %v3490 = vrot.slane %v3129, 1
      %v3491 = vsel %vm2445, %v3489, %v3490
      %v3492 = vrot.slane %v3135, 1
      %v3493 = vsel %vm2445, %v3490, %v3492
      %v3494 = vrot.slane %v3141, 1
      %v3495 = vrot.slane %v3147, 1
      %v3496 = vsel %vm2445, %v3494, %v3495
      %v3497 = vrot.slane %v3153, 1
      %v3498 = vsel %vm2445, %v3495, %v3497
      %v3499 = vrot.slane %v3159, 1
      %v3500 = vrot.slane %v3165, 1
      %v3501 = vsel %vm2445, %v3499, %v3500
      %v3502 = vrot.slane %v3171, 1
      %v3503 = vsel %vm2445, %v3500, %v3502
      %v3504 = vrot.slane %v3177, 1
      %v3505 = vrot.slane %v3183, 1
      %v3506 = vsel %vm2445, %v3504, %v3505
      %v3507 = vrot.slane %v3189, 1
      %v3508 = vsel %vm2445, %v3505, %v3507
      %v3509 = vrot.slane %v3195, 1
      %v3510 = vrot.slane %v3201, 1
      %v3511 = vsel %vm2445, %v3509, %v3510
      %v3512 = vrot.slane %v3207, 1
      %v3513 = vsel %vm2445, %v3510, %v3512
      %v3514 = vrot.slane %v3213, 1
      %v3515 = vrot.slane %v3219, 1
      %v3516 = vsel %vm2445, %v3514, %v3515
      %v3517 = vrot.slane %v3225, 1
      %v3518 = vsel %vm2445, %v3515, %v3517
      %v3519 = vrot.slane %v3231, 1
      %v3520 = vrot.slane %v3237, 1
      %v3521 = vsel %vm2445, %v3519, %v3520
      %v3522 = vrot.slane %v3243, 1
      %v3523 = vsel %vm2445, %v3520, %v3522
      %v3524 = vrot.slane %v3249, 1
      %v3525 = vrot.slane %v3255, 1
      %v3526 = vsel %vm2445, %v3524, %v3525
      %v3527 = vrot.slane %v3261, 1
      %v3528 = vsel %vm2445, %v3525, %v3527
      %v3529 = vrot.slane %v3267, 1
      %v3530 = vrot.slane %v3273, 1
      %v3531 = vsel %vm2445, %v3529, %v3530
      %v3532 = vrot.slane %v3279, 1
      %v3533 = vsel %vm2445, %v3530, %v3532
      %v3534 = vrot.slane %v3285, 1
      %v3535 = vrot.slane %v3291, 1
      %v3536 = vsel %vm2445, %v3534, %v3535
      %v3537 = vrot.slane %v3297, 1
      %v3538 = vsel %vm2445, %v3535, %v3537
      %v3539 = vrot.slane %v3303, 1
      %v3540 = vrot.slane %v3309, 1
      %v3541 = vsel %vm2445, %v3539, %v3540
      %v3542 = vrot.slane %v3315, 1
      %v3543 = vsel %vm2445, %v3540, %v3542
      %v3544 = vrot.slane %v3321, 1
      %v3545 = vrot.slane %v3327, 1
      %v3546 = vsel %vm2445, %v3544, %v3545
      %v3547 = vrot.slane %v3333, 1
      %v3548 = vsel %vm2445, %v3545, %v3547
      %v3549 = vrot.slane %v3339, 1
      %v3550 = vrot.slane %v3345, 1
      %v3551 = vsel %vm2445, %v3549, %v3550
      %v3552 = vrot.slane %v3351, 1
      %v3553 = vsel %vm2445, %v3550, %v3552
      %v3554 = vrot.slane %v3357, 1
      %v3555 = vrot.slane %v3363, 1
      %v3556 = vsel %vm2445, %v3554, %v3555
      %v3557 = vrot.slane %v3369, 1
      %v3558 = vsel %vm2445, %v3555, %v3557
      %v3559 = vrot.slane %v3375, 1
      %v3560 = vrot.slane %v3381, 1
      %v3561 = vsel %vm2445, %v3559, %v3560
      %v3562 = vrot.slane %v3387, 1
      %v3563 = vsel %vm2445, %v3560, %v3562
      %v3564 = vrot.slane %v3393, 1
      %v3565 = vrot.slane %v3399, 1
      %v3566 = vsel %vm2445, %v3564, %v3565
      %v3567 = vrot.slane %v3405, 1
      %v3568 = vsel %vm2445, %v3565, %v3567
      %3569 = vrot.lane.b32.xlu0 %v3491, 64
      %v3570 = vpop.permute.xlu0 %3569
      %3571 = vrot.lane.b32.xlu0 %v3493, 64
      %v3572 = vpop.permute.xlu0 %3571
      %3573 = vrot.lane.b32.xlu0 %v3496, 64
      %v3574 = vpop.permute.xlu0 %3573
      %3575 = vrot.lane.b32.xlu0 %v3498, 64
      %v3576 = vpop.permute.xlu0 %3575
      %3577 = vrot.lane.b32.xlu0 %v3501, 64
      %v3578 = vpop.permute.xlu0 %3577
      %3579 = vrot.lane.b32.xlu0 %v3503, 64
      %v3580 = vpop.permute.xlu0 %3579
      %3581 = vrot.lane.b32.xlu0 %v3506, 64
      %v3582 = vpop.permute.xlu0 %3581
      %3583 = vrot.lane.b32.xlu0 %v3508, 64
      %v3584 = vpop.permute.xlu0 %3583
      %3585 = vrot.lane.b32.xlu0 %v3511, 64
      %v3586 = vpop.permute.xlu0 %3585
      %3587 = vrot.lane.b32.xlu0 %v3513, 64
      %v3588 = vpop.permute.xlu0 %3587
      %3589 = vrot.lane.b32.xlu0 %v3516, 64
      %v3590 = vpop.permute.xlu0 %3589
      %3591 = vrot.lane.b32.xlu0 %v3518, 64
      %v3592 = vpop.permute.xlu0 %3591
      %3593 = vrot.lane.b32.xlu0 %v3521, 64
      %v3594 = vpop.permute.xlu0 %3593
      %3595 = vrot.lane.b32.xlu0 %v3523, 64
      %v3596 = vpop.permute.xlu0 %3595
      %3597 = vrot.lane.b32.xlu0 %v3526, 64
      %v3598 = vpop.permute.xlu0 %3597
      %3599 = vrot.lane.b32.xlu0 %v3528, 64
      %v3600 = vpop.permute.xlu0 %3599
      %3601 = vrot.lane.b32.xlu0 %v3531, 64
      %v3602 = vpop.permute.xlu0 %3601
      %3603 = vrot.lane.b32.xlu0 %v3533, 64
      %v3604 = vpop.permute.xlu0 %3603
      %3605 = vrot.lane.b32.xlu0 %v3536, 64
      %v3606 = vpop.permute.xlu0 %3605
      %3607 = vrot.lane.b32.xlu0 %v3538, 64
      %v3608 = vpop.permute.xlu0 %3607
      %3609 = vrot.lane.b32.xlu0 %v3541, 64
      %v3610 = vpop.permute.xlu0 %3609
      %3611 = vrot.lane.b32.xlu0 %v3543, 64
      %v3612 = vpop.permute.xlu0 %3611
      %3613 = vrot.lane.b32.xlu0 %v3546, 64
      %v3614 = vpop.permute.xlu0 %3613
      %3615 = vrot.lane.b32.xlu0 %v3548, 64
      %v3616 = vpop.permute.xlu0 %3615
      %3617 = vrot.lane.b32.xlu0 %v3551, 64
      %v3618 = vpop.permute.xlu0 %3617
      %3619 = vrot.lane.b32.xlu0 %v3553, 64
      %v3620 = vpop.permute.xlu0 %3619
      %3621 = vrot.lane.b32.xlu0 %v3556, 64
      %v3622 = vpop.permute.xlu0 %3621
      %3623 = vrot.lane.b32.xlu0 %v3558, 64
      %v3624 = vpop.permute.xlu0 %3623
      %3625 = vrot.lane.b32.xlu0 %v3561, 64
      %v3626 = vpop.permute.xlu0 %3625
      %3627 = vrot.lane.b32.xlu0 %v3563, 64
      %v3628 = vpop.permute.xlu0 %3627
      %3629 = vrot.lane.b32.xlu0 %v3566, 64
      %v3630 = vpop.permute.xlu0 %3629
      %3631 = vrot.lane.b32.xlu0 %v3568, 64
      %v3632 = vpop.permute.xlu0 %3631
      %v3665 = vadd.f32 %v3409, %v3570
      %v3666 = vadd.f32 %v3410, %v3572
      %v3667 = vadd.f32 %v3411, %v3574
      %v3668 = vadd.f32 %v3412, %v3576
      %v3669 = vadd.f32 %v3413, %v3578
      %v3670 = vadd.f32 %v3414, %v3580
      %v3671 = vadd.f32 %v3415, %v3582
      %v3672 = vadd.f32 %v3416, %v3584
      %v3673 = vadd.f32 %v3417, %v3586
      %v3674 = vadd.f32 %v3418, %v3588
      %v3675 = vadd.f32 %v3419, %v3590
      %v3676 = vadd.f32 %v3420, %v3592
      %v3677 = vadd.f32 %v3421, %v3594
      %v3678 = vadd.f32 %v3422, %v3596
      %v3679 = vadd.f32 %v3423, %v3598
      %v3680 = vadd.f32 %v3424, %v3600
      %v3681 = vadd.f32 %v3425, %v3602
      %v3682 = vadd.f32 %v3426, %v3604
      %v3683 = vadd.f32 %v3427, %v3606
      %v3684 = vadd.f32 %v3428, %v3608
      %v3685 = vadd.f32 %v3429, %v3610
      %v3686 = vadd.f32 %v3430, %v3612
      %v3687 = vadd.f32 %v3431, %v3614
      %v3688 = vadd.f32 %v3432, %v3616
      %v3689 = vadd.f32 %v3433, %v3618
      %v3690 = vadd.f32 %v3434, %v3620
      %v3691 = vadd.f32 %v3435, %v3622
      %v3692 = vadd.f32 %v3436, %v3624
      %v3693 = vadd.f32 %v3437, %v3626
      %v3694 = vadd.f32 %v3438, %v3628
      %v3695 = vadd.f32 %v3439, %v3630
      %v3696 = vadd.f32 %v3440, %v3632
      %v3745 = vrot.slane %v3125, 2
      %v3746 = vrot.slane %v3131, 2
      %v3747 = vsel %vm2702, %v3745, %v3746
      %v3748 = vrot.slane %v3137, 2
      %v3749 = vsel %vm2702, %v3746, %v3748
      %v3750 = vrot.slane %v3143, 2
      %v3751 = vrot.slane %v3149, 2
      %v3752 = vsel %vm2702, %v3750, %v3751
      %v3753 = vrot.slane %v3155, 2
      %v3754 = vsel %vm2702, %v3751, %v3753
      %v3755 = vrot.slane %v3161, 2
      %v3756 = vrot.slane %v3167, 2
      %v3757 = vsel %vm2702, %v3755, %v3756
      %v3758 = vrot.slane %v3173, 2
      %v3759 = vsel %vm2702, %v3756, %v3758
      %v3760 = vrot.slane %v3179, 2
      %v3761 = vrot.slane %v3185, 2
      %v3762 = vsel %vm2702, %v3760, %v3761
      %v3763 = vrot.slane %v3191, 2
      %v3764 = vsel %vm2702, %v3761, %v3763
      %v3765 = vrot.slane %v3197, 2
      %v3766 = vrot.slane %v3203, 2
      %v3767 = vsel %vm2702, %v3765, %v3766
      %v3768 = vrot.slane %v3209, 2
      %v3769 = vsel %vm2702, %v3766, %v3768
      %v3770 = vrot.slane %v3215, 2
      %v3771 = vrot.slane %v3221, 2
      %v3772 = vsel %vm2702, %v3770, %v3771
      %v3773 = vrot.slane %v3227, 2
      %v3774 = vsel %vm2702, %v3771, %v3773
      %v3775 = vrot.slane %v3233, 2
      %v3776 = vrot.slane %v3239, 2
      %v3777 = vsel %vm2702, %v3775, %v3776
      %v3778 = vrot.slane %v3245, 2
      %v3779 = vsel %vm2702, %v3776, %v3778
      %v3780 = vrot.slane %v3251, 2
      %v3781 = vrot.slane %v3257, 2
      %v3782 = vsel %vm2702, %v3780, %v3781
      %v3783 = vrot.slane %v3263, 2
      %v3784 = vsel %vm2702, %v3781, %v3783
      %v3785 = vrot.slane %v3269, 2
      %v3786 = vrot.slane %v3275, 2
      %v3787 = vsel %vm2702, %v3785, %v3786
      %v3788 = vrot.slane %v3281, 2
      %v3789 = vsel %vm2702, %v3786, %v3788
      %v3790 = vrot.slane %v3287, 2
      %v3791 = vrot.slane %v3293, 2
      %v3792 = vsel %vm2702, %v3790, %v3791
      %v3793 = vrot.slane %v3299, 2
      %v3794 = vsel %vm2702, %v3791, %v3793
      %v3795 = vrot.slane %v3305, 2
      %v3796 = vrot.slane %v3311, 2
      %v3797 = vsel %vm2702, %v3795, %v3796
      %v3798 = vrot.slane %v3317, 2
      %v3799 = vsel %vm2702, %v3796, %v3798
      %v3800 = vrot.slane %v3323, 2
      %v3801 = vrot.slane %v3329, 2
      %v3802 = vsel %vm2702, %v3800, %v3801
      %v3803 = vrot.slane %v3335, 2
      %v3804 = vsel %vm2702, %v3801, %v3803
      %v3805 = vrot.slane %v3341, 2
      %v3806 = vrot.slane %v3347, 2
      %v3807 = vsel %vm2702, %v3805, %v3806
      %v3808 = vrot.slane %v3353, 2
      %v3809 = vsel %vm2702, %v3806, %v3808
      %v3810 = vrot.slane %v3359, 2
      %v3811 = vrot.slane %v3365, 2
      %v3812 = vsel %vm2702, %v3810, %v3811
      %v3813 = vrot.slane %v3371, 2
      %v3814 = vsel %vm2702, %v3811, %v3813
      %v3815 = vrot.slane %v3377, 2
      %v3816 = vrot.slane %v3383, 2
      %v3817 = vsel %vm2702, %v3815, %v3816
      %v3818 = vrot.slane %v3389, 2
      %v3819 = vsel %vm2702, %v3816, %v3818
      %v3820 = vrot.slane %v3395, 2
      %v3821 = vrot.slane %v3401, 2
      %v3822 = vsel %vm2702, %v3820, %v3821
      %v3823 = vrot.slane %v3407, 2
      %v3824 = vsel %vm2702, %v3821, %v3823
      %v3857 = vadd.f32 %v3665, %v3747
      %v3858 = vadd.f32 %v3666, %v3749
      %v3859 = vadd.f32 %v3667, %v3752
      %v3860 = vadd.f32 %v3668, %v3754
      %v3861 = vadd.f32 %v3669, %v3757
      %v3862 = vadd.f32 %v3670, %v3759
      %v3863 = vadd.f32 %v3671, %v3762
      %v3864 = vadd.f32 %v3672, %v3764
      %v3865 = vadd.f32 %v3673, %v3767
      %v3866 = vadd.f32 %v3674, %v3769
      %v3867 = vadd.f32 %v3675, %v3772
      %v3868 = vadd.f32 %v3676, %v3774
      %v3869 = vadd.f32 %v3677, %v3777
      %v3870 = vadd.f32 %v3678, %v3779
      %v3871 = vadd.f32 %v3679, %v3782
      %v3872 = vadd.f32 %v3680, %v3784
      %v3873 = vadd.f32 %v3681, %v3787
      %v3874 = vadd.f32 %v3682, %v3789
      %v3875 = vadd.f32 %v3683, %v3792
      %v3876 = vadd.f32 %v3684, %v3794
      %v3877 = vadd.f32 %v3685, %v3797
      %v3878 = vadd.f32 %v3686, %v3799
      %v3879 = vadd.f32 %v3687, %v3802
      %v3880 = vadd.f32 %v3688, %v3804
      %v3881 = vadd.f32 %v3689, %v3807
      %v3882 = vadd.f32 %v3690, %v3809
      %v3883 = vadd.f32 %v3691, %v3812
      %v3884 = vadd.f32 %v3692, %v3814
      %v3885 = vadd.f32 %v3693, %v3817
      %v3886 = vadd.f32 %v3694, %v3819
      %v3887 = vadd.f32 %v3695, %v3822
      %v3888 = vadd.f32 %v3696, %v3824
      %s3889 = scalar_lea.vmem [#allocation2], 48
      %v3890 = vld [vmem:[%s3889] sm:$0xff]
      %v3891 = vld [vmem:[%s3889 + $0x8] sm:$0xff]
      %v3892 = vld [vmem:[%s3889 + $0x10] sm:$0xff]
      %v3893 = vld [vmem:[%s3889 + $0x18] sm:$0xff]
      %v3894 = vld [vmem:[%s3889 + $0x20] sm:$0xff]
      %v3895 = vld [vmem:[%s3889 + $0x28] sm:$0xff]
      %v3896 = vld [vmem:[%s3889 + $0x30] sm:$0xff]
      %v3897 = vld [vmem:[%s3889 + $0x38] sm:$0xff]
      %v3898 = vld [vmem:[%s3889 + $0x40] sm:$0xff]
      %v3899 = vld [vmem:[%s3889 + $0x48] sm:$0xff]
      %v3900 = vld [vmem:[%s3889 + $0x50] sm:$0xff]
      %v3901 = vld [vmem:[%s3889 + $0x58] sm:$0xff]
      %v3902 = vld [vmem:[%s3889 + $0x60] sm:$0xff]
      %v3903 = vld [vmem:[%s3889 + $0x68] sm:$0xff]
      %v3904 = vld [vmem:[%s3889 + $0x70] sm:$0xff]
      %v3905 = vld [vmem:[%s3889 + $0x78] sm:$0xff]
      %v3906 = vld [vmem:[%s3889 + $0x80] sm:$0xff]
      %v3907 = vld [vmem:[%s3889 + $0x88] sm:$0xff]
      %v3908 = vld [vmem:[%s3889 + $0x90] sm:$0xff]
      %v3909 = vld [vmem:[%s3889 + $0x98] sm:$0xff]
      %v3910 = vld [vmem:[%s3889 + $0xa0] sm:$0xff]
      %v3911 = vld [vmem:[%s3889 + $0xa8] sm:$0xff]
      %v3912 = vld [vmem:[%s3889 + $0xb0] sm:$0xff]
      %v3913 = vld [vmem:[%s3889 + $0xb8] sm:$0xff]
      %v3914 = vld [vmem:[%s3889 + $0xc0] sm:$0xff]
      %v3915 = vld [vmem:[%s3889 + $0xc8] sm:$0xff]
      %v3916 = vld [vmem:[%s3889 + $0xd0] sm:$0xff]
      %v3917 = vld [vmem:[%s3889 + $0xd8] sm:$0xff]
      %v3918 = vld [vmem:[%s3889 + $0xe0] sm:$0xff]
      %v3919 = vld [vmem:[%s3889 + $0xe8] sm:$0xff]
      %v3920 = vld [vmem:[%s3889 + $0xf0] sm:$0xff]
      %v3921 = vld [vmem:[%s3889 + $0xf8] sm:$0xff]
      %v3922 = vld [vmem:[%s3889 + $0x100] sm:$0xff]
      %v3923 = vld [vmem:[%s3889 + $0x108] sm:$0xff]
      %v3924 = vld [vmem:[%s3889 + $0x110] sm:$0xff]
      %v3925 = vld [vmem:[%s3889 + $0x118] sm:$0xff]
      %v3926 = vld [vmem:[%s3889 + $0x120] sm:$0xff]
      %v3927 = vld [vmem:[%s3889 + $0x128] sm:$0xff]
      %v3928 = vld [vmem:[%s3889 + $0x130] sm:$0xff]
      %v3929 = vld [vmem:[%s3889 + $0x138] sm:$0xff]
      %v3930 = vld [vmem:[%s3889 + $0x140] sm:$0xff]
      %v3931 = vld [vmem:[%s3889 + $0x148] sm:$0xff]
      %v3932 = vld [vmem:[%s3889 + $0x150] sm:$0xff]
      %v3933 = vld [vmem:[%s3889 + $0x158] sm:$0xff]
      %v3934 = vld [vmem:[%s3889 + $0x160] sm:$0xff]
      %v3935 = vld [vmem:[%s3889 + $0x168] sm:$0xff]
      %v3936 = vld [vmem:[%s3889 + $0x170] sm:$0xff]
      %v3937 = vld [vmem:[%s3889 + $0x178] sm:$0xff]
      %s3938 = scalar_lea.vmem %s6, 256
      %v3939 = vld [vmem:[%s3938] sm:$0xff]
      %v3940 = vld [vmem:[%s3938 + $0x8] sm:$0xff]
      %v3941 = vld [vmem:[%s3938 + $0x10] sm:$0xff]
      %v3942 = vld [vmem:[%s3938 + $0x18] sm:$0xff]
      %v3943 = vld [vmem:[%s3938 + $0x20] sm:$0xff]
      %v3944 = vld [vmem:[%s3938 + $0x28] sm:$0xff]
      %v3945 = vld [vmem:[%s3938 + $0x30] sm:$0xff]
      %v3946 = vld [vmem:[%s3938 + $0x38] sm:$0xff]
      %v3947 = vld [vmem:[%s3938 + $0x40] sm:$0xff]
      %v3948 = vld [vmem:[%s3938 + $0x48] sm:$0xff]
      %v3949 = vld [vmem:[%s3938 + $0x50] sm:$0xff]
      %v3950 = vld [vmem:[%s3938 + $0x58] sm:$0xff]
      %v3951 = vld [vmem:[%s3938 + $0x60] sm:$0xff]
      %v3952 = vld [vmem:[%s3938 + $0x68] sm:$0xff]
      %v3953 = vld [vmem:[%s3938 + $0x70] sm:$0xff]
      %v3954 = vld [vmem:[%s3938 + $0x78] sm:$0xff]
      %v3956 = vsel %vm569, %v3890, 0
      %v3959 = vsel %vm569, %v3891, 0
      %v3962 = vsel %vm569, %v3892, 0
      %v3965 = vsel %vm569, %v3893, 0
      %v3968 = vsel %vm569, %v3894, 0
      %v3971 = vsel %vm569, %v3895, 0
      %v3974 = vsel %vm569, %v3896, 0
      %v3977 = vsel %vm569, %v3897, 0
      %v3980 = vsel %vm569, %v3898, 0
      %v3983 = vsel %vm569, %v3899, 0
      %v3986 = vsel %vm569, %v3900, 0
      %v3989 = vsel %vm569, %v3901, 0
      %v3992 = vsel %vm569, %v3902, 0
      %v3995 = vsel %vm569, %v3903, 0
      %v3998 = vsel %vm569, %v3904, 0
      %v4001 = vsel %vm569, %v3905, 0
      %v4004 = vsel %vm569, %v3906, 0
      %v4007 = vsel %vm569, %v3907, 0
      %v4010 = vsel %vm569, %v3908, 0
      %v4013 = vsel %vm569, %v3909, 0
      %v4016 = vsel %vm569, %v3910, 0
      %v4019 = vsel %vm569, %v3911, 0
      %v4022 = vsel %vm569, %v3912, 0
      %v4025 = vsel %vm569, %v3913, 0
      %v4028 = vsel %vm569, %v3914, 0
      %v4031 = vsel %vm569, %v3915, 0
      %v4034 = vsel %vm569, %v3916, 0
      %v4037 = vsel %vm569, %v3917, 0
      %v4040 = vsel %vm569, %v3918, 0
      %v4043 = vsel %vm569, %v3919, 0
      %v4046 = vsel %vm569, %v3920, 0
      %v4049 = vsel %vm569, %v3921, 0
      %v4052 = vsel %vm569, %v3922, 0
      %v4055 = vsel %vm569, %v3923, 0
      %v4058 = vsel %vm569, %v3924, 0
      %v4061 = vsel %vm569, %v3925, 0
      %v4064 = vsel %vm569, %v3926, 0
      %v4067 = vsel %vm569, %v3927, 0
      %v4070 = vsel %vm569, %v3928, 0
      %v4073 = vsel %vm569, %v3929, 0
      %v4076 = vsel %vm569, %v3930, 0
      %v4079 = vsel %vm569, %v3931, 0
      %v4082 = vsel %vm569, %v3932, 0
      %v4085 = vsel %vm569, %v3933, 0
      %v4088 = vsel %vm569, %v3934, 0
      %v4091 = vsel %vm569, %v3935, 0
      %v4094 = vsel %vm569, %v3936, 0
      %v4097 = vsel %vm569, %v3937, 0
      %4099 = vmatprep.subr.mxu0 0.0
      %4100 = vmatpush1.msra.mxu0 0.0
      %4101 = vmatprep.subr.mxu0 0.0
      %4102 = vmatpush1.msra.mxu0 0.0
      %4103 = vmatprep.subr.mxu0 0.0
      %4104 = vmatpush1.msra.mxu0 0.0
      %4105 = vmatprep.subr.mxu0 0.0
      %4106 = vmatpush1.msra.mxu0 0.0
      %4107 = vmatprep.subr.mxu0 0.0
      %4108 = vmatpush1.msra.mxu0 0.0
      %4109 = vmatprep.subr.mxu0 0.0
      %4110 = vmatpush1.msra.mxu0 0.0
      %4111 = vmatprep.subr.mxu0 0.0
      %4112 = vmatpush1.msra.mxu0 0.0
      %4113 = vmatprep.subr.mxu0 0.0
      %4114 = vmatpush1.msra.mxu0 0.0
      %4115 = vmatprep.subr.mxu0 %v3954
      %4116 = vmatpush1.msra.mxu0 %v3953
      %4117 = vmatprep.subr.mxu0 %v3952
      %4118 = vmatpush1.msra.mxu0 %v3951
      %4119 = vmatprep.subr.mxu0 %v3950
      %4120 = vmatpush1.msra.mxu0 %v3949
      %4121 = vmatprep.subr.mxu0 %v3948
      %4122 = vmatpush1.msra.mxu0 %v3947
      %4123 = vmatprep.subr.mxu0 %v3946
      %4124 = vmatpush1.msra.mxu0 %v3945
      %4125 = vmatprep.subr.mxu0 %v3944
      %4126 = vmatpush1.msra.mxu0 %v3943
      %4127 = vmatprep.subr.mxu0 %v3942
      %4128 = vmatpush1.msra.mxu0 %v3941
      %4129 = vmatprep.subr.mxu0 %v3940
      %4130 = vmatpush1.msra.mxu0 %v3939
      %4131 = vmatprep.subr.mxu0 0.0
      %4132 = vmatpush2.msra.mxu0 0.0
      %4133 = vmatprep.subr.mxu0 0.0
      %4134 = vmatpush2.msra.mxu0 0.0
      %4135 = vmatprep.subr.mxu0 0.0
      %4136 = vmatpush2.msra.mxu0 0.0
      %4137 = vmatprep.subr.mxu0 0.0
      %4138 = vmatpush2.msra.mxu0 0.0
      %4139 = vmatprep.subr.mxu0 0.0
      %4140 = vmatpush2.msra.mxu0 0.0
      %4141 = vmatprep.subr.mxu0 0.0
      %4142 = vmatpush2.msra.mxu0 0.0
      %4143 = vmatprep.subr.mxu0 0.0
      %4144 = vmatpush2.msra.mxu0 0.0
      %4145 = vmatprep.subr.mxu0 0.0
      %4146 = vmatpush2.msra.mxu0 0.0
      %4147 = vmatprep.subr.mxu0 0.0
      %4148 = vmatpush2.msra.mxu0 0.0
      %4149 = vmatprep.subr.mxu0 0.0
      %4150 = vmatpush2.msra.mxu0 0.0
      %4151 = vmatprep.subr.mxu0 0.0
      %4152 = vmatpush2.msra.mxu0 0.0
      %4153 = vmatprep.subr.mxu0 0.0
      %4154 = vmatpush2.msra.mxu0 0.0
      %4155 = vmatprep.subr.mxu0 0.0
      %4156 = vmatpush2.msra.mxu0 0.0
      %4157 = vmatprep.subr.mxu0 0.0
      %4158 = vmatpush2.msra.mxu0 0.0
      %4159 = vmatprep.subr.mxu0 0.0
      %4160 = vmatpush2.msra.mxu0 0.0
      %4161 = vmatprep.subr.mxu0 0.0
      %4162 = vmatpush2.msra.mxu0 0.0
      %4163 = vmatprep.mubr.f32.mxu0 0.0
      %4164 = vmatmul.mubr.f32.gmra.mxu0 %v3956
      %v4165 = vpop.f32.mrf.mxu0
      %v4166 = vadd.f32 0.0, %v4165
      %v4167 = vpop.f32.mrf.mxu0
      %v4168 = vadd.f32 0.0, %v4167
      %4169 = vmatprep.mubr.f32.mxu0 0.0
      %4170 = vmatmul.mubr.f32.gmra.mxu0 %v3959
      %v4171 = vpop.f32.mrf.mxu0
      %v4172 = vadd.f32 0.0, %v4171
      %v4173 = vpop.f32.mrf.mxu0
      %v4174 = vadd.f32 0.0, %v4173
      %4175 = vmatprep.mubr.f32.mxu0 0.0
      %4176 = vmatmul.mubr.f32.gmra.mxu0 %v3962
      %v4177 = vpop.f32.mrf.mxu0
      %v4178 = vadd.f32 0.0, %v4177
      %v4179 = vpop.f32.mrf.mxu0
      %v4180 = vadd.f32 0.0, %v4179
      %4181 = vmatprep.mubr.f32.mxu0 0.0
      %4182 = vmatmul.mubr.f32.gmra.mxu0 %v3965
      %v4183 = vpop.f32.mrf.mxu0
      %v4184 = vadd.f32 0.0, %v4183
      %v4185 = vpop.f32.mrf.mxu0
      %v4186 = vadd.f32 0.0, %v4185
      %4187 = vmatprep.mubr.f32.mxu0 0.0
      %4188 = vmatmul.mubr.f32.gmra.mxu0 %v3968
      %v4189 = vpop.f32.mrf.mxu0
      %v4190 = vadd.f32 0.0, %v4189
      %v4191 = vpop.f32.mrf.mxu0
      %v4192 = vadd.f32 0.0, %v4191
      %4193 = vmatprep.mubr.f32.mxu0 0.0
      %4194 = vmatmul.mubr.f32.gmra.mxu0 %v3971
      %v4195 = vpop.f32.mrf.mxu0
      %v4196 = vadd.f32 0.0, %v4195
      %v4197 = vpop.f32.mrf.mxu0
      %v4198 = vadd.f32 0.0, %v4197
      %4199 = vmatprep.mubr.f32.mxu0 0.0
      %4200 = vmatmul.mubr.f32.gmra.mxu0 %v3974
      %v4201 = vpop.f32.mrf.mxu0
      %v4202 = vadd.f32 0.0, %v4201
      %v4203 = vpop.f32.mrf.mxu0
      %v4204 = vadd.f32 0.0, %v4203
      %4205 = vmatprep.mubr.f32.mxu0 0.0
      %4206 = vmatmul.mubr.f32.gmra.mxu0 %v3977
      %v4207 = vpop.f32.mrf.mxu0
      %v4208 = vadd.f32 0.0, %v4207
      %v4209 = vpop.f32.mrf.mxu0
      %v4210 = vadd.f32 0.0, %v4209
      %4211 = vmatprep.mubr.f32.mxu0 0.0
      %4212 = vmatmul.mubr.f32.gmra.mxu0 %v3980
      %v4213 = vpop.f32.mrf.mxu0
      %v4214 = vadd.f32 0.0, %v4213
      %v4215 = vpop.f32.mrf.mxu0
      %v4216 = vadd.f32 0.0, %v4215
      %4217 = vmatprep.mubr.f32.mxu0 0.0
      %4218 = vmatmul.mubr.f32.gmra.mxu0 %v3983
      %v4219 = vpop.f32.mrf.mxu0
      %v4220 = vadd.f32 0.0, %v4219
      %v4221 = vpop.f32.mrf.mxu0
      %v4222 = vadd.f32 0.0, %v4221
      %4223 = vmatprep.mubr.f32.mxu0 0.0
      %4224 = vmatmul.mubr.f32.gmra.mxu0 %v3986
      %v4225 = vpop.f32.mrf.mxu0
      %v4226 = vadd.f32 0.0, %v4225
      %v4227 = vpop.f32.mrf.mxu0
      %v4228 = vadd.f32 0.0, %v4227
      %4229 = vmatprep.mubr.f32.mxu0 0.0
      %4230 = vmatmul.mubr.f32.gmra.mxu0 %v3989
      %v4231 = vpop.f32.mrf.mxu0
      %v4232 = vadd.f32 0.0, %v4231
      %v4233 = vpop.f32.mrf.mxu0
      %v4234 = vadd.f32 0.0, %v4233
      %4235 = vmatprep.mubr.f32.mxu0 0.0
      %4236 = vmatmul.mubr.f32.gmra.mxu0 %v3992
      %v4237 = vpop.f32.mrf.mxu0
      %v4238 = vadd.f32 0.0, %v4237
      %v4239 = vpop.f32.mrf.mxu0
      %v4240 = vadd.f32 0.0, %v4239
      %4241 = vmatprep.mubr.f32.mxu0 0.0
      %4242 = vmatmul.mubr.f32.gmra.mxu0 %v3995
      %v4243 = vpop.f32.mrf.mxu0
      %v4244 = vadd.f32 0.0, %v4243
      %v4245 = vpop.f32.mrf.mxu0
      %v4246 = vadd.f32 0.0, %v4245
      %4247 = vmatprep.mubr.f32.mxu0 0.0
      %4248 = vmatmul.mubr.f32.gmra.mxu0 %v3998
      %v4249 = vpop.f32.mrf.mxu0
      %v4250 = vadd.f32 0.0, %v4249
      %v4251 = vpop.f32.mrf.mxu0
      %v4252 = vadd.f32 0.0, %v4251
      %4253 = vmatprep.mubr.f32.mxu0 0.0
      %4254 = vmatmul.mubr.f32.gmra.mxu0 %v4001
      %v4255 = vpop.f32.mrf.mxu0
      %v4256 = vadd.f32 0.0, %v4255
      %v4257 = vpop.f32.mrf.mxu0
      %v4258 = vadd.f32 0.0, %v4257
      %4259 = vmatprep.mubr.f32.mxu0 0.0
      %4260 = vmatmul.mubr.f32.gmra.mxu0 %v4004
      %v4261 = vpop.f32.mrf.mxu0
      %v4262 = vadd.f32 0.0, %v4261
      %v4263 = vpop.f32.mrf.mxu0
      %v4264 = vadd.f32 0.0, %v4263
      %4265 = vmatprep.mubr.f32.mxu0 0.0
      %4266 = vmatmul.mubr.f32.gmra.mxu0 %v4007
      %v4267 = vpop.f32.mrf.mxu0
      %v4268 = vadd.f32 0.0, %v4267
      %v4269 = vpop.f32.mrf.mxu0
      %v4270 = vadd.f32 0.0, %v4269
      %4271 = vmatprep.mubr.f32.mxu0 0.0
      %4272 = vmatmul.mubr.f32.gmra.mxu0 %v4010
      %v4273 = vpop.f32.mrf.mxu0
      %v4274 = vadd.f32 0.0, %v4273
      %v4275 = vpop.f32.mrf.mxu0
      %v4276 = vadd.f32 0.0, %v4275
      %4277 = vmatprep.mubr.f32.mxu0 0.0
      %4278 = vmatmul.mubr.f32.gmra.mxu0 %v4013
      %v4279 = vpop.f32.mrf.mxu0
      %v4280 = vadd.f32 0.0, %v4279
      %v4281 = vpop.f32.mrf.mxu0
      %v4282 = vadd.f32 0.0, %v4281
      %4283 = vmatprep.mubr.f32.mxu0 0.0
      %4284 = vmatmul.mubr.f32.gmra.mxu0 %v4016
      %v4285 = vpop.f32.mrf.mxu0
      %v4286 = vadd.f32 0.0, %v4285
      %v4287 = vpop.f32.mrf.mxu0
      %v4288 = vadd.f32 0.0, %v4287
      %4289 = vmatprep.mubr.f32.mxu0 0.0
      %4290 = vmatmul.mubr.f32.gmra.mxu0 %v4019
      %v4291 = vpop.f32.mrf.mxu0
      %v4292 = vadd.f32 0.0, %v4291
      %v4293 = vpop.f32.mrf.mxu0
      %v4294 = vadd.f32 0.0, %v4293
      %4295 = vmatprep.mubr.f32.mxu0 0.0
      %4296 = vmatmul.mubr.f32.gmra.mxu0 %v4022
      %v4297 = vpop.f32.mrf.mxu0
      %v4298 = vadd.f32 0.0, %v4297
      %v4299 = vpop.f32.mrf.mxu0
      %v4300 = vadd.f32 0.0, %v4299
      %4301 = vmatprep.mubr.f32.mxu0 0.0
      %4302 = vmatmul.mubr.f32.gmra.mxu0 %v4025
      %v4303 = vpop.f32.mrf.mxu0
      %v4304 = vadd.f32 0.0, %v4303
      %v4305 = vpop.f32.mrf.mxu0
      %v4306 = vadd.f32 0.0, %v4305
      %4307 = vmatprep.mubr.f32.mxu0 0.0
      %4308 = vmatmul.mubr.f32.gmra.mxu0 %v4028
      %v4309 = vpop.f32.mrf.mxu0
      %v4310 = vadd.f32 0.0, %v4309
      %v4311 = vpop.f32.mrf.mxu0
      %v4312 = vadd.f32 0.0, %v4311
      %4313 = vmatprep.mubr.f32.mxu0 0.0
      %4314 = vmatmul.mubr.f32.gmra.mxu0 %v4031
      %v4315 = vpop.f32.mrf.mxu0
      %v4316 = vadd.f32 0.0, %v4315
      %v4317 = vpop.f32.mrf.mxu0
      %v4318 = vadd.f32 0.0, %v4317
      %4319 = vmatprep.mubr.f32.mxu0 0.0
      %4320 = vmatmul.mubr.f32.gmra.mxu0 %v4034
      %v4321 = vpop.f32.mrf.mxu0
      %v4322 = vadd.f32 0.0, %v4321
      %v4323 = vpop.f32.mrf.mxu0
      %v4324 = vadd.f32 0.0, %v4323
      %4325 = vmatprep.mubr.f32.mxu0 0.0
      %4326 = vmatmul.mubr.f32.gmra.mxu0 %v4037
      %v4327 = vpop.f32.mrf.mxu0
      %v4328 = vadd.f32 0.0, %v4327
      %v4329 = vpop.f32.mrf.mxu0
      %v4330 = vadd.f32 0.0, %v4329
      %4331 = vmatprep.mubr.f32.mxu0 0.0
      %4332 = vmatmul.mubr.f32.gmra.mxu0 %v4040
      %v4333 = vpop.f32.mrf.mxu0
      %v4334 = vadd.f32 0.0, %v4333
      %v4335 = vpop.f32.mrf.mxu0
      %v4336 = vadd.f32 0.0, %v4335
      %4337 = vmatprep.mubr.f32.mxu0 0.0
      %4338 = vmatmul.mubr.f32.gmra.mxu0 %v4043
      %v4339 = vpop.f32.mrf.mxu0
      %v4340 = vadd.f32 0.0, %v4339
      %v4341 = vpop.f32.mrf.mxu0
      %v4342 = vadd.f32 0.0, %v4341
      %4343 = vmatprep.mubr.f32.mxu0 0.0
      %4344 = vmatmul.mubr.f32.gmra.mxu0 %v4046
      %v4345 = vpop.f32.mrf.mxu0
      %v4346 = vadd.f32 0.0, %v4345
      %v4347 = vpop.f32.mrf.mxu0
      %v4348 = vadd.f32 0.0, %v4347
      %4349 = vmatprep.mubr.f32.mxu0 0.0
      %4350 = vmatmul.mubr.f32.gmra.mxu0 %v4049
      %v4351 = vpop.f32.mrf.mxu0
      %v4352 = vadd.f32 0.0, %v4351
      %v4353 = vpop.f32.mrf.mxu0
      %v4354 = vadd.f32 0.0, %v4353
      %4355 = vmatprep.mubr.f32.mxu0 0.0
      %4356 = vmatmul.mubr.f32.gmra.mxu0 %v4052
      %v4357 = vpop.f32.mrf.mxu0
      %v4358 = vadd.f32 0.0, %v4357
      %v4359 = vpop.f32.mrf.mxu0
      %v4360 = vadd.f32 0.0, %v4359
      %4361 = vmatprep.mubr.f32.mxu0 0.0
      %4362 = vmatmul.mubr.f32.gmra.mxu0 %v4055
      %v4363 = vpop.f32.mrf.mxu0
      %v4364 = vadd.f32 0.0, %v4363
      %v4365 = vpop.f32.mrf.mxu0
      %v4366 = vadd.f32 0.0, %v4365
      %4367 = vmatprep.mubr.f32.mxu0 0.0
      %4368 = vmatmul.mubr.f32.gmra.mxu0 %v4058
      %v4369 = vpop.f32.mrf.mxu0
      %v4370 = vadd.f32 0.0, %v4369
      %v4371 = vpop.f32.mrf.mxu0
      %v4372 = vadd.f32 0.0, %v4371
      %4373 = vmatprep.mubr.f32.mxu0 0.0
      %4374 = vmatmul.mubr.f32.gmra.mxu0 %v4061
      %v4375 = vpop.f32.mrf.mxu0
      %v4376 = vadd.f32 0.0, %v4375
      %v4377 = vpop.f32.mrf.mxu0
      %v4378 = vadd.f32 0.0, %v4377
      %4379 = vmatprep.mubr.f32.mxu0 0.0
      %4380 = vmatmul.mubr.f32.gmra.mxu0 %v4064
      %v4381 = vpop.f32.mrf.mxu0
      %v4382 = vadd.f32 0.0, %v4381
      %v4383 = vpop.f32.mrf.mxu0
      %v4384 = vadd.f32 0.0, %v4383
      %4385 = vmatprep.mubr.f32.mxu0 0.0
      %4386 = vmatmul.mubr.f32.gmra.mxu0 %v4067
      %v4387 = vpop.f32.mrf.mxu0
      %v4388 = vadd.f32 0.0, %v4387
      %v4389 = vpop.f32.mrf.mxu0
      %v4390 = vadd.f32 0.0, %v4389
      %4391 = vmatprep.mubr.f32.mxu0 0.0
      %4392 = vmatmul.mubr.f32.gmra.mxu0 %v4070
      %v4393 = vpop.f32.mrf.mxu0
      %v4394 = vadd.f32 0.0, %v4393
      %v4395 = vpop.f32.mrf.mxu0
      %v4396 = vadd.f32 0.0, %v4395
      %4397 = vmatprep.mubr.f32.mxu0 0.0
      %4398 = vmatmul.mubr.f32.gmra.mxu0 %v4073
      %v4399 = vpop.f32.mrf.mxu0
      %v4400 = vadd.f32 0.0, %v4399
      %v4401 = vpop.f32.mrf.mxu0
      %v4402 = vadd.f32 0.0, %v4401
      %4403 = vmatprep.mubr.f32.mxu0 0.0
      %4404 = vmatmul.mubr.f32.gmra.mxu0 %v4076
      %v4405 = vpop.f32.mrf.mxu0
      %v4406 = vadd.f32 0.0, %v4405
      %v4407 = vpop.f32.mrf.mxu0
      %v4408 = vadd.f32 0.0, %v4407
      %4409 = vmatprep.mubr.f32.mxu0 0.0
      %4410 = vmatmul.mubr.f32.gmra.mxu0 %v4079
      %v4411 = vpop.f32.mrf.mxu0
      %v4412 = vadd.f32 0.0, %v4411
      %v4413 = vpop.f32.mrf.mxu0
      %v4414 = vadd.f32 0.0, %v4413
      %4415 = vmatprep.mubr.f32.mxu0 0.0
      %4416 = vmatmul.mubr.f32.gmra.mxu0 %v4082
      %v4417 = vpop.f32.mrf.mxu0
      %v4418 = vadd.f32 0.0, %v4417
      %v4419 = vpop.f32.mrf.mxu0
      %v4420 = vadd.f32 0.0, %v4419
      %4421 = vmatprep.mubr.f32.mxu0 0.0
      %4422 = vmatmul.mubr.f32.gmra.mxu0 %v4085
      %v4423 = vpop.f32.mrf.mxu0
      %v4424 = vadd.f32 0.0, %v4423
      %v4425 = vpop.f32.mrf.mxu0
      %v4426 = vadd.f32 0.0, %v4425
      %4427 = vmatprep.mubr.f32.mxu0 0.0
      %4428 = vmatmul.mubr.f32.gmra.mxu0 %v4088
      %v4429 = vpop.f32.mrf.mxu0
      %v4430 = vadd.f32 0.0, %v4429
      %v4431 = vpop.f32.mrf.mxu0
      %v4432 = vadd.f32 0.0, %v4431
      %4433 = vmatprep.mubr.f32.mxu0 0.0
      %4434 = vmatmul.mubr.f32.gmra.mxu0 %v4091
      %v4435 = vpop.f32.mrf.mxu0
      %v4436 = vadd.f32 0.0, %v4435
      %v4437 = vpop.f32.mrf.mxu0
      %v4438 = vadd.f32 0.0, %v4437
      %4439 = vmatprep.mubr.f32.mxu0 0.0
      %4440 = vmatmul.mubr.f32.gmra.mxu0 %v4094
      %v4441 = vpop.f32.mrf.mxu0
      %v4442 = vadd.f32 0.0, %v4441
      %v4443 = vpop.f32.mrf.mxu0
      %v4444 = vadd.f32 0.0, %v4443
      %4445 = vmatprep.mubr.f32.mxu0 0.0
      %4446 = vmatmul.mubr.f32.gmra.mxu0 %v4097
      %v4447 = vpop.f32.mrf.mxu0
      %v4448 = vadd.f32 0.0, %v4447
      %v4449 = vpop.f32.mrf.mxu0
      %v4450 = vadd.f32 0.0, %v4449
      %4451 = vdwg.mxu0
      %v4452 = vadd.f32 %v3857, %v4166
      %v4453 = vadd.f32 %v3858, %v4172
      %v4454 = vadd.f32 %v3859, %v4184
      %v4455 = vadd.f32 %v3860, %v4190
      %v4456 = vadd.f32 %v3861, %v4202
      %v4457 = vadd.f32 %v3862, %v4208
      %v4458 = vadd.f32 %v3863, %v4220
      %v4459 = vadd.f32 %v3864, %v4226
      %v4460 = vadd.f32 %v3865, %v4238
      %v4461 = vadd.f32 %v3866, %v4244
      %v4462 = vadd.f32 %v3867, %v4256
      %v4463 = vadd.f32 %v3868, %v4262
      %v4464 = vadd.f32 %v3869, %v4274
      %v4465 = vadd.f32 %v3870, %v4280
      %v4466 = vadd.f32 %v3871, %v4292
      %v4467 = vadd.f32 %v3872, %v4298
      %v4468 = vadd.f32 %v3873, %v4310
      %v4469 = vadd.f32 %v3874, %v4316
      %v4470 = vadd.f32 %v3875, %v4328
      %v4471 = vadd.f32 %v3876, %v4334
      %v4472 = vadd.f32 %v3877, %v4346
      %v4473 = vadd.f32 %v3878, %v4352
      %v4474 = vadd.f32 %v3879, %v4364
      %v4475 = vadd.f32 %v3880, %v4370
      %v4476 = vadd.f32 %v3881, %v4382
      %v4477 = vadd.f32 %v3882, %v4388
      %v4478 = vadd.f32 %v3883, %v4400
      %v4479 = vadd.f32 %v3884, %v4406
      %v4480 = vadd.f32 %v3885, %v4418
      %v4481 = vadd.f32 %v3886, %v4424
      %v4482 = vadd.f32 %v3887, %v4436
      %v4483 = vadd.f32 %v3888, %v4442
      %v4532 = vrot.slane %v4166, 1
      %v4533 = vrot.slane %v4172, 1
      %v4534 = vsel %vm2445, %v4532, %v4533
      %v4535 = vrot.slane %v4178, 1
      %v4536 = vsel %vm2445, %v4533, %v4535
      %v4537 = vrot.slane %v4184, 1
      %v4538 = vrot.slane %v4190, 1
      %v4539 = vsel %vm2445, %v4537, %v4538
      %v4540 = vrot.slane %v4196, 1
      %v4541 = vsel %vm2445, %v4538, %v4540
      %v4542 = vrot.slane %v4202, 1
      %v4543 = vrot.slane %v4208, 1
      %v4544 = vsel %vm2445, %v4542, %v4543
      %v4545 = vrot.slane %v4214, 1
      %v4546 = vsel %vm2445, %v4543, %v4545
      %v4547 = vrot.slane %v4220, 1
      %v4548 = vrot.slane %v4226, 1
      %v4549 = vsel %vm2445, %v4547, %v4548
      %v4550 = vrot.slane %v4232, 1
      %v4551 = vsel %vm2445, %v4548, %v4550
      %v4552 = vrot.slane %v4238, 1
      %v4553 = vrot.slane %v4244, 1
      %v4554 = vsel %vm2445, %v4552, %v4553
      %v4555 = vrot.slane %v4250, 1
      %v4556 = vsel %vm2445, %v4553, %v4555
      %v4557 = vrot.slane %v4256, 1
      %v4558 = vrot.slane %v4262, 1
      %v4559 = vsel %vm2445, %v4557, %v4558
      %v4560 = vrot.slane %v4268, 1
      %v4561 = vsel %vm2445, %v4558, %v4560
      %v4562 = vrot.slane %v4274, 1
      %v4563 = vrot.slane %v4280, 1
      %v4564 = vsel %vm2445, %v4562, %v4563
      %v4565 = vrot.slane %v4286, 1
      %v4566 = vsel %vm2445, %v4563, %v4565
      %v4567 = vrot.slane %v4292, 1
      %v4568 = vrot.slane %v4298, 1
      %v4569 = vsel %vm2445, %v4567, %v4568
      %v4570 = vrot.slane %v4304, 1
      %v4571 = vsel %vm2445, %v4568, %v4570
      %v4572 = vrot.slane %v4310, 1
      %v4573 = vrot.slane %v4316, 1
      %v4574 = vsel %vm2445, %v4572, %v4573
      %v4575 = vrot.slane %v4322, 1
      %v4576 = vsel %vm2445, %v4573, %v4575
      %v4577 = vrot.slane %v4328, 1
      %v4578 = vrot.slane %v4334, 1
      %v4579 = vsel %vm2445, %v4577, %v4578
      %v4580 = vrot.slane %v4340, 1
      %v4581 = vsel %vm2445, %v4578, %v4580
      %v4582 = vrot.slane %v4346, 1
      %v4583 = vrot.slane %v4352, 1
      %v4584 = vsel %vm2445, %v4582, %v4583
      %v4585 = vrot.slane %v4358, 1
      %v4586 = vsel %vm2445, %v4583, %v4585
      %v4587 = vrot.slane %v4364, 1
      %v4588 = vrot.slane %v4370, 1
      %v4589 = vsel %vm2445, %v4587, %v4588
      %v4590 = vrot.slane %v4376, 1
      %v4591 = vsel %vm2445, %v4588, %v4590
      %v4592 = vrot.slane %v4382, 1
      %v4593 = vrot.slane %v4388, 1
      %v4594 = vsel %vm2445, %v4592, %v4593
      %v4595 = vrot.slane %v4394, 1
      %v4596 = vsel %vm2445, %v4593, %v4595
      %v4597 = vrot.slane %v4400, 1
      %v4598 = vrot.slane %v4406, 1
      %v4599 = vsel %vm2445, %v4597, %v4598
      %v4600 = vrot.slane %v4412, 1
      %v4601 = vsel %vm2445, %v4598, %v4600
      %v4602 = vrot.slane %v4418, 1
      %v4603 = vrot.slane %v4424, 1
      %v4604 = vsel %vm2445, %v4602, %v4603
      %v4605 = vrot.slane %v4430, 1
      %v4606 = vsel %vm2445, %v4603, %v4605
      %v4607 = vrot.slane %v4436, 1
      %v4608 = vrot.slane %v4442, 1
      %v4609 = vsel %vm2445, %v4607, %v4608
      %v4610 = vrot.slane %v4448, 1
      %v4611 = vsel %vm2445, %v4608, %v4610
      %4612 = vrot.lane.b32.xlu0 %v4534, 64
      %v4613 = vpop.permute.xlu0 %4612
      %4614 = vrot.lane.b32.xlu0 %v4536, 64
      %v4615 = vpop.permute.xlu0 %4614
      %4616 = vrot.lane.b32.xlu0 %v4539, 64
      %v4617 = vpop.permute.xlu0 %4616
      %4618 = vrot.lane.b32.xlu0 %v4541, 64
      %v4619 = vpop.permute.xlu0 %4618
      %4620 = vrot.lane.b32.xlu0 %v4544, 64
      %v4621 = vpop.permute.xlu0 %4620
      %4622 = vrot.lane.b32.xlu0 %v4546, 64
      %v4623 = vpop.permute.xlu0 %4622
      %4624 = vrot.lane.b32.xlu0 %v4549, 64
      %v4625 = vpop.permute.xlu0 %4624
      %4626 = vrot.lane.b32.xlu0 %v4551, 64
      %v4627 = vpop.permute.xlu0 %4626
      %4628 = vrot.lane.b32.xlu0 %v4554, 64
      %v4629 = vpop.permute.xlu0 %4628
      %4630 = vrot.lane.b32.xlu0 %v4556, 64
      %v4631 = vpop.permute.xlu0 %4630
      %4632 = vrot.lane.b32.xlu0 %v4559, 64
      %v4633 = vpop.permute.xlu0 %4632
      %4634 = vrot.lane.b32.xlu0 %v4561, 64
      %v4635 = vpop.permute.xlu0 %4634
      %4636 = vrot.lane.b32.xlu0 %v4564, 64
      %v4637 = vpop.permute.xlu0 %4636
      %4638 = vrot.lane.b32.xlu0 %v4566, 64
      %v4639 = vpop.permute.xlu0 %4638
      %4640 = vrot.lane.b32.xlu0 %v4569, 64
      %v4641 = vpop.permute.xlu0 %4640
      %4642 = vrot.lane.b32.xlu0 %v4571, 64
      %v4643 = vpop.permute.xlu0 %4642
      %4644 = vrot.lane.b32.xlu0 %v4574, 64
      %v4645 = vpop.permute.xlu0 %4644
      %4646 = vrot.lane.b32.xlu0 %v4576, 64
      %v4647 = vpop.permute.xlu0 %4646
      %4648 = vrot.lane.b32.xlu0 %v4579, 64
      %v4649 = vpop.permute.xlu0 %4648
      %4650 = vrot.lane.b32.xlu0 %v4581, 64
      %v4651 = vpop.permute.xlu0 %4650
      %4652 = vrot.lane.b32.xlu0 %v4584, 64
      %v4653 = vpop.permute.xlu0 %4652
      %4654 = vrot.lane.b32.xlu0 %v4586, 64
      %v4655 = vpop.permute.xlu0 %4654
      %4656 = vrot.lane.b32.xlu0 %v4589, 64
      %v4657 = vpop.permute.xlu0 %4656
      %4658 = vrot.lane.b32.xlu0 %v4591, 64
      %v4659 = vpop.permute.xlu0 %4658
      %4660 = vrot.lane.b32.xlu0 %v4594, 64
      %v4661 = vpop.permute.xlu0 %4660
      %4662 = vrot.lane.b32.xlu0 %v4596, 64
      %v4663 = vpop.permute.xlu0 %4662
      %4664 = vrot.lane.b32.xlu0 %v4599, 64
      %v4665 = vpop.permute.xlu0 %4664
      %4666 = vrot.lane.b32.xlu0 %v4601, 64
      %v4667 = vpop.permute.xlu0 %4666
      %4668 = vrot.lane.b32.xlu0 %v4604, 64
      %v4669 = vpop.permute.xlu0 %4668
      %4670 = vrot.lane.b32.xlu0 %v4606, 64
      %v4671 = vpop.permute.xlu0 %4670
      %4672 = vrot.lane.b32.xlu0 %v4609, 64
      %v4673 = vpop.permute.xlu0 %4672
      %4674 = vrot.lane.b32.xlu0 %v4611, 64
      %v4675 = vpop.permute.xlu0 %4674
      %v4708 = vadd.f32 %v4452, %v4613
      %v4709 = vadd.f32 %v4453, %v4615
      %v4710 = vadd.f32 %v4454, %v4617
      %v4711 = vadd.f32 %v4455, %v4619
      %v4712 = vadd.f32 %v4456, %v4621
      %v4713 = vadd.f32 %v4457, %v4623
      %v4714 = vadd.f32 %v4458, %v4625
      %v4715 = vadd.f32 %v4459, %v4627
      %v4716 = vadd.f32 %v4460, %v4629
      %v4717 = vadd.f32 %v4461, %v4631
      %v4718 = vadd.f32 %v4462, %v4633
      %v4719 = vadd.f32 %v4463, %v4635
      %v4720 = vadd.f32 %v4464, %v4637
      %v4721 = vadd.f32 %v4465, %v4639
      %v4722 = vadd.f32 %v4466, %v4641
      %v4723 = vadd.f32 %v4467, %v4643
      %v4724 = vadd.f32 %v4468, %v4645
      %v4725 = vadd.f32 %v4469, %v4647
      %v4726 = vadd.f32 %v4470, %v4649
      %v4727 = vadd.f32 %v4471, %v4651
      %v4728 = vadd.f32 %v4472, %v4653
      %v4729 = vadd.f32 %v4473, %v4655
      %v4730 = vadd.f32 %v4474, %v4657
      %v4731 = vadd.f32 %v4475, %v4659
      %v4732 = vadd.f32 %v4476, %v4661
      %v4733 = vadd.f32 %v4477, %v4663
      %v4734 = vadd.f32 %v4478, %v4665
      %v4735 = vadd.f32 %v4479, %v4667
      %v4736 = vadd.f32 %v4480, %v4669
      %v4737 = vadd.f32 %v4481, %v4671
      %v4738 = vadd.f32 %v4482, %v4673
      %v4739 = vadd.f32 %v4483, %v4675
      %v4788 = vrot.slane %v4168, 2
      %v4789 = vrot.slane %v4174, 2
      %v4790 = vsel %vm2702, %v4788, %v4789
      %v4791 = vrot.slane %v4180, 2
      %v4792 = vsel %vm2702, %v4789, %v4791
      %v4793 = vrot.slane %v4186, 2
      %v4794 = vrot.slane %v4192, 2
      %v4795 = vsel %vm2702, %v4793, %v4794
      %v4796 = vrot.slane %v4198, 2
      %v4797 = vsel %vm2702, %v4794, %v4796
      %v4798 = vrot.slane %v4204, 2
      %v4799 = vrot.slane %v4210, 2
      %v4800 = vsel %vm2702, %v4798, %v4799
      %v4801 = vrot.slane %v4216, 2
      %v4802 = vsel %vm2702, %v4799, %v4801
      %v4803 = vrot.slane %v4222, 2
      %v4804 = vrot.slane %v4228, 2
      %v4805 = vsel %vm2702, %v4803, %v4804
      %v4806 = vrot.slane %v4234, 2
      %v4807 = vsel %vm2702, %v4804, %v4806
      %v4808 = vrot.slane %v4240, 2
      %v4809 = vrot.slane %v4246, 2
      %v4810 = vsel %vm2702, %v4808, %v4809
      %v4811 = vrot.slane %v4252, 2
      %v4812 = vsel %vm2702, %v4809, %v4811
      %v4813 = vrot.slane %v4258, 2
      %v4814 = vrot.slane %v4264, 2
      %v4815 = vsel %vm2702, %v4813, %v4814
      %v4816 = vrot.slane %v4270, 2
      %v4817 = vsel %vm2702, %v4814, %v4816
      %v4818 = vrot.slane %v4276, 2
      %v4819 = vrot.slane %v4282, 2
      %v4820 = vsel %vm2702, %v4818, %v4819
      %v4821 = vrot.slane %v4288, 2
      %v4822 = vsel %vm2702, %v4819, %v4821
      %v4823 = vrot.slane %v4294, 2
      %v4824 = vrot.slane %v4300, 2
      %v4825 = vsel %vm2702, %v4823, %v4824
      %v4826 = vrot.slane %v4306, 2
      %v4827 = vsel %vm2702, %v4824, %v4826
      %v4828 = vrot.slane %v4312, 2
      %v4829 = vrot.slane %v4318, 2
      %v4830 = vsel %vm2702, %v4828, %v4829
      %v4831 = vrot.slane %v4324, 2
      %v4832 = vsel %vm2702, %v4829, %v4831
      %v4833 = vrot.slane %v4330, 2
      %v4834 = vrot.slane %v4336, 2
      %v4835 = vsel %vm2702, %v4833, %v4834
      %v4836 = vrot.slane %v4342, 2
      %v4837 = vsel %vm2702, %v4834, %v4836
      %v4838 = vrot.slane %v4348, 2
      %v4839 = vrot.slane %v4354, 2
      %v4840 = vsel %vm2702, %v4838, %v4839
      %v4841 = vrot.slane %v4360, 2
      %v4842 = vsel %vm2702, %v4839, %v4841
      %v4843 = vrot.slane %v4366, 2
      %v4844 = vrot.slane %v4372, 2
      %v4845 = vsel %vm2702, %v4843, %v4844
      %v4846 = vrot.slane %v4378, 2
      %v4847 = vsel %vm2702, %v4844, %v4846
      %v4848 = vrot.slane %v4384, 2
      %v4849 = vrot.slane %v4390, 2
      %v4850 = vsel %vm2702, %v4848, %v4849
      %v4851 = vrot.slane %v4396, 2
      %v4852 = vsel %vm2702, %v4849, %v4851
      %v4853 = vrot.slane %v4402, 2
      %v4854 = vrot.slane %v4408, 2
      %v4855 = vsel %vm2702, %v4853, %v4854
      %v4856 = vrot.slane %v4414, 2
      %v4857 = vsel %vm2702, %v4854, %v4856
      %v4858 = vrot.slane %v4420, 2
      %v4859 = vrot.slane %v4426, 2
      %v4860 = vsel %vm2702, %v4858, %v4859
      %v4861 = vrot.slane %v4432, 2
      %v4862 = vsel %vm2702, %v4859, %v4861
      %v4863 = vrot.slane %v4438, 2
      %v4864 = vrot.slane %v4444, 2
      %v4865 = vsel %vm2702, %v4863, %v4864
      %v4866 = vrot.slane %v4450, 2
      %v4867 = vsel %vm2702, %v4864, %v4866
      %v4900 = vadd.f32 %v4708, %v4790
      %v4901 = vadd.f32 %v4709, %v4792
      %v4902 = vadd.f32 %v4710, %v4795
      %v4903 = vadd.f32 %v4711, %v4797
      %v4904 = vadd.f32 %v4712, %v4800
      %v4905 = vadd.f32 %v4713, %v4802
      %v4906 = vadd.f32 %v4714, %v4805
      %v4907 = vadd.f32 %v4715, %v4807
      %v4908 = vadd.f32 %v4716, %v4810
      %v4909 = vadd.f32 %v4717, %v4812
      %v4910 = vadd.f32 %v4718, %v4815
      %v4911 = vadd.f32 %v4719, %v4817
      %v4912 = vadd.f32 %v4720, %v4820
      %v4913 = vadd.f32 %v4721, %v4822
      %v4914 = vadd.f32 %v4722, %v4825
      %v4915 = vadd.f32 %v4723, %v4827
      %v4916 = vadd.f32 %v4724, %v4830
      %v4917 = vadd.f32 %v4725, %v4832
      %v4918 = vadd.f32 %v4726, %v4835
      %v4919 = vadd.f32 %v4727, %v4837
      %v4920 = vadd.f32 %v4728, %v4840
      %v4921 = vadd.f32 %v4729, %v4842
      %v4922 = vadd.f32 %v4730, %v4845
      %v4923 = vadd.f32 %v4731, %v4847
      %v4924 = vadd.f32 %v4732, %v4850
      %v4925 = vadd.f32 %v4733, %v4852
      %v4926 = vadd.f32 %v4734, %v4855
      %v4927 = vadd.f32 %v4735, %v4857
      %v4928 = vadd.f32 %v4736, %v4860
      %v4929 = vadd.f32 %v4737, %v4862
      %v4930 = vadd.f32 %v4738, %v4865
      %v4931 = vadd.f32 %v4739, %v4867
      %v4932 = vld [vmem:[%s8] sm:$0x1]
      %v4934 = vlaneseq
      %v4935 = vshrl.u32 %v4934, 7
      %v4936 = vsub.s32 0, %v4935
      %v4937 = vrot.slane %v4932, %v4936
      %v4939 = vadd.f32 %v4900, %v4937
      %v4940 = vadd.f32 %v4901, %v4937
      %v4941 = vadd.f32 %v4902, %v4937
      %v4942 = vadd.f32 %v4903, %v4937
      %v4943 = vadd.f32 %v4904, %v4937
      %v4944 = vadd.f32 %v4905, %v4937
      %v4945 = vadd.f32 %v4906, %v4937
      %v4946 = vadd.f32 %v4907, %v4937
      %v4947 = vadd.f32 %v4908, %v4937
      %v4948 = vadd.f32 %v4909, %v4937
      %v4949 = vadd.f32 %v4910, %v4937
      %v4950 = vadd.f32 %v4911, %v4937
      %v4951 = vadd.f32 %v4912, %v4937
      %v4952 = vadd.f32 %v4913, %v4937
      %v4953 = vadd.f32 %v4914, %v4937
      %v4954 = vadd.f32 %v4915, %v4937
      %v4955 = vadd.f32 %v4916, %v4937
      %v4956 = vadd.f32 %v4917, %v4937
      %v4957 = vadd.f32 %v4918, %v4937
      %v4958 = vadd.f32 %v4919, %v4937
      %v4959 = vadd.f32 %v4920, %v4937
      %v4960 = vadd.f32 %v4921, %v4937
      %v4961 = vadd.f32 %v4922, %v4937
      %v4962 = vadd.f32 %v4923, %v4937
      %v4963 = vadd.f32 %v4924, %v4937
      %v4964 = vadd.f32 %v4925, %v4937
      %v4965 = vadd.f32 %v4926, %v4937
      %v4966 = vadd.f32 %v4927, %v4937
      %v4967 = vadd.f32 %v4928, %v4937
      %v4968 = vadd.f32 %v4929, %v4937
      %v4969 = vadd.f32 %v4930, %v4937
      %v4970 = vadd.f32 %v4931, %v4937
      %v4971 = vmax.f32 %v4939, 0.0
      %v4972 = vmax.f32 %v4940, 0.0
      %v4973 = vmax.f32 %v4941, 0.0
      %v4974 = vmax.f32 %v4942, 0.0
      %v4975 = vmax.f32 %v4943, 0.0
      %v4976 = vmax.f32 %v4944, 0.0
      %v4977 = vmax.f32 %v4945, 0.0
      %v4978 = vmax.f32 %v4946, 0.0
      %v4979 = vmax.f32 %v4947, 0.0
      %v4980 = vmax.f32 %v4948, 0.0
      %v4981 = vmax.f32 %v4949, 0.0
      %v4982 = vmax.f32 %v4950, 0.0
      %v4983 = vmax.f32 %v4951, 0.0
      %v4984 = vmax.f32 %v4952, 0.0
      %v4985 = vmax.f32 %v4953, 0.0
      %v4986 = vmax.f32 %v4954, 0.0
      %v4987 = vmax.f32 %v4955, 0.0
      %v4988 = vmax.f32 %v4956, 0.0
      %v4989 = vmax.f32 %v4957, 0.0
      %v4990 = vmax.f32 %v4958, 0.0
      %v4991 = vmax.f32 %v4959, 0.0
      %v4992 = vmax.f32 %v4960, 0.0
      %v4993 = vmax.f32 %v4961, 0.0
      %v4994 = vmax.f32 %v4962, 0.0
      %v4995 = vmax.f32 %v4963, 0.0
      %v4996 = vmax.f32 %v4964, 0.0
      %v4997 = vmax.f32 %v4965, 0.0
      %v4998 = vmax.f32 %v4966, 0.0
      %v4999 = vmax.f32 %v4967, 0.0
      %v5000 = vmax.f32 %v4968, 0.0
      %v5001 = vmax.f32 %v4969, 0.0
      %v5002 = vmax.f32 %v4970, 0.0
      %5003 = vst.msk [vmem:[%s1771 + $0x1] sm:$0xff] %vm569, %v4971
      %5004 = vst.msk [vmem:[%s1771 + $0x9] sm:$0xff] %vm569, %v4972
      %5005 = vst.msk [vmem:[%s1771 + $0x19] sm:$0xff] %vm569, %v4973
      %5006 = vst.msk [vmem:[%s1771 + $0x21] sm:$0xff] %vm569, %v4974
      %5007 = vst.msk [vmem:[%s1771 + $0x31] sm:$0xff] %vm569, %v4975
      %5008 = vst.msk [vmem:[%s1771 + $0x39] sm:$0xff] %vm569, %v4976
      %5009 = vst.msk [vmem:[%s1771 + $0x49] sm:$0xff] %vm569, %v4977
      %5010 = vst.msk [vmem:[%s1771 + $0x51] sm:$0xff] %vm569, %v4978
      %5011 = vst.msk [vmem:[%s1771 + $0x61] sm:$0xff] %vm569, %v4979
      %5012 = vst.msk [vmem:[%s1771 + $0x69] sm:$0xff] %vm569, %v4980
      %5013 = vst.msk [vmem:[%s1771 + $0x79] sm:$0xff] %vm569, %v4981
      %5014 = vst.msk [vmem:[%s1771 + $0x81] sm:$0xff] %vm569, %v4982
      %5015 = vst.msk [vmem:[%s1771 + $0x91] sm:$0xff] %vm569, %v4983
      %5016 = vst.msk [vmem:[%s1771 + $0x99] sm:$0xff] %vm569, %v4984
      %5017 = vst.msk [vmem:[%s1771 + $0xa9] sm:$0xff] %vm569, %v4985
      %5018 = vst.msk [vmem:[%s1771 + $0xb1] sm:$0xff] %vm569, %v4986
      %5019 = vst.msk [vmem:[%s1771 + $0xc1] sm:$0xff] %vm569, %v4987
      %5020 = vst.msk [vmem:[%s1771 + $0xc9] sm:$0xff] %vm569, %v4988
      %5021 = vst.msk [vmem:[%s1771 + $0xd9] sm:$0xff] %vm569, %v4989
      %5022 = vst.msk [vmem:[%s1771 + $0xe1] sm:$0xff] %vm569, %v4990
      %5023 = vst.msk [vmem:[%s1771 + $0xf1] sm:$0xff] %vm569, %v4991
      %5024 = vst.msk [vmem:[%s1771 + $0xf9] sm:$0xff] %vm569, %v4992
      %5025 = vst.msk [vmem:[%s1771 + $0x109] sm:$0xff] %vm569, %v4993
      %5026 = vst.msk [vmem:[%s1771 + $0x111] sm:$0xff] %vm569, %v4994
      %5027 = vst.msk [vmem:[%s1771 + $0x121] sm:$0xff] %vm569, %v4995
      %5028 = vst.msk [vmem:[%s1771 + $0x129] sm:$0xff] %vm569, %v4996
      %5029 = vst.msk [vmem:[%s1771 + $0x139] sm:$0xff] %vm569, %v4997
      %5030 = vst.msk [vmem:[%s1771 + $0x141] sm:$0xff] %vm569, %v4998
      %5031 = vst.msk [vmem:[%s1771 + $0x151] sm:$0xff] %vm569, %v4999
      %5032 = vst.msk [vmem:[%s1771 + $0x159] sm:$0xff] %vm569, %v5000
      %5033 = vst.msk [vmem:[%s1771 + $0x169] sm:$0xff] %vm569, %v5001
      %5034 = vst.msk [vmem:[%s1771 + $0x171] sm:$0xff] %vm569, %v5002
      %v5035 = vld [vmem:[#allocation2] sm:$0xff]
      %v5036 = vld [vmem:[#allocation2 + $0x8] sm:$0xff]
      %v5037 = vld [vmem:[#allocation2 + $0x10] sm:$0xff]
      %v5038 = vld [vmem:[#allocation2 + $0x18] sm:$0xff]
      %v5039 = vld [vmem:[#allocation2 + $0x20] sm:$0xff]
      %v5040 = vld [vmem:[#allocation2 + $0x28] sm:$0xff]
      %v5041 = vld [vmem:[#allocation2 + $0x30] sm:$0xff]
      %v5042 = vld [vmem:[#allocation2 + $0x38] sm:$0xff]
      %v5043 = vld [vmem:[#allocation2 + $0x40] sm:$0xff]
      %v5044 = vld [vmem:[#allocation2 + $0x48] sm:$0xff]
      %v5045 = vld [vmem:[#allocation2 + $0x50] sm:$0xff]
      %v5046 = vld [vmem:[#allocation2 + $0x58] sm:$0xff]
      %v5047 = vld [vmem:[#allocation2 + $0x60] sm:$0xff]
      %v5048 = vld [vmem:[#allocation2 + $0x68] sm:$0xff]
      %v5049 = vld [vmem:[#allocation2 + $0x70] sm:$0xff]
      %v5050 = vld [vmem:[#allocation2 + $0x78] sm:$0xff]
      %v5051 = vld [vmem:[#allocation2 + $0x80] sm:$0xff]
      %v5052 = vld [vmem:[#allocation2 + $0x88] sm:$0xff]
      %v5053 = vld [vmem:[#allocation2 + $0x90] sm:$0xff]
      %v5054 = vld [vmem:[#allocation2 + $0x98] sm:$0xff]
      %v5055 = vld [vmem:[#allocation2 + $0xa0] sm:$0xff]
      %v5056 = vld [vmem:[#allocation2 + $0xa8] sm:$0xff]
      %v5057 = vld [vmem:[#allocation2 + $0xb0] sm:$0xff]
      %v5058 = vld [vmem:[#allocation2 + $0xb8] sm:$0xff]
      %v5059 = vld [vmem:[#allocation2 + $0xc0] sm:$0xff]
      %v5060 = vld [vmem:[#allocation2 + $0xc8] sm:$0xff]
      %v5061 = vld [vmem:[#allocation2 + $0xd0] sm:$0xff]
      %v5062 = vld [vmem:[#allocation2 + $0xd8] sm:$0xff]
      %v5063 = vld [vmem:[#allocation2 + $0xe0] sm:$0xff]
      %v5064 = vld [vmem:[#allocation2 + $0xe8] sm:$0xff]
      %v5065 = vld [vmem:[#allocation2 + $0xf0] sm:$0xff]
      %v5066 = vld [vmem:[#allocation2 + $0xf8] sm:$0xff]
      %v5067 = vld [vmem:[#allocation2 + $0x100] sm:$0xff]
      %v5068 = vld [vmem:[#allocation2 + $0x108] sm:$0xff]
      %v5069 = vld [vmem:[#allocation2 + $0x110] sm:$0xff]
      %v5070 = vld [vmem:[#allocation2 + $0x118] sm:$0xff]
      %v5071 = vld [vmem:[#allocation2 + $0x120] sm:$0xff]
      %v5072 = vld [vmem:[#allocation2 + $0x128] sm:$0xff]
      %v5073 = vld [vmem:[#allocation2 + $0x130] sm:$0xff]
      %v5074 = vld [vmem:[#allocation2 + $0x138] sm:$0xff]
      %v5075 = vld [vmem:[#allocation2 + $0x140] sm:$0xff]
      %v5076 = vld [vmem:[#allocation2 + $0x148] sm:$0xff]
      %v5077 = vld [vmem:[#allocation2 + $0x150] sm:$0xff]
      %v5078 = vld [vmem:[#allocation2 + $0x158] sm:$0xff]
      %v5079 = vld [vmem:[#allocation2 + $0x160] sm:$0xff]
      %v5080 = vld [vmem:[#allocation2 + $0x168] sm:$0xff]
      %v5081 = vld [vmem:[#allocation2 + $0x170] sm:$0xff]
      %v5082 = vld [vmem:[#allocation2 + $0x178] sm:$0xff]
      %v5083 = vld [vmem:[%s9] sm:$0xff]
      %v5084 = vld [vmem:[%s9 + $0x8] sm:$0xff]
      %v5085 = vld [vmem:[%s9 + $0x10] sm:$0xff]
      %v5086 = vld [vmem:[%s9 + $0x18] sm:$0xff]
      %v5087 = vld [vmem:[%s9 + $0x20] sm:$0xff]
      %v5088 = vld [vmem:[%s9 + $0x28] sm:$0xff]
      %v5089 = vld [vmem:[%s9 + $0x30] sm:$0xff]
      %v5090 = vld [vmem:[%s9 + $0x38] sm:$0xff]
      %v5091 = vld [vmem:[%s9 + $0x40] sm:$0xff]
      %v5092 = vld [vmem:[%s9 + $0x48] sm:$0xff]
      %v5093 = vld [vmem:[%s9 + $0x50] sm:$0xff]
      %v5094 = vld [vmem:[%s9 + $0x58] sm:$0xff]
      %v5095 = vld [vmem:[%s9 + $0x60] sm:$0xff]
      %v5096 = vld [vmem:[%s9 + $0x68] sm:$0xff]
      %v5097 = vld [vmem:[%s9 + $0x70] sm:$0xff]
      %v5098 = vld [vmem:[%s9 + $0x78] sm:$0xff]
      %v5100 = vsel %vm569, %v5035, 0
      %v5103 = vsel %vm569, %v5036, 0
      %v5106 = vsel %vm569, %v5037, 0
      %v5109 = vsel %vm569, %v5038, 0
      %v5112 = vsel %vm569, %v5039, 0
      %v5115 = vsel %vm569, %v5040, 0
      %v5118 = vsel %vm569, %v5041, 0
      %v5121 = vsel %vm569, %v5042, 0
      %v5124 = vsel %vm569, %v5043, 0
      %v5127 = vsel %vm569, %v5044, 0
      %v5130 = vsel %vm569, %v5045, 0
      %v5133 = vsel %vm569, %v5046, 0
      %v5136 = vsel %vm569, %v5047, 0
      %v5139 = vsel %vm569, %v5048, 0
      %v5142 = vsel %vm569, %v5049, 0
      %v5145 = vsel %vm569, %v5050, 0
      %v5148 = vsel %vm569, %v5051, 0
      %v5151 = vsel %vm569, %v5052, 0
      %v5154 = vsel %vm569, %v5053, 0
      %v5157 = vsel %vm569, %v5054, 0
      %v5160 = vsel %vm569, %v5055, 0
      %v5163 = vsel %vm569, %v5056, 0
      %v5166 = vsel %vm569, %v5057, 0
      %v5169 = vsel %vm569, %v5058, 0
      %v5172 = vsel %vm569, %v5059, 0
      %v5175 = vsel %vm569, %v5060, 0
      %v5178 = vsel %vm569, %v5061, 0
      %v5181 = vsel %vm569, %v5062, 0
      %v5184 = vsel %vm569, %v5063, 0
      %v5187 = vsel %vm569, %v5064, 0
      %v5190 = vsel %vm569, %v5065, 0
      %v5193 = vsel %vm569, %v5066, 0
      %v5196 = vsel %vm569, %v5067, 0
      %v5199 = vsel %vm569, %v5068, 0
      %v5202 = vsel %vm569, %v5069, 0
      %v5205 = vsel %vm569, %v5070, 0
      %v5208 = vsel %vm569, %v5071, 0
      %v5211 = vsel %vm569, %v5072, 0
      %v5214 = vsel %vm569, %v5073, 0
      %v5217 = vsel %vm569, %v5074, 0
      %v5220 = vsel %vm569, %v5075, 0
      %v5223 = vsel %vm569, %v5076, 0
      %v5226 = vsel %vm569, %v5077, 0
      %v5229 = vsel %vm569, %v5078, 0
      %v5232 = vsel %vm569, %v5079, 0
      %v5235 = vsel %vm569, %v5080, 0
      %v5238 = vsel %vm569, %v5081, 0
      %v5241 = vsel %vm569, %v5082, 0
      %5243 = vmatprep.subr.mxu0 0.0
      %5244 = vmatpush1.msra.mxu0 0.0
      %5245 = vmatprep.subr.mxu0 0.0
      %5246 = vmatpush1.msra.mxu0 0.0
      %5247 = vmatprep.subr.mxu0 0.0
      %5248 = vmatpush1.msra.mxu0 0.0
      %5249 = vmatprep.subr.mxu0 0.0
      %5250 = vmatpush1.msra.mxu0 0.0
      %5251 = vmatprep.subr.mxu0 0.0
      %5252 = vmatpush1.msra.mxu0 0.0
      %5253 = vmatprep.subr.mxu0 0.0
      %5254 = vmatpush1.msra.mxu0 0.0
      %5255 = vmatprep.subr.mxu0 0.0
      %5256 = vmatpush1.msra.mxu0 0.0
      %5257 = vmatprep.subr.mxu0 0.0
      %5258 = vmatpush1.msra.mxu0 0.0
      %5259 = vmatprep.subr.mxu0 %v5098
      %5260 = vmatpush1.msra.mxu0 %v5097
      %5261 = vmatprep.subr.mxu0 %v5096
      %5262 = vmatpush1.msra.mxu0 %v5095
      %5263 = vmatprep.subr.mxu0 %v5094
      %5264 = vmatpush1.msra.mxu0 %v5093
      %5265 = vmatprep.subr.mxu0 %v5092
      %5266 = vmatpush1.msra.mxu0 %v5091
      %5267 = vmatprep.subr.mxu0 %v5090
      %5268 = vmatpush1.msra.mxu0 %v5089
      %5269 = vmatprep.subr.mxu0 %v5088
      %5270 = vmatpush1.msra.mxu0 %v5087
      %5271 = vmatprep.subr.mxu0 %v5086
      %5272 = vmatpush1.msra.mxu0 %v5085
      %5273 = vmatprep.subr.mxu0 %v5084
      %5274 = vmatpush1.msra.mxu0 %v5083
      %5275 = vmatprep.subr.mxu0 0.0
      %5276 = vmatpush2.msra.mxu0 0.0
      %5277 = vmatprep.subr.mxu0 0.0
      %5278 = vmatpush2.msra.mxu0 0.0
      %5279 = vmatprep.subr.mxu0 0.0
      %5280 = vmatpush2.msra.mxu0 0.0
      %5281 = vmatprep.subr.mxu0 0.0
      %5282 = vmatpush2.msra.mxu0 0.0
      %5283 = vmatprep.subr.mxu0 0.0
      %5284 = vmatpush2.msra.mxu0 0.0
      %5285 = vmatprep.subr.mxu0 0.0
      %5286 = vmatpush2.msra.mxu0 0.0
      %5287 = vmatprep.subr.mxu0 0.0
      %5288 = vmatpush2.msra.mxu0 0.0
      %5289 = vmatprep.subr.mxu0 0.0
      %5290 = vmatpush2.msra.mxu0 0.0
      %5291 = vmatprep.subr.mxu0 0.0
      %5292 = vmatpush2.msra.mxu0 0.0
      %5293 = vmatprep.subr.mxu0 0.0
      %5294 = vmatpush2.msra.mxu0 0.0
      %5295 = vmatprep.subr.mxu0 0.0
      %5296 = vmatpush2.msra.mxu0 0.0
      %5297 = vmatprep.subr.mxu0 0.0
      %5298 = vmatpush2.msra.mxu0 0.0
      %5299 = vmatprep.subr.mxu0 0.0
      %5300 = vmatpush2.msra.mxu0 0.0
      %5301 = vmatprep.subr.mxu0 0.0
      %5302 = vmatpush2.msra.mxu0 0.0
      %5303 = vmatprep.subr.mxu0 0.0
      %5304 = vmatpush2.msra.mxu0 0.0
      %5305 = vmatprep.subr.mxu0 0.0
      %5306 = vmatpush2.msra.mxu0 0.0
      %5307 = vmatprep.mubr.f32.mxu0 0.0
      %5308 = vmatmul.mubr.f32.gmra.mxu0 %v5100
      %v5309 = vpop.f32.mrf.mxu0
      %v5310 = vadd.f32 0.0, %v5309
      %v5311 = vpop.f32.mrf.mxu0
      %v5312 = vadd.f32 0.0, %v5311
      %5313 = vmatprep.mubr.f32.mxu0 0.0
      %5314 = vmatmul.mubr.f32.gmra.mxu0 %v5103
      %v5315 = vpop.f32.mrf.mxu0
      %v5316 = vadd.f32 0.0, %v5315
      %v5317 = vpop.f32.mrf.mxu0
      %v5318 = vadd.f32 0.0, %v5317
      %5319 = vmatprep.mubr.f32.mxu0 0.0
      %5320 = vmatmul.mubr.f32.gmra.mxu0 %v5106
      %v5321 = vpop.f32.mrf.mxu0
      %v5322 = vadd.f32 0.0, %v5321
      %v5323 = vpop.f32.mrf.mxu0
      %v5324 = vadd.f32 0.0, %v5323
      %5325 = vmatprep.mubr.f32.mxu0 0.0
      %5326 = vmatmul.mubr.f32.gmra.mxu0 %v5109
      %v5327 = vpop.f32.mrf.mxu0
      %v5328 = vadd.f32 0.0, %v5327
      %v5329 = vpop.f32.mrf.mxu0
      %v5330 = vadd.f32 0.0, %v5329
      %5331 = vmatprep.mubr.f32.mxu0 0.0
      %5332 = vmatmul.mubr.f32.gmra.mxu0 %v5112
      %v5333 = vpop.f32.mrf.mxu0
      %v5334 = vadd.f32 0.0, %v5333
      %v5335 = vpop.f32.mrf.mxu0
      %v5336 = vadd.f32 0.0, %v5335
      %5337 = vmatprep.mubr.f32.mxu0 0.0
      %5338 = vmatmul.mubr.f32.gmra.mxu0 %v5115
      %v5339 = vpop.f32.mrf.mxu0
      %v5340 = vadd.f32 0.0, %v5339
      %v5341 = vpop.f32.mrf.mxu0
      %v5342 = vadd.f32 0.0, %v5341
      %5343 = vmatprep.mubr.f32.mxu0 0.0
      %5344 = vmatmul.mubr.f32.gmra.mxu0 %v5118
      %v5345 = vpop.f32.mrf.mxu0
      %v5346 = vadd.f32 0.0, %v5345
      %v5347 = vpop.f32.mrf.mxu0
      %v5348 = vadd.f32 0.0, %v5347
      %5349 = vmatprep.mubr.f32.mxu0 0.0
      %5350 = vmatmul.mubr.f32.gmra.mxu0 %v5121
      %v5351 = vpop.f32.mrf.mxu0
      %v5352 = vadd.f32 0.0, %v5351
      %v5353 = vpop.f32.mrf.mxu0
      %v5354 = vadd.f32 0.0, %v5353
      %5355 = vmatprep.mubr.f32.mxu0 0.0
      %5356 = vmatmul.mubr.f32.gmra.mxu0 %v5124
      %v5357 = vpop.f32.mrf.mxu0
      %v5358 = vadd.f32 0.0, %v5357
      %v5359 = vpop.f32.mrf.mxu0
      %v5360 = vadd.f32 0.0, %v5359
      %5361 = vmatprep.mubr.f32.mxu0 0.0
      %5362 = vmatmul.mubr.f32.gmra.mxu0 %v5127
      %v5363 = vpop.f32.mrf.mxu0
      %v5364 = vadd.f32 0.0, %v5363
      %v5365 = vpop.f32.mrf.mxu0
      %v5366 = vadd.f32 0.0, %v5365
      %5367 = vmatprep.mubr.f32.mxu0 0.0
      %5368 = vmatmul.mubr.f32.gmra.mxu0 %v5130
      %v5369 = vpop.f32.mrf.mxu0
      %v5370 = vadd.f32 0.0, %v5369
      %v5371 = vpop.f32.mrf.mxu0
      %v5372 = vadd.f32 0.0, %v5371
      %5373 = vmatprep.mubr.f32.mxu0 0.0
      %5374 = vmatmul.mubr.f32.gmra.mxu0 %v5133
      %v5375 = vpop.f32.mrf.mxu0
      %v5376 = vadd.f32 0.0, %v5375
      %v5377 = vpop.f32.mrf.mxu0
      %v5378 = vadd.f32 0.0, %v5377
      %5379 = vmatprep.mubr.f32.mxu0 0.0
      %5380 = vmatmul.mubr.f32.gmra.mxu0 %v5136
      %v5381 = vpop.f32.mrf.mxu0
      %v5382 = vadd.f32 0.0, %v5381
      %v5383 = vpop.f32.mrf.mxu0
      %v5384 = vadd.f32 0.0, %v5383
      %5385 = vmatprep.mubr.f32.mxu0 0.0
      %5386 = vmatmul.mubr.f32.gmra.mxu0 %v5139
      %v5387 = vpop.f32.mrf.mxu0
      %v5388 = vadd.f32 0.0, %v5387
      %v5389 = vpop.f32.mrf.mxu0
      %v5390 = vadd.f32 0.0, %v5389
      %5391 = vmatprep.mubr.f32.mxu0 0.0
      %5392 = vmatmul.mubr.f32.gmra.mxu0 %v5142
      %v5393 = vpop.f32.mrf.mxu0
      %v5394 = vadd.f32 0.0, %v5393
      %v5395 = vpop.f32.mrf.mxu0
      %v5396 = vadd.f32 0.0, %v5395
      %5397 = vmatprep.mubr.f32.mxu0 0.0
      %5398 = vmatmul.mubr.f32.gmra.mxu0 %v5145
      %v5399 = vpop.f32.mrf.mxu0
      %v5400 = vadd.f32 0.0, %v5399
      %v5401 = vpop.f32.mrf.mxu0
      %v5402 = vadd.f32 0.0, %v5401
      %5403 = vmatprep.mubr.f32.mxu0 0.0
      %5404 = vmatmul.mubr.f32.gmra.mxu0 %v5148
      %v5405 = vpop.f32.mrf.mxu0
      %v5406 = vadd.f32 0.0, %v5405
      %v5407 = vpop.f32.mrf.mxu0
      %v5408 = vadd.f32 0.0, %v5407
      %5409 = vmatprep.mubr.f32.mxu0 0.0
      %5410 = vmatmul.mubr.f32.gmra.mxu0 %v5151
      %v5411 = vpop.f32.mrf.mxu0
      %v5412 = vadd.f32 0.0, %v5411
      %v5413 = vpop.f32.mrf.mxu0
      %v5414 = vadd.f32 0.0, %v5413
      %5415 = vmatprep.mubr.f32.mxu0 0.0
      %5416 = vmatmul.mubr.f32.gmra.mxu0 %v5154
      %v5417 = vpop.f32.mrf.mxu0
      %v5418 = vadd.f32 0.0, %v5417
      %v5419 = vpop.f32.mrf.mxu0
      %v5420 = vadd.f32 0.0, %v5419
      %5421 = vmatprep.mubr.f32.mxu0 0.0
      %5422 = vmatmul.mubr.f32.gmra.mxu0 %v5157
      %v5423 = vpop.f32.mrf.mxu0
      %v5424 = vadd.f32 0.0, %v5423
      %v5425 = vpop.f32.mrf.mxu0
      %v5426 = vadd.f32 0.0, %v5425
      %5427 = vmatprep.mubr.f32.mxu0 0.0
      %5428 = vmatmul.mubr.f32.gmra.mxu0 %v5160
      %v5429 = vpop.f32.mrf.mxu0
      %v5430 = vadd.f32 0.0, %v5429
      %v5431 = vpop.f32.mrf.mxu0
      %v5432 = vadd.f32 0.0, %v5431
      %5433 = vmatprep.mubr.f32.mxu0 0.0
      %5434 = vmatmul.mubr.f32.gmra.mxu0 %v5163
      %v5435 = vpop.f32.mrf.mxu0
      %v5436 = vadd.f32 0.0, %v5435
      %v5437 = vpop.f32.mrf.mxu0
      %v5438 = vadd.f32 0.0, %v5437
      %5439 = vmatprep.mubr.f32.mxu0 0.0
      %5440 = vmatmul.mubr.f32.gmra.mxu0 %v5166
      %v5441 = vpop.f32.mrf.mxu0
      %v5442 = vadd.f32 0.0, %v5441
      %v5443 = vpop.f32.mrf.mxu0
      %v5444 = vadd.f32 0.0, %v5443
      %5445 = vmatprep.mubr.f32.mxu0 0.0
      %5446 = vmatmul.mubr.f32.gmra.mxu0 %v5169
      %v5447 = vpop.f32.mrf.mxu0
      %v5448 = vadd.f32 0.0, %v5447
      %v5449 = vpop.f32.mrf.mxu0
      %v5450 = vadd.f32 0.0, %v5449
      %5451 = vmatprep.mubr.f32.mxu0 0.0
      %5452 = vmatmul.mubr.f32.gmra.mxu0 %v5172
      %v5453 = vpop.f32.mrf.mxu0
      %v5454 = vadd.f32 0.0, %v5453
      %v5455 = vpop.f32.mrf.mxu0
      %v5456 = vadd.f32 0.0, %v5455
      %5457 = vmatprep.mubr.f32.mxu0 0.0
      %5458 = vmatmul.mubr.f32.gmra.mxu0 %v5175
      %v5459 = vpop.f32.mrf.mxu0
      %v5460 = vadd.f32 0.0, %v5459
      %v5461 = vpop.f32.mrf.mxu0
      %v5462 = vadd.f32 0.0, %v5461
      %5463 = vmatprep.mubr.f32.mxu0 0.0
      %5464 = vmatmul.mubr.f32.gmra.mxu0 %v5178
      %v5465 = vpop.f32.mrf.mxu0
      %v5466 = vadd.f32 0.0, %v5465
      %v5467 = vpop.f32.mrf.mxu0
      %v5468 = vadd.f32 0.0, %v5467
      %5469 = vmatprep.mubr.f32.mxu0 0.0
      %5470 = vmatmul.mubr.f32.gmra.mxu0 %v5181
      %v5471 = vpop.f32.mrf.mxu0
      %v5472 = vadd.f32 0.0, %v5471
      %v5473 = vpop.f32.mrf.mxu0
      %v5474 = vadd.f32 0.0, %v5473
      %5475 = vmatprep.mubr.f32.mxu0 0.0
      %5476 = vmatmul.mubr.f32.gmra.mxu0 %v5184
      %v5477 = vpop.f32.mrf.mxu0
      %v5478 = vadd.f32 0.0, %v5477
      %v5479 = vpop.f32.mrf.mxu0
      %v5480 = vadd.f32 0.0, %v5479
      %5481 = vmatprep.mubr.f32.mxu0 0.0
      %5482 = vmatmul.mubr.f32.gmra.mxu0 %v5187
      %v5483 = vpop.f32.mrf.mxu0
      %v5484 = vadd.f32 0.0, %v5483
      %v5485 = vpop.f32.mrf.mxu0
      %v5486 = vadd.f32 0.0, %v5485
      %5487 = vmatprep.mubr.f32.mxu0 0.0
      %5488 = vmatmul.mubr.f32.gmra.mxu0 %v5190
      %v5489 = vpop.f32.mrf.mxu0
      %v5490 = vadd.f32 0.0, %v5489
      %v5491 = vpop.f32.mrf.mxu0
      %v5492 = vadd.f32 0.0, %v5491
      %5493 = vmatprep.mubr.f32.mxu0 0.0
      %5494 = vmatmul.mubr.f32.gmra.mxu0 %v5193
      %v5495 = vpop.f32.mrf.mxu0
      %v5496 = vadd.f32 0.0, %v5495
      %v5497 = vpop.f32.mrf.mxu0
      %v5498 = vadd.f32 0.0, %v5497
      %5499 = vmatprep.mubr.f32.mxu0 0.0
      %5500 = vmatmul.mubr.f32.gmra.mxu0 %v5196
      %v5501 = vpop.f32.mrf.mxu0
      %v5502 = vadd.f32 0.0, %v5501
      %v5503 = vpop.f32.mrf.mxu0
      %v5504 = vadd.f32 0.0, %v5503
      %5505 = vmatprep.mubr.f32.mxu0 0.0
      %5506 = vmatmul.mubr.f32.gmra.mxu0 %v5199
      %v5507 = vpop.f32.mrf.mxu0
      %v5508 = vadd.f32 0.0, %v5507
      %v5509 = vpop.f32.mrf.mxu0
      %v5510 = vadd.f32 0.0, %v5509
      %5511 = vmatprep.mubr.f32.mxu0 0.0
      %5512 = vmatmul.mubr.f32.gmra.mxu0 %v5202
      %v5513 = vpop.f32.mrf.mxu0
      %v5514 = vadd.f32 0.0, %v5513
      %v5515 = vpop.f32.mrf.mxu0
      %v5516 = vadd.f32 0.0, %v5515
      %5517 = vmatprep.mubr.f32.mxu0 0.0
      %5518 = vmatmul.mubr.f32.gmra.mxu0 %v5205
      %v5519 = vpop.f32.mrf.mxu0
      %v5520 = vadd.f32 0.0, %v5519
      %v5521 = vpop.f32.mrf.mxu0
      %v5522 = vadd.f32 0.0, %v5521
      %5523 = vmatprep.mubr.f32.mxu0 0.0
      %5524 = vmatmul.mubr.f32.gmra.mxu0 %v5208
      %v5525 = vpop.f32.mrf.mxu0
      %v5526 = vadd.f32 0.0, %v5525
      %v5527 = vpop.f32.mrf.mxu0
      %v5528 = vadd.f32 0.0, %v5527
      %5529 = vmatprep.mubr.f32.mxu0 0.0
      %5530 = vmatmul.mubr.f32.gmra.mxu0 %v5211
      %v5531 = vpop.f32.mrf.mxu0
      %v5532 = vadd.f32 0.0, %v5531
      %v5533 = vpop.f32.mrf.mxu0
      %v5534 = vadd.f32 0.0, %v5533
      %5535 = vmatprep.mubr.f32.mxu0 0.0
      %5536 = vmatmul.mubr.f32.gmra.mxu0 %v5214
      %v5537 = vpop.f32.mrf.mxu0
      %v5538 = vadd.f32 0.0, %v5537
      %v5539 = vpop.f32.mrf.mxu0
      %v5540 = vadd.f32 0.0, %v5539
      %5541 = vmatprep.mubr.f32.mxu0 0.0
      %5542 = vmatmul.mubr.f32.gmra.mxu0 %v5217
      %v5543 = vpop.f32.mrf.mxu0
      %v5544 = vadd.f32 0.0, %v5543
      %v5545 = vpop.f32.mrf.mxu0
      %v5546 = vadd.f32 0.0, %v5545
      %5547 = vmatprep.mubr.f32.mxu0 0.0
      %5548 = vmatmul.mubr.f32.gmra.mxu0 %v5220
      %v5549 = vpop.f32.mrf.mxu0
      %v5550 = vadd.f32 0.0, %v5549
      %v5551 = vpop.f32.mrf.mxu0
      %v5552 = vadd.f32 0.0, %v5551
      %5553 = vmatprep.mubr.f32.mxu0 0.0
      %5554 = vmatmul.mubr.f32.gmra.mxu0 %v5223
      %v5555 = vpop.f32.mrf.mxu0
      %v5556 = vadd.f32 0.0, %v5555
      %v5557 = vpop.f32.mrf.mxu0
      %v5558 = vadd.f32 0.0, %v5557
      %5559 = vmatprep.mubr.f32.mxu0 0.0
      %5560 = vmatmul.mubr.f32.gmra.mxu0 %v5226
      %v5561 = vpop.f32.mrf.mxu0
      %v5562 = vadd.f32 0.0, %v5561
      %v5563 = vpop.f32.mrf.mxu0
      %v5564 = vadd.f32 0.0, %v5563
      %5565 = vmatprep.mubr.f32.mxu0 0.0
      %5566 = vmatmul.mubr.f32.gmra.mxu0 %v5229
      %v5567 = vpop.f32.mrf.mxu0
      %v5568 = vadd.f32 0.0, %v5567
      %v5569 = vpop.f32.mrf.mxu0
      %v5570 = vadd.f32 0.0, %v5569
      %5571 = vmatprep.mubr.f32.mxu0 0.0
      %5572 = vmatmul.mubr.f32.gmra.mxu0 %v5232
      %v5573 = vpop.f32.mrf.mxu0
      %v5574 = vadd.f32 0.0, %v5573
      %v5575 = vpop.f32.mrf.mxu0
      %v5576 = vadd.f32 0.0, %v5575
      %5577 = vmatprep.mubr.f32.mxu0 0.0
      %5578 = vmatmul.mubr.f32.gmra.mxu0 %v5235
      %v5579 = vpop.f32.mrf.mxu0
      %v5580 = vadd.f32 0.0, %v5579
      %v5581 = vpop.f32.mrf.mxu0
      %v5582 = vadd.f32 0.0, %v5581
      %5583 = vmatprep.mubr.f32.mxu0 0.0
      %5584 = vmatmul.mubr.f32.gmra.mxu0 %v5238
      %v5585 = vpop.f32.mrf.mxu0
      %v5586 = vadd.f32 0.0, %v5585
      %v5587 = vpop.f32.mrf.mxu0
      %v5588 = vadd.f32 0.0, %v5587
      %5589 = vmatprep.mubr.f32.mxu0 0.0
      %5590 = vmatmul.mubr.f32.gmra.mxu0 %v5241
      %v5591 = vpop.f32.mrf.mxu0
      %v5592 = vadd.f32 0.0, %v5591
      %v5593 = vpop.f32.mrf.mxu0
      %v5594 = vadd.f32 0.0, %v5593
      %5595 = vdwg.mxu0
      %v5596 = vadd.f32 %v5310, 0.0
      %v5597 = vadd.f32 %v5316, 0.0
      %v5598 = vadd.f32 %v5328, 0.0
      %v5599 = vadd.f32 %v5334, 0.0
      %v5600 = vadd.f32 %v5346, 0.0
      %v5601 = vadd.f32 %v5352, 0.0
      %v5602 = vadd.f32 %v5364, 0.0
      %v5603 = vadd.f32 %v5370, 0.0
      %v5604 = vadd.f32 %v5382, 0.0
      %v5605 = vadd.f32 %v5388, 0.0
      %v5606 = vadd.f32 %v5400, 0.0
      %v5607 = vadd.f32 %v5406, 0.0
      %v5608 = vadd.f32 %v5418, 0.0
      %v5609 = vadd.f32 %v5424, 0.0
      %v5610 = vadd.f32 %v5436, 0.0
      %v5611 = vadd.f32 %v5442, 0.0
      %v5612 = vadd.f32 %v5454, 0.0
      %v5613 = vadd.f32 %v5460, 0.0
      %v5614 = vadd.f32 %v5472, 0.0
      %v5615 = vadd.f32 %v5478, 0.0
      %v5616 = vadd.f32 %v5490, 0.0
      %v5617 = vadd.f32 %v5496, 0.0
      %v5618 = vadd.f32 %v5508, 0.0
      %v5619 = vadd.f32 %v5514, 0.0
      %v5620 = vadd.f32 %v5526, 0.0
      %v5621 = vadd.f32 %v5532, 0.0
      %v5622 = vadd.f32 %v5544, 0.0
      %v5623 = vadd.f32 %v5550, 0.0
      %v5624 = vadd.f32 %v5562, 0.0
      %v5625 = vadd.f32 %v5568, 0.0
      %v5626 = vadd.f32 %v5580, 0.0
      %v5627 = vadd.f32 %v5586, 0.0
      %v5676 = vrot.slane %v5310, 1
      %v5677 = vrot.slane %v5316, 1
      %v5678 = vsel %vm2445, %v5676, %v5677
      %v5679 = vrot.slane %v5322, 1
      %v5680 = vsel %vm2445, %v5677, %v5679
      %v5681 = vrot.slane %v5328, 1
      %v5682 = vrot.slane %v5334, 1
      %v5683 = vsel %vm2445, %v5681, %v5682
      %v5684 = vrot.slane %v5340, 1
      %v5685 = vsel %vm2445, %v5682, %v5684
      %v5686 = vrot.slane %v5346, 1
      %v5687 = vrot.slane %v5352, 1
      %v5688 = vsel %vm2445, %v5686, %v5687
      %v5689 = vrot.slane %v5358, 1
      %v5690 = vsel %vm2445, %v5687, %v5689
      %v5691 = vrot.slane %v5364, 1
      %v5692 = vrot.slane %v5370, 1
      %v5693 = vsel %vm2445, %v5691, %v5692
      %v5694 = vrot.slane %v5376, 1
      %v5695 = vsel %vm2445, %v5692, %v5694
      %v5696 = vrot.slane %v5382, 1
      %v5697 = vrot.slane %v5388, 1
      %v5698 = vsel %vm2445, %v5696, %v5697
      %v5699 = vrot.slane %v5394, 1
      %v5700 = vsel %vm2445, %v5697, %v5699
      %v5701 = vrot.slane %v5400, 1
      %v5702 = vrot.slane %v5406, 1
      %v5703 = vsel %vm2445, %v5701, %v5702
      %v5704 = vrot.slane %v5412, 1
      %v5705 = vsel %vm2445, %v5702, %v5704
      %v5706 = vrot.slane %v5418, 1
      %v5707 = vrot.slane %v5424, 1
      %v5708 = vsel %vm2445, %v5706, %v5707
      %v5709 = vrot.slane %v5430, 1
      %v5710 = vsel %vm2445, %v5707, %v5709
      %v5711 = vrot.slane %v5436, 1
      %v5712 = vrot.slane %v5442, 1
      %v5713 = vsel %vm2445, %v5711, %v5712
      %v5714 = vrot.slane %v5448, 1
      %v5715 = vsel %vm2445, %v5712, %v5714
      %v5716 = vrot.slane %v5454, 1
      %v5717 = vrot.slane %v5460, 1
      %v5718 = vsel %vm2445, %v5716, %v5717
      %v5719 = vrot.slane %v5466, 1
      %v5720 = vsel %vm2445, %v5717, %v5719
      %v5721 = vrot.slane %v5472, 1
      %v5722 = vrot.slane %v5478, 1
      %v5723 = vsel %vm2445, %v5721, %v5722
      %v5724 = vrot.slane %v5484, 1
      %v5725 = vsel %vm2445, %v5722, %v5724
      %v5726 = vrot.slane %v5490, 1
      %v5727 = vrot.slane %v5496, 1
      %v5728 = vsel %vm2445, %v5726, %v5727
      %v5729 = vrot.slane %v5502, 1
      %v5730 = vsel %vm2445, %v5727, %v5729
      %v5731 = vrot.slane %v5508, 1
      %v5732 = vrot.slane %v5514, 1
      %v5733 = vsel %vm2445, %v5731, %v5732
      %v5734 = vrot.slane %v5520, 1
      %v5735 = vsel %vm2445, %v5732, %v5734
      %v5736 = vrot.slane %v5526, 1
      %v5737 = vrot.slane %v5532, 1
      %v5738 = vsel %vm2445, %v5736, %v5737
      %v5739 = vrot.slane %v5538, 1
      %v5740 = vsel %vm2445, %v5737, %v5739
      %v5741 = vrot.slane %v5544, 1
      %v5742 = vrot.slane %v5550, 1
      %v5743 = vsel %vm2445, %v5741, %v5742
      %v5744 = vrot.slane %v5556, 1
      %v5745 = vsel %vm2445, %v5742, %v5744
      %v5746 = vrot.slane %v5562, 1
      %v5747 = vrot.slane %v5568, 1
      %v5748 = vsel %vm2445, %v5746, %v5747
      %v5749 = vrot.slane %v5574, 1
      %v5750 = vsel %vm2445, %v5747, %v5749
      %v5751 = vrot.slane %v5580, 1
      %v5752 = vrot.slane %v5586, 1
      %v5753 = vsel %vm2445, %v5751, %v5752
      %v5754 = vrot.slane %v5592, 1
      %v5755 = vsel %vm2445, %v5752, %v5754
      %5756 = vrot.lane.b32.xlu0 %v5678, 64
      %v5757 = vpop.permute.xlu0 %5756
      %5758 = vrot.lane.b32.xlu0 %v5680, 64
      %v5759 = vpop.permute.xlu0 %5758
      %5760 = vrot.lane.b32.xlu0 %v5683, 64
      %v5761 = vpop.permute.xlu0 %5760
      %5762 = vrot.lane.b32.xlu0 %v5685, 64
      %v5763 = vpop.permute.xlu0 %5762
      %5764 = vrot.lane.b32.xlu0 %v5688, 64
      %v5765 = vpop.permute.xlu0 %5764
      %5766 = vrot.lane.b32.xlu0 %v5690, 64
      %v5767 = vpop.permute.xlu0 %5766
      %5768 = vrot.lane.b32.xlu0 %v5693, 64
      %v5769 = vpop.permute.xlu0 %5768
      %5770 = vrot.lane.b32.xlu0 %v5695, 64
      %v5771 = vpop.permute.xlu0 %5770
      %5772 = vrot.lane.b32.xlu0 %v5698, 64
      %v5773 = vpop.permute.xlu0 %5772
      %5774 = vrot.lane.b32.xlu0 %v5700, 64
      %v5775 = vpop.permute.xlu0 %5774
      %5776 = vrot.lane.b32.xlu0 %v5703, 64
      %v5777 = vpop.permute.xlu0 %5776
      %5778 = vrot.lane.b32.xlu0 %v5705, 64
      %v5779 = vpop.permute.xlu0 %5778
      %5780 = vrot.lane.b32.xlu0 %v5708, 64
      %v5781 = vpop.permute.xlu0 %5780
      %5782 = vrot.lane.b32.xlu0 %v5710, 64
      %v5783 = vpop.permute.xlu0 %5782
      %5784 = vrot.lane.b32.xlu0 %v5713, 64
      %v5785 = vpop.permute.xlu0 %5784
      %5786 = vrot.lane.b32.xlu0 %v5715, 64
      %v5787 = vpop.permute.xlu0 %5786
      %5788 = vrot.lane.b32.xlu0 %v5718, 64
      %v5789 = vpop.permute.xlu0 %5788
      %5790 = vrot.lane.b32.xlu0 %v5720, 64
      %v5791 = vpop.permute.xlu0 %5790
      %5792 = vrot.lane.b32.xlu0 %v5723, 64
      %v5793 = vpop.permute.xlu0 %5792
      %5794 = vrot.lane.b32.xlu0 %v5725, 64
      %v5795 = vpop.permute.xlu0 %5794
      %5796 = vrot.lane.b32.xlu0 %v5728, 64
      %v5797 = vpop.permute.xlu0 %5796
      %5798 = vrot.lane.b32.xlu0 %v5730, 64
      %v5799 = vpop.permute.xlu0 %5798
      %5800 = vrot.lane.b32.xlu0 %v5733, 64
      %v5801 = vpop.permute.xlu0 %5800
      %5802 = vrot.lane.b32.xlu0 %v5735, 64
      %v5803 = vpop.permute.xlu0 %5802
      %5804 = vrot.lane.b32.xlu0 %v5738, 64
      %v5805 = vpop.permute.xlu0 %5804
      %5806 = vrot.lane.b32.xlu0 %v5740, 64
      %v5807 = vpop.permute.xlu0 %5806
      %5808 = vrot.lane.b32.xlu0 %v5743, 64
      %v5809 = vpop.permute.xlu0 %5808
      %5810 = vrot.lane.b32.xlu0 %v5745, 64
      %v5811 = vpop.permute.xlu0 %5810
      %5812 = vrot.lane.b32.xlu0 %v5748, 64
      %v5813 = vpop.permute.xlu0 %5812
      %5814 = vrot.lane.b32.xlu0 %v5750, 64
      %v5815 = vpop.permute.xlu0 %5814
      %5816 = vrot.lane.b32.xlu0 %v5753, 64
      %v5817 = vpop.permute.xlu0 %5816
      %5818 = vrot.lane.b32.xlu0 %v5755, 64
      %v5819 = vpop.permute.xlu0 %5818
      %v5852 = vadd.f32 %v5596, %v5757
      %v5853 = vadd.f32 %v5597, %v5759
      %v5854 = vadd.f32 %v5598, %v5761
      %v5855 = vadd.f32 %v5599, %v5763
      %v5856 = vadd.f32 %v5600, %v5765
      %v5857 = vadd.f32 %v5601, %v5767
      %v5858 = vadd.f32 %v5602, %v5769
      %v5859 = vadd.f32 %v5603, %v5771
      %v5860 = vadd.f32 %v5604, %v5773
      %v5861 = vadd.f32 %v5605, %v5775
      %v5862 = vadd.f32 %v5606, %v5777
      %v5863 = vadd.f32 %v5607, %v5779
      %v5864 = vadd.f32 %v5608, %v5781
      %v5865 = vadd.f32 %v5609, %v5783
      %v5866 = vadd.f32 %v5610, %v5785
      %v5867 = vadd.f32 %v5611, %v5787
      %v5868 = vadd.f32 %v5612, %v5789
      %v5869 = vadd.f32 %v5613, %v5791
      %v5870 = vadd.f32 %v5614, %v5793
      %v5871 = vadd.f32 %v5615, %v5795
      %v5872 = vadd.f32 %v5616, %v5797
      %v5873 = vadd.f32 %v5617, %v5799
      %v5874 = vadd.f32 %v5618, %v5801
      %v5875 = vadd.f32 %v5619, %v5803
      %v5876 = vadd.f32 %v5620, %v5805
      %v5877 = vadd.f32 %v5621, %v5807
      %v5878 = vadd.f32 %v5622, %v5809
      %v5879 = vadd.f32 %v5623, %v5811
      %v5880 = vadd.f32 %v5624, %v5813
      %v5881 = vadd.f32 %v5625, %v5815
      %v5882 = vadd.f32 %v5626, %v5817
      %v5883 = vadd.f32 %v5627, %v5819
      %v5932 = vrot.slane %v5312, 2
      %v5933 = vrot.slane %v5318, 2
      %v5934 = vsel %vm2702, %v5932, %v5933
      %v5935 = vrot.slane %v5324, 2
      %v5936 = vsel %vm2702, %v5933, %v5935
      %v5937 = vrot.slane %v5330, 2
      %v5938 = vrot.slane %v5336, 2
      %v5939 = vsel %vm2702, %v5937, %v5938
      %v5940 = vrot.slane %v5342, 2
      %v5941 = vsel %vm2702, %v5938, %v5940
      %v5942 = vrot.slane %v5348, 2
      %v5943 = vrot.slane %v5354, 2
      %v5944 = vsel %vm2702, %v5942, %v5943
      %v5945 = vrot.slane %v5360, 2
      %v5946 = vsel %vm2702, %v5943, %v5945
      %v5947 = vrot.slane %v5366, 2
      %v5948 = vrot.slane %v5372, 2
      %v5949 = vsel %vm2702, %v5947, %v5948
      %v5950 = vrot.slane %v5378, 2
      %v5951 = vsel %vm2702, %v5948, %v5950
      %v5952 = vrot.slane %v5384, 2
      %v5953 = vrot.slane %v5390, 2
      %v5954 = vsel %vm2702, %v5952, %v5953
      %v5955 = vrot.slane %v5396, 2
      %v5956 = vsel %vm2702, %v5953, %v5955
      %v5957 = vrot.slane %v5402, 2
      %v5958 = vrot.slane %v5408, 2
      %v5959 = vsel %vm2702, %v5957, %v5958
      %v5960 = vrot.slane %v5414, 2
      %v5961 = vsel %vm2702, %v5958, %v5960
      %v5962 = vrot.slane %v5420, 2
      %v5963 = vrot.slane %v5426, 2
      %v5964 = vsel %vm2702, %v5962, %v5963
      %v5965 = vrot.slane %v5432, 2
      %v5966 = vsel %vm2702, %v5963, %v5965
      %v5967 = vrot.slane %v5438, 2
      %v5968 = vrot.slane %v5444, 2
      %v5969 = vsel %vm2702, %v5967, %v5968
      %v5970 = vrot.slane %v5450, 2
      %v5971 = vsel %vm2702, %v5968, %v5970
      %v5972 = vrot.slane %v5456, 2
      %v5973 = vrot.slane %v5462, 2
      %v5974 = vsel %vm2702, %v5972, %v5973
      %v5975 = vrot.slane %v5468, 2
      %v5976 = vsel %vm2702, %v5973, %v5975
      %v5977 = vrot.slane %v5474, 2
      %v5978 = vrot.slane %v5480, 2
      %v5979 = vsel %vm2702, %v5977, %v5978
      %v5980 = vrot.slane %v5486, 2
      %v5981 = vsel %vm2702, %v5978, %v5980
      %v5982 = vrot.slane %v5492, 2
      %v5983 = vrot.slane %v5498, 2
      %v5984 = vsel %vm2702, %v5982, %v5983
      %v5985 = vrot.slane %v5504, 2
      %v5986 = vsel %vm2702, %v5983, %v5985
      %v5987 = vrot.slane %v5510, 2
      %v5988 = vrot.slane %v5516, 2
      %v5989 = vsel %vm2702, %v5987, %v5988
      %v5990 = vrot.slane %v5522, 2
      %v5991 = vsel %vm2702, %v5988, %v5990
      %v5992 = vrot.slane %v5528, 2
      %v5993 = vrot.slane %v5534, 2
      %v5994 = vsel %vm2702, %v5992, %v5993
      %v5995 = vrot.slane %v5540, 2
      %v5996 = vsel %vm2702, %v5993, %v5995
      %v5997 = vrot.slane %v5546, 2
      %v5998 = vrot.slane %v5552, 2
      %v5999 = vsel %vm2702, %v5997, %v5998
      %v6000 = vrot.slane %v5558, 2
      %v6001 = vsel %vm2702, %v5998, %v6000
      %v6002 = vrot.slane %v5564, 2
      %v6003 = vrot.slane %v5570, 2
      %v6004 = vsel %vm2702, %v6002, %v6003
      %v6005 = vrot.slane %v5576, 2
      %v6006 = vsel %vm2702, %v6003, %v6005
      %v6007 = vrot.slane %v5582, 2
      %v6008 = vrot.slane %v5588, 2
      %v6009 = vsel %vm2702, %v6007, %v6008
      %v6010 = vrot.slane %v5594, 2
      %v6011 = vsel %vm2702, %v6008, %v6010
      %v6044 = vadd.f32 %v5852, %v5934
      %v6045 = vadd.f32 %v5853, %v5936
      %v6046 = vadd.f32 %v5854, %v5939
      %v6047 = vadd.f32 %v5855, %v5941
      %v6048 = vadd.f32 %v5856, %v5944
      %v6049 = vadd.f32 %v5857, %v5946
      %v6050 = vadd.f32 %v5858, %v5949
      %v6051 = vadd.f32 %v5859, %v5951
      %v6052 = vadd.f32 %v5860, %v5954
      %v6053 = vadd.f32 %v5861, %v5956
      %v6054 = vadd.f32 %v5862, %v5959
      %v6055 = vadd.f32 %v5863, %v5961
      %v6056 = vadd.f32 %v5864, %v5964
      %v6057 = vadd.f32 %v5865, %v5966
      %v6058 = vadd.f32 %v5866, %v5969
      %v6059 = vadd.f32 %v5867, %v5971
      %v6060 = vadd.f32 %v5868, %v5974
      %v6061 = vadd.f32 %v5869, %v5976
      %v6062 = vadd.f32 %v5870, %v5979
      %v6063 = vadd.f32 %v5871, %v5981
      %v6064 = vadd.f32 %v5872, %v5984
      %v6065 = vadd.f32 %v5873, %v5986
      %v6066 = vadd.f32 %v5874, %v5989
      %v6067 = vadd.f32 %v5875, %v5991
      %v6068 = vadd.f32 %v5876, %v5994
      %v6069 = vadd.f32 %v5877, %v5996
      %v6070 = vadd.f32 %v5878, %v5999
      %v6071 = vadd.f32 %v5879, %v6001
      %v6072 = vadd.f32 %v5880, %v6004
      %v6073 = vadd.f32 %v5881, %v6006
      %v6074 = vadd.f32 %v5882, %v6009
      %v6075 = vadd.f32 %v5883, %v6011
      %v6076 = vld [vmem:[%s1771] sm:$0xff]
      %v6077 = vld [vmem:[%s1771 + $0x8] sm:$0xff]
      %v6078 = vld [vmem:[%s1771 + $0x10] sm:$0xff]
      %v6079 = vld [vmem:[%s1771 + $0x18] sm:$0xff]
      %v6080 = vld [vmem:[%s1771 + $0x20] sm:$0xff]
      %v6081 = vld [vmem:[%s1771 + $0x28] sm:$0xff]
      %v6082 = vld [vmem:[%s1771 + $0x30] sm:$0xff]
      %v6083 = vld [vmem:[%s1771 + $0x38] sm:$0xff]
      %v6084 = vld [vmem:[%s1771 + $0x40] sm:$0xff]
      %v6085 = vld [vmem:[%s1771 + $0x48] sm:$0xff]
      %v6086 = vld [vmem:[%s1771 + $0x50] sm:$0xff]
      %v6087 = vld [vmem:[%s1771 + $0x58] sm:$0xff]
      %v6088 = vld [vmem:[%s1771 + $0x60] sm:$0xff]
      %v6089 = vld [vmem:[%s1771 + $0x68] sm:$0xff]
      %v6090 = vld [vmem:[%s1771 + $0x70] sm:$0xff]
      %v6091 = vld [vmem:[%s1771 + $0x78] sm:$0xff]
      %v6092 = vld [vmem:[%s1771 + $0x80] sm:$0xff]
      %v6093 = vld [vmem:[%s1771 + $0x88] sm:$0xff]
      %v6094 = vld [vmem:[%s1771 + $0x90] sm:$0xff]
      %v6095 = vld [vmem:[%s1771 + $0x98] sm:$0xff]
      %v6096 = vld [vmem:[%s1771 + $0xa0] sm:$0xff]
      %v6097 = vld [vmem:[%s1771 + $0xa8] sm:$0xff]
      %v6098 = vld [vmem:[%s1771 + $0xb0] sm:$0xff]
      %v6099 = vld [vmem:[%s1771 + $0xb8] sm:$0xff]
      %v6100 = vld [vmem:[%s1771 + $0xc0] sm:$0xff]
      %v6101 = vld [vmem:[%s1771 + $0xc8] sm:$0xff]
      %v6102 = vld [vmem:[%s1771 + $0xd0] sm:$0xff]
      %v6103 = vld [vmem:[%s1771 + $0xd8] sm:$0xff]
      %v6104 = vld [vmem:[%s1771 + $0xe0] sm:$0xff]
      %v6105 = vld [vmem:[%s1771 + $0xe8] sm:$0xff]
      %v6106 = vld [vmem:[%s1771 + $0xf0] sm:$0xff]
      %v6107 = vld [vmem:[%s1771 + $0xf8] sm:$0xff]
      %v6108 = vld [vmem:[%s1771 + $0x100] sm:$0xff]
      %v6109 = vld [vmem:[%s1771 + $0x108] sm:$0xff]
      %v6110 = vld [vmem:[%s1771 + $0x110] sm:$0xff]
      %v6111 = vld [vmem:[%s1771 + $0x118] sm:$0xff]
      %v6112 = vld [vmem:[%s1771 + $0x120] sm:$0xff]
      %v6113 = vld [vmem:[%s1771 + $0x128] sm:$0xff]
      %v6114 = vld [vmem:[%s1771 + $0x130] sm:$0xff]
      %v6115 = vld [vmem:[%s1771 + $0x138] sm:$0xff]
      %v6116 = vld [vmem:[%s1771 + $0x140] sm:$0xff]
      %v6117 = vld [vmem:[%s1771 + $0x148] sm:$0xff]
      %v6118 = vld [vmem:[%s1771 + $0x150] sm:$0xff]
      %v6119 = vld [vmem:[%s1771 + $0x158] sm:$0xff]
      %v6120 = vld [vmem:[%s1771 + $0x160] sm:$0xff]
      %v6121 = vld [vmem:[%s1771 + $0x168] sm:$0xff]
      %v6122 = vld [vmem:[%s1771 + $0x170] sm:$0xff]
      %v6123 = vld [vmem:[%s1771 + $0x178] sm:$0xff]
      %s6124 = scalar_lea.vmem %s9, 128
      %v6125 = vld [vmem:[%s6124] sm:$0xff]
      %v6126 = vld [vmem:[%s6124 + $0x8] sm:$0xff]
      %v6127 = vld [vmem:[%s6124 + $0x10] sm:$0xff]
      %v6128 = vld [vmem:[%s6124 + $0x18] sm:$0xff]
      %v6129 = vld [vmem:[%s6124 + $0x20] sm:$0xff]
      %v6130 = vld [vmem:[%s6124 + $0x28] sm:$0xff]
      %v6131 = vld [vmem:[%s6124 + $0x30] sm:$0xff]
      %v6132 = vld [vmem:[%s6124 + $0x38] sm:$0xff]
      %v6133 = vld [vmem:[%s6124 + $0x40] sm:$0xff]
      %v6134 = vld [vmem:[%s6124 + $0x48] sm:$0xff]
      %v6135 = vld [vmem:[%s6124 + $0x50] sm:$0xff]
      %v6136 = vld [vmem:[%s6124 + $0x58] sm:$0xff]
      %v6137 = vld [vmem:[%s6124 + $0x60] sm:$0xff]
      %v6138 = vld [vmem:[%s6124 + $0x68] sm:$0xff]
      %v6139 = vld [vmem:[%s6124 + $0x70] sm:$0xff]
      %v6140 = vld [vmem:[%s6124 + $0x78] sm:$0xff]
      %v6142 = vsel %vm569, %v6076, 0
      %v6145 = vsel %vm569, %v6077, 0
      %v6148 = vsel %vm569, %v6078, 0
      %v6151 = vsel %vm569, %v6079, 0
      %v6154 = vsel %vm569, %v6080, 0
      %v6157 = vsel %vm569, %v6081, 0
      %v6160 = vsel %vm569, %v6082, 0
      %v6163 = vsel %vm569, %v6083, 0
      %v6166 = vsel %vm569, %v6084, 0
      %v6169 = vsel %vm569, %v6085, 0
      %v6172 = vsel %vm569, %v6086, 0
      %v6175 = vsel %vm569, %v6087, 0
      %v6178 = vsel %vm569, %v6088, 0
      %v6181 = vsel %vm569, %v6089, 0
      %v6184 = vsel %vm569, %v6090, 0
      %v6187 = vsel %vm569, %v6091, 0
      %v6190 = vsel %vm569, %v6092, 0
      %v6193 = vsel %vm569, %v6093, 0
      %v6196 = vsel %vm569, %v6094, 0
      %v6199 = vsel %vm569, %v6095, 0
      %v6202 = vsel %vm569, %v6096, 0
      %v6205 = vsel %vm569, %v6097, 0
      %v6208 = vsel %vm569, %v6098, 0
      %v6211 = vsel %vm569, %v6099, 0
      %v6214 = vsel %vm569, %v6100, 0
      %v6217 = vsel %vm569, %v6101, 0
      %v6220 = vsel %vm569, %v6102, 0
      %v6223 = vsel %vm569, %v6103, 0
      %v6226 = vsel %vm569, %v6104, 0
      %v6229 = vsel %vm569, %v6105, 0
      %v6232 = vsel %vm569, %v6106, 0
      %v6235 = vsel %vm569, %v6107, 0
      %v6238 = vsel %vm569, %v6108, 0
      %v6241 = vsel %vm569, %v6109, 0
      %v6244 = vsel %vm569, %v6110, 0
      %v6247 = vsel %vm569, %v6111, 0
      %v6250 = vsel %vm569, %v6112, 0
      %v6253 = vsel %vm569, %v6113, 0
      %v6256 = vsel %vm569, %v6114, 0
      %v6259 = vsel %vm569, %v6115, 0
      %v6262 = vsel %vm569, %v6116, 0
      %v6265 = vsel %vm569, %v6117, 0
      %v6268 = vsel %vm569, %v6118, 0
      %v6271 = vsel %vm569, %v6119, 0
      %v6274 = vsel %vm569, %v6120, 0
      %v6277 = vsel %vm569, %v6121, 0
      %v6280 = vsel %vm569, %v6122, 0
      %v6283 = vsel %vm569, %v6123, 0
      %6285 = vmatprep.subr.mxu0 0.0
      %6286 = vmatpush1.msra.mxu0 0.0
      %6287 = vmatprep.subr.mxu0 0.0
      %6288 = vmatpush1.msra.mxu0 0.0
      %6289 = vmatprep.subr.mxu0 0.0
      %6290 = vmatpush1.msra.mxu0 0.0
      %6291 = vmatprep.subr.mxu0 0.0
      %6292 = vmatpush1.msra.mxu0 0.0
      %6293 = vmatprep.subr.mxu0 0.0
      %6294 = vmatpush1.msra.mxu0 0.0
      %6295 = vmatprep.subr.mxu0 0.0
      %6296 = vmatpush1.msra.mxu0 0.0
      %6297 = vmatprep.subr.mxu0 0.0
      %6298 = vmatpush1.msra.mxu0 0.0
      %6299 = vmatprep.subr.mxu0 0.0
      %6300 = vmatpush1.msra.mxu0 0.0
      %6301 = vmatprep.subr.mxu0 %v6140
      %6302 = vmatpush1.msra.mxu0 %v6139
      %6303 = vmatprep.subr.mxu0 %v6138
      %6304 = vmatpush1.msra.mxu0 %v6137
      %6305 = vmatprep.subr.mxu0 %v6136
      %6306 = vmatpush1.msra.mxu0 %v6135
      %6307 = vmatprep.subr.mxu0 %v6134
      %6308 = vmatpush1.msra.mxu0 %v6133
      %6309 = vmatprep.subr.mxu0 %v6132
      %6310 = vmatpush1.msra.mxu0 %v6131
      %6311 = vmatprep.subr.mxu0 %v6130
      %6312 = vmatpush1.msra.mxu0 %v6129
      %6313 = vmatprep.subr.mxu0 %v6128
      %6314 = vmatpush1.msra.mxu0 %v6127
      %6315 = vmatprep.subr.mxu0 %v6126
      %6316 = vmatpush1.msra.mxu0 %v6125
      %6317 = vmatprep.subr.mxu0 0.0
      %6318 = vmatpush2.msra.mxu0 0.0
      %6319 = vmatprep.subr.mxu0 0.0
      %6320 = vmatpush2.msra.mxu0 0.0
      %6321 = vmatprep.subr.mxu0 0.0
      %6322 = vmatpush2.msra.mxu0 0.0
      %6323 = vmatprep.subr.mxu0 0.0
      %6324 = vmatpush2.msra.mxu0 0.0
      %6325 = vmatprep.subr.mxu0 0.0
      %6326 = vmatpush2.msra.mxu0 0.0
      %6327 = vmatprep.subr.mxu0 0.0
      %6328 = vmatpush2.msra.mxu0 0.0
      %6329 = vmatprep.subr.mxu0 0.0
      %6330 = vmatpush2.msra.mxu0 0.0
      %6331 = vmatprep.subr.mxu0 0.0
      %6332 = vmatpush2.msra.mxu0 0.0
      %6333 = vmatprep.subr.mxu0 0.0
      %6334 = vmatpush2.msra.mxu0 0.0
      %6335 = vmatprep.subr.mxu0 0.0
      %6336 = vmatpush2.msra.mxu0 0.0
      %6337 = vmatprep.subr.mxu0 0.0
      %6338 = vmatpush2.msra.mxu0 0.0
      %6339 = vmatprep.subr.mxu0 0.0
      %6340 = vmatpush2.msra.mxu0 0.0
      %6341 = vmatprep.subr.mxu0 0.0
      %6342 = vmatpush2.msra.mxu0 0.0
      %6343 = vmatprep.subr.mxu0 0.0
      %6344 = vmatpush2.msra.mxu0 0.0
      %6345 = vmatprep.subr.mxu0 0.0
      %6346 = vmatpush2.msra.mxu0 0.0
      %6347 = vmatprep.subr.mxu0 0.0
      %6348 = vmatpush2.msra.mxu0 0.0
      %6349 = vmatprep.mubr.f32.mxu0 0.0
      %6350 = vmatmul.mubr.f32.gmra.mxu0 %v6142
      %v6351 = vpop.f32.mrf.mxu0
      %v6352 = vadd.f32 0.0, %v6351
      %v6353 = vpop.f32.mrf.mxu0
      %v6354 = vadd.f32 0.0, %v6353
      %6355 = vmatprep.mubr.f32.mxu0 0.0
      %6356 = vmatmul.mubr.f32.gmra.mxu0 %v6145
      %v6357 = vpop.f32.mrf.mxu0
      %v6358 = vadd.f32 0.0, %v6357
      %v6359 = vpop.f32.mrf.mxu0
      %v6360 = vadd.f32 0.0, %v6359
      %6361 = vmatprep.mubr.f32.mxu0 0.0
      %6362 = vmatmul.mubr.f32.gmra.mxu0 %v6148
      %v6363 = vpop.f32.mrf.mxu0
      %v6364 = vadd.f32 0.0, %v6363
      %v6365 = vpop.f32.mrf.mxu0
      %v6366 = vadd.f32 0.0, %v6365
      %6367 = vmatprep.mubr.f32.mxu0 0.0
      %6368 = vmatmul.mubr.f32.gmra.mxu0 %v6151
      %v6369 = vpop.f32.mrf.mxu0
      %v6370 = vadd.f32 0.0, %v6369
      %v6371 = vpop.f32.mrf.mxu0
      %v6372 = vadd.f32 0.0, %v6371
      %6373 = vmatprep.mubr.f32.mxu0 0.0
      %6374 = vmatmul.mubr.f32.gmra.mxu0 %v6154
      %v6375 = vpop.f32.mrf.mxu0
      %v6376 = vadd.f32 0.0, %v6375
      %v6377 = vpop.f32.mrf.mxu0
      %v6378 = vadd.f32 0.0, %v6377
      %6379 = vmatprep.mubr.f32.mxu0 0.0
      %6380 = vmatmul.mubr.f32.gmra.mxu0 %v6157
      %v6381 = vpop.f32.mrf.mxu0
      %v6382 = vadd.f32 0.0, %v6381
      %v6383 = vpop.f32.mrf.mxu0
      %v6384 = vadd.f32 0.0, %v6383
      %6385 = vmatprep.mubr.f32.mxu0 0.0
      %6386 = vmatmul.mubr.f32.gmra.mxu0 %v6160
      %v6387 = vpop.f32.mrf.mxu0
      %v6388 = vadd.f32 0.0, %v6387
      %v6389 = vpop.f32.mrf.mxu0
      %v6390 = vadd.f32 0.0, %v6389
      %6391 = vmatprep.mubr.f32.mxu0 0.0
      %6392 = vmatmul.mubr.f32.gmra.mxu0 %v6163
      %v6393 = vpop.f32.mrf.mxu0
      %v6394 = vadd.f32 0.0, %v6393
      %v6395 = vpop.f32.mrf.mxu0
      %v6396 = vadd.f32 0.0, %v6395
      %6397 = vmatprep.mubr.f32.mxu0 0.0
      %6398 = vmatmul.mubr.f32.gmra.mxu0 %v6166
      %v6399 = vpop.f32.mrf.mxu0
      %v6400 = vadd.f32 0.0, %v6399
      %v6401 = vpop.f32.mrf.mxu0
      %v6402 = vadd.f32 0.0, %v6401
      %6403 = vmatprep.mubr.f32.mxu0 0.0
      %6404 = vmatmul.mubr.f32.gmra.mxu0 %v6169
      %v6405 = vpop.f32.mrf.mxu0
      %v6406 = vadd.f32 0.0, %v6405
      %v6407 = vpop.f32.mrf.mxu0
      %v6408 = vadd.f32 0.0, %v6407
      %6409 = vmatprep.mubr.f32.mxu0 0.0
      %6410 = vmatmul.mubr.f32.gmra.mxu0 %v6172
      %v6411 = vpop.f32.mrf.mxu0
      %v6412 = vadd.f32 0.0, %v6411
      %v6413 = vpop.f32.mrf.mxu0
      %v6414 = vadd.f32 0.0, %v6413
      %6415 = vmatprep.mubr.f32.mxu0 0.0
      %6416 = vmatmul.mubr.f32.gmra.mxu0 %v6175
      %v6417 = vpop.f32.mrf.mxu0
      %v6418 = vadd.f32 0.0, %v6417
      %v6419 = vpop.f32.mrf.mxu0
      %v6420 = vadd.f32 0.0, %v6419
      %6421 = vmatprep.mubr.f32.mxu0 0.0
      %6422 = vmatmul.mubr.f32.gmra.mxu0 %v6178
      %v6423 = vpop.f32.mrf.mxu0
      %v6424 = vadd.f32 0.0, %v6423
      %v6425 = vpop.f32.mrf.mxu0
      %v6426 = vadd.f32 0.0, %v6425
      %6427 = vmatprep.mubr.f32.mxu0 0.0
      %6428 = vmatmul.mubr.f32.gmra.mxu0 %v6181
      %v6429 = vpop.f32.mrf.mxu0
      %v6430 = vadd.f32 0.0, %v6429
      %v6431 = vpop.f32.mrf.mxu0
      %v6432 = vadd.f32 0.0, %v6431
      %6433 = vmatprep.mubr.f32.mxu0 0.0
      %6434 = vmatmul.mubr.f32.gmra.mxu0 %v6184
      %v6435 = vpop.f32.mrf.mxu0
      %v6436 = vadd.f32 0.0, %v6435
      %v6437 = vpop.f32.mrf.mxu0
      %v6438 = vadd.f32 0.0, %v6437
      %6439 = vmatprep.mubr.f32.mxu0 0.0
      %6440 = vmatmul.mubr.f32.gmra.mxu0 %v6187
      %v6441 = vpop.f32.mrf.mxu0
      %v6442 = vadd.f32 0.0, %v6441
      %v6443 = vpop.f32.mrf.mxu0
      %v6444 = vadd.f32 0.0, %v6443
      %6445 = vmatprep.mubr.f32.mxu0 0.0
      %6446 = vmatmul.mubr.f32.gmra.mxu0 %v6190
      %v6447 = vpop.f32.mrf.mxu0
      %v6448 = vadd.f32 0.0, %v6447
      %v6449 = vpop.f32.mrf.mxu0
      %v6450 = vadd.f32 0.0, %v6449
      %6451 = vmatprep.mubr.f32.mxu0 0.0
      %6452 = vmatmul.mubr.f32.gmra.mxu0 %v6193
      %v6453 = vpop.f32.mrf.mxu0
      %v6454 = vadd.f32 0.0, %v6453
      %v6455 = vpop.f32.mrf.mxu0
      %v6456 = vadd.f32 0.0, %v6455
      %6457 = vmatprep.mubr.f32.mxu0 0.0
      %6458 = vmatmul.mubr.f32.gmra.mxu0 %v6196
      %v6459 = vpop.f32.mrf.mxu0
      %v6460 = vadd.f32 0.0, %v6459
      %v6461 = vpop.f32.mrf.mxu0
      %v6462 = vadd.f32 0.0, %v6461
      %6463 = vmatprep.mubr.f32.mxu0 0.0
      %6464 = vmatmul.mubr.f32.gmra.mxu0 %v6199
      %v6465 = vpop.f32.mrf.mxu0
      %v6466 = vadd.f32 0.0, %v6465
      %v6467 = vpop.f32.mrf.mxu0
      %v6468 = vadd.f32 0.0, %v6467
      %6469 = vmatprep.mubr.f32.mxu0 0.0
      %6470 = vmatmul.mubr.f32.gmra.mxu0 %v6202
      %v6471 = vpop.f32.mrf.mxu0
      %v6472 = vadd.f32 0.0, %v6471
      %v6473 = vpop.f32.mrf.mxu0
      %v6474 = vadd.f32 0.0, %v6473
      %6475 = vmatprep.mubr.f32.mxu0 0.0
      %6476 = vmatmul.mubr.f32.gmra.mxu0 %v6205
      %v6477 = vpop.f32.mrf.mxu0
      %v6478 = vadd.f32 0.0, %v6477
      %v6479 = vpop.f32.mrf.mxu0
      %v6480 = vadd.f32 0.0, %v6479
      %6481 = vmatprep.mubr.f32.mxu0 0.0
      %6482 = vmatmul.mubr.f32.gmra.mxu0 %v6208
      %v6483 = vpop.f32.mrf.mxu0
      %v6484 = vadd.f32 0.0, %v6483
      %v6485 = vpop.f32.mrf.mxu0
      %v6486 = vadd.f32 0.0, %v6485
      %6487 = vmatprep.mubr.f32.mxu0 0.0
      %6488 = vmatmul.mubr.f32.gmra.mxu0 %v6211
      %v6489 = vpop.f32.mrf.mxu0
      %v6490 = vadd.f32 0.0, %v6489
      %v6491 = vpop.f32.mrf.mxu0
      %v6492 = vadd.f32 0.0, %v6491
      %6493 = vmatprep.mubr.f32.mxu0 0.0
      %6494 = vmatmul.mubr.f32.gmra.mxu0 %v6214
      %v6495 = vpop.f32.mrf.mxu0
      %v6496 = vadd.f32 0.0, %v6495
      %v6497 = vpop.f32.mrf.mxu0
      %v6498 = vadd.f32 0.0, %v6497
      %6499 = vmatprep.mubr.f32.mxu0 0.0
      %6500 = vmatmul.mubr.f32.gmra.mxu0 %v6217
      %v6501 = vpop.f32.mrf.mxu0
      %v6502 = vadd.f32 0.0, %v6501
      %v6503 = vpop.f32.mrf.mxu0
      %v6504 = vadd.f32 0.0, %v6503
      %6505 = vmatprep.mubr.f32.mxu0 0.0
      %6506 = vmatmul.mubr.f32.gmra.mxu0 %v6220
      %v6507 = vpop.f32.mrf.mxu0
      %v6508 = vadd.f32 0.0, %v6507
      %v6509 = vpop.f32.mrf.mxu0
      %v6510 = vadd.f32 0.0, %v6509
      %6511 = vmatprep.mubr.f32.mxu0 0.0
      %6512 = vmatmul.mubr.f32.gmra.mxu0 %v6223
      %v6513 = vpop.f32.mrf.mxu0
      %v6514 = vadd.f32 0.0, %v6513
      %v6515 = vpop.f32.mrf.mxu0
      %v6516 = vadd.f32 0.0, %v6515
      %6517 = vmatprep.mubr.f32.mxu0 0.0
      %6518 = vmatmul.mubr.f32.gmra.mxu0 %v6226
      %v6519 = vpop.f32.mrf.mxu0
      %v6520 = vadd.f32 0.0, %v6519
      %v6521 = vpop.f32.mrf.mxu0
      %v6522 = vadd.f32 0.0, %v6521
      %6523 = vmatprep.mubr.f32.mxu0 0.0
      %6524 = vmatmul.mubr.f32.gmra.mxu0 %v6229
      %v6525 = vpop.f32.mrf.mxu0
      %v6526 = vadd.f32 0.0, %v6525
      %v6527 = vpop.f32.mrf.mxu0
      %v6528 = vadd.f32 0.0, %v6527
      %6529 = vmatprep.mubr.f32.mxu0 0.0
      %6530 = vmatmul.mubr.f32.gmra.mxu0 %v6232
      %v6531 = vpop.f32.mrf.mxu0
      %v6532 = vadd.f32 0.0, %v6531
      %v6533 = vpop.f32.mrf.mxu0
      %v6534 = vadd.f32 0.0, %v6533
      %6535 = vmatprep.mubr.f32.mxu0 0.0
      %6536 = vmatmul.mubr.f32.gmra.mxu0 %v6235
      %v6537 = vpop.f32.mrf.mxu0
      %v6538 = vadd.f32 0.0, %v6537
      %v6539 = vpop.f32.mrf.mxu0
      %v6540 = vadd.f32 0.0, %v6539
      %6541 = vmatprep.mubr.f32.mxu0 0.0
      %6542 = vmatmul.mubr.f32.gmra.mxu0 %v6238
      %v6543 = vpop.f32.mrf.mxu0
      %v6544 = vadd.f32 0.0, %v6543
      %v6545 = vpop.f32.mrf.mxu0
      %v6546 = vadd.f32 0.0, %v6545
      %6547 = vmatprep.mubr.f32.mxu0 0.0
      %6548 = vmatmul.mubr.f32.gmra.mxu0 %v6241
      %v6549 = vpop.f32.mrf.mxu0
      %v6550 = vadd.f32 0.0, %v6549
      %v6551 = vpop.f32.mrf.mxu0
      %v6552 = vadd.f32 0.0, %v6551
      %6553 = vmatprep.mubr.f32.mxu0 0.0
      %6554 = vmatmul.mubr.f32.gmra.mxu0 %v6244
      %v6555 = vpop.f32.mrf.mxu0
      %v6556 = vadd.f32 0.0, %v6555
      %v6557 = vpop.f32.mrf.mxu0
      %v6558 = vadd.f32 0.0, %v6557
      %6559 = vmatprep.mubr.f32.mxu0 0.0
      %6560 = vmatmul.mubr.f32.gmra.mxu0 %v6247
      %v6561 = vpop.f32.mrf.mxu0
      %v6562 = vadd.f32 0.0, %v6561
      %v6563 = vpop.f32.mrf.mxu0
      %v6564 = vadd.f32 0.0, %v6563
      %6565 = vmatprep.mubr.f32.mxu0 0.0
      %6566 = vmatmul.mubr.f32.gmra.mxu0 %v6250
      %v6567 = vpop.f32.mrf.mxu0
      %v6568 = vadd.f32 0.0, %v6567
      %v6569 = vpop.f32.mrf.mxu0
      %v6570 = vadd.f32 0.0, %v6569
      %6571 = vmatprep.mubr.f32.mxu0 0.0
      %6572 = vmatmul.mubr.f32.gmra.mxu0 %v6253
      %v6573 = vpop.f32.mrf.mxu0
      %v6574 = vadd.f32 0.0, %v6573
      %v6575 = vpop.f32.mrf.mxu0
      %v6576 = vadd.f32 0.0, %v6575
      %6577 = vmatprep.mubr.f32.mxu0 0.0
      %6578 = vmatmul.mubr.f32.gmra.mxu0 %v6256
      %v6579 = vpop.f32.mrf.mxu0
      %v6580 = vadd.f32 0.0, %v6579
      %v6581 = vpop.f32.mrf.mxu0
      %v6582 = vadd.f32 0.0, %v6581
      %6583 = vmatprep.mubr.f32.mxu0 0.0
      %6584 = vmatmul.mubr.f32.gmra.mxu0 %v6259
      %v6585 = vpop.f32.mrf.mxu0
      %v6586 = vadd.f32 0.0, %v6585
      %v6587 = vpop.f32.mrf.mxu0
      %v6588 = vadd.f32 0.0, %v6587
      %6589 = vmatprep.mubr.f32.mxu0 0.0
      %6590 = vmatmul.mubr.f32.gmra.mxu0 %v6262
      %v6591 = vpop.f32.mrf.mxu0
      %v6592 = vadd.f32 0.0, %v6591
      %v6593 = vpop.f32.mrf.mxu0
      %v6594 = vadd.f32 0.0, %v6593
      %6595 = vmatprep.mubr.f32.mxu0 0.0
      %6596 = vmatmul.mubr.f32.gmra.mxu0 %v6265
      %v6597 = vpop.f32.mrf.mxu0
      %v6598 = vadd.f32 0.0, %v6597
      %v6599 = vpop.f32.mrf.mxu0
      %v6600 = vadd.f32 0.0, %v6599
      %6601 = vmatprep.mubr.f32.mxu0 0.0
      %6602 = vmatmul.mubr.f32.gmra.mxu0 %v6268
      %v6603 = vpop.f32.mrf.mxu0
      %v6604 = vadd.f32 0.0, %v6603
      %v6605 = vpop.f32.mrf.mxu0
      %v6606 = vadd.f32 0.0, %v6605
      %6607 = vmatprep.mubr.f32.mxu0 0.0
      %6608 = vmatmul.mubr.f32.gmra.mxu0 %v6271
      %v6609 = vpop.f32.mrf.mxu0
      %v6610 = vadd.f32 0.0, %v6609
      %v6611 = vpop.f32.mrf.mxu0
      %v6612 = vadd.f32 0.0, %v6611
      %6613 = vmatprep.mubr.f32.mxu0 0.0
      %6614 = vmatmul.mubr.f32.gmra.mxu0 %v6274
      %v6615 = vpop.f32.mrf.mxu0
      %v6616 = vadd.f32 0.0, %v6615
      %v6617 = vpop.f32.mrf.mxu0
      %v6618 = vadd.f32 0.0, %v6617
      %6619 = vmatprep.mubr.f32.mxu0 0.0
      %6620 = vmatmul.mubr.f32.gmra.mxu0 %v6277
      %v6621 = vpop.f32.mrf.mxu0
      %v6622 = vadd.f32 0.0, %v6621
      %v6623 = vpop.f32.mrf.mxu0
      %v6624 = vadd.f32 0.0, %v6623
      %6625 = vmatprep.mubr.f32.mxu0 0.0
      %6626 = vmatmul.mubr.f32.gmra.mxu0 %v6280
      %v6627 = vpop.f32.mrf.mxu0
      %v6628 = vadd.f32 0.0, %v6627
      %v6629 = vpop.f32.mrf.mxu0
      %v6630 = vadd.f32 0.0, %v6629
      %6631 = vmatprep.mubr.f32.mxu0 0.0
      %6632 = vmatmul.mubr.f32.gmra.mxu0 %v6283
      %v6633 = vpop.f32.mrf.mxu0
      %v6634 = vadd.f32 0.0, %v6633
      %v6635 = vpop.f32.mrf.mxu0
      %v6636 = vadd.f32 0.0, %v6635
      %6637 = vdwg.mxu0
      %v6638 = vadd.f32 %v6044, %v6352
      %v6639 = vadd.f32 %v6045, %v6358
      %v6640 = vadd.f32 %v6046, %v6370
      %v6641 = vadd.f32 %v6047, %v6376
      %v6642 = vadd.f32 %v6048, %v6388
      %v6643 = vadd.f32 %v6049, %v6394
      %v6644 = vadd.f32 %v6050, %v6406
      %v6645 = vadd.f32 %v6051, %v6412
      %v6646 = vadd.f32 %v6052, %v6424
      %v6647 = vadd.f32 %v6053, %v6430
      %v6648 = vadd.f32 %v6054, %v6442
      %v6649 = vadd.f32 %v6055, %v6448
      %v6650 = vadd.f32 %v6056, %v6460
      %v6651 = vadd.f32 %v6057, %v6466
      %v6652 = vadd.f32 %v6058, %v6478
      %v6653 = vadd.f32 %v6059, %v6484
      %v6654 = vadd.f32 %v6060, %v6496
      %v6655 = vadd.f32 %v6061, %v6502
      %v6656 = vadd.f32 %v6062, %v6514
      %v6657 = vadd.f32 %v6063, %v6520
      %v6658 = vadd.f32 %v6064, %v6532
      %v6659 = vadd.f32 %v6065, %v6538
      %v6660 = vadd.f32 %v6066, %v6550
      %v6661 = vadd.f32 %v6067, %v6556
      %v6662 = vadd.f32 %v6068, %v6568
      %v6663 = vadd.f32 %v6069, %v6574
      %v6664 = vadd.f32 %v6070, %v6586
      %v6665 = vadd.f32 %v6071, %v6592
      %v6666 = vadd.f32 %v6072, %v6604
      %v6667 = vadd.f32 %v6073, %v6610
      %v6668 = vadd.f32 %v6074, %v6622
      %v6669 = vadd.f32 %v6075, %v6628
      %v6718 = vrot.slane %v6352, 1
      %v6719 = vrot.slane %v6358, 1
      %v6720 = vsel %vm2445, %v6718, %v6719
      %v6721 = vrot.slane %v6364, 1
      %v6722 = vsel %vm2445, %v6719, %v6721
      %v6723 = vrot.slane %v6370, 1
      %v6724 = vrot.slane %v6376, 1
      %v6725 = vsel %vm2445, %v6723, %v6724
      %v6726 = vrot.slane %v6382, 1
      %v6727 = vsel %vm2445, %v6724, %v6726
      %v6728 = vrot.slane %v6388, 1
      %v6729 = vrot.slane %v6394, 1
      %v6730 = vsel %vm2445, %v6728, %v6729
      %v6731 = vrot.slane %v6400, 1
      %v6732 = vsel %vm2445, %v6729, %v6731
      %v6733 = vrot.slane %v6406, 1
      %v6734 = vrot.slane %v6412, 1
      %v6735 = vsel %vm2445, %v6733, %v6734
      %v6736 = vrot.slane %v6418, 1
      %v6737 = vsel %vm2445, %v6734, %v6736
      %v6738 = vrot.slane %v6424, 1
      %v6739 = vrot.slane %v6430, 1
      %v6740 = vsel %vm2445, %v6738, %v6739
      %v6741 = vrot.slane %v6436, 1
      %v6742 = vsel %vm2445, %v6739, %v6741
      %v6743 = vrot.slane %v6442, 1
      %v6744 = vrot.slane %v6448, 1
      %v6745 = vsel %vm2445, %v6743, %v6744
      %v6746 = vrot.slane %v6454, 1
      %v6747 = vsel %vm2445, %v6744, %v6746
      %v6748 = vrot.slane %v6460, 1
      %v6749 = vrot.slane %v6466, 1
      %v6750 = vsel %vm2445, %v6748, %v6749
      %v6751 = vrot.slane %v6472, 1
      %v6752 = vsel %vm2445, %v6749, %v6751
      %v6753 = vrot.slane %v6478, 1
      %v6754 = vrot.slane %v6484, 1
      %v6755 = vsel %vm2445, %v6753, %v6754
      %v6756 = vrot.slane %v6490, 1
      %v6757 = vsel %vm2445, %v6754, %v6756
      %v6758 = vrot.slane %v6496, 1
      %v6759 = vrot.slane %v6502, 1
      %v6760 = vsel %vm2445, %v6758, %v6759
      %v6761 = vrot.slane %v6508, 1
      %v6762 = vsel %vm2445, %v6759, %v6761
      %v6763 = vrot.slane %v6514, 1
      %v6764 = vrot.slane %v6520, 1
      %v6765 = vsel %vm2445, %v6763, %v6764
      %v6766 = vrot.slane %v6526, 1
      %v6767 = vsel %vm2445, %v6764, %v6766
      %v6768 = vrot.slane %v6532, 1
      %v6769 = vrot.slane %v6538, 1
      %v6770 = vsel %vm2445, %v6768, %v6769
      %v6771 = vrot.slane %v6544, 1
      %v6772 = vsel %vm2445, %v6769, %v6771
      %v6773 = vrot.slane %v6550, 1
      %v6774 = vrot.slane %v6556, 1
      %v6775 = vsel %vm2445, %v6773, %v6774
      %v6776 = vrot.slane %v6562, 1
      %v6777 = vsel %vm2445, %v6774, %v6776
      %v6778 = vrot.slane %v6568, 1
      %v6779 = vrot.slane %v6574, 1
      %v6780 = vsel %vm2445, %v6778, %v6779
      %v6781 = vrot.slane %v6580, 1
      %v6782 = vsel %vm2445, %v6779, %v6781
      %v6783 = vrot.slane %v6586, 1
      %v6784 = vrot.slane %v6592, 1
      %v6785 = vsel %vm2445, %v6783, %v6784
      %v6786 = vrot.slane %v6598, 1
      %v6787 = vsel %vm2445, %v6784, %v6786
      %v6788 = vrot.slane %v6604, 1
      %v6789 = vrot.slane %v6610, 1
      %v6790 = vsel %vm2445, %v6788, %v6789
      %v6791 = vrot.slane %v6616, 1
      %v6792 = vsel %vm2445, %v6789, %v6791
      %v6793 = vrot.slane %v6622, 1
      %v6794 = vrot.slane %v6628, 1
      %v6795 = vsel %vm2445, %v6793, %v6794
      %v6796 = vrot.slane %v6634, 1
      %v6797 = vsel %vm2445, %v6794, %v6796
      %6798 = vrot.lane.b32.xlu0 %v6720, 64
      %v6799 = vpop.permute.xlu0 %6798
      %6800 = vrot.lane.b32.xlu0 %v6722, 64
      %v6801 = vpop.permute.xlu0 %6800
      %6802 = vrot.lane.b32.xlu0 %v6725, 64
      %v6803 = vpop.permute.xlu0 %6802
      %6804 = vrot.lane.b32.xlu0 %v6727, 64
      %v6805 = vpop.permute.xlu0 %6804
      %6806 = vrot.lane.b32.xlu0 %v6730, 64
      %v6807 = vpop.permute.xlu0 %6806
      %6808 = vrot.lane.b32.xlu0 %v6732, 64
      %v6809 = vpop.permute.xlu0 %6808
      %6810 = vrot.lane.b32.xlu0 %v6735, 64
      %v6811 = vpop.permute.xlu0 %6810
      %6812 = vrot.lane.b32.xlu0 %v6737, 64
      %v6813 = vpop.permute.xlu0 %6812
      %6814 = vrot.lane.b32.xlu0 %v6740, 64
      %v6815 = vpop.permute.xlu0 %6814
      %6816 = vrot.lane.b32.xlu0 %v6742, 64
      %v6817 = vpop.permute.xlu0 %6816
      %6818 = vrot.lane.b32.xlu0 %v6745, 64
      %v6819 = vpop.permute.xlu0 %6818
      %6820 = vrot.lane.b32.xlu0 %v6747, 64
      %v6821 = vpop.permute.xlu0 %6820
      %6822 = vrot.lane.b32.xlu0 %v6750, 64
      %v6823 = vpop.permute.xlu0 %6822
      %6824 = vrot.lane.b32.xlu0 %v6752, 64
      %v6825 = vpop.permute.xlu0 %6824
      %6826 = vrot.lane.b32.xlu0 %v6755, 64
      %v6827 = vpop.permute.xlu0 %6826
      %6828 = vrot.lane.b32.xlu0 %v6757, 64
      %v6829 = vpop.permute.xlu0 %6828
      %6830 = vrot.lane.b32.xlu0 %v6760, 64
      %v6831 = vpop.permute.xlu0 %6830
      %6832 = vrot.lane.b32.xlu0 %v6762, 64
      %v6833 = vpop.permute.xlu0 %6832
      %6834 = vrot.lane.b32.xlu0 %v6765, 64
      %v6835 = vpop.permute.xlu0 %6834
      %6836 = vrot.lane.b32.xlu0 %v6767, 64
      %v6837 = vpop.permute.xlu0 %6836
      %6838 = vrot.lane.b32.xlu0 %v6770, 64
      %v6839 = vpop.permute.xlu0 %6838
      %6840 = vrot.lane.b32.xlu0 %v6772, 64
      %v6841 = vpop.permute.xlu0 %6840
      %6842 = vrot.lane.b32.xlu0 %v6775, 64
      %v6843 = vpop.permute.xlu0 %6842
      %6844 = vrot.lane.b32.xlu0 %v6777, 64
      %v6845 = vpop.permute.xlu0 %6844
      %6846 = vrot.lane.b32.xlu0 %v6780, 64
      %v6847 = vpop.permute.xlu0 %6846
      %6848 = vrot.lane.b32.xlu0 %v6782, 64
      %v6849 = vpop.permute.xlu0 %6848
      %6850 = vrot.lane.b32.xlu0 %v6785, 64
      %v6851 = vpop.permute.xlu0 %6850
      %6852 = vrot.lane.b32.xlu0 %v6787, 64
      %v6853 = vpop.permute.xlu0 %6852
      %6854 = vrot.lane.b32.xlu0 %v6790, 64
      %v6855 = vpop.permute.xlu0 %6854
      %6856 = vrot.lane.b32.xlu0 %v6792, 64
      %v6857 = vpop.permute.xlu0 %6856
      %6858 = vrot.lane.b32.xlu0 %v6795, 64
      %v6859 = vpop.permute.xlu0 %6858
      %6860 = vrot.lane.b32.xlu0 %v6797, 64
      %v6861 = vpop.permute.xlu0 %6860
      %v6894 = vadd.f32 %v6638, %v6799
      %v6895 = vadd.f32 %v6639, %v6801
      %v6896 = vadd.f32 %v6640, %v6803
      %v6897 = vadd.f32 %v6641, %v6805
      %v6898 = vadd.f32 %v6642, %v6807
      %v6899 = vadd.f32 %v6643, %v6809
      %v6900 = vadd.f32 %v6644, %v6811
      %v6901 = vadd.f32 %v6645, %v6813
      %v6902 = vadd.f32 %v6646, %v6815
      %v6903 = vadd.f32 %v6647, %v6817
      %v6904 = vadd.f32 %v6648, %v6819
      %v6905 = vadd.f32 %v6649, %v6821
      %v6906 = vadd.f32 %v6650, %v6823
      %v6907 = vadd.f32 %v6651, %v6825
      %v6908 = vadd.f32 %v6652, %v6827
      %v6909 = vadd.f32 %v6653, %v6829
      %v6910 = vadd.f32 %v6654, %v6831
      %v6911 = vadd.f32 %v6655, %v6833
      %v6912 = vadd.f32 %v6656, %v6835
      %v6913 = vadd.f32 %v6657, %v6837
      %v6914 = vadd.f32 %v6658, %v6839
      %v6915 = vadd.f32 %v6659, %v6841
      %v6916 = vadd.f32 %v6660, %v6843
      %v6917 = vadd.f32 %v6661, %v6845
      %v6918 = vadd.f32 %v6662, %v6847
      %v6919 = vadd.f32 %v6663, %v6849
      %v6920 = vadd.f32 %v6664, %v6851
      %v6921 = vadd.f32 %v6665, %v6853
      %v6922 = vadd.f32 %v6666, %v6855
      %v6923 = vadd.f32 %v6667, %v6857
      %v6924 = vadd.f32 %v6668, %v6859
      %v6925 = vadd.f32 %v6669, %v6861
      %v6974 = vrot.slane %v6354, 2
      %v6975 = vrot.slane %v6360, 2
      %v6976 = vsel %vm2702, %v6974, %v6975
      %v6977 = vrot.slane %v6366, 2
      %v6978 = vsel %vm2702, %v6975, %v6977
      %v6979 = vrot.slane %v6372, 2
      %v6980 = vrot.slane %v6378, 2
      %v6981 = vsel %vm2702, %v6979, %v6980
      %v6982 = vrot.slane %v6384, 2
      %v6983 = vsel %vm2702, %v6980, %v6982
      %v6984 = vrot.slane %v6390, 2
      %v6985 = vrot.slane %v6396, 2
      %v6986 = vsel %vm2702, %v6984, %v6985
      %v6987 = vrot.slane %v6402, 2
      %v6988 = vsel %vm2702, %v6985, %v6987
      %v6989 = vrot.slane %v6408, 2
      %v6990 = vrot.slane %v6414, 2
      %v6991 = vsel %vm2702, %v6989, %v6990
      %v6992 = vrot.slane %v6420, 2
      %v6993 = vsel %vm2702, %v6990, %v6992
      %v6994 = vrot.slane %v6426, 2
      %v6995 = vrot.slane %v6432, 2
      %v6996 = vsel %vm2702, %v6994, %v6995
      %v6997 = vrot.slane %v6438, 2
      %v6998 = vsel %vm2702, %v6995, %v6997
      %v6999 = vrot.slane %v6444, 2
      %v7000 = vrot.slane %v6450, 2
      %v7001 = vsel %vm2702, %v6999, %v7000
      %v7002 = vrot.slane %v6456, 2
      %v7003 = vsel %vm2702, %v7000, %v7002
      %v7004 = vrot.slane %v6462, 2
      %v7005 = vrot.slane %v6468, 2
      %v7006 = vsel %vm2702, %v7004, %v7005
      %v7007 = vrot.slane %v6474, 2
      %v7008 = vsel %vm2702, %v7005, %v7007
      %v7009 = vrot.slane %v6480, 2
      %v7010 = vrot.slane %v6486, 2
      %v7011 = vsel %vm2702, %v7009, %v7010
      %v7012 = vrot.slane %v6492, 2
      %v7013 = vsel %vm2702, %v7010, %v7012
      %v7014 = vrot.slane %v6498, 2
      %v7015 = vrot.slane %v6504, 2
      %v7016 = vsel %vm2702, %v7014, %v7015
      %v7017 = vrot.slane %v6510, 2
      %v7018 = vsel %vm2702, %v7015, %v7017
      %v7019 = vrot.slane %v6516, 2
      %v7020 = vrot.slane %v6522, 2
      %v7021 = vsel %vm2702, %v7019, %v7020
      %v7022 = vrot.slane %v6528, 2
      %v7023 = vsel %vm2702, %v7020, %v7022
      %v7024 = vrot.slane %v6534, 2
      %v7025 = vrot.slane %v6540, 2
      %v7026 = vsel %vm2702, %v7024, %v7025
      %v7027 = vrot.slane %v6546, 2
      %v7028 = vsel %vm2702, %v7025, %v7027
      %v7029 = vrot.slane %v6552, 2
      %v7030 = vrot.slane %v6558, 2
      %v7031 = vsel %vm2702, %v7029, %v7030
      %v7032 = vrot.slane %v6564, 2
      %v7033 = vsel %vm2702, %v7030, %v7032
      %v7034 = vrot.slane %v6570, 2
      %v7035 = vrot.slane %v6576, 2
      %v7036 = vsel %vm2702, %v7034, %v7035
      %v7037 = vrot.slane %v6582, 2
      %v7038 = vsel %vm2702, %v7035, %v7037
      %v7039 = vrot.slane %v6588, 2
      %v7040 = vrot.slane %v6594, 2
      %v7041 = vsel %vm2702, %v7039, %v7040
      %v7042 = vrot.slane %v6600, 2
      %v7043 = vsel %vm2702, %v7040, %v7042
      %v7044 = vrot.slane %v6606, 2
      %v7045 = vrot.slane %v6612, 2
      %v7046 = vsel %vm2702, %v7044, %v7045
      %v7047 = vrot.slane %v6618, 2
      %v7048 = vsel %vm2702, %v7045, %v7047
      %v7049 = vrot.slane %v6624, 2
      %v7050 = vrot.slane %v6630, 2
      %v7051 = vsel %vm2702, %v7049, %v7050
      %v7052 = vrot.slane %v6636, 2
      %v7053 = vsel %vm2702, %v7050, %v7052
      %v7086 = vadd.f32 %v6894, %v6976
      %v7087 = vadd.f32 %v6895, %v6978
      %v7088 = vadd.f32 %v6896, %v6981
      %v7089 = vadd.f32 %v6897, %v6983
      %v7090 = vadd.f32 %v6898, %v6986
      %v7091 = vadd.f32 %v6899, %v6988
      %v7092 = vadd.f32 %v6900, %v6991
      %v7093 = vadd.f32 %v6901, %v6993
      %v7094 = vadd.f32 %v6902, %v6996
      %v7095 = vadd.f32 %v6903, %v6998
      %v7096 = vadd.f32 %v6904, %v7001
      %v7097 = vadd.f32 %v6905, %v7003
      %v7098 = vadd.f32 %v6906, %v7006
      %v7099 = vadd.f32 %v6907, %v7008
      %v7100 = vadd.f32 %v6908, %v7011
      %v7101 = vadd.f32 %v6909, %v7013
      %v7102 = vadd.f32 %v6910, %v7016
      %v7103 = vadd.f32 %v6911, %v7018
      %v7104 = vadd.f32 %v6912, %v7021
      %v7105 = vadd.f32 %v6913, %v7023
      %v7106 = vadd.f32 %v6914, %v7026
      %v7107 = vadd.f32 %v6915, %v7028
      %v7108 = vadd.f32 %v6916, %v7031
      %v7109 = vadd.f32 %v6917, %v7033
      %v7110 = vadd.f32 %v6918, %v7036
      %v7111 = vadd.f32 %v6919, %v7038
      %v7112 = vadd.f32 %v6920, %v7041
      %v7113 = vadd.f32 %v6921, %v7043
      %v7114 = vadd.f32 %v6922, %v7046
      %v7115 = vadd.f32 %v6923, %v7048
      %v7116 = vadd.f32 %v6924, %v7051
      %v7117 = vadd.f32 %v6925, %v7053
      %v7118 = vld [vmem:[%s3889] sm:$0xff]
      %v7119 = vld [vmem:[%s3889 + $0x8] sm:$0xff]
      %v7120 = vld [vmem:[%s3889 + $0x10] sm:$0xff]
      %v7121 = vld [vmem:[%s3889 + $0x18] sm:$0xff]
      %v7122 = vld [vmem:[%s3889 + $0x20] sm:$0xff]
      %v7123 = vld [vmem:[%s3889 + $0x28] sm:$0xff]
      %v7124 = vld [vmem:[%s3889 + $0x30] sm:$0xff]
      %v7125 = vld [vmem:[%s3889 + $0x38] sm:$0xff]
      %v7126 = vld [vmem:[%s3889 + $0x40] sm:$0xff]
      %v7127 = vld [vmem:[%s3889 + $0x48] sm:$0xff]
      %v7128 = vld [vmem:[%s3889 + $0x50] sm:$0xff]
      %v7129 = vld [vmem:[%s3889 + $0x58] sm:$0xff]
      %v7130 = vld [vmem:[%s3889 + $0x60] sm:$0xff]
      %v7131 = vld [vmem:[%s3889 + $0x68] sm:$0xff]
      %v7132 = vld [vmem:[%s3889 + $0x70] sm:$0xff]
      %v7133 = vld [vmem:[%s3889 + $0x78] sm:$0xff]
      %v7134 = vld [vmem:[%s3889 + $0x80] sm:$0xff]
      %v7135 = vld [vmem:[%s3889 + $0x88] sm:$0xff]
      %v7136 = vld [vmem:[%s3889 + $0x90] sm:$0xff]
      %v7137 = vld [vmem:[%s3889 + $0x98] sm:$0xff]
      %v7138 = vld [vmem:[%s3889 + $0xa0] sm:$0xff]
      %v7139 = vld [vmem:[%s3889 + $0xa8] sm:$0xff]
      %v7140 = vld [vmem:[%s3889 + $0xb0] sm:$0xff]
      %v7141 = vld [vmem:[%s3889 + $0xb8] sm:$0xff]
      %v7142 = vld [vmem:[%s3889 + $0xc0] sm:$0xff]
      %v7143 = vld [vmem:[%s3889 + $0xc8] sm:$0xff]
      %v7144 = vld [vmem:[%s3889 + $0xd0] sm:$0xff]
      %v7145 = vld [vmem:[%s3889 + $0xd8] sm:$0xff]
      %v7146 = vld [vmem:[%s3889 + $0xe0] sm:$0xff]
      %v7147 = vld [vmem:[%s3889 + $0xe8] sm:$0xff]
      %v7148 = vld [vmem:[%s3889 + $0xf0] sm:$0xff]
      %v7149 = vld [vmem:[%s3889 + $0xf8] sm:$0xff]
      %v7150 = vld [vmem:[%s3889 + $0x100] sm:$0xff]
      %v7151 = vld [vmem:[%s3889 + $0x108] sm:$0xff]
      %v7152 = vld [vmem:[%s3889 + $0x110] sm:$0xff]
      %v7153 = vld [vmem:[%s3889 + $0x118] sm:$0xff]
      %v7154 = vld [vmem:[%s3889 + $0x120] sm:$0xff]
      %v7155 = vld [vmem:[%s3889 + $0x128] sm:$0xff]
      %v7156 = vld [vmem:[%s3889 + $0x130] sm:$0xff]
      %v7157 = vld [vmem:[%s3889 + $0x138] sm:$0xff]
      %v7158 = vld [vmem:[%s3889 + $0x140] sm:$0xff]
      %v7159 = vld [vmem:[%s3889 + $0x148] sm:$0xff]
      %v7160 = vld [vmem:[%s3889 + $0x150] sm:$0xff]
      %v7161 = vld [vmem:[%s3889 + $0x158] sm:$0xff]
      %v7162 = vld [vmem:[%s3889 + $0x160] sm:$0xff]
      %v7163 = vld [vmem:[%s3889 + $0x168] sm:$0xff]
      %v7164 = vld [vmem:[%s3889 + $0x170] sm:$0xff]
      %v7165 = vld [vmem:[%s3889 + $0x178] sm:$0xff]
      %s7166 = scalar_lea.vmem %s9, 256
      %v7167 = vld [vmem:[%s7166] sm:$0xff]
      %v7168 = vld [vmem:[%s7166 + $0x8] sm:$0xff]
      %v7169 = vld [vmem:[%s7166 + $0x10] sm:$0xff]
      %v7170 = vld [vmem:[%s7166 + $0x18] sm:$0xff]
      %v7171 = vld [vmem:[%s7166 + $0x20] sm:$0xff]
      %v7172 = vld [vmem:[%s7166 + $0x28] sm:$0xff]
      %v7173 = vld [vmem:[%s7166 + $0x30] sm:$0xff]
      %v7174 = vld [vmem:[%s7166 + $0x38] sm:$0xff]
      %v7175 = vld [vmem:[%s7166 + $0x40] sm:$0xff]
      %v7176 = vld [vmem:[%s7166 + $0x48] sm:$0xff]
      %v7177 = vld [vmem:[%s7166 + $0x50] sm:$0xff]
      %v7178 = vld [vmem:[%s7166 + $0x58] sm:$0xff]
      %v7179 = vld [vmem:[%s7166 + $0x60] sm:$0xff]
      %v7180 = vld [vmem:[%s7166 + $0x68] sm:$0xff]
      %v7181 = vld [vmem:[%s7166 + $0x70] sm:$0xff]
      %v7182 = vld [vmem:[%s7166 + $0x78] sm:$0xff]
      %v7184 = vsel %vm569, %v7118, 0
      %v7187 = vsel %vm569, %v7119, 0
      %v7190 = vsel %vm569, %v7120, 0
      %v7193 = vsel %vm569, %v7121, 0
      %v7196 = vsel %vm569, %v7122, 0
      %v7199 = vsel %vm569, %v7123, 0
      %v7202 = vsel %vm569, %v7124, 0
      %v7205 = vsel %vm569, %v7125, 0
      %v7208 = vsel %vm569, %v7126, 0
      %v7211 = vsel %vm569, %v7127, 0
      %v7214 = vsel %vm569, %v7128, 0
      %v7217 = vsel %vm569, %v7129, 0
      %v7220 = vsel %vm569, %v7130, 0
      %v7223 = vsel %vm569, %v7131, 0
      %v7226 = vsel %vm569, %v7132, 0
      %v7229 = vsel %vm569, %v7133, 0
      %v7232 = vsel %vm569, %v7134, 0
      %v7235 = vsel %vm569, %v7135, 0
      %v7238 = vsel %vm569, %v7136, 0
      %v7241 = vsel %vm569, %v7137, 0
      %v7244 = vsel %vm569, %v7138, 0
      %v7247 = vsel %vm569, %v7139, 0
      %v7250 = vsel %vm569, %v7140, 0
      %v7253 = vsel %vm569, %v7141, 0
      %v7256 = vsel %vm569, %v7142, 0
      %v7259 = vsel %vm569, %v7143, 0
      %v7262 = vsel %vm569, %v7144, 0
      %v7265 = vsel %vm569, %v7145, 0
      %v7268 = vsel %vm569, %v7146, 0
      %v7271 = vsel %vm569, %v7147, 0
      %v7274 = vsel %vm569, %v7148, 0
      %v7277 = vsel %vm569, %v7149, 0
      %v7280 = vsel %vm569, %v7150, 0
      %v7283 = vsel %vm569, %v7151, 0
      %v7286 = vsel %vm569, %v7152, 0
      %v7289 = vsel %vm569, %v7153, 0
      %v7292 = vsel %vm569, %v7154, 0
      %v7295 = vsel %vm569, %v7155, 0
      %v7298 = vsel %vm569, %v7156, 0
      %v7301 = vsel %vm569, %v7157, 0
      %v7304 = vsel %vm569, %v7158, 0
      %v7307 = vsel %vm569, %v7159, 0
      %v7310 = vsel %vm569, %v7160, 0
      %v7313 = vsel %vm569, %v7161, 0
      %v7316 = vsel %vm569, %v7162, 0
      %v7319 = vsel %vm569, %v7163, 0
      %v7322 = vsel %vm569, %v7164, 0
      %v7325 = vsel %vm569, %v7165, 0
      %7327 = vmatprep.subr.mxu0 0.0
      %7328 = vmatpush1.msra.mxu0 0.0
      %7329 = vmatprep.subr.mxu0 0.0
      %7330 = vmatpush1.msra.mxu0 0.0
      %7331 = vmatprep.subr.mxu0 0.0
      %7332 = vmatpush1.msra.mxu0 0.0
      %7333 = vmatprep.subr.mxu0 0.0
      %7334 = vmatpush1.msra.mxu0 0.0
      %7335 = vmatprep.subr.mxu0 0.0
      %7336 = vmatpush1.msra.mxu0 0.0
      %7337 = vmatprep.subr.mxu0 0.0
      %7338 = vmatpush1.msra.mxu0 0.0
      %7339 = vmatprep.subr.mxu0 0.0
      %7340 = vmatpush1.msra.mxu0 0.0
      %7341 = vmatprep.subr.mxu0 0.0
      %7342 = vmatpush1.msra.mxu0 0.0
      %7343 = vmatprep.subr.mxu0 %v7182
      %7344 = vmatpush1.msra.mxu0 %v7181
      %7345 = vmatprep.subr.mxu0 %v7180
      %7346 = vmatpush1.msra.mxu0 %v7179
      %7347 = vmatprep.subr.mxu0 %v7178
      %7348 = vmatpush1.msra.mxu0 %v7177
      %7349 = vmatprep.subr.mxu0 %v7176
      %7350 = vmatpush1.msra.mxu0 %v7175
      %7351 = vmatprep.subr.mxu0 %v7174
      %7352 = vmatpush1.msra.mxu0 %v7173
      %7353 = vmatprep.subr.mxu0 %v7172
      %7354 = vmatpush1.msra.mxu0 %v7171
      %7355 = vmatprep.subr.mxu0 %v7170
      %7356 = vmatpush1.msra.mxu0 %v7169
      %7357 = vmatprep.subr.mxu0 %v7168
      %7358 = vmatpush1.msra.mxu0 %v7167
      %7359 = vmatprep.subr.mxu0 0.0
      %7360 = vmatpush2.msra.mxu0 0.0
      %7361 = vmatprep.subr.mxu0 0.0
      %7362 = vmatpush2.msra.mxu0 0.0
      %7363 = vmatprep.subr.mxu0 0.0
      %7364 = vmatpush2.msra.mxu0 0.0
      %7365 = vmatprep.subr.mxu0 0.0
      %7366 = vmatpush2.msra.mxu0 0.0
      %7367 = vmatprep.subr.mxu0 0.0
      %7368 = vmatpush2.msra.mxu0 0.0
      %7369 = vmatprep.subr.mxu0 0.0
      %7370 = vmatpush2.msra.mxu0 0.0
      %7371 = vmatprep.subr.mxu0 0.0
      %7372 = vmatpush2.msra.mxu0 0.0
      %7373 = vmatprep.subr.mxu0 0.0
      %7374 = vmatpush2.msra.mxu0 0.0
      %7375 = vmatprep.subr.mxu0 0.0
      %7376 = vmatpush2.msra.mxu0 0.0
      %7377 = vmatprep.subr.mxu0 0.0
      %7378 = vmatpush2.msra.mxu0 0.0
      %7379 = vmatprep.subr.mxu0 0.0
      %7380 = vmatpush2.msra.mxu0 0.0
      %7381 = vmatprep.subr.mxu0 0.0
      %7382 = vmatpush2.msra.mxu0 0.0
      %7383 = vmatprep.subr.mxu0 0.0
      %7384 = vmatpush2.msra.mxu0 0.0
      %7385 = vmatprep.subr.mxu0 0.0
      %7386 = vmatpush2.msra.mxu0 0.0
      %7387 = vmatprep.subr.mxu0 0.0
      %7388 = vmatpush2.msra.mxu0 0.0
      %7389 = vmatprep.subr.mxu0 0.0
      %7390 = vmatpush2.msra.mxu0 0.0
      %7391 = vmatprep.mubr.f32.mxu0 0.0
      %7392 = vmatmul.mubr.f32.gmra.mxu0 %v7184
      %v7393 = vpop.f32.mrf.mxu0
      %v7394 = vadd.f32 0.0, %v7393
      %v7395 = vpop.f32.mrf.mxu0
      %v7396 = vadd.f32 0.0, %v7395
      %7397 = vmatprep.mubr.f32.mxu0 0.0
      %7398 = vmatmul.mubr.f32.gmra.mxu0 %v7187
      %v7399 = vpop.f32.mrf.mxu0
      %v7400 = vadd.f32 0.0, %v7399
      %v7401 = vpop.f32.mrf.mxu0
      %v7402 = vadd.f32 0.0, %v7401
      %7403 = vmatprep.mubr.f32.mxu0 0.0
      %7404 = vmatmul.mubr.f32.gmra.mxu0 %v7190
      %v7405 = vpop.f32.mrf.mxu0
      %v7406 = vadd.f32 0.0, %v7405
      %v7407 = vpop.f32.mrf.mxu0
      %v7408 = vadd.f32 0.0, %v7407
      %7409 = vmatprep.mubr.f32.mxu0 0.0
      %7410 = vmatmul.mubr.f32.gmra.mxu0 %v7193
      %v7411 = vpop.f32.mrf.mxu0
      %v7412 = vadd.f32 0.0, %v7411
      %v7413 = vpop.f32.mrf.mxu0
      %v7414 = vadd.f32 0.0, %v7413
      %7415 = vmatprep.mubr.f32.mxu0 0.0
      %7416 = vmatmul.mubr.f32.gmra.mxu0 %v7196
      %v7417 = vpop.f32.mrf.mxu0
      %v7418 = vadd.f32 0.0, %v7417
      %v7419 = vpop.f32.mrf.mxu0
      %v7420 = vadd.f32 0.0, %v7419
      %7421 = vmatprep.mubr.f32.mxu0 0.0
      %7422 = vmatmul.mubr.f32.gmra.mxu0 %v7199
      %v7423 = vpop.f32.mrf.mxu0
      %v7424 = vadd.f32 0.0, %v7423
      %v7425 = vpop.f32.mrf.mxu0
      %v7426 = vadd.f32 0.0, %v7425
      %7427 = vmatprep.mubr.f32.mxu0 0.0
      %7428 = vmatmul.mubr.f32.gmra.mxu0 %v7202
      %v7429 = vpop.f32.mrf.mxu0
      %v7430 = vadd.f32 0.0, %v7429
      %v7431 = vpop.f32.mrf.mxu0
      %v7432 = vadd.f32 0.0, %v7431
      %7433 = vmatprep.mubr.f32.mxu0 0.0
      %7434 = vmatmul.mubr.f32.gmra.mxu0 %v7205
      %v7435 = vpop.f32.mrf.mxu0
      %v7436 = vadd.f32 0.0, %v7435
      %v7437 = vpop.f32.mrf.mxu0
      %v7438 = vadd.f32 0.0, %v7437
      %7439 = vmatprep.mubr.f32.mxu0 0.0
      %7440 = vmatmul.mubr.f32.gmra.mxu0 %v7208
      %v7441 = vpop.f32.mrf.mxu0
      %v7442 = vadd.f32 0.0, %v7441
      %v7443 = vpop.f32.mrf.mxu0
      %v7444 = vadd.f32 0.0, %v7443
      %7445 = vmatprep.mubr.f32.mxu0 0.0
      %7446 = vmatmul.mubr.f32.gmra.mxu0 %v7211
      %v7447 = vpop.f32.mrf.mxu0
      %v7448 = vadd.f32 0.0, %v7447
      %v7449 = vpop.f32.mrf.mxu0
      %v7450 = vadd.f32 0.0, %v7449
      %7451 = vmatprep.mubr.f32.mxu0 0.0
      %7452 = vmatmul.mubr.f32.gmra.mxu0 %v7214
      %v7453 = vpop.f32.mrf.mxu0
      %v7454 = vadd.f32 0.0, %v7453
      %v7455 = vpop.f32.mrf.mxu0
      %v7456 = vadd.f32 0.0, %v7455
      %7457 = vmatprep.mubr.f32.mxu0 0.0
      %7458 = vmatmul.mubr.f32.gmra.mxu0 %v7217
      %v7459 = vpop.f32.mrf.mxu0
      %v7460 = vadd.f32 0.0, %v7459
      %v7461 = vpop.f32.mrf.mxu0
      %v7462 = vadd.f32 0.0, %v7461
      %7463 = vmatprep.mubr.f32.mxu0 0.0
      %7464 = vmatmul.mubr.f32.gmra.mxu0 %v7220
      %v7465 = vpop.f32.mrf.mxu0
      %v7466 = vadd.f32 0.0, %v7465
      %v7467 = vpop.f32.mrf.mxu0
      %v7468 = vadd.f32 0.0, %v7467
      %7469 = vmatprep.mubr.f32.mxu0 0.0
      %7470 = vmatmul.mubr.f32.gmra.mxu0 %v7223
      %v7471 = vpop.f32.mrf.mxu0
      %v7472 = vadd.f32 0.0, %v7471
      %v7473 = vpop.f32.mrf.mxu0
      %v7474 = vadd.f32 0.0, %v7473
      %7475 = vmatprep.mubr.f32.mxu0 0.0
      %7476 = vmatmul.mubr.f32.gmra.mxu0 %v7226
      %v7477 = vpop.f32.mrf.mxu0
      %v7478 = vadd.f32 0.0, %v7477
      %v7479 = vpop.f32.mrf.mxu0
      %v7480 = vadd.f32 0.0, %v7479
      %7481 = vmatprep.mubr.f32.mxu0 0.0
      %7482 = vmatmul.mubr.f32.gmra.mxu0 %v7229
      %v7483 = vpop.f32.mrf.mxu0
      %v7484 = vadd.f32 0.0, %v7483
      %v7485 = vpop.f32.mrf.mxu0
      %v7486 = vadd.f32 0.0, %v7485
      %7487 = vmatprep.mubr.f32.mxu0 0.0
      %7488 = vmatmul.mubr.f32.gmra.mxu0 %v7232
      %v7489 = vpop.f32.mrf.mxu0
      %v7490 = vadd.f32 0.0, %v7489
      %v7491 = vpop.f32.mrf.mxu0
      %v7492 = vadd.f32 0.0, %v7491
      %7493 = vmatprep.mubr.f32.mxu0 0.0
      %7494 = vmatmul.mubr.f32.gmra.mxu0 %v7235
      %v7495 = vpop.f32.mrf.mxu0
      %v7496 = vadd.f32 0.0, %v7495
      %v7497 = vpop.f32.mrf.mxu0
      %v7498 = vadd.f32 0.0, %v7497
      %7499 = vmatprep.mubr.f32.mxu0 0.0
      %7500 = vmatmul.mubr.f32.gmra.mxu0 %v7238
      %v7501 = vpop.f32.mrf.mxu0
      %v7502 = vadd.f32 0.0, %v7501
      %v7503 = vpop.f32.mrf.mxu0
      %v7504 = vadd.f32 0.0, %v7503
      %7505 = vmatprep.mubr.f32.mxu0 0.0
      %7506 = vmatmul.mubr.f32.gmra.mxu0 %v7241
      %v7507 = vpop.f32.mrf.mxu0
      %v7508 = vadd.f32 0.0, %v7507
      %v7509 = vpop.f32.mrf.mxu0
      %v7510 = vadd.f32 0.0, %v7509
      %7511 = vmatprep.mubr.f32.mxu0 0.0
      %7512 = vmatmul.mubr.f32.gmra.mxu0 %v7244
      %v7513 = vpop.f32.mrf.mxu0
      %v7514 = vadd.f32 0.0, %v7513
      %v7515 = vpop.f32.mrf.mxu0
      %v7516 = vadd.f32 0.0, %v7515
      %7517 = vmatprep.mubr.f32.mxu0 0.0
      %7518 = vmatmul.mubr.f32.gmra.mxu0 %v7247
      %v7519 = vpop.f32.mrf.mxu0
      %v7520 = vadd.f32 0.0, %v7519
      %v7521 = vpop.f32.mrf.mxu0
      %v7522 = vadd.f32 0.0, %v7521
      %7523 = vmatprep.mubr.f32.mxu0 0.0
      %7524 = vmatmul.mubr.f32.gmra.mxu0 %v7250
      %v7525 = vpop.f32.mrf.mxu0
      %v7526 = vadd.f32 0.0, %v7525
      %v7527 = vpop.f32.mrf.mxu0
      %v7528 = vadd.f32 0.0, %v7527
      %7529 = vmatprep.mubr.f32.mxu0 0.0
      %7530 = vmatmul.mubr.f32.gmra.mxu0 %v7253
      %v7531 = vpop.f32.mrf.mxu0
      %v7532 = vadd.f32 0.0, %v7531
      %v7533 = vpop.f32.mrf.mxu0
      %v7534 = vadd.f32 0.0, %v7533
      %7535 = vmatprep.mubr.f32.mxu0 0.0
      %7536 = vmatmul.mubr.f32.gmra.mxu0 %v7256
      %v7537 = vpop.f32.mrf.mxu0
      %v7538 = vadd.f32 0.0, %v7537
      %v7539 = vpop.f32.mrf.mxu0
      %v7540 = vadd.f32 0.0, %v7539
      %7541 = vmatprep.mubr.f32.mxu0 0.0
      %7542 = vmatmul.mubr.f32.gmra.mxu0 %v7259
      %v7543 = vpop.f32.mrf.mxu0
      %v7544 = vadd.f32 0.0, %v7543
      %v7545 = vpop.f32.mrf.mxu0
      %v7546 = vadd.f32 0.0, %v7545
      %7547 = vmatprep.mubr.f32.mxu0 0.0
      %7548 = vmatmul.mubr.f32.gmra.mxu0 %v7262
      %v7549 = vpop.f32.mrf.mxu0
      %v7550 = vadd.f32 0.0, %v7549
      %v7551 = vpop.f32.mrf.mxu0
      %v7552 = vadd.f32 0.0, %v7551
      %7553 = vmatprep.mubr.f32.mxu0 0.0
      %7554 = vmatmul.mubr.f32.gmra.mxu0 %v7265
      %v7555 = vpop.f32.mrf.mxu0
      %v7556 = vadd.f32 0.0, %v7555
      %v7557 = vpop.f32.mrf.mxu0
      %v7558 = vadd.f32 0.0, %v7557
      %7559 = vmatprep.mubr.f32.mxu0 0.0
      %7560 = vmatmul.mubr.f32.gmra.mxu0 %v7268
      %v7561 = vpop.f32.mrf.mxu0
      %v7562 = vadd.f32 0.0, %v7561
      %v7563 = vpop.f32.mrf.mxu0
      %v7564 = vadd.f32 0.0, %v7563
      %7565 = vmatprep.mubr.f32.mxu0 0.0
      %7566 = vmatmul.mubr.f32.gmra.mxu0 %v7271
      %v7567 = vpop.f32.mrf.mxu0
      %v7568 = vadd.f32 0.0, %v7567
      %v7569 = vpop.f32.mrf.mxu0
      %v7570 = vadd.f32 0.0, %v7569
      %7571 = vmatprep.mubr.f32.mxu0 0.0
      %7572 = vmatmul.mubr.f32.gmra.mxu0 %v7274
      %v7573 = vpop.f32.mrf.mxu0
      %v7574 = vadd.f32 0.0, %v7573
      %v7575 = vpop.f32.mrf.mxu0
      %v7576 = vadd.f32 0.0, %v7575
      %7577 = vmatprep.mubr.f32.mxu0 0.0
      %7578 = vmatmul.mubr.f32.gmra.mxu0 %v7277
      %v7579 = vpop.f32.mrf.mxu0
      %v7580 = vadd.f32 0.0, %v7579
      %v7581 = vpop.f32.mrf.mxu0
      %v7582 = vadd.f32 0.0, %v7581
      %7583 = vmatprep.mubr.f32.mxu0 0.0
      %7584 = vmatmul.mubr.f32.gmra.mxu0 %v7280
      %v7585 = vpop.f32.mrf.mxu0
      %v7586 = vadd.f32 0.0, %v7585
      %v7587 = vpop.f32.mrf.mxu0
      %v7588 = vadd.f32 0.0, %v7587
      %7589 = vmatprep.mubr.f32.mxu0 0.0
      %7590 = vmatmul.mubr.f32.gmra.mxu0 %v7283
      %v7591 = vpop.f32.mrf.mxu0
      %v7592 = vadd.f32 0.0, %v7591
      %v7593 = vpop.f32.mrf.mxu0
      %v7594 = vadd.f32 0.0, %v7593
      %7595 = vmatprep.mubr.f32.mxu0 0.0
      %7596 = vmatmul.mubr.f32.gmra.mxu0 %v7286
      %v7597 = vpop.f32.mrf.mxu0
      %v7598 = vadd.f32 0.0, %v7597
      %v7599 = vpop.f32.mrf.mxu0
      %v7600 = vadd.f32 0.0, %v7599
      %7601 = vmatprep.mubr.f32.mxu0 0.0
      %7602 = vmatmul.mubr.f32.gmra.mxu0 %v7289
      %v7603 = vpop.f32.mrf.mxu0
      %v7604 = vadd.f32 0.0, %v7603
      %v7605 = vpop.f32.mrf.mxu0
      %v7606 = vadd.f32 0.0, %v7605
      %7607 = vmatprep.mubr.f32.mxu0 0.0
      %7608 = vmatmul.mubr.f32.gmra.mxu0 %v7292
      %v7609 = vpop.f32.mrf.mxu0
      %v7610 = vadd.f32 0.0, %v7609
      %v7611 = vpop.f32.mrf.mxu0
      %v7612 = vadd.f32 0.0, %v7611
      %7613 = vmatprep.mubr.f32.mxu0 0.0
      %7614 = vmatmul.mubr.f32.gmra.mxu0 %v7295
      %v7615 = vpop.f32.mrf.mxu0
      %v7616 = vadd.f32 0.0, %v7615
      %v7617 = vpop.f32.mrf.mxu0
      %v7618 = vadd.f32 0.0, %v7617
      %7619 = vmatprep.mubr.f32.mxu0 0.0
      %7620 = vmatmul.mubr.f32.gmra.mxu0 %v7298
      %v7621 = vpop.f32.mrf.mxu0
      %v7622 = vadd.f32 0.0, %v7621
      %v7623 = vpop.f32.mrf.mxu0
      %v7624 = vadd.f32 0.0, %v7623
      %7625 = vmatprep.mubr.f32.mxu0 0.0
      %7626 = vmatmul.mubr.f32.gmra.mxu0 %v7301
      %v7627 = vpop.f32.mrf.mxu0
      %v7628 = vadd.f32 0.0, %v7627
      %v7629 = vpop.f32.mrf.mxu0
      %v7630 = vadd.f32 0.0, %v7629
      %7631 = vmatprep.mubr.f32.mxu0 0.0
      %7632 = vmatmul.mubr.f32.gmra.mxu0 %v7304
      %v7633 = vpop.f32.mrf.mxu0
      %v7634 = vadd.f32 0.0, %v7633
      %v7635 = vpop.f32.mrf.mxu0
      %v7636 = vadd.f32 0.0, %v7635
      %7637 = vmatprep.mubr.f32.mxu0 0.0
      %7638 = vmatmul.mubr.f32.gmra.mxu0 %v7307
      %v7639 = vpop.f32.mrf.mxu0
      %v7640 = vadd.f32 0.0, %v7639
      %v7641 = vpop.f32.mrf.mxu0
      %v7642 = vadd.f32 0.0, %v7641
      %7643 = vmatprep.mubr.f32.mxu0 0.0
      %7644 = vmatmul.mubr.f32.gmra.mxu0 %v7310
      %v7645 = vpop.f32.mrf.mxu0
      %v7646 = vadd.f32 0.0, %v7645
      %v7647 = vpop.f32.mrf.mxu0
      %v7648 = vadd.f32 0.0, %v7647
      %7649 = vmatprep.mubr.f32.mxu0 0.0
      %7650 = vmatmul.mubr.f32.gmra.mxu0 %v7313
      %v7651 = vpop.f32.mrf.mxu0
      %v7652 = vadd.f32 0.0, %v7651
      %v7653 = vpop.f32.mrf.mxu0
      %v7654 = vadd.f32 0.0, %v7653
      %7655 = vmatprep.mubr.f32.mxu0 0.0
      %7656 = vmatmul.mubr.f32.gmra.mxu0 %v7316
      %v7657 = vpop.f32.mrf.mxu0
      %v7658 = vadd.f32 0.0, %v7657
      %v7659 = vpop.f32.mrf.mxu0
      %v7660 = vadd.f32 0.0, %v7659
      %7661 = vmatprep.mubr.f32.mxu0 0.0
      %7662 = vmatmul.mubr.f32.gmra.mxu0 %v7319
      %v7663 = vpop.f32.mrf.mxu0
      %v7664 = vadd.f32 0.0, %v7663
      %v7665 = vpop.f32.mrf.mxu0
      %v7666 = vadd.f32 0.0, %v7665
      %7667 = vmatprep.mubr.f32.mxu0 0.0
      %7668 = vmatmul.mubr.f32.gmra.mxu0 %v7322
      %v7669 = vpop.f32.mrf.mxu0
      %v7670 = vadd.f32 0.0, %v7669
      %v7671 = vpop.f32.mrf.mxu0
      %v7672 = vadd.f32 0.0, %v7671
      %7673 = vmatprep.mubr.f32.mxu0 0.0
      %7674 = vmatmul.mubr.f32.gmra.mxu0 %v7325
      %v7675 = vpop.f32.mrf.mxu0
      %v7676 = vadd.f32 0.0, %v7675
      %v7677 = vpop.f32.mrf.mxu0
      %v7678 = vadd.f32 0.0, %v7677
      %7679 = vdwg.mxu0
      %v7680 = vadd.f32 %v7086, %v7394
      %v7681 = vadd.f32 %v7087, %v7400
      %v7682 = vadd.f32 %v7088, %v7412
      %v7683 = vadd.f32 %v7089, %v7418
      %v7684 = vadd.f32 %v7090, %v7430
      %v7685 = vadd.f32 %v7091, %v7436
      %v7686 = vadd.f32 %v7092, %v7448
      %v7687 = vadd.f32 %v7093, %v7454
      %v7688 = vadd.f32 %v7094, %v7466
      %v7689 = vadd.f32 %v7095, %v7472
      %v7690 = vadd.f32 %v7096, %v7484
      %v7691 = vadd.f32 %v7097, %v7490
      %v7692 = vadd.f32 %v7098, %v7502
      %v7693 = vadd.f32 %v7099, %v7508
      %v7694 = vadd.f32 %v7100, %v7520
      %v7695 = vadd.f32 %v7101, %v7526
      %v7696 = vadd.f32 %v7102, %v7538
      %v7697 = vadd.f32 %v7103, %v7544
      %v7698 = vadd.f32 %v7104, %v7556
      %v7699 = vadd.f32 %v7105, %v7562
      %v7700 = vadd.f32 %v7106, %v7574
      %v7701 = vadd.f32 %v7107, %v7580
      %v7702 = vadd.f32 %v7108, %v7592
      %v7703 = vadd.f32 %v7109, %v7598
      %v7704 = vadd.f32 %v7110, %v7610
      %v7705 = vadd.f32 %v7111, %v7616
      %v7706 = vadd.f32 %v7112, %v7628
      %v7707 = vadd.f32 %v7113, %v7634
      %v7708 = vadd.f32 %v7114, %v7646
      %v7709 = vadd.f32 %v7115, %v7652
      %v7710 = vadd.f32 %v7116, %v7664
      %v7711 = vadd.f32 %v7117, %v7670
      %v7760 = vrot.slane %v7394, 1
      %v7761 = vrot.slane %v7400, 1
      %v7762 = vsel %vm2445, %v7760, %v7761
      %v7763 = vrot.slane %v7406, 1
      %v7764 = vsel %vm2445, %v7761, %v7763
      %v7765 = vrot.slane %v7412, 1
      %v7766 = vrot.slane %v7418, 1
      %v7767 = vsel %vm2445, %v7765, %v7766
      %v7768 = vrot.slane %v7424, 1
      %v7769 = vsel %vm2445, %v7766, %v7768
      %v7770 = vrot.slane %v7430, 1
      %v7771 = vrot.slane %v7436, 1
      %v7772 = vsel %vm2445, %v7770, %v7771
      %v7773 = vrot.slane %v7442, 1
      %v7774 = vsel %vm2445, %v7771, %v7773
      %v7775 = vrot.slane %v7448, 1
      %v7776 = vrot.slane %v7454, 1
      %v7777 = vsel %vm2445, %v7775, %v7776
      %v7778 = vrot.slane %v7460, 1
      %v7779 = vsel %vm2445, %v7776, %v7778
      %v7780 = vrot.slane %v7466, 1
      %v7781 = vrot.slane %v7472, 1
      %v7782 = vsel %vm2445, %v7780, %v7781
      %v7783 = vrot.slane %v7478, 1
      %v7784 = vsel %vm2445, %v7781, %v7783
      %v7785 = vrot.slane %v7484, 1
      %v7786 = vrot.slane %v7490, 1
      %v7787 = vsel %vm2445, %v7785, %v7786
      %v7788 = vrot.slane %v7496, 1
      %v7789 = vsel %vm2445, %v7786, %v7788
      %v7790 = vrot.slane %v7502, 1
      %v7791 = vrot.slane %v7508, 1
      %v7792 = vsel %vm2445, %v7790, %v7791
      %v7793 = vrot.slane %v7514, 1
      %v7794 = vsel %vm2445, %v7791, %v7793
      %v7795 = vrot.slane %v7520, 1
      %v7796 = vrot.slane %v7526, 1
      %v7797 = vsel %vm2445, %v7795, %v7796
      %v7798 = vrot.slane %v7532, 1
      %v7799 = vsel %vm2445, %v7796, %v7798
      %v7800 = vrot.slane %v7538, 1
      %v7801 = vrot.slane %v7544, 1
      %v7802 = vsel %vm2445, %v7800, %v7801
      %v7803 = vrot.slane %v7550, 1
      %v7804 = vsel %vm2445, %v7801, %v7803
      %v7805 = vrot.slane %v7556, 1
      %v7806 = vrot.slane %v7562, 1
      %v7807 = vsel %vm2445, %v7805, %v7806
      %v7808 = vrot.slane %v7568, 1
      %v7809 = vsel %vm2445, %v7806, %v7808
      %v7810 = vrot.slane %v7574, 1
      %v7811 = vrot.slane %v7580, 1
      %v7812 = vsel %vm2445, %v7810, %v7811
      %v7813 = vrot.slane %v7586, 1
      %v7814 = vsel %vm2445, %v7811, %v7813
      %v7815 = vrot.slane %v7592, 1
      %v7816 = vrot.slane %v7598, 1
      %v7817 = vsel %vm2445, %v7815, %v7816
      %v7818 = vrot.slane %v7604, 1
      %v7819 = vsel %vm2445, %v7816, %v7818
      %v7820 = vrot.slane %v7610, 1
      %v7821 = vrot.slane %v7616, 1
      %v7822 = vsel %vm2445, %v7820, %v7821
      %v7823 = vrot.slane %v7622, 1
      %v7824 = vsel %vm2445, %v7821, %v7823
      %v7825 = vrot.slane %v7628, 1
      %v7826 = vrot.slane %v7634, 1
      %v7827 = vsel %vm2445, %v7825, %v7826
      %v7828 = vrot.slane %v7640, 1
      %v7829 = vsel %vm2445, %v7826, %v7828
      %v7830 = vrot.slane %v7646, 1
      %v7831 = vrot.slane %v7652, 1
      %v7832 = vsel %vm2445, %v7830, %v7831
      %v7833 = vrot.slane %v7658, 1
      %v7834 = vsel %vm2445, %v7831, %v7833
      %v7835 = vrot.slane %v7664, 1
      %v7836 = vrot.slane %v7670, 1
      %v7837 = vsel %vm2445, %v7835, %v7836
      %v7838 = vrot.slane %v7676, 1
      %v7839 = vsel %vm2445, %v7836, %v7838
      %7840 = vrot.lane.b32.xlu0 %v7762, 64
      %v7841 = vpop.permute.xlu0 %7840
      %7842 = vrot.lane.b32.xlu0 %v7764, 64
      %v7843 = vpop.permute.xlu0 %7842
      %7844 = vrot.lane.b32.xlu0 %v7767, 64
      %v7845 = vpop.permute.xlu0 %7844
      %7846 = vrot.lane.b32.xlu0 %v7769, 64
      %v7847 = vpop.permute.xlu0 %7846
      %7848 = vrot.lane.b32.xlu0 %v7772, 64
      %v7849 = vpop.permute.xlu0 %7848
      %7850 = vrot.lane.b32.xlu0 %v7774, 64
      %v7851 = vpop.permute.xlu0 %7850
      %7852 = vrot.lane.b32.xlu0 %v7777, 64
      %v7853 = vpop.permute.xlu0 %7852
      %7854 = vrot.lane.b32.xlu0 %v7779, 64
      %v7855 = vpop.permute.xlu0 %7854
      %7856 = vrot.lane.b32.xlu0 %v7782, 64
      %v7857 = vpop.permute.xlu0 %7856
      %7858 = vrot.lane.b32.xlu0 %v7784, 64
      %v7859 = vpop.permute.xlu0 %7858
      %7860 = vrot.lane.b32.xlu0 %v7787, 64
      %v7861 = vpop.permute.xlu0 %7860
      %7862 = vrot.lane.b32.xlu0 %v7789, 64
      %v7863 = vpop.permute.xlu0 %7862
      %7864 = vrot.lane.b32.xlu0 %v7792, 64
      %v7865 = vpop.permute.xlu0 %7864
      %7866 = vrot.lane.b32.xlu0 %v7794, 64
      %v7867 = vpop.permute.xlu0 %7866
      %7868 = vrot.lane.b32.xlu0 %v7797, 64
      %v7869 = vpop.permute.xlu0 %7868
      %7870 = vrot.lane.b32.xlu0 %v7799, 64
      %v7871 = vpop.permute.xlu0 %7870
      %7872 = vrot.lane.b32.xlu0 %v7802, 64
      %v7873 = vpop.permute.xlu0 %7872
      %7874 = vrot.lane.b32.xlu0 %v7804, 64
      %v7875 = vpop.permute.xlu0 %7874
      %7876 = vrot.lane.b32.xlu0 %v7807, 64
      %v7877 = vpop.permute.xlu0 %7876
      %7878 = vrot.lane.b32.xlu0 %v7809, 64
      %v7879 = vpop.permute.xlu0 %7878
      %7880 = vrot.lane.b32.xlu0 %v7812, 64
      %v7881 = vpop.permute.xlu0 %7880
      %7882 = vrot.lane.b32.xlu0 %v7814, 64
      %v7883 = vpop.permute.xlu0 %7882
      %7884 = vrot.lane.b32.xlu0 %v7817, 64
      %v7885 = vpop.permute.xlu0 %7884
      %7886 = vrot.lane.b32.xlu0 %v7819, 64
      %v7887 = vpop.permute.xlu0 %7886
      %7888 = vrot.lane.b32.xlu0 %v7822, 64
      %v7889 = vpop.permute.xlu0 %7888
      %7890 = vrot.lane.b32.xlu0 %v7824, 64
      %v7891 = vpop.permute.xlu0 %7890
      %7892 = vrot.lane.b32.xlu0 %v7827, 64
      %v7893 = vpop.permute.xlu0 %7892
      %7894 = vrot.lane.b32.xlu0 %v7829, 64
      %v7895 = vpop.permute.xlu0 %7894
      %7896 = vrot.lane.b32.xlu0 %v7832, 64
      %v7897 = vpop.permute.xlu0 %7896
      %7898 = vrot.lane.b32.xlu0 %v7834, 64
      %v7899 = vpop.permute.xlu0 %7898
      %7900 = vrot.lane.b32.xlu0 %v7837, 64
      %v7901 = vpop.permute.xlu0 %7900
      %7902 = vrot.lane.b32.xlu0 %v7839, 64
      %v7903 = vpop.permute.xlu0 %7902
      %v7936 = vadd.f32 %v7680, %v7841
      %v7937 = vadd.f32 %v7681, %v7843
      %v7938 = vadd.f32 %v7682, %v7845
      %v7939 = vadd.f32 %v7683, %v7847
      %v7940 = vadd.f32 %v7684, %v7849
      %v7941 = vadd.f32 %v7685, %v7851
      %v7942 = vadd.f32 %v7686, %v7853
      %v7943 = vadd.f32 %v7687, %v7855
      %v7944 = vadd.f32 %v7688, %v7857
      %v7945 = vadd.f32 %v7689, %v7859
      %v7946 = vadd.f32 %v7690, %v7861
      %v7947 = vadd.f32 %v7691, %v7863
      %v7948 = vadd.f32 %v7692, %v7865
      %v7949 = vadd.f32 %v7693, %v7867
      %v7950 = vadd.f32 %v7694, %v7869
      %v7951 = vadd.f32 %v7695, %v7871
      %v7952 = vadd.f32 %v7696, %v7873
      %v7953 = vadd.f32 %v7697, %v7875
      %v7954 = vadd.f32 %v7698, %v7877
      %v7955 = vadd.f32 %v7699, %v7879
      %v7956 = vadd.f32 %v7700, %v7881
      %v7957 = vadd.f32 %v7701, %v7883
      %v7958 = vadd.f32 %v7702, %v7885
      %v7959 = vadd.f32 %v7703, %v7887
      %v7960 = vadd.f32 %v7704, %v7889
      %v7961 = vadd.f32 %v7705, %v7891
      %v7962 = vadd.f32 %v7706, %v7893
      %v7963 = vadd.f32 %v7707, %v7895
      %v7964 = vadd.f32 %v7708, %v7897
      %v7965 = vadd.f32 %v7709, %v7899
      %v7966 = vadd.f32 %v7710, %v7901
      %v7967 = vadd.f32 %v7711, %v7903
      %v8016 = vrot.slane %v7396, 2
      %v8017 = vrot.slane %v7402, 2
      %v8018 = vsel %vm2702, %v8016, %v8017
      %v8019 = vrot.slane %v7408, 2
      %v8020 = vsel %vm2702, %v8017, %v8019
      %v8021 = vrot.slane %v7414, 2
      %v8022 = vrot.slane %v7420, 2
      %v8023 = vsel %vm2702, %v8021, %v8022
      %v8024 = vrot.slane %v7426, 2
      %v8025 = vsel %vm2702, %v8022, %v8024
      %v8026 = vrot.slane %v7432, 2
      %v8027 = vrot.slane %v7438, 2
      %v8028 = vsel %vm2702, %v8026, %v8027
      %v8029 = vrot.slane %v7444, 2
      %v8030 = vsel %vm2702, %v8027, %v8029
      %v8031 = vrot.slane %v7450, 2
      %v8032 = vrot.slane %v7456, 2
      %v8033 = vsel %vm2702, %v8031, %v8032
      %v8034 = vrot.slane %v7462, 2
      %v8035 = vsel %vm2702, %v8032, %v8034
      %v8036 = vrot.slane %v7468, 2
      %v8037 = vrot.slane %v7474, 2
      %v8038 = vsel %vm2702, %v8036, %v8037
      %v8039 = vrot.slane %v7480, 2
      %v8040 = vsel %vm2702, %v8037, %v8039
      %v8041 = vrot.slane %v7486, 2
      %v8042 = vrot.slane %v7492, 2
      %v8043 = vsel %vm2702, %v8041, %v8042
      %v8044 = vrot.slane %v7498, 2
      %v8045 = vsel %vm2702, %v8042, %v8044
      %v8046 = vrot.slane %v7504, 2
      %v8047 = vrot.slane %v7510, 2
      %v8048 = vsel %vm2702, %v8046, %v8047
      %v8049 = vrot.slane %v7516, 2
      %v8050 = vsel %vm2702, %v8047, %v8049
      %v8051 = vrot.slane %v7522, 2
      %v8052 = vrot.slane %v7528, 2
      %v8053 = vsel %vm2702, %v8051, %v8052
      %v8054 = vrot.slane %v7534, 2
      %v8055 = vsel %vm2702, %v8052, %v8054
      %v8056 = vrot.slane %v7540, 2
      %v8057 = vrot.slane %v7546, 2
      %v8058 = vsel %vm2702, %v8056, %v8057
      %v8059 = vrot.slane %v7552, 2
      %v8060 = vsel %vm2702, %v8057, %v8059
      %v8061 = vrot.slane %v7558, 2
      %v8062 = vrot.slane %v7564, 2
      %v8063 = vsel %vm2702, %v8061, %v8062
      %v8064 = vrot.slane %v7570, 2
      %v8065 = vsel %vm2702, %v8062, %v8064
      %v8066 = vrot.slane %v7576, 2
      %v8067 = vrot.slane %v7582, 2
      %v8068 = vsel %vm2702, %v8066, %v8067
      %v8069 = vrot.slane %v7588, 2
      %v8070 = vsel %vm2702, %v8067, %v8069
      %v8071 = vrot.slane %v7594, 2
      %v8072 = vrot.slane %v7600, 2
      %v8073 = vsel %vm2702, %v8071, %v8072
      %v8074 = vrot.slane %v7606, 2
      %v8075 = vsel %vm2702, %v8072, %v8074
      %v8076 = vrot.slane %v7612, 2
      %v8077 = vrot.slane %v7618, 2
      %v8078 = vsel %vm2702, %v8076, %v8077
      %v8079 = vrot.slane %v7624, 2
      %v8080 = vsel %vm2702, %v8077, %v8079
      %v8081 = vrot.slane %v7630, 2
      %v8082 = vrot.slane %v7636, 2
      %v8083 = vsel %vm2702, %v8081, %v8082
      %v8084 = vrot.slane %v7642, 2
      %v8085 = vsel %vm2702, %v8082, %v8084
      %v8086 = vrot.slane %v7648, 2
      %v8087 = vrot.slane %v7654, 2
      %v8088 = vsel %vm2702, %v8086, %v8087
      %v8089 = vrot.slane %v7660, 2
      %v8090 = vsel %vm2702, %v8087, %v8089
      %v8091 = vrot.slane %v7666, 2
      %v8092 = vrot.slane %v7672, 2
      %v8093 = vsel %vm2702, %v8091, %v8092
      %v8094 = vrot.slane %v7678, 2
      %v8095 = vsel %vm2702, %v8092, %v8094
      %v8128 = vadd.f32 %v7936, %v8018
      %v8129 = vadd.f32 %v7937, %v8020
      %v8130 = vadd.f32 %v7938, %v8023
      %v8131 = vadd.f32 %v7939, %v8025
      %v8132 = vadd.f32 %v7940, %v8028
      %v8133 = vadd.f32 %v7941, %v8030
      %v8134 = vadd.f32 %v7942, %v8033
      %v8135 = vadd.f32 %v7943, %v8035
      %v8136 = vadd.f32 %v7944, %v8038
      %v8137 = vadd.f32 %v7945, %v8040
      %v8138 = vadd.f32 %v7946, %v8043
      %v8139 = vadd.f32 %v7947, %v8045
      %v8140 = vadd.f32 %v7948, %v8048
      %v8141 = vadd.f32 %v7949, %v8050
      %v8142 = vadd.f32 %v7950, %v8053
      %v8143 = vadd.f32 %v7951, %v8055
      %v8144 = vadd.f32 %v7952, %v8058
      %v8145 = vadd.f32 %v7953, %v8060
      %v8146 = vadd.f32 %v7954, %v8063
      %v8147 = vadd.f32 %v7955, %v8065
      %v8148 = vadd.f32 %v7956, %v8068
      %v8149 = vadd.f32 %v7957, %v8070
      %v8150 = vadd.f32 %v7958, %v8073
      %v8151 = vadd.f32 %v7959, %v8075
      %v8152 = vadd.f32 %v7960, %v8078
      %v8153 = vadd.f32 %v7961, %v8080
      %v8154 = vadd.f32 %v7962, %v8083
      %v8155 = vadd.f32 %v7963, %v8085
      %v8156 = vadd.f32 %v7964, %v8088
      %v8157 = vadd.f32 %v7965, %v8090
      %v8158 = vadd.f32 %v7966, %v8093
      %v8159 = vadd.f32 %v7967, %v8095
      %v8160 = vld [vmem:[%s10] sm:$0x1]
      %v8162 = vlaneseq
      %v8163 = vshrl.u32 %v8162, 7
      %v8164 = vsub.s32 0, %v8163
      %v8165 = vrot.slane %v8160, %v8164
      %v8167 = vadd.f32 %v8128, %v8165
      %v8168 = vadd.f32 %v8129, %v8165
      %v8169 = vadd.f32 %v8130, %v8165
      %v8170 = vadd.f32 %v8131, %v8165
      %v8171 = vadd.f32 %v8132, %v8165
      %v8172 = vadd.f32 %v8133, %v8165
      %v8173 = vadd.f32 %v8134, %v8165
      %v8174 = vadd.f32 %v8135, %v8165
      %v8175 = vadd.f32 %v8136, %v8165
      %v8176 = vadd.f32 %v8137, %v8165
      %v8177 = vadd.f32 %v8138, %v8165
      %v8178 = vadd.f32 %v8139, %v8165
      %v8179 = vadd.f32 %v8140, %v8165
      %v8180 = vadd.f32 %v8141, %v8165
      %v8181 = vadd.f32 %v8142, %v8165
      %v8182 = vadd.f32 %v8143, %v8165
      %v8183 = vadd.f32 %v8144, %v8165
      %v8184 = vadd.f32 %v8145, %v8165
      %v8185 = vadd.f32 %v8146, %v8165
      %v8186 = vadd.f32 %v8147, %v8165
      %v8187 = vadd.f32 %v8148, %v8165
      %v8188 = vadd.f32 %v8149, %v8165
      %v8189 = vadd.f32 %v8150, %v8165
      %v8190 = vadd.f32 %v8151, %v8165
      %v8191 = vadd.f32 %v8152, %v8165
      %v8192 = vadd.f32 %v8153, %v8165
      %v8193 = vadd.f32 %v8154, %v8165
      %v8194 = vadd.f32 %v8155, %v8165
      %v8195 = vadd.f32 %v8156, %v8165
      %v8196 = vadd.f32 %v8157, %v8165
      %v8197 = vadd.f32 %v8158, %v8165
      %v8198 = vadd.f32 %v8159, %v8165
      %v8199 = vmax.f32 %v8167, 0.0
      %v8200 = vmax.f32 %v8168, 0.0
      %v8201 = vmax.f32 %v8169, 0.0
      %v8202 = vmax.f32 %v8170, 0.0
      %v8203 = vmax.f32 %v8171, 0.0
      %v8204 = vmax.f32 %v8172, 0.0
      %v8205 = vmax.f32 %v8173, 0.0
      %v8206 = vmax.f32 %v8174, 0.0
      %v8207 = vmax.f32 %v8175, 0.0
      %v8208 = vmax.f32 %v8176, 0.0
      %v8209 = vmax.f32 %v8177, 0.0
      %v8210 = vmax.f32 %v8178, 0.0
      %v8211 = vmax.f32 %v8179, 0.0
      %v8212 = vmax.f32 %v8180, 0.0
      %v8213 = vmax.f32 %v8181, 0.0
      %v8214 = vmax.f32 %v8182, 0.0
      %v8215 = vmax.f32 %v8183, 0.0
      %v8216 = vmax.f32 %v8184, 0.0
      %v8217 = vmax.f32 %v8185, 0.0
      %v8218 = vmax.f32 %v8186, 0.0
      %v8219 = vmax.f32 %v8187, 0.0
      %v8220 = vmax.f32 %v8188, 0.0
      %v8221 = vmax.f32 %v8189, 0.0
      %v8222 = vmax.f32 %v8190, 0.0
      %v8223 = vmax.f32 %v8191, 0.0
      %v8224 = vmax.f32 %v8192, 0.0
      %v8225 = vmax.f32 %v8193, 0.0
      %v8226 = vmax.f32 %v8194, 0.0
      %v8227 = vmax.f32 %v8195, 0.0
      %v8228 = vmax.f32 %v8196, 0.0
      %v8229 = vmax.f32 %v8197, 0.0
      %v8230 = vmax.f32 %v8198, 0.0
      %8231 = vst.msk [vmem:[%s1771 + $0x1] sm:$0xff] %vm569, %v8199
      %8232 = vst.msk [vmem:[%s1771 + $0x9] sm:$0xff] %vm569, %v8200
      %8233 = vst.msk [vmem:[%s1771 + $0x19] sm:$0xff] %vm569, %v8201
      %8234 = vst.msk [vmem:[%s1771 + $0x21] sm:$0xff] %vm569, %v8202
      %8235 = vst.msk [vmem:[%s1771 + $0x31] sm:$0xff] %vm569, %v8203
      %8236 = vst.msk [vmem:[%s1771 + $0x39] sm:$0xff] %vm569, %v8204
      %8237 = vst.msk [vmem:[%s1771 + $0x49] sm:$0xff] %vm569, %v8205
      %8238 = vst.msk [vmem:[%s1771 + $0x51] sm:$0xff] %vm569, %v8206
      %8239 = vst.msk [vmem:[%s1771 + $0x61] sm:$0xff] %vm569, %v8207
      %8240 = vst.msk [vmem:[%s1771 + $0x69] sm:$0xff] %vm569, %v8208
      %8241 = vst.msk [vmem:[%s1771 + $0x79] sm:$0xff] %vm569, %v8209
      %8242 = vst.msk [vmem:[%s1771 + $0x81] sm:$0xff] %vm569, %v8210
      %8243 = vst.msk [vmem:[%s1771 + $0x91] sm:$0xff] %vm569, %v8211
      %8244 = vst.msk [vmem:[%s1771 + $0x99] sm:$0xff] %vm569, %v8212
      %8245 = vst.msk [vmem:[%s1771 + $0xa9] sm:$0xff] %vm569, %v8213
      %8246 = vst.msk [vmem:[%s1771 + $0xb1] sm:$0xff] %vm569, %v8214
      %8247 = vst.msk [vmem:[%s1771 + $0xc1] sm:$0xff] %vm569, %v8215
      %8248 = vst.msk [vmem:[%s1771 + $0xc9] sm:$0xff] %vm569, %v8216
      %8249 = vst.msk [vmem:[%s1771 + $0xd9] sm:$0xff] %vm569, %v8217
      %8250 = vst.msk [vmem:[%s1771 + $0xe1] sm:$0xff] %vm569, %v8218
      %8251 = vst.msk [vmem:[%s1771 + $0xf1] sm:$0xff] %vm569, %v8219
      %8252 = vst.msk [vmem:[%s1771 + $0xf9] sm:$0xff] %vm569, %v8220
      %8253 = vst.msk [vmem:[%s1771 + $0x109] sm:$0xff] %vm569, %v8221
      %8254 = vst.msk [vmem:[%s1771 + $0x111] sm:$0xff] %vm569, %v8222
      %8255 = vst.msk [vmem:[%s1771 + $0x121] sm:$0xff] %vm569, %v8223
      %8256 = vst.msk [vmem:[%s1771 + $0x129] sm:$0xff] %vm569, %v8224
      %8257 = vst.msk [vmem:[%s1771 + $0x139] sm:$0xff] %vm569, %v8225
      %8258 = vst.msk [vmem:[%s1771 + $0x141] sm:$0xff] %vm569, %v8226
      %8259 = vst.msk [vmem:[%s1771 + $0x151] sm:$0xff] %vm569, %v8227
      %8260 = vst.msk [vmem:[%s1771 + $0x159] sm:$0xff] %vm569, %v8228
      %8261 = vst.msk [vmem:[%s1771 + $0x169] sm:$0xff] %vm569, %v8229
      %8262 = vst.msk [vmem:[%s1771 + $0x171] sm:$0xff] %vm569, %v8230
      %v8263 = vld [vmem:[#allocation2] sm:$0xff]
      %v8264 = vld [vmem:[#allocation2 + $0x8] sm:$0xff]
      %v8265 = vld [vmem:[#allocation2 + $0x10] sm:$0xff]
      %v8266 = vld [vmem:[#allocation2 + $0x18] sm:$0xff]
      %v8267 = vld [vmem:[#allocation2 + $0x20] sm:$0xff]
      %v8268 = vld [vmem:[#allocation2 + $0x28] sm:$0xff]
      %v8269 = vld [vmem:[#allocation2 + $0x30] sm:$0xff]
      %v8270 = vld [vmem:[#allocation2 + $0x38] sm:$0xff]
      %v8271 = vld [vmem:[#allocation2 + $0x40] sm:$0xff]
      %v8272 = vld [vmem:[#allocation2 + $0x48] sm:$0xff]
      %v8273 = vld [vmem:[#allocation2 + $0x50] sm:$0xff]
      %v8274 = vld [vmem:[#allocation2 + $0x58] sm:$0xff]
      %v8275 = vld [vmem:[#allocation2 + $0x60] sm:$0xff]
      %v8276 = vld [vmem:[#allocation2 + $0x68] sm:$0xff]
      %v8277 = vld [vmem:[#allocation2 + $0x70] sm:$0xff]
      %v8278 = vld [vmem:[#allocation2 + $0x78] sm:$0xff]
      %v8279 = vld [vmem:[#allocation2 + $0x80] sm:$0xff]
      %v8280 = vld [vmem:[#allocation2 + $0x88] sm:$0xff]
      %v8281 = vld [vmem:[#allocation2 + $0x90] sm:$0xff]
      %v8282 = vld [vmem:[#allocation2 + $0x98] sm:$0xff]
      %v8283 = vld [vmem:[#allocation2 + $0xa0] sm:$0xff]
      %v8284 = vld [vmem:[#allocation2 + $0xa8] sm:$0xff]
      %v8285 = vld [vmem:[#allocation2 + $0xb0] sm:$0xff]
      %v8286 = vld [vmem:[#allocation2 + $0xb8] sm:$0xff]
      %v8287 = vld [vmem:[#allocation2 + $0xc0] sm:$0xff]
      %v8288 = vld [vmem:[#allocation2 + $0xc8] sm:$0xff]
      %v8289 = vld [vmem:[#allocation2 + $0xd0] sm:$0xff]
      %v8290 = vld [vmem:[#allocation2 + $0xd8] sm:$0xff]
      %v8291 = vld [vmem:[#allocation2 + $0xe0] sm:$0xff]
      %v8292 = vld [vmem:[#allocation2 + $0xe8] sm:$0xff]
      %v8293 = vld [vmem:[#allocation2 + $0xf0] sm:$0xff]
      %v8294 = vld [vmem:[#allocation2 + $0xf8] sm:$0xff]
      %v8295 = vld [vmem:[#allocation2 + $0x100] sm:$0xff]
      %v8296 = vld [vmem:[#allocation2 + $0x108] sm:$0xff]
      %v8297 = vld [vmem:[#allocation2 + $0x110] sm:$0xff]
      %v8298 = vld [vmem:[#allocation2 + $0x118] sm:$0xff]
      %v8299 = vld [vmem:[#allocation2 + $0x120] sm:$0xff]
      %v8300 = vld [vmem:[#allocation2 + $0x128] sm:$0xff]
      %v8301 = vld [vmem:[#allocation2 + $0x130] sm:$0xff]
      %v8302 = vld [vmem:[#allocation2 + $0x138] sm:$0xff]
      %v8303 = vld [vmem:[#allocation2 + $0x140] sm:$0xff]
      %v8304 = vld [vmem:[#allocation2 + $0x148] sm:$0xff]
      %v8305 = vld [vmem:[#allocation2 + $0x150] sm:$0xff]
      %v8306 = vld [vmem:[#allocation2 + $0x158] sm:$0xff]
      %v8307 = vld [vmem:[#allocation2 + $0x160] sm:$0xff]
      %v8308 = vld [vmem:[#allocation2 + $0x168] sm:$0xff]
      %v8309 = vld [vmem:[#allocation2 + $0x170] sm:$0xff]
      %v8310 = vld [vmem:[#allocation2 + $0x178] sm:$0xff]
      %v8311 = vld [vmem:[%s11] sm:$0xff]
      %v8312 = vld [vmem:[%s11 + $0x8] sm:$0xff]
      %v8313 = vld [vmem:[%s11 + $0x10] sm:$0xff]
      %v8314 = vld [vmem:[%s11 + $0x18] sm:$0xff]
      %v8315 = vld [vmem:[%s11 + $0x20] sm:$0xff]
      %v8316 = vld [vmem:[%s11 + $0x28] sm:$0xff]
      %v8317 = vld [vmem:[%s11 + $0x30] sm:$0xff]
      %v8318 = vld [vmem:[%s11 + $0x38] sm:$0xff]
      %v8319 = vld [vmem:[%s11 + $0x40] sm:$0xff]
      %v8320 = vld [vmem:[%s11 + $0x48] sm:$0xff]
      %v8321 = vld [vmem:[%s11 + $0x50] sm:$0xff]
      %v8322 = vld [vmem:[%s11 + $0x58] sm:$0xff]
      %v8323 = vld [vmem:[%s11 + $0x60] sm:$0xff]
      %v8324 = vld [vmem:[%s11 + $0x68] sm:$0xff]
      %v8325 = vld [vmem:[%s11 + $0x70] sm:$0xff]
      %v8326 = vld [vmem:[%s11 + $0x78] sm:$0xff]
      %v8328 = vsel %vm569, %v8263, 0
      %v8331 = vsel %vm569, %v8264, 0
      %v8334 = vsel %vm569, %v8265, 0
      %v8337 = vsel %vm569, %v8266, 0
      %v8340 = vsel %vm569, %v8267, 0
      %v8343 = vsel %vm569, %v8268, 0
      %v8346 = vsel %vm569, %v8269, 0
      %v8349 = vsel %vm569, %v8270, 0
      %v8352 = vsel %vm569, %v8271, 0
      %v8355 = vsel %vm569, %v8272, 0
      %v8358 = vsel %vm569, %v8273, 0
      %v8361 = vsel %vm569, %v8274, 0
      %v8364 = vsel %vm569, %v8275, 0
      %v8367 = vsel %vm569, %v8276, 0
      %v8370 = vsel %vm569, %v8277, 0
      %v8373 = vsel %vm569, %v8278, 0
      %v8376 = vsel %vm569, %v8279, 0
      %v8379 = vsel %vm569, %v8280, 0
      %v8382 = vsel %vm569, %v8281, 0
      %v8385 = vsel %vm569, %v8282, 0
      %v8388 = vsel %vm569, %v8283, 0
      %v8391 = vsel %vm569, %v8284, 0
      %v8394 = vsel %vm569, %v8285, 0
      %v8397 = vsel %vm569, %v8286, 0
      %v8400 = vsel %vm569, %v8287, 0
      %v8403 = vsel %vm569, %v8288, 0
      %v8406 = vsel %vm569, %v8289, 0
      %v8409 = vsel %vm569, %v8290, 0
      %v8412 = vsel %vm569, %v8291, 0
      %v8415 = vsel %vm569, %v8292, 0
      %v8418 = vsel %vm569, %v8293, 0
      %v8421 = vsel %vm569, %v8294, 0
      %v8424 = vsel %vm569, %v8295, 0
      %v8427 = vsel %vm569, %v8296, 0
      %v8430 = vsel %vm569, %v8297, 0
      %v8433 = vsel %vm569, %v8298, 0
      %v8436 = vsel %vm569, %v8299, 0
      %v8439 = vsel %vm569, %v8300, 0
      %v8442 = vsel %vm569, %v8301, 0
      %v8445 = vsel %vm569, %v8302, 0
      %v8448 = vsel %vm569, %v8303, 0
      %v8451 = vsel %vm569, %v8304, 0
      %v8454 = vsel %vm569, %v8305, 0
      %v8457 = vsel %vm569, %v8306, 0
      %v8460 = vsel %vm569, %v8307, 0
      %v8463 = vsel %vm569, %v8308, 0
      %v8466 = vsel %vm569, %v8309, 0
      %v8469 = vsel %vm569, %v8310, 0
      %8471 = vmatprep.subr.mxu0 0.0
      %8472 = vmatpush1.msra.mxu0 0.0
      %8473 = vmatprep.subr.mxu0 0.0
      %8474 = vmatpush1.msra.mxu0 0.0
      %8475 = vmatprep.subr.mxu0 0.0
      %8476 = vmatpush1.msra.mxu0 0.0
      %8477 = vmatprep.subr.mxu0 0.0
      %8478 = vmatpush1.msra.mxu0 0.0
      %8479 = vmatprep.subr.mxu0 0.0
      %8480 = vmatpush1.msra.mxu0 0.0
      %8481 = vmatprep.subr.mxu0 0.0
      %8482 = vmatpush1.msra.mxu0 0.0
      %8483 = vmatprep.subr.mxu0 0.0
      %8484 = vmatpush1.msra.mxu0 0.0
      %8485 = vmatprep.subr.mxu0 0.0
      %8486 = vmatpush1.msra.mxu0 0.0
      %8487 = vmatprep.subr.mxu0 %v8326
      %8488 = vmatpush1.msra.mxu0 %v8325
      %8489 = vmatprep.subr.mxu0 %v8324
      %8490 = vmatpush1.msra.mxu0 %v8323
      %8491 = vmatprep.subr.mxu0 %v8322
      %8492 = vmatpush1.msra.mxu0 %v8321
      %8493 = vmatprep.subr.mxu0 %v8320
      %8494 = vmatpush1.msra.mxu0 %v8319
      %8495 = vmatprep.subr.mxu0 %v8318
      %8496 = vmatpush1.msra.mxu0 %v8317
      %8497 = vmatprep.subr.mxu0 %v8316
      %8498 = vmatpush1.msra.mxu0 %v8315
      %8499 = vmatprep.subr.mxu0 %v8314
      %8500 = vmatpush1.msra.mxu0 %v8313
      %8501 = vmatprep.subr.mxu0 %v8312
      %8502 = vmatpush1.msra.mxu0 %v8311
      %8503 = vmatprep.subr.mxu0 0.0
      %8504 = vmatpush2.msra.mxu0 0.0
      %8505 = vmatprep.subr.mxu0 0.0
      %8506 = vmatpush2.msra.mxu0 0.0
      %8507 = vmatprep.subr.mxu0 0.0
      %8508 = vmatpush2.msra.mxu0 0.0
      %8509 = vmatprep.subr.mxu0 0.0
      %8510 = vmatpush2.msra.mxu0 0.0
      %8511 = vmatprep.subr.mxu0 0.0
      %8512 = vmatpush2.msra.mxu0 0.0
      %8513 = vmatprep.subr.mxu0 0.0
      %8514 = vmatpush2.msra.mxu0 0.0
      %8515 = vmatprep.subr.mxu0 0.0
      %8516 = vmatpush2.msra.mxu0 0.0
      %8517 = vmatprep.subr.mxu0 0.0
      %8518 = vmatpush2.msra.mxu0 0.0
      %8519 = vmatprep.subr.mxu0 0.0
      %8520 = vmatpush2.msra.mxu0 0.0
      %8521 = vmatprep.subr.mxu0 0.0
      %8522 = vmatpush2.msra.mxu0 0.0
      %8523 = vmatprep.subr.mxu0 0.0
      %8524 = vmatpush2.msra.mxu0 0.0
      %8525 = vmatprep.subr.mxu0 0.0
      %8526 = vmatpush2.msra.mxu0 0.0
      %8527 = vmatprep.subr.mxu0 0.0
      %8528 = vmatpush2.msra.mxu0 0.0
      %8529 = vmatprep.subr.mxu0 0.0
      %8530 = vmatpush2.msra.mxu0 0.0
      %8531 = vmatprep.subr.mxu0 0.0
      %8532 = vmatpush2.msra.mxu0 0.0
      %8533 = vmatprep.subr.mxu0 0.0
      %8534 = vmatpush2.msra.mxu0 0.0
      %8535 = vmatprep.mubr.f32.mxu0 0.0
      %8536 = vmatmul.mubr.f32.gmra.mxu0 %v8328
      %v8537 = vpop.f32.mrf.mxu0
      %v8538 = vadd.f32 0.0, %v8537
      %v8539 = vpop.f32.mrf.mxu0
      %v8540 = vadd.f32 0.0, %v8539
      %8541 = vmatprep.mubr.f32.mxu0 0.0
      %8542 = vmatmul.mubr.f32.gmra.mxu0 %v8331
      %v8543 = vpop.f32.mrf.mxu0
      %v8544 = vadd.f32 0.0, %v8543
      %v8545 = vpop.f32.mrf.mxu0
      %v8546 = vadd.f32 0.0, %v8545
      %8547 = vmatprep.mubr.f32.mxu0 0.0
      %8548 = vmatmul.mubr.f32.gmra.mxu0 %v8334
      %v8549 = vpop.f32.mrf.mxu0
      %v8550 = vadd.f32 0.0, %v8549
      %v8551 = vpop.f32.mrf.mxu0
      %v8552 = vadd.f32 0.0, %v8551
      %8553 = vmatprep.mubr.f32.mxu0 0.0
      %8554 = vmatmul.mubr.f32.gmra.mxu0 %v8337
      %v8555 = vpop.f32.mrf.mxu0
      %v8556 = vadd.f32 0.0, %v8555
      %v8557 = vpop.f32.mrf.mxu0
      %v8558 = vadd.f32 0.0, %v8557
      %8559 = vmatprep.mubr.f32.mxu0 0.0
      %8560 = vmatmul.mubr.f32.gmra.mxu0 %v8340
      %v8561 = vpop.f32.mrf.mxu0
      %v8562 = vadd.f32 0.0, %v8561
      %v8563 = vpop.f32.mrf.mxu0
      %v8564 = vadd.f32 0.0, %v8563
      %8565 = vmatprep.mubr.f32.mxu0 0.0
      %8566 = vmatmul.mubr.f32.gmra.mxu0 %v8343
      %v8567 = vpop.f32.mrf.mxu0
      %v8568 = vadd.f32 0.0, %v8567
      %v8569 = vpop.f32.mrf.mxu0
      %v8570 = vadd.f32 0.0, %v8569
      %8571 = vmatprep.mubr.f32.mxu0 0.0
      %8572 = vmatmul.mubr.f32.gmra.mxu0 %v8346
      %v8573 = vpop.f32.mrf.mxu0
      %v8574 = vadd.f32 0.0, %v8573
      %v8575 = vpop.f32.mrf.mxu0
      %v8576 = vadd.f32 0.0, %v8575
      %8577 = vmatprep.mubr.f32.mxu0 0.0
      %8578 = vmatmul.mubr.f32.gmra.mxu0 %v8349
      %v8579 = vpop.f32.mrf.mxu0
      %v8580 = vadd.f32 0.0, %v8579
      %v8581 = vpop.f32.mrf.mxu0
      %v8582 = vadd.f32 0.0, %v8581
      %8583 = vmatprep.mubr.f32.mxu0 0.0
      %8584 = vmatmul.mubr.f32.gmra.mxu0 %v8352
      %v8585 = vpop.f32.mrf.mxu0
      %v8586 = vadd.f32 0.0, %v8585
      %v8587 = vpop.f32.mrf.mxu0
      %v8588 = vadd.f32 0.0, %v8587
      %8589 = vmatprep.mubr.f32.mxu0 0.0
      %8590 = vmatmul.mubr.f32.gmra.mxu0 %v8355
      %v8591 = vpop.f32.mrf.mxu0
      %v8592 = vadd.f32 0.0, %v8591
      %v8593 = vpop.f32.mrf.mxu0
      %v8594 = vadd.f32 0.0, %v8593
      %8595 = vmatprep.mubr.f32.mxu0 0.0
      %8596 = vmatmul.mubr.f32.gmra.mxu0 %v8358
      %v8597 = vpop.f32.mrf.mxu0
      %v8598 = vadd.f32 0.0, %v8597
      %v8599 = vpop.f32.mrf.mxu0
      %v8600 = vadd.f32 0.0, %v8599
      %8601 = vmatprep.mubr.f32.mxu0 0.0
      %8602 = vmatmul.mubr.f32.gmra.mxu0 %v8361
      %v8603 = vpop.f32.mrf.mxu0
      %v8604 = vadd.f32 0.0, %v8603
      %v8605 = vpop.f32.mrf.mxu0
      %v8606 = vadd.f32 0.0, %v8605
      %8607 = vmatprep.mubr.f32.mxu0 0.0
      %8608 = vmatmul.mubr.f32.gmra.mxu0 %v8364
      %v8609 = vpop.f32.mrf.mxu0
      %v8610 = vadd.f32 0.0, %v8609
      %v8611 = vpop.f32.mrf.mxu0
      %v8612 = vadd.f32 0.0, %v8611
      %8613 = vmatprep.mubr.f32.mxu0 0.0
      %8614 = vmatmul.mubr.f32.gmra.mxu0 %v8367
      %v8615 = vpop.f32.mrf.mxu0
      %v8616 = vadd.f32 0.0, %v8615
      %v8617 = vpop.f32.mrf.mxu0
      %v8618 = vadd.f32 0.0, %v8617
      %8619 = vmatprep.mubr.f32.mxu0 0.0
      %8620 = vmatmul.mubr.f32.gmra.mxu0 %v8370
      %v8621 = vpop.f32.mrf.mxu0
      %v8622 = vadd.f32 0.0, %v8621
      %v8623 = vpop.f32.mrf.mxu0
      %v8624 = vadd.f32 0.0, %v8623
      %8625 = vmatprep.mubr.f32.mxu0 0.0
      %8626 = vmatmul.mubr.f32.gmra.mxu0 %v8373
      %v8627 = vpop.f32.mrf.mxu0
      %v8628 = vadd.f32 0.0, %v8627
      %v8629 = vpop.f32.mrf.mxu0
      %v8630 = vadd.f32 0.0, %v8629
      %8631 = vmatprep.mubr.f32.mxu0 0.0
      %8632 = vmatmul.mubr.f32.gmra.mxu0 %v8376
      %v8633 = vpop.f32.mrf.mxu0
      %v8634 = vadd.f32 0.0, %v8633
      %v8635 = vpop.f32.mrf.mxu0
      %v8636 = vadd.f32 0.0, %v8635
      %8637 = vmatprep.mubr.f32.mxu0 0.0
      %8638 = vmatmul.mubr.f32.gmra.mxu0 %v8379
      %v8639 = vpop.f32.mrf.mxu0
      %v8640 = vadd.f32 0.0, %v8639
      %v8641 = vpop.f32.mrf.mxu0
      %v8642 = vadd.f32 0.0, %v8641
      %8643 = vmatprep.mubr.f32.mxu0 0.0
      %8644 = vmatmul.mubr.f32.gmra.mxu0 %v8382
      %v8645 = vpop.f32.mrf.mxu0
      %v8646 = vadd.f32 0.0, %v8645
      %v8647 = vpop.f32.mrf.mxu0
      %v8648 = vadd.f32 0.0, %v8647
      %8649 = vmatprep.mubr.f32.mxu0 0.0
      %8650 = vmatmul.mubr.f32.gmra.mxu0 %v8385
      %v8651 = vpop.f32.mrf.mxu0
      %v8652 = vadd.f32 0.0, %v8651
      %v8653 = vpop.f32.mrf.mxu0
      %v8654 = vadd.f32 0.0, %v8653
      %8655 = vmatprep.mubr.f32.mxu0 0.0
      %8656 = vmatmul.mubr.f32.gmra.mxu0 %v8388
      %v8657 = vpop.f32.mrf.mxu0
      %v8658 = vadd.f32 0.0, %v8657
      %v8659 = vpop.f32.mrf.mxu0
      %v8660 = vadd.f32 0.0, %v8659
      %8661 = vmatprep.mubr.f32.mxu0 0.0
      %8662 = vmatmul.mubr.f32.gmra.mxu0 %v8391
      %v8663 = vpop.f32.mrf.mxu0
      %v8664 = vadd.f32 0.0, %v8663
      %v8665 = vpop.f32.mrf.mxu0
      %v8666 = vadd.f32 0.0, %v8665
      %8667 = vmatprep.mubr.f32.mxu0 0.0
      %8668 = vmatmul.mubr.f32.gmra.mxu0 %v8394
      %v8669 = vpop.f32.mrf.mxu0
      %v8670 = vadd.f32 0.0, %v8669
      %v8671 = vpop.f32.mrf.mxu0
      %v8672 = vadd.f32 0.0, %v8671
      %8673 = vmatprep.mubr.f32.mxu0 0.0
      %8674 = vmatmul.mubr.f32.gmra.mxu0 %v8397
      %v8675 = vpop.f32.mrf.mxu0
      %v8676 = vadd.f32 0.0, %v8675
      %v8677 = vpop.f32.mrf.mxu0
      %v8678 = vadd.f32 0.0, %v8677
      %8679 = vmatprep.mubr.f32.mxu0 0.0
      %8680 = vmatmul.mubr.f32.gmra.mxu0 %v8400
      %v8681 = vpop.f32.mrf.mxu0
      %v8682 = vadd.f32 0.0, %v8681
      %v8683 = vpop.f32.mrf.mxu0
      %v8684 = vadd.f32 0.0, %v8683
      %8685 = vmatprep.mubr.f32.mxu0 0.0
      %8686 = vmatmul.mubr.f32.gmra.mxu0 %v8403
      %v8687 = vpop.f32.mrf.mxu0
      %v8688 = vadd.f32 0.0, %v8687
      %v8689 = vpop.f32.mrf.mxu0
      %v8690 = vadd.f32 0.0, %v8689
      %8691 = vmatprep.mubr.f32.mxu0 0.0
      %8692 = vmatmul.mubr.f32.gmra.mxu0 %v8406
      %v8693 = vpop.f32.mrf.mxu0
      %v8694 = vadd.f32 0.0, %v8693
      %v8695 = vpop.f32.mrf.mxu0
      %v8696 = vadd.f32 0.0, %v8695
      %8697 = vmatprep.mubr.f32.mxu0 0.0
      %8698 = vmatmul.mubr.f32.gmra.mxu0 %v8409
      %v8699 = vpop.f32.mrf.mxu0
      %v8700 = vadd.f32 0.0, %v8699
      %v8701 = vpop.f32.mrf.mxu0
      %v8702 = vadd.f32 0.0, %v8701
      %8703 = vmatprep.mubr.f32.mxu0 0.0
      %8704 = vmatmul.mubr.f32.gmra.mxu0 %v8412
      %v8705 = vpop.f32.mrf.mxu0
      %v8706 = vadd.f32 0.0, %v8705
      %v8707 = vpop.f32.mrf.mxu0
      %v8708 = vadd.f32 0.0, %v8707
      %8709 = vmatprep.mubr.f32.mxu0 0.0
      %8710 = vmatmul.mubr.f32.gmra.mxu0 %v8415
      %v8711 = vpop.f32.mrf.mxu0
      %v8712 = vadd.f32 0.0, %v8711
      %v8713 = vpop.f32.mrf.mxu0
      %v8714 = vadd.f32 0.0, %v8713
      %8715 = vmatprep.mubr.f32.mxu0 0.0
      %8716 = vmatmul.mubr.f32.gmra.mxu0 %v8418
      %v8717 = vpop.f32.mrf.mxu0
      %v8718 = vadd.f32 0.0, %v8717
      %v8719 = vpop.f32.mrf.mxu0
      %v8720 = vadd.f32 0.0, %v8719
      %8721 = vmatprep.mubr.f32.mxu0 0.0
      %8722 = vmatmul.mubr.f32.gmra.mxu0 %v8421
      %v8723 = vpop.f32.mrf.mxu0
      %v8724 = vadd.f32 0.0, %v8723
      %v8725 = vpop.f32.mrf.mxu0
      %v8726 = vadd.f32 0.0, %v8725
      %8727 = vmatprep.mubr.f32.mxu0 0.0
      %8728 = vmatmul.mubr.f32.gmra.mxu0 %v8424
      %v8729 = vpop.f32.mrf.mxu0
      %v8730 = vadd.f32 0.0, %v8729
      %v8731 = vpop.f32.mrf.mxu0
      %v8732 = vadd.f32 0.0, %v8731
      %8733 = vmatprep.mubr.f32.mxu0 0.0
      %8734 = vmatmul.mubr.f32.gmra.mxu0 %v8427
      %v8735 = vpop.f32.mrf.mxu0
      %v8736 = vadd.f32 0.0, %v8735
      %v8737 = vpop.f32.mrf.mxu0
      %v8738 = vadd.f32 0.0, %v8737
      %8739 = vmatprep.mubr.f32.mxu0 0.0
      %8740 = vmatmul.mubr.f32.gmra.mxu0 %v8430
      %v8741 = vpop.f32.mrf.mxu0
      %v8742 = vadd.f32 0.0, %v8741
      %v8743 = vpop.f32.mrf.mxu0
      %v8744 = vadd.f32 0.0, %v8743
      %8745 = vmatprep.mubr.f32.mxu0 0.0
      %8746 = vmatmul.mubr.f32.gmra.mxu0 %v8433
      %v8747 = vpop.f32.mrf.mxu0
      %v8748 = vadd.f32 0.0, %v8747
      %v8749 = vpop.f32.mrf.mxu0
      %v8750 = vadd.f32 0.0, %v8749
      %8751 = vmatprep.mubr.f32.mxu0 0.0
      %8752 = vmatmul.mubr.f32.gmra.mxu0 %v8436
      %v8753 = vpop.f32.mrf.mxu0
      %v8754 = vadd.f32 0.0, %v8753
      %v8755 = vpop.f32.mrf.mxu0
      %v8756 = vadd.f32 0.0, %v8755
      %8757 = vmatprep.mubr.f32.mxu0 0.0
      %8758 = vmatmul.mubr.f32.gmra.mxu0 %v8439
      %v8759 = vpop.f32.mrf.mxu0
      %v8760 = vadd.f32 0.0, %v8759
      %v8761 = vpop.f32.mrf.mxu0
      %v8762 = vadd.f32 0.0, %v8761
      %8763 = vmatprep.mubr.f32.mxu0 0.0
      %8764 = vmatmul.mubr.f32.gmra.mxu0 %v8442
      %v8765 = vpop.f32.mrf.mxu0
      %v8766 = vadd.f32 0.0, %v8765
      %v8767 = vpop.f32.mrf.mxu0
      %v8768 = vadd.f32 0.0, %v8767
      %8769 = vmatprep.mubr.f32.mxu0 0.0
      %8770 = vmatmul.mubr.f32.gmra.mxu0 %v8445
      %v8771 = vpop.f32.mrf.mxu0
      %v8772 = vadd.f32 0.0, %v8771
      %v8773 = vpop.f32.mrf.mxu0
      %v8774 = vadd.f32 0.0, %v8773
      %8775 = vmatprep.mubr.f32.mxu0 0.0
      %8776 = vmatmul.mubr.f32.gmra.mxu0 %v8448
      %v8777 = vpop.f32.mrf.mxu0
      %v8778 = vadd.f32 0.0, %v8777
      %v8779 = vpop.f32.mrf.mxu0
      %v8780 = vadd.f32 0.0, %v8779
      %8781 = vmatprep.mubr.f32.mxu0 0.0
      %8782 = vmatmul.mubr.f32.gmra.mxu0 %v8451
      %v8783 = vpop.f32.mrf.mxu0
      %v8784 = vadd.f32 0.0, %v8783
      %v8785 = vpop.f32.mrf.mxu0
      %v8786 = vadd.f32 0.0, %v8785
      %8787 = vmatprep.mubr.f32.mxu0 0.0
      %8788 = vmatmul.mubr.f32.gmra.mxu0 %v8454
      %v8789 = vpop.f32.mrf.mxu0
      %v8790 = vadd.f32 0.0, %v8789
      %v8791 = vpop.f32.mrf.mxu0
      %v8792 = vadd.f32 0.0, %v8791
      %8793 = vmatprep.mubr.f32.mxu0 0.0
      %8794 = vmatmul.mubr.f32.gmra.mxu0 %v8457
      %v8795 = vpop.f32.mrf.mxu0
      %v8796 = vadd.f32 0.0, %v8795
      %v8797 = vpop.f32.mrf.mxu0
      %v8798 = vadd.f32 0.0, %v8797
      %8799 = vmatprep.mubr.f32.mxu0 0.0
      %8800 = vmatmul.mubr.f32.gmra.mxu0 %v8460
      %v8801 = vpop.f32.mrf.mxu0
      %v8802 = vadd.f32 0.0, %v8801
      %v8803 = vpop.f32.mrf.mxu0
      %v8804 = vadd.f32 0.0, %v8803
      %8805 = vmatprep.mubr.f32.mxu0 0.0
      %8806 = vmatmul.mubr.f32.gmra.mxu0 %v8463
      %v8807 = vpop.f32.mrf.mxu0
      %v8808 = vadd.f32 0.0, %v8807
      %v8809 = vpop.f32.mrf.mxu0
      %v8810 = vadd.f32 0.0, %v8809
      %8811 = vmatprep.mubr.f32.mxu0 0.0
      %8812 = vmatmul.mubr.f32.gmra.mxu0 %v8466
      %v8813 = vpop.f32.mrf.mxu0
      %v8814 = vadd.f32 0.0, %v8813
      %v8815 = vpop.f32.mrf.mxu0
      %v8816 = vadd.f32 0.0, %v8815
      %8817 = vmatprep.mubr.f32.mxu0 0.0
      %8818 = vmatmul.mubr.f32.gmra.mxu0 %v8469
      %v8819 = vpop.f32.mrf.mxu0
      %v8820 = vadd.f32 0.0, %v8819
      %v8821 = vpop.f32.mrf.mxu0
      %v8822 = vadd.f32 0.0, %v8821
      %8823 = vdwg.mxu0
      %v8824 = vadd.f32 %v8538, 0.0
      %v8825 = vadd.f32 %v8544, 0.0
      %v8826 = vadd.f32 %v8556, 0.0
      %v8827 = vadd.f32 %v8562, 0.0
      %v8828 = vadd.f32 %v8574, 0.0
      %v8829 = vadd.f32 %v8580, 0.0
      %v8830 = vadd.f32 %v8592, 0.0
      %v8831 = vadd.f32 %v8598, 0.0
      %v8832 = vadd.f32 %v8610, 0.0
      %v8833 = vadd.f32 %v8616, 0.0
      %v8834 = vadd.f32 %v8628, 0.0
      %v8835 = vadd.f32 %v8634, 0.0
      %v8836 = vadd.f32 %v8646, 0.0
      %v8837 = vadd.f32 %v8652, 0.0
      %v8838 = vadd.f32 %v8664, 0.0
      %v8839 = vadd.f32 %v8670, 0.0
      %v8840 = vadd.f32 %v8682, 0.0
      %v8841 = vadd.f32 %v8688, 0.0
      %v8842 = vadd.f32 %v8700, 0.0
      %v8843 = vadd.f32 %v8706, 0.0
      %v8844 = vadd.f32 %v8718, 0.0
      %v8845 = vadd.f32 %v8724, 0.0
      %v8846 = vadd.f32 %v8736, 0.0
      %v8847 = vadd.f32 %v8742, 0.0
      %v8848 = vadd.f32 %v8754, 0.0
      %v8849 = vadd.f32 %v8760, 0.0
      %v8850 = vadd.f32 %v8772, 0.0
      %v8851 = vadd.f32 %v8778, 0.0
      %v8852 = vadd.f32 %v8790, 0.0
      %v8853 = vadd.f32 %v8796, 0.0
      %v8854 = vadd.f32 %v8808, 0.0
      %v8855 = vadd.f32 %v8814, 0.0
      %v8904 = vrot.slane %v8538, 1
      %v8905 = vrot.slane %v8544, 1
      %v8906 = vsel %vm2445, %v8904, %v8905
      %v8907 = vrot.slane %v8550, 1
      %v8908 = vsel %vm2445, %v8905, %v8907
      %v8909 = vrot.slane %v8556, 1
      %v8910 = vrot.slane %v8562, 1
      %v8911 = vsel %vm2445, %v8909, %v8910
      %v8912 = vrot.slane %v8568, 1
      %v8913 = vsel %vm2445, %v8910, %v8912
      %v8914 = vrot.slane %v8574, 1
      %v8915 = vrot.slane %v8580, 1
      %v8916 = vsel %vm2445, %v8914, %v8915
      %v8917 = vrot.slane %v8586, 1
      %v8918 = vsel %vm2445, %v8915, %v8917
      %v8919 = vrot.slane %v8592, 1
      %v8920 = vrot.slane %v8598, 1
      %v8921 = vsel %vm2445, %v8919, %v8920
      %v8922 = vrot.slane %v8604, 1
      %v8923 = vsel %vm2445, %v8920, %v8922
      %v8924 = vrot.slane %v8610, 1
      %v8925 = vrot.slane %v8616, 1
      %v8926 = vsel %vm2445, %v8924, %v8925
      %v8927 = vrot.slane %v8622, 1
      %v8928 = vsel %vm2445, %v8925, %v8927
      %v8929 = vrot.slane %v8628, 1
      %v8930 = vrot.slane %v8634, 1
      %v8931 = vsel %vm2445, %v8929, %v8930
      %v8932 = vrot.slane %v8640, 1
      %v8933 = vsel %vm2445, %v8930, %v8932
      %v8934 = vrot.slane %v8646, 1
      %v8935 = vrot.slane %v8652, 1
      %v8936 = vsel %vm2445, %v8934, %v8935
      %v8937 = vrot.slane %v8658, 1
      %v8938 = vsel %vm2445, %v8935, %v8937
      %v8939 = vrot.slane %v8664, 1
      %v8940 = vrot.slane %v8670, 1
      %v8941 = vsel %vm2445, %v8939, %v8940
      %v8942 = vrot.slane %v8676, 1
      %v8943 = vsel %vm2445, %v8940, %v8942
      %v8944 = vrot.slane %v8682, 1
      %v8945 = vrot.slane %v8688, 1
      %v8946 = vsel %vm2445, %v8944, %v8945
      %v8947 = vrot.slane %v8694, 1
      %v8948 = vsel %vm2445, %v8945, %v8947
      %v8949 = vrot.slane %v8700, 1
      %v8950 = vrot.slane %v8706, 1
      %v8951 = vsel %vm2445, %v8949, %v8950
      %v8952 = vrot.slane %v8712, 1
      %v8953 = vsel %vm2445, %v8950, %v8952
      %v8954 = vrot.slane %v8718, 1
      %v8955 = vrot.slane %v8724, 1
      %v8956 = vsel %vm2445, %v8954, %v8955
      %v8957 = vrot.slane %v8730, 1
      %v8958 = vsel %vm2445, %v8955, %v8957
      %v8959 = vrot.slane %v8736, 1
      %v8960 = vrot.slane %v8742, 1
      %v8961 = vsel %vm2445, %v8959, %v8960
      %v8962 = vrot.slane %v8748, 1
      %v8963 = vsel %vm2445, %v8960, %v8962
      %v8964 = vrot.slane %v8754, 1
      %v8965 = vrot.slane %v8760, 1
      %v8966 = vsel %vm2445, %v8964, %v8965
      %v8967 = vrot.slane %v8766, 1
      %v8968 = vsel %vm2445, %v8965, %v8967
      %v8969 = vrot.slane %v8772, 1
      %v8970 = vrot.slane %v8778, 1
      %v8971 = vsel %vm2445, %v8969, %v8970
      %v8972 = vrot.slane %v8784, 1
      %v8973 = vsel %vm2445, %v8970, %v8972
      %v8974 = vrot.slane %v8790, 1
      %v8975 = vrot.slane %v8796, 1
      %v8976 = vsel %vm2445, %v8974, %v8975
      %v8977 = vrot.slane %v8802, 1
      %v8978 = vsel %vm2445, %v8975, %v8977
      %v8979 = vrot.slane %v8808, 1
      %v8980 = vrot.slane %v8814, 1
      %v8981 = vsel %vm2445, %v8979, %v8980
      %v8982 = vrot.slane %v8820, 1
      %v8983 = vsel %vm2445, %v8980, %v8982
      %8984 = vrot.lane.b32.xlu0 %v8906, 64
      %v8985 = vpop.permute.xlu0 %8984
      %8986 = vrot.lane.b32.xlu0 %v8908, 64
      %v8987 = vpop.permute.xlu0 %8986
      %8988 = vrot.lane.b32.xlu0 %v8911, 64
      %v8989 = vpop.permute.xlu0 %8988
      %8990 = vrot.lane.b32.xlu0 %v8913, 64
      %v8991 = vpop.permute.xlu0 %8990
      %8992 = vrot.lane.b32.xlu0 %v8916, 64
      %v8993 = vpop.permute.xlu0 %8992
      %8994 = vrot.lane.b32.xlu0 %v8918, 64
      %v8995 = vpop.permute.xlu0 %8994
      %8996 = vrot.lane.b32.xlu0 %v8921, 64
      %v8997 = vpop.permute.xlu0 %8996
      %8998 = vrot.lane.b32.xlu0 %v8923, 64
      %v8999 = vpop.permute.xlu0 %8998
      %9000 = vrot.lane.b32.xlu0 %v8926, 64
      %v9001 = vpop.permute.xlu0 %9000
      %9002 = vrot.lane.b32.xlu0 %v8928, 64
      %v9003 = vpop.permute.xlu0 %9002
      %9004 = vrot.lane.b32.xlu0 %v8931, 64
      %v9005 = vpop.permute.xlu0 %9004
      %9006 = vrot.lane.b32.xlu0 %v8933, 64
      %v9007 = vpop.permute.xlu0 %9006
      %9008 = vrot.lane.b32.xlu0 %v8936, 64
      %v9009 = vpop.permute.xlu0 %9008
      %9010 = vrot.lane.b32.xlu0 %v8938, 64
      %v9011 = vpop.permute.xlu0 %9010
      %9012 = vrot.lane.b32.xlu0 %v8941, 64
      %v9013 = vpop.permute.xlu0 %9012
      %9014 = vrot.lane.b32.xlu0 %v8943, 64
      %v9015 = vpop.permute.xlu0 %9014
      %9016 = vrot.lane.b32.xlu0 %v8946, 64
      %v9017 = vpop.permute.xlu0 %9016
      %9018 = vrot.lane.b32.xlu0 %v8948, 64
      %v9019 = vpop.permute.xlu0 %9018
      %9020 = vrot.lane.b32.xlu0 %v8951, 64
      %v9021 = vpop.permute.xlu0 %9020
      %9022 = vrot.lane.b32.xlu0 %v8953, 64
      %v9023 = vpop.permute.xlu0 %9022
      %9024 = vrot.lane.b32.xlu0 %v8956, 64
      %v9025 = vpop.permute.xlu0 %9024
      %9026 = vrot.lane.b32.xlu0 %v8958, 64
      %v9027 = vpop.permute.xlu0 %9026
      %9028 = vrot.lane.b32.xlu0 %v8961, 64
      %v9029 = vpop.permute.xlu0 %9028
      %9030 = vrot.lane.b32.xlu0 %v8963, 64
      %v9031 = vpop.permute.xlu0 %9030
      %9032 = vrot.lane.b32.xlu0 %v8966, 64
      %v9033 = vpop.permute.xlu0 %9032
      %9034 = vrot.lane.b32.xlu0 %v8968, 64
      %v9035 = vpop.permute.xlu0 %9034
      %9036 = vrot.lane.b32.xlu0 %v8971, 64
      %v9037 = vpop.permute.xlu0 %9036
      %9038 = vrot.lane.b32.xlu0 %v8973, 64
      %v9039 = vpop.permute.xlu0 %9038
      %9040 = vrot.lane.b32.xlu0 %v8976, 64
      %v9041 = vpop.permute.xlu0 %9040
      %9042 = vrot.lane.b32.xlu0 %v8978, 64
      %v9043 = vpop.permute.xlu0 %9042
      %9044 = vrot.lane.b32.xlu0 %v8981, 64
      %v9045 = vpop.permute.xlu0 %9044
      %9046 = vrot.lane.b32.xlu0 %v8983, 64
      %v9047 = vpop.permute.xlu0 %9046
      %v9080 = vadd.f32 %v8824, %v8985
      %v9081 = vadd.f32 %v8825, %v8987
      %v9082 = vadd.f32 %v8826, %v8989
      %v9083 = vadd.f32 %v8827, %v8991
      %v9084 = vadd.f32 %v8828, %v8993
      %v9085 = vadd.f32 %v8829, %v8995
      %v9086 = vadd.f32 %v8830, %v8997
      %v9087 = vadd.f32 %v8831, %v8999
      %v9088 = vadd.f32 %v8832, %v9001
      %v9089 = vadd.f32 %v8833, %v9003
      %v9090 = vadd.f32 %v8834, %v9005
      %v9091 = vadd.f32 %v8835, %v9007
      %v9092 = vadd.f32 %v8836, %v9009
      %v9093 = vadd.f32 %v8837, %v9011
      %v9094 = vadd.f32 %v8838, %v9013
      %v9095 = vadd.f32 %v8839, %v9015
      %v9096 = vadd.f32 %v8840, %v9017
      %v9097 = vadd.f32 %v8841, %v9019
      %v9098 = vadd.f32 %v8842, %v9021
      %v9099 = vadd.f32 %v8843, %v9023
      %v9100 = vadd.f32 %v8844, %v9025
      %v9101 = vadd.f32 %v8845, %v9027
      %v9102 = vadd.f32 %v8846, %v9029
      %v9103 = vadd.f32 %v8847, %v9031
      %v9104 = vadd.f32 %v8848, %v9033
      %v9105 = vadd.f32 %v8849, %v9035
      %v9106 = vadd.f32 %v8850, %v9037
      %v9107 = vadd.f32 %v8851, %v9039
      %v9108 = vadd.f32 %v8852, %v9041
      %v9109 = vadd.f32 %v8853, %v9043
      %v9110 = vadd.f32 %v8854, %v9045
      %v9111 = vadd.f32 %v8855, %v9047
      %v9160 = vrot.slane %v8540, 2
      %v9161 = vrot.slane %v8546, 2
      %v9162 = vsel %vm2702, %v9160, %v9161
      %v9163 = vrot.slane %v8552, 2
      %v9164 = vsel %vm2702, %v9161, %v9163
      %v9165 = vrot.slane %v8558, 2
      %v9166 = vrot.slane %v8564, 2
      %v9167 = vsel %vm2702, %v9165, %v9166
      %v9168 = vrot.slane %v8570, 2
      %v9169 = vsel %vm2702, %v9166, %v9168
      %v9170 = vrot.slane %v8576, 2
      %v9171 = vrot.slane %v8582, 2
      %v9172 = vsel %vm2702, %v9170, %v9171
      %v9173 = vrot.slane %v8588, 2
      %v9174 = vsel %vm2702, %v9171, %v9173
      %v9175 = vrot.slane %v8594, 2
      %v9176 = vrot.slane %v8600, 2
      %v9177 = vsel %vm2702, %v9175, %v9176
      %v9178 = vrot.slane %v8606, 2
      %v9179 = vsel %vm2702, %v9176, %v9178
      %v9180 = vrot.slane %v8612, 2
      %v9181 = vrot.slane %v8618, 2
      %v9182 = vsel %vm2702, %v9180, %v9181
      %v9183 = vrot.slane %v8624, 2
      %v9184 = vsel %vm2702, %v9181, %v9183
      %v9185 = vrot.slane %v8630, 2
      %v9186 = vrot.slane %v8636, 2
      %v9187 = vsel %vm2702, %v9185, %v9186
      %v9188 = vrot.slane %v8642, 2
      %v9189 = vsel %vm2702, %v9186, %v9188
      %v9190 = vrot.slane %v8648, 2
      %v9191 = vrot.slane %v8654, 2
      %v9192 = vsel %vm2702, %v9190, %v9191
      %v9193 = vrot.slane %v8660, 2
      %v9194 = vsel %vm2702, %v9191, %v9193
      %v9195 = vrot.slane %v8666, 2
      %v9196 = vrot.slane %v8672, 2
      %v9197 = vsel %vm2702, %v9195, %v9196
      %v9198 = vrot.slane %v8678, 2
      %v9199 = vsel %vm2702, %v9196, %v9198
      %v9200 = vrot.slane %v8684, 2
      %v9201 = vrot.slane %v8690, 2
      %v9202 = vsel %vm2702, %v9200, %v9201
      %v9203 = vrot.slane %v8696, 2
      %v9204 = vsel %vm2702, %v9201, %v9203
      %v9205 = vrot.slane %v8702, 2
      %v9206 = vrot.slane %v8708, 2
      %v9207 = vsel %vm2702, %v9205, %v9206
      %v9208 = vrot.slane %v8714, 2
      %v9209 = vsel %vm2702, %v9206, %v9208
      %v9210 = vrot.slane %v8720, 2
      %v9211 = vrot.slane %v8726, 2
      %v9212 = vsel %vm2702, %v9210, %v9211
      %v9213 = vrot.slane %v8732, 2
      %v9214 = vsel %vm2702, %v9211, %v9213
      %v9215 = vrot.slane %v8738, 2
      %v9216 = vrot.slane %v8744, 2
      %v9217 = vsel %vm2702, %v9215, %v9216
      %v9218 = vrot.slane %v8750, 2
      %v9219 = vsel %vm2702, %v9216, %v9218
      %v9220 = vrot.slane %v8756, 2
      %v9221 = vrot.slane %v8762, 2
      %v9222 = vsel %vm2702, %v9220, %v9221
      %v9223 = vrot.slane %v8768, 2
      %v9224 = vsel %vm2702, %v9221, %v9223
      %v9225 = vrot.slane %v8774, 2
      %v9226 = vrot.slane %v8780, 2
      %v9227 = vsel %vm2702, %v9225, %v9226
      %v9228 = vrot.slane %v8786, 2
      %v9229 = vsel %vm2702, %v9226, %v9228
      %v9230 = vrot.slane %v8792, 2
      %v9231 = vrot.slane %v8798, 2
      %v9232 = vsel %vm2702, %v9230, %v9231
      %v9233 = vrot.slane %v8804, 2
      %v9234 = vsel %vm2702, %v9231, %v9233
      %v9235 = vrot.slane %v8810, 2
      %v9236 = vrot.slane %v8816, 2
      %v9237 = vsel %vm2702, %v9235, %v9236
      %v9238 = vrot.slane %v8822, 2
      %v9239 = vsel %vm2702, %v9236, %v9238
      %v9272 = vadd.f32 %v9080, %v9162
      %v9273 = vadd.f32 %v9081, %v9164
      %v9274 = vadd.f32 %v9082, %v9167
      %v9275 = vadd.f32 %v9083, %v9169
      %v9276 = vadd.f32 %v9084, %v9172
      %v9277 = vadd.f32 %v9085, %v9174
      %v9278 = vadd.f32 %v9086, %v9177
      %v9279 = vadd.f32 %v9087, %v9179
      %v9280 = vadd.f32 %v9088, %v9182
      %v9281 = vadd.f32 %v9089, %v9184
      %v9282 = vadd.f32 %v9090, %v9187
      %v9283 = vadd.f32 %v9091, %v9189
      %v9284 = vadd.f32 %v9092, %v9192
      %v9285 = vadd.f32 %v9093, %v9194
      %v9286 = vadd.f32 %v9094, %v9197
      %v9287 = vadd.f32 %v9095, %v9199
      %v9288 = vadd.f32 %v9096, %v9202
      %v9289 = vadd.f32 %v9097, %v9204
      %v9290 = vadd.f32 %v9098, %v9207
      %v9291 = vadd.f32 %v9099, %v9209
      %v9292 = vadd.f32 %v9100, %v9212
      %v9293 = vadd.f32 %v9101, %v9214
      %v9294 = vadd.f32 %v9102, %v9217
      %v9295 = vadd.f32 %v9103, %v9219
      %v9296 = vadd.f32 %v9104, %v9222
      %v9297 = vadd.f32 %v9105, %v9224
      %v9298 = vadd.f32 %v9106, %v9227
      %v9299 = vadd.f32 %v9107, %v9229
      %v9300 = vadd.f32 %v9108, %v9232
      %v9301 = vadd.f32 %v9109, %v9234
      %v9302 = vadd.f32 %v9110, %v9237
      %v9303 = vadd.f32 %v9111, %v9239
      %v9304 = vld [vmem:[%s1771] sm:$0xff]
      %v9305 = vld [vmem:[%s1771 + $0x8] sm:$0xff]
      %v9306 = vld [vmem:[%s1771 + $0x10] sm:$0xff]
      %v9307 = vld [vmem:[%s1771 + $0x18] sm:$0xff]
      %v9308 = vld [vmem:[%s1771 + $0x20] sm:$0xff]
      %v9309 = vld [vmem:[%s1771 + $0x28] sm:$0xff]
      %v9310 = vld [vmem:[%s1771 + $0x30] sm:$0xff]
      %v9311 = vld [vmem:[%s1771 + $0x38] sm:$0xff]
      %v9312 = vld [vmem:[%s1771 + $0x40] sm:$0xff]
      %v9313 = vld [vmem:[%s1771 + $0x48] sm:$0xff]
      %v9314 = vld [vmem:[%s1771 + $0x50] sm:$0xff]
      %v9315 = vld [vmem:[%s1771 + $0x58] sm:$0xff]
      %v9316 = vld [vmem:[%s1771 + $0x60] sm:$0xff]
      %v9317 = vld [vmem:[%s1771 + $0x68] sm:$0xff]
      %v9318 = vld [vmem:[%s1771 + $0x70] sm:$0xff]
      %v9319 = vld [vmem:[%s1771 + $0x78] sm:$0xff]
      %v9320 = vld [vmem:[%s1771 + $0x80] sm:$0xff]
      %v9321 = vld [vmem:[%s1771 + $0x88] sm:$0xff]
      %v9322 = vld [vmem:[%s1771 + $0x90] sm:$0xff]
      %v9323 = vld [vmem:[%s1771 + $0x98] sm:$0xff]
      %v9324 = vld [vmem:[%s1771 + $0xa0] sm:$0xff]
      %v9325 = vld [vmem:[%s1771 + $0xa8] sm:$0xff]
      %v9326 = vld [vmem:[%s1771 + $0xb0] sm:$0xff]
      %v9327 = vld [vmem:[%s1771 + $0xb8] sm:$0xff]
      %v9328 = vld [vmem:[%s1771 + $0xc0] sm:$0xff]
      %v9329 = vld [vmem:[%s1771 + $0xc8] sm:$0xff]
      %v9330 = vld [vmem:[%s1771 + $0xd0] sm:$0xff]
      %v9331 = vld [vmem:[%s1771 + $0xd8] sm:$0xff]
      %v9332 = vld [vmem:[%s1771 + $0xe0] sm:$0xff]
      %v9333 = vld [vmem:[%s1771 + $0xe8] sm:$0xff]
      %v9334 = vld [vmem:[%s1771 + $0xf0] sm:$0xff]
      %v9335 = vld [vmem:[%s1771 + $0xf8] sm:$0xff]
      %v9336 = vld [vmem:[%s1771 + $0x100] sm:$0xff]
      %v9337 = vld [vmem:[%s1771 + $0x108] sm:$0xff]
      %v9338 = vld [vmem:[%s1771 + $0x110] sm:$0xff]
      %v9339 = vld [vmem:[%s1771 + $0x118] sm:$0xff]
      %v9340 = vld [vmem:[%s1771 + $0x120] sm:$0xff]
      %v9341 = vld [vmem:[%s1771 + $0x128] sm:$0xff]
      %v9342 = vld [vmem:[%s1771 + $0x130] sm:$0xff]
      %v9343 = vld [vmem:[%s1771 + $0x138] sm:$0xff]
      %v9344 = vld [vmem:[%s1771 + $0x140] sm:$0xff]
      %v9345 = vld [vmem:[%s1771 + $0x148] sm:$0xff]
      %v9346 = vld [vmem:[%s1771 + $0x150] sm:$0xff]
      %v9347 = vld [vmem:[%s1771 + $0x158] sm:$0xff]
      %v9348 = vld [vmem:[%s1771 + $0x160] sm:$0xff]
      %v9349 = vld [vmem:[%s1771 + $0x168] sm:$0xff]
      %v9350 = vld [vmem:[%s1771 + $0x170] sm:$0xff]
      %v9351 = vld [vmem:[%s1771 + $0x178] sm:$0xff]
      %s9352 = scalar_lea.vmem %s11, 128
      %v9353 = vld [vmem:[%s9352] sm:$0xff]
      %v9354 = vld [vmem:[%s9352 + $0x8] sm:$0xff]
      %v9355 = vld [vmem:[%s9352 + $0x10] sm:$0xff]
      %v9356 = vld [vmem:[%s9352 + $0x18] sm:$0xff]
      %v9357 = vld [vmem:[%s9352 + $0x20] sm:$0xff]
      %v9358 = vld [vmem:[%s9352 + $0x28] sm:$0xff]
      %v9359 = vld [vmem:[%s9352 + $0x30] sm:$0xff]
      %v9360 = vld [vmem:[%s9352 + $0x38] sm:$0xff]
      %v9361 = vld [vmem:[%s9352 + $0x40] sm:$0xff]
      %v9362 = vld [vmem:[%s9352 + $0x48] sm:$0xff]
      %v9363 = vld [vmem:[%s9352 + $0x50] sm:$0xff]
      %v9364 = vld [vmem:[%s9352 + $0x58] sm:$0xff]
      %v9365 = vld [vmem:[%s9352 + $0x60] sm:$0xff]
      %v9366 = vld [vmem:[%s9352 + $0x68] sm:$0xff]
      %v9367 = vld [vmem:[%s9352 + $0x70] sm:$0xff]
      %v9368 = vld [vmem:[%s9352 + $0x78] sm:$0xff]
      %v9370 = vsel %vm569, %v9304, 0
      %v9373 = vsel %vm569, %v9305, 0
      %v9376 = vsel %vm569, %v9306, 0
      %v9379 = vsel %vm569, %v9307, 0
      %v9382 = vsel %vm569, %v9308, 0
      %v9385 = vsel %vm569, %v9309, 0
      %v9388 = vsel %vm569, %v9310, 0
      %v9391 = vsel %vm569, %v9311, 0
      %v9394 = vsel %vm569, %v9312, 0
      %v9397 = vsel %vm569, %v9313, 0
      %v9400 = vsel %vm569, %v9314, 0
      %v9403 = vsel %vm569, %v9315, 0
      %v9406 = vsel %vm569, %v9316, 0
      %v9409 = vsel %vm569, %v9317, 0
      %v9412 = vsel %vm569, %v9318, 0
      %v9415 = vsel %vm569, %v9319, 0
      %v9418 = vsel %vm569, %v9320, 0
      %v9421 = vsel %vm569, %v9321, 0
      %v9424 = vsel %vm569, %v9322, 0
      %v9427 = vsel %vm569, %v9323, 0
      %v9430 = vsel %vm569, %v9324, 0
      %v9433 = vsel %vm569, %v9325, 0
      %v9436 = vsel %vm569, %v9326, 0
      %v9439 = vsel %vm569, %v9327, 0
      %v9442 = vsel %vm569, %v9328, 0
      %v9445 = vsel %vm569, %v9329, 0
      %v9448 = vsel %vm569, %v9330, 0
      %v9451 = vsel %vm569, %v9331, 0
      %v9454 = vsel %vm569, %v9332, 0
      %v9457 = vsel %vm569, %v9333, 0
      %v9460 = vsel %vm569, %v9334, 0
      %v9463 = vsel %vm569, %v9335, 0
      %v9466 = vsel %vm569, %v9336, 0
      %v9469 = vsel %vm569, %v9337, 0
      %v9472 = vsel %vm569, %v9338, 0
      %v9475 = vsel %vm569, %v9339, 0
      %v9478 = vsel %vm569, %v9340, 0
      %v9481 = vsel %vm569, %v9341, 0
      %v9484 = vsel %vm569, %v9342, 0
      %v9487 = vsel %vm569, %v9343, 0
      %v9490 = vsel %vm569, %v9344, 0
      %v9493 = vsel %vm569, %v9345, 0
      %v9496 = vsel %vm569, %v9346, 0
      %v9499 = vsel %vm569, %v9347, 0
      %v9502 = vsel %vm569, %v9348, 0
      %v9505 = vsel %vm569, %v9349, 0
      %v9508 = vsel %vm569, %v9350, 0
      %v9511 = vsel %vm569, %v9351, 0
      %9513 = vmatprep.subr.mxu0 0.0
      %9514 = vmatpush1.msra.mxu0 0.0
      %9515 = vmatprep.subr.mxu0 0.0
      %9516 = vmatpush1.msra.mxu0 0.0
      %9517 = vmatprep.subr.mxu0 0.0
      %9518 = vmatpush1.msra.mxu0 0.0
      %9519 = vmatprep.subr.mxu0 0.0
      %9520 = vmatpush1.msra.mxu0 0.0
      %9521 = vmatprep.subr.mxu0 0.0
      %9522 = vmatpush1.msra.mxu0 0.0
      %9523 = vmatprep.subr.mxu0 0.0
      %9524 = vmatpush1.msra.mxu0 0.0
      %9525 = vmatprep.subr.mxu0 0.0
      %9526 = vmatpush1.msra.mxu0 0.0
      %9527 = vmatprep.subr.mxu0 0.0
      %9528 = vmatpush1.msra.mxu0 0.0
      %9529 = vmatprep.subr.mxu0 %v9368
      %9530 = vmatpush1.msra.mxu0 %v9367
      %9531 = vmatprep.subr.mxu0 %v9366
      %9532 = vmatpush1.msra.mxu0 %v9365
      %9533 = vmatprep.subr.mxu0 %v9364
      %9534 = vmatpush1.msra.mxu0 %v9363
      %9535 = vmatprep.subr.mxu0 %v9362
      %9536 = vmatpush1.msra.mxu0 %v9361
      %9537 = vmatprep.subr.mxu0 %v9360
      %9538 = vmatpush1.msra.mxu0 %v9359
      %9539 = vmatprep.subr.mxu0 %v9358
      %9540 = vmatpush1.msra.mxu0 %v9357
      %9541 = vmatprep.subr.mxu0 %v9356
      %9542 = vmatpush1.msra.mxu0 %v9355
      %9543 = vmatprep.subr.mxu0 %v9354
      %9544 = vmatpush1.msra.mxu0 %v9353
      %9545 = vmatprep.subr.mxu0 0.0
      %9546 = vmatpush2.msra.mxu0 0.0
      %9547 = vmatprep.subr.mxu0 0.0
      %9548 = vmatpush2.msra.mxu0 0.0
      %9549 = vmatprep.subr.mxu0 0.0
      %9550 = vmatpush2.msra.mxu0 0.0
      %9551 = vmatprep.subr.mxu0 0.0
      %9552 = vmatpush2.msra.mxu0 0.0
      %9553 = vmatprep.subr.mxu0 0.0
      %9554 = vmatpush2.msra.mxu0 0.0
      %9555 = vmatprep.subr.mxu0 0.0
      %9556 = vmatpush2.msra.mxu0 0.0
      %9557 = vmatprep.subr.mxu0 0.0
      %9558 = vmatpush2.msra.mxu0 0.0
      %9559 = vmatprep.subr.mxu0 0.0
      %9560 = vmatpush2.msra.mxu0 0.0
      %9561 = vmatprep.subr.mxu0 0.0
      %9562 = vmatpush2.msra.mxu0 0.0
      %9563 = vmatprep.subr.mxu0 0.0
      %9564 = vmatpush2.msra.mxu0 0.0
      %9565 = vmatprep.subr.mxu0 0.0
      %9566 = vmatpush2.msra.mxu0 0.0
      %9567 = vmatprep.subr.mxu0 0.0
      %9568 = vmatpush2.msra.mxu0 0.0
      %9569 = vmatprep.subr.mxu0 0.0
      %9570 = vmatpush2.msra.mxu0 0.0
      %9571 = vmatprep.subr.mxu0 0.0
      %9572 = vmatpush2.msra.mxu0 0.0
      %9573 = vmatprep.subr.mxu0 0.0
      %9574 = vmatpush2.msra.mxu0 0.0
      %9575 = vmatprep.subr.mxu0 0.0
      %9576 = vmatpush2.msra.mxu0 0.0
      %9577 = vmatprep.mubr.f32.mxu0 0.0
      %9578 = vmatmul.mubr.f32.gmra.mxu0 %v9370
      %v9579 = vpop.f32.mrf.mxu0
      %v9580 = vadd.f32 0.0, %v9579
      %v9581 = vpop.f32.mrf.mxu0
      %v9582 = vadd.f32 0.0, %v9581
      %9583 = vmatprep.mubr.f32.mxu0 0.0
      %9584 = vmatmul.mubr.f32.gmra.mxu0 %v9373
      %v9585 = vpop.f32.mrf.mxu0
      %v9586 = vadd.f32 0.0, %v9585
      %v9587 = vpop.f32.mrf.mxu0
      %v9588 = vadd.f32 0.0, %v9587
      %9589 = vmatprep.mubr.f32.mxu0 0.0
      %9590 = vmatmul.mubr.f32.gmra.mxu0 %v9376
      %v9591 = vpop.f32.mrf.mxu0
      %v9592 = vadd.f32 0.0, %v9591
      %v9593 = vpop.f32.mrf.mxu0
      %v9594 = vadd.f32 0.0, %v9593
      %9595 = vmatprep.mubr.f32.mxu0 0.0
      %9596 = vmatmul.mubr.f32.gmra.mxu0 %v9379
      %v9597 = vpop.f32.mrf.mxu0
      %v9598 = vadd.f32 0.0, %v9597
      %v9599 = vpop.f32.mrf.mxu0
      %v9600 = vadd.f32 0.0, %v9599
      %9601 = vmatprep.mubr.f32.mxu0 0.0
      %9602 = vmatmul.mubr.f32.gmra.mxu0 %v9382
      %v9603 = vpop.f32.mrf.mxu0
      %v9604 = vadd.f32 0.0, %v9603
      %v9605 = vpop.f32.mrf.mxu0
      %v9606 = vadd.f32 0.0, %v9605
      %9607 = vmatprep.mubr.f32.mxu0 0.0
      %9608 = vmatmul.mubr.f32.gmra.mxu0 %v9385
      %v9609 = vpop.f32.mrf.mxu0
      %v9610 = vadd.f32 0.0, %v9609
      %v9611 = vpop.f32.mrf.mxu0
      %v9612 = vadd.f32 0.0, %v9611
      %9613 = vmatprep.mubr.f32.mxu0 0.0
      %9614 = vmatmul.mubr.f32.gmra.mxu0 %v9388
      %v9615 = vpop.f32.mrf.mxu0
      %v9616 = vadd.f32 0.0, %v9615
      %v9617 = vpop.f32.mrf.mxu0
      %v9618 = vadd.f32 0.0, %v9617
      %9619 = vmatprep.mubr.f32.mxu0 0.0
      %9620 = vmatmul.mubr.f32.gmra.mxu0 %v9391
      %v9621 = vpop.f32.mrf.mxu0
      %v9622 = vadd.f32 0.0, %v9621
      %v9623 = vpop.f32.mrf.mxu0
      %v9624 = vadd.f32 0.0, %v9623
      %9625 = vmatprep.mubr.f32.mxu0 0.0
      %9626 = vmatmul.mubr.f32.gmra.mxu0 %v9394
      %v9627 = vpop.f32.mrf.mxu0
      %v9628 = vadd.f32 0.0, %v9627
      %v9629 = vpop.f32.mrf.mxu0
      %v9630 = vadd.f32 0.0, %v9629
      %9631 = vmatprep.mubr.f32.mxu0 0.0
      %9632 = vmatmul.mubr.f32.gmra.mxu0 %v9397
      %v9633 = vpop.f32.mrf.mxu0
      %v9634 = vadd.f32 0.0, %v9633
      %v9635 = vpop.f32.mrf.mxu0
      %v9636 = vadd.f32 0.0, %v9635
      %9637 = vmatprep.mubr.f32.mxu0 0.0
      %9638 = vmatmul.mubr.f32.gmra.mxu0 %v9400
      %v9639 = vpop.f32.mrf.mxu0
      %v9640 = vadd.f32 0.0, %v9639
      %v9641 = vpop.f32.mrf.mxu0
      %v9642 = vadd.f32 0.0, %v9641
      %9643 = vmatprep.mubr.f32.mxu0 0.0
      %9644 = vmatmul.mubr.f32.gmra.mxu0 %v9403
      %v9645 = vpop.f32.mrf.mxu0
      %v9646 = vadd.f32 0.0, %v9645
      %v9647 = vpop.f32.mrf.mxu0
      %v9648 = vadd.f32 0.0, %v9647
      %9649 = vmatprep.mubr.f32.mxu0 0.0
      %9650 = vmatmul.mubr.f32.gmra.mxu0 %v9406
      %v9651 = vpop.f32.mrf.mxu0
      %v9652 = vadd.f32 0.0, %v9651
      %v9653 = vpop.f32.mrf.mxu0
      %v9654 = vadd.f32 0.0, %v9653
      %9655 = vmatprep.mubr.f32.mxu0 0.0
      %9656 = vmatmul.mubr.f32.gmra.mxu0 %v9409
      %v9657 = vpop.f32.mrf.mxu0
      %v9658 = vadd.f32 0.0, %v9657
      %v9659 = vpop.f32.mrf.mxu0
      %v9660 = vadd.f32 0.0, %v9659
      %9661 = vmatprep.mubr.f32.mxu0 0.0
      %9662 = vmatmul.mubr.f32.gmra.mxu0 %v9412
      %v9663 = vpop.f32.mrf.mxu0
      %v9664 = vadd.f32 0.0, %v9663
      %v9665 = vpop.f32.mrf.mxu0
      %v9666 = vadd.f32 0.0, %v9665
      %9667 = vmatprep.mubr.f32.mxu0 0.0
      %9668 = vmatmul.mubr.f32.gmra.mxu0 %v9415
      %v9669 = vpop.f32.mrf.mxu0
      %v9670 = vadd.f32 0.0, %v9669
      %v9671 = vpop.f32.mrf.mxu0
      %v9672 = vadd.f32 0.0, %v9671
      %9673 = vmatprep.mubr.f32.mxu0 0.0
      %9674 = vmatmul.mubr.f32.gmra.mxu0 %v9418
      %v9675 = vpop.f32.mrf.mxu0
      %v9676 = vadd.f32 0.0, %v9675
      %v9677 = vpop.f32.mrf.mxu0
      %v9678 = vadd.f32 0.0, %v9677
      %9679 = vmatprep.mubr.f32.mxu0 0.0
      %9680 = vmatmul.mubr.f32.gmra.mxu0 %v9421
      %v9681 = vpop.f32.mrf.mxu0
      %v9682 = vadd.f32 0.0, %v9681
      %v9683 = vpop.f32.mrf.mxu0
      %v9684 = vadd.f32 0.0, %v9683
      %9685 = vmatprep.mubr.f32.mxu0 0.0
      %9686 = vmatmul.mubr.f32.gmra.mxu0 %v9424
      %v9687 = vpop.f32.mrf.mxu0
      %v9688 = vadd.f32 0.0, %v9687
      %v9689 = vpop.f32.mrf.mxu0
      %v9690 = vadd.f32 0.0, %v9689
      %9691 = vmatprep.mubr.f32.mxu0 0.0
      %9692 = vmatmul.mubr.f32.gmra.mxu0 %v9427
      %v9693 = vpop.f32.mrf.mxu0
      %v9694 = vadd.f32 0.0, %v9693
      %v9695 = vpop.f32.mrf.mxu0
      %v9696 = vadd.f32 0.0, %v9695
      %9697 = vmatprep.mubr.f32.mxu0 0.0
      %9698 = vmatmul.mubr.f32.gmra.mxu0 %v9430
      %v9699 = vpop.f32.mrf.mxu0
      %v9700 = vadd.f32 0.0, %v9699
      %v9701 = vpop.f32.mrf.mxu0
      %v9702 = vadd.f32 0.0, %v9701
      %9703 = vmatprep.mubr.f32.mxu0 0.0
      %9704 = vmatmul.mubr.f32.gmra.mxu0 %v9433
      %v9705 = vpop.f32.mrf.mxu0
      %v9706 = vadd.f32 0.0, %v9705
      %v9707 = vpop.f32.mrf.mxu0
      %v9708 = vadd.f32 0.0, %v9707
      %9709 = vmatprep.mubr.f32.mxu0 0.0
      %9710 = vmatmul.mubr.f32.gmra.mxu0 %v9436
      %v9711 = vpop.f32.mrf.mxu0
      %v9712 = vadd.f32 0.0, %v9711
      %v9713 = vpop.f32.mrf.mxu0
      %v9714 = vadd.f32 0.0, %v9713
      %9715 = vmatprep.mubr.f32.mxu0 0.0
      %9716 = vmatmul.mubr.f32.gmra.mxu0 %v9439
      %v9717 = vpop.f32.mrf.mxu0
      %v9718 = vadd.f32 0.0, %v9717
      %v9719 = vpop.f32.mrf.mxu0
      %v9720 = vadd.f32 0.0, %v9719
      %9721 = vmatprep.mubr.f32.mxu0 0.0
      %9722 = vmatmul.mubr.f32.gmra.mxu0 %v9442
      %v9723 = vpop.f32.mrf.mxu0
      %v9724 = vadd.f32 0.0, %v9723
      %v9725 = vpop.f32.mrf.mxu0
      %v9726 = vadd.f32 0.0, %v9725
      %9727 = vmatprep.mubr.f32.mxu0 0.0
      %9728 = vmatmul.mubr.f32.gmra.mxu0 %v9445
      %v9729 = vpop.f32.mrf.mxu0
      %v9730 = vadd.f32 0.0, %v9729
      %v9731 = vpop.f32.mrf.mxu0
      %v9732 = vadd.f32 0.0, %v9731
      %9733 = vmatprep.mubr.f32.mxu0 0.0
      %9734 = vmatmul.mubr.f32.gmra.mxu0 %v9448
      %v9735 = vpop.f32.mrf.mxu0
      %v9736 = vadd.f32 0.0, %v9735
      %v9737 = vpop.f32.mrf.mxu0
      %v9738 = vadd.f32 0.0, %v9737
      %9739 = vmatprep.mubr.f32.mxu0 0.0
      %9740 = vmatmul.mubr.f32.gmra.mxu0 %v9451
      %v9741 = vpop.f32.mrf.mxu0
      %v9742 = vadd.f32 0.0, %v9741
      %v9743 = vpop.f32.mrf.mxu0
      %v9744 = vadd.f32 0.0, %v9743
      %9745 = vmatprep.mubr.f32.mxu0 0.0
      %9746 = vmatmul.mubr.f32.gmra.mxu0 %v9454
      %v9747 = vpop.f32.mrf.mxu0
      %v9748 = vadd.f32 0.0, %v9747
      %v9749 = vpop.f32.mrf.mxu0
      %v9750 = vadd.f32 0.0, %v9749
      %9751 = vmatprep.mubr.f32.mxu0 0.0
      %9752 = vmatmul.mubr.f32.gmra.mxu0 %v9457
      %v9753 = vpop.f32.mrf.mxu0
      %v9754 = vadd.f32 0.0, %v9753
      %v9755 = vpop.f32.mrf.mxu0
      %v9756 = vadd.f32 0.0, %v9755
      %9757 = vmatprep.mubr.f32.mxu0 0.0
      %9758 = vmatmul.mubr.f32.gmra.mxu0 %v9460
      %v9759 = vpop.f32.mrf.mxu0
      %v9760 = vadd.f32 0.0, %v9759
      %v9761 = vpop.f32.mrf.mxu0
      %v9762 = vadd.f32 0.0, %v9761
      %9763 = vmatprep.mubr.f32.mxu0 0.0
      %9764 = vmatmul.mubr.f32.gmra.mxu0 %v9463
      %v9765 = vpop.f32.mrf.mxu0
      %v9766 = vadd.f32 0.0, %v9765
      %v9767 = vpop.f32.mrf.mxu0
      %v9768 = vadd.f32 0.0, %v9767
      %9769 = vmatprep.mubr.f32.mxu0 0.0
      %9770 = vmatmul.mubr.f32.gmra.mxu0 %v9466
      %v9771 = vpop.f32.mrf.mxu0
      %v9772 = vadd.f32 0.0, %v9771
      %v9773 = vpop.f32.mrf.mxu0
      %v9774 = vadd.f32 0.0, %v9773
      %9775 = vmatprep.mubr.f32.mxu0 0.0
      %9776 = vmatmul.mubr.f32.gmra.mxu0 %v9469
      %v9777 = vpop.f32.mrf.mxu0
      %v9778 = vadd.f32 0.0, %v9777
      %v9779 = vpop.f32.mrf.mxu0
      %v9780 = vadd.f32 0.0, %v9779
      %9781 = vmatprep.mubr.f32.mxu0 0.0
      %9782 = vmatmul.mubr.f32.gmra.mxu0 %v9472
      %v9783 = vpop.f32.mrf.mxu0
      %v9784 = vadd.f32 0.0, %v9783
      %v9785 = vpop.f32.mrf.mxu0
      %v9786 = vadd.f32 0.0, %v9785
      %9787 = vmatprep.mubr.f32.mxu0 0.0
      %9788 = vmatmul.mubr.f32.gmra.mxu0 %v9475
      %v9789 = vpop.f32.mrf.mxu0
      %v9790 = vadd.f32 0.0, %v9789
      %v9791 = vpop.f32.mrf.mxu0
      %v9792 = vadd.f32 0.0, %v9791
      %9793 = vmatprep.mubr.f32.mxu0 0.0
      %9794 = vmatmul.mubr.f32.gmra.mxu0 %v9478
      %v9795 = vpop.f32.mrf.mxu0
      %v9796 = vadd.f32 0.0, %v9795
      %v9797 = vpop.f32.mrf.mxu0
      %v9798 = vadd.f32 0.0, %v9797
      %9799 = vmatprep.mubr.f32.mxu0 0.0
      %9800 = vmatmul.mubr.f32.gmra.mxu0 %v9481
      %v9801 = vpop.f32.mrf.mxu0
      %v9802 = vadd.f32 0.0, %v9801
      %v9803 = vpop.f32.mrf.mxu0
      %v9804 = vadd.f32 0.0, %v9803
      %9805 = vmatprep.mubr.f32.mxu0 0.0
      %9806 = vmatmul.mubr.f32.gmra.mxu0 %v9484
      %v9807 = vpop.f32.mrf.mxu0
      %v9808 = vadd.f32 0.0, %v9807
      %v9809 = vpop.f32.mrf.mxu0
      %v9810 = vadd.f32 0.0, %v9809
      %9811 = vmatprep.mubr.f32.mxu0 0.0
      %9812 = vmatmul.mubr.f32.gmra.mxu0 %v9487
      %v9813 = vpop.f32.mrf.mxu0
      %v9814 = vadd.f32 0.0, %v9813
      %v9815 = vpop.f32.mrf.mxu0
      %v9816 = vadd.f32 0.0, %v9815
      %9817 = vmatprep.mubr.f32.mxu0 0.0
      %9818 = vmatmul.mubr.f32.gmra.mxu0 %v9490
      %v9819 = vpop.f32.mrf.mxu0
      %v9820 = vadd.f32 0.0, %v9819
      %v9821 = vpop.f32.mrf.mxu0
      %v9822 = vadd.f32 0.0, %v9821
      %9823 = vmatprep.mubr.f32.mxu0 0.0
      %9824 = vmatmul.mubr.f32.gmra.mxu0 %v9493
      %v9825 = vpop.f32.mrf.mxu0
      %v9826 = vadd.f32 0.0, %v9825
      %v9827 = vpop.f32.mrf.mxu0
      %v9828 = vadd.f32 0.0, %v9827
      %9829 = vmatprep.mubr.f32.mxu0 0.0
      %9830 = vmatmul.mubr.f32.gmra.mxu0 %v9496
      %v9831 = vpop.f32.mrf.mxu0
      %v9832 = vadd.f32 0.0, %v9831
      %v9833 = vpop.f32.mrf.mxu0
      %v9834 = vadd.f32 0.0, %v9833
      %9835 = vmatprep.mubr.f32.mxu0 0.0
      %9836 = vmatmul.mubr.f32.gmra.mxu0 %v9499
      %v9837 = vpop.f32.mrf.mxu0
      %v9838 = vadd.f32 0.0, %v9837
      %v9839 = vpop.f32.mrf.mxu0
      %v9840 = vadd.f32 0.0, %v9839
      %9841 = vmatprep.mubr.f32.mxu0 0.0
      %9842 = vmatmul.mubr.f32.gmra.mxu0 %v9502
      %v9843 = vpop.f32.mrf.mxu0
      %v9844 = vadd.f32 0.0, %v9843
      %v9845 = vpop.f32.mrf.mxu0
      %v9846 = vadd.f32 0.0, %v9845
      %9847 = vmatprep.mubr.f32.mxu0 0.0
      %9848 = vmatmul.mubr.f32.gmra.mxu0 %v9505
      %v9849 = vpop.f32.mrf.mxu0
      %v9850 = vadd.f32 0.0, %v9849
      %v9851 = vpop.f32.mrf.mxu0
      %v9852 = vadd.f32 0.0, %v9851
      %9853 = vmatprep.mubr.f32.mxu0 0.0
      %9854 = vmatmul.mubr.f32.gmra.mxu0 %v9508
      %v9855 = vpop.f32.mrf.mxu0
      %v9856 = vadd.f32 0.0, %v9855
      %v9857 = vpop.f32.mrf.mxu0
      %v9858 = vadd.f32 0.0, %v9857
      %9859 = vmatprep.mubr.f32.mxu0 0.0
      %9860 = vmatmul.mubr.f32.gmra.mxu0 %v9511
      %v9861 = vpop.f32.mrf.mxu0
      %v9862 = vadd.f32 0.0, %v9861
      %v9863 = vpop.f32.mrf.mxu0
      %v9864 = vadd.f32 0.0, %v9863
      %9865 = vdwg.mxu0
      %v9866 = vadd.f32 %v9272, %v9580
      %v9867 = vadd.f32 %v9273, %v9586
      %v9868 = vadd.f32 %v9274, %v9598
      %v9869 = vadd.f32 %v9275, %v9604
      %v9870 = vadd.f32 %v9276, %v9616
      %v9871 = vadd.f32 %v9277, %v9622
      %v9872 = vadd.f32 %v9278, %v9634
      %v9873 = vadd.f32 %v9279, %v9640
      %v9874 = vadd.f32 %v9280, %v9652
      %v9875 = vadd.f32 %v9281, %v9658
      %v9876 = vadd.f32 %v9282, %v9670
      %v9877 = vadd.f32 %v9283, %v9676
      %v9878 = vadd.f32 %v9284, %v9688
      %v9879 = vadd.f32 %v9285, %v9694
      %v9880 = vadd.f32 %v9286, %v9706
      %v9881 = vadd.f32 %v9287, %v9712
      %v9882 = vadd.f32 %v9288, %v9724
      %v9883 = vadd.f32 %v9289, %v9730
      %v9884 = vadd.f32 %v9290, %v9742
      %v9885 = vadd.f32 %v9291, %v9748
      %v9886 = vadd.f32 %v9292, %v9760
      %v9887 = vadd.f32 %v9293, %v9766
      %v9888 = vadd.f32 %v9294, %v9778
      %v9889 = vadd.f32 %v9295, %v9784
      %v9890 = vadd.f32 %v9296, %v9796
      %v9891 = vadd.f32 %v9297, %v9802
      %v9892 = vadd.f32 %v9298, %v9814
      %v9893 = vadd.f32 %v9299, %v9820
      %v9894 = vadd.f32 %v9300, %v9832
      %v9895 = vadd.f32 %v9301, %v9838
      %v9896 = vadd.f32 %v9302, %v9850
      %v9897 = vadd.f32 %v9303, %v9856
      %v9946 = vrot.slane %v9580, 1
      %v9947 = vrot.slane %v9586, 1
      %v9948 = vsel %vm2445, %v9946, %v9947
      %v9949 = vrot.slane %v9592, 1
      %v9950 = vsel %vm2445, %v9947, %v9949
      %v9951 = vrot.slane %v9598, 1
      %v9952 = vrot.slane %v9604, 1
      %v9953 = vsel %vm2445, %v9951, %v9952
      %v9954 = vrot.slane %v9610, 1
      %v9955 = vsel %vm2445, %v9952, %v9954
      %v9956 = vrot.slane %v9616, 1
      %v9957 = vrot.slane %v9622, 1
      %v9958 = vsel %vm2445, %v9956, %v9957
      %v9959 = vrot.slane %v9628, 1
      %v9960 = vsel %vm2445, %v9957, %v9959
      %v9961 = vrot.slane %v9634, 1
      %v9962 = vrot.slane %v9640, 1
      %v9963 = vsel %vm2445, %v9961, %v9962
      %v9964 = vrot.slane %v9646, 1
      %v9965 = vsel %vm2445, %v9962, %v9964
      %v9966 = vrot.slane %v9652, 1
      %v9967 = vrot.slane %v9658, 1
      %v9968 = vsel %vm2445, %v9966, %v9967
      %v9969 = vrot.slane %v9664, 1
      %v9970 = vsel %vm2445, %v9967, %v9969
      %v9971 = vrot.slane %v9670, 1
      %v9972 = vrot.slane %v9676, 1
      %v9973 = vsel %vm2445, %v9971, %v9972
      %v9974 = vrot.slane %v9682, 1
      %v9975 = vsel %vm2445, %v9972, %v9974
      %v9976 = vrot.slane %v9688, 1
      %v9977 = vrot.slane %v9694, 1
      %v9978 = vsel %vm2445, %v9976, %v9977
      %v9979 = vrot.slane %v9700, 1
      %v9980 = vsel %vm2445, %v9977, %v9979
      %v9981 = vrot.slane %v9706, 1
      %v9982 = vrot.slane %v9712, 1
      %v9983 = vsel %vm2445, %v9981, %v9982
      %v9984 = vrot.slane %v9718, 1
      %v9985 = vsel %vm2445, %v9982, %v9984
      %v9986 = vrot.slane %v9724, 1
      %v9987 = vrot.slane %v9730, 1
      %v9988 = vsel %vm2445, %v9986, %v9987
      %v9989 = vrot.slane %v9736, 1
      %v9990 = vsel %vm2445, %v9987, %v9989
      %v9991 = vrot.slane %v9742, 1
      %v9992 = vrot.slane %v9748, 1
      %v9993 = vsel %vm2445, %v9991, %v9992
      %v9994 = vrot.slane %v9754, 1
      %v9995 = vsel %vm2445, %v9992, %v9994
      %v9996 = vrot.slane %v9760, 1
      %v9997 = vrot.slane %v9766, 1
      %v9998 = vsel %vm2445, %v9996, %v9997
      %v9999 = vrot.slane %v9772, 1
      %v10000 = vsel %vm2445, %v9997, %v9999
      %v10001 = vrot.slane %v9778, 1
      %v10002 = vrot.slane %v9784, 1
      %v10003 = vsel %vm2445, %v10001, %v10002
      %v10004 = vrot.slane %v9790, 1
      %v10005 = vsel %vm2445, %v10002, %v10004
      %v10006 = vrot.slane %v9796, 1
      %v10007 = vrot.slane %v9802, 1
      %v10008 = vsel %vm2445, %v10006, %v10007
      %v10009 = vrot.slane %v9808, 1
      %v10010 = vsel %vm2445, %v10007, %v10009
      %v10011 = vrot.slane %v9814, 1
      %v10012 = vrot.slane %v9820, 1
      %v10013 = vsel %vm2445, %v10011, %v10012
      %v10014 = vrot.slane %v9826, 1
      %v10015 = vsel %vm2445, %v10012, %v10014
      %v10016 = vrot.slane %v9832, 1
      %v10017 = vrot.slane %v9838, 1
      %v10018 = vsel %vm2445, %v10016, %v10017
      %v10019 = vrot.slane %v9844, 1
      %v10020 = vsel %vm2445, %v10017, %v10019
      %v10021 = vrot.slane %v9850, 1
      %v10022 = vrot.slane %v9856, 1
      %v10023 = vsel %vm2445, %v10021, %v10022
      %v10024 = vrot.slane %v9862, 1
      %v10025 = vsel %vm2445, %v10022, %v10024
      %10026 = vrot.lane.b32.xlu0 %v9948, 64
      %v10027 = vpop.permute.xlu0 %10026
      %10028 = vrot.lane.b32.xlu0 %v9950, 64
      %v10029 = vpop.permute.xlu0 %10028
      %10030 = vrot.lane.b32.xlu0 %v9953, 64
      %v10031 = vpop.permute.xlu0 %10030
      %10032 = vrot.lane.b32.xlu0 %v9955, 64
      %v10033 = vpop.permute.xlu0 %10032
      %10034 = vrot.lane.b32.xlu0 %v9958, 64
      %v10035 = vpop.permute.xlu0 %10034
      %10036 = vrot.lane.b32.xlu0 %v9960, 64
      %v10037 = vpop.permute.xlu0 %10036
      %10038 = vrot.lane.b32.xlu0 %v9963, 64
      %v10039 = vpop.permute.xlu0 %10038
      %10040 = vrot.lane.b32.xlu0 %v9965, 64
      %v10041 = vpop.permute.xlu0 %10040
      %10042 = vrot.lane.b32.xlu0 %v9968, 64
      %v10043 = vpop.permute.xlu0 %10042
      %10044 = vrot.lane.b32.xlu0 %v9970, 64
      %v10045 = vpop.permute.xlu0 %10044
      %10046 = vrot.lane.b32.xlu0 %v9973, 64
      %v10047 = vpop.permute.xlu0 %10046
      %10048 = vrot.lane.b32.xlu0 %v9975, 64
      %v10049 = vpop.permute.xlu0 %10048
      %10050 = vrot.lane.b32.xlu0 %v9978, 64
      %v10051 = vpop.permute.xlu0 %10050
      %10052 = vrot.lane.b32.xlu0 %v9980, 64
      %v10053 = vpop.permute.xlu0 %10052
      %10054 = vrot.lane.b32.xlu0 %v9983, 64
      %v10055 = vpop.permute.xlu0 %10054
      %10056 = vrot.lane.b32.xlu0 %v9985, 64
      %v10057 = vpop.permute.xlu0 %10056
      %10058 = vrot.lane.b32.xlu0 %v9988, 64
      %v10059 = vpop.permute.xlu0 %10058
      %10060 = vrot.lane.b32.xlu0 %v9990, 64
      %v10061 = vpop.permute.xlu0 %10060
      %10062 = vrot.lane.b32.xlu0 %v9993, 64
      %v10063 = vpop.permute.xlu0 %10062
      %10064 = vrot.lane.b32.xlu0 %v9995, 64
      %v10065 = vpop.permute.xlu0 %10064
      %10066 = vrot.lane.b32.xlu0 %v9998, 64
      %v10067 = vpop.permute.xlu0 %10066
      %10068 = vrot.lane.b32.xlu0 %v10000, 64
      %v10069 = vpop.permute.xlu0 %10068
      %10070 = vrot.lane.b32.xlu0 %v10003, 64
      %v10071 = vpop.permute.xlu0 %10070
      %10072 = vrot.lane.b32.xlu0 %v10005, 64
      %v10073 = vpop.permute.xlu0 %10072
      %10074 = vrot.lane.b32.xlu0 %v10008, 64
      %v10075 = vpop.permute.xlu0 %10074
      %10076 = vrot.lane.b32.xlu0 %v10010, 64
      %v10077 = vpop.permute.xlu0 %10076
      %10078 = vrot.lane.b32.xlu0 %v10013, 64
      %v10079 = vpop.permute.xlu0 %10078
      %10080 = vrot.lane.b32.xlu0 %v10015, 64
      %v10081 = vpop.permute.xlu0 %10080
      %10082 = vrot.lane.b32.xlu0 %v10018, 64
      %v10083 = vpop.permute.xlu0 %10082
      %10084 = vrot.lane.b32.xlu0 %v10020, 64
      %v10085 = vpop.permute.xlu0 %10084
      %10086 = vrot.lane.b32.xlu0 %v10023, 64
      %v10087 = vpop.permute.xlu0 %10086
      %10088 = vrot.lane.b32.xlu0 %v10025, 64
      %v10089 = vpop.permute.xlu0 %10088
      %v10122 = vadd.f32 %v9866, %v10027
      %v10123 = vadd.f32 %v9867, %v10029
      %v10124 = vadd.f32 %v9868, %v10031
      %v10125 = vadd.f32 %v9869, %v10033
      %v10126 = vadd.f32 %v9870, %v10035
      %v10127 = vadd.f32 %v9871, %v10037
      %v10128 = vadd.f32 %v9872, %v10039
      %v10129 = vadd.f32 %v9873, %v10041
      %v10130 = vadd.f32 %v9874, %v10043
      %v10131 = vadd.f32 %v9875, %v10045
      %v10132 = vadd.f32 %v9876, %v10047
      %v10133 = vadd.f32 %v9877, %v10049
      %v10134 = vadd.f32 %v9878, %v10051
      %v10135 = vadd.f32 %v9879, %v10053
      %v10136 = vadd.f32 %v9880, %v10055
      %v10137 = vadd.f32 %v9881, %v10057
      %v10138 = vadd.f32 %v9882, %v10059
      %v10139 = vadd.f32 %v9883, %v10061
      %v10140 = vadd.f32 %v9884, %v10063
      %v10141 = vadd.f32 %v9885, %v10065
      %v10142 = vadd.f32 %v9886, %v10067
      %v10143 = vadd.f32 %v9887, %v10069
      %v10144 = vadd.f32 %v9888, %v10071
      %v10145 = vadd.f32 %v9889, %v10073
      %v10146 = vadd.f32 %v9890, %v10075
      %v10147 = vadd.f32 %v9891, %v10077
      %v10148 = vadd.f32 %v9892, %v10079
      %v10149 = vadd.f32 %v9893, %v10081
      %v10150 = vadd.f32 %v9894, %v10083
      %v10151 = vadd.f32 %v9895, %v10085
      %v10152 = vadd.f32 %v9896, %v10087
      %v10153 = vadd.f32 %v9897, %v10089
      %v10202 = vrot.slane %v9582, 2
      %v10203 = vrot.slane %v9588, 2
      %v10204 = vsel %vm2702, %v10202, %v10203
      %v10205 = vrot.slane %v9594, 2
      %v10206 = vsel %vm2702, %v10203, %v10205
      %v10207 = vrot.slane %v9600, 2
      %v10208 = vrot.slane %v9606, 2
      %v10209 = vsel %vm2702, %v10207, %v10208
      %v10210 = vrot.slane %v9612, 2
      %v10211 = vsel %vm2702, %v10208, %v10210
      %v10212 = vrot.slane %v9618, 2
      %v10213 = vrot.slane %v9624, 2
      %v10214 = vsel %vm2702, %v10212, %v10213
      %v10215 = vrot.slane %v9630, 2
      %v10216 = vsel %vm2702, %v10213, %v10215
      %v10217 = vrot.slane %v9636, 2
      %v10218 = vrot.slane %v9642, 2
      %v10219 = vsel %vm2702, %v10217, %v10218
      %v10220 = vrot.slane %v9648, 2
      %v10221 = vsel %vm2702, %v10218, %v10220
      %v10222 = vrot.slane %v9654, 2
      %v10223 = vrot.slane %v9660, 2
      %v10224 = vsel %vm2702, %v10222, %v10223
      %v10225 = vrot.slane %v9666, 2
      %v10226 = vsel %vm2702, %v10223, %v10225
      %v10227 = vrot.slane %v9672, 2
      %v10228 = vrot.slane %v9678, 2
      %v10229 = vsel %vm2702, %v10227, %v10228
      %v10230 = vrot.slane %v9684, 2
      %v10231 = vsel %vm2702, %v10228, %v10230
      %v10232 = vrot.slane %v9690, 2
      %v10233 = vrot.slane %v9696, 2
      %v10234 = vsel %vm2702, %v10232, %v10233
      %v10235 = vrot.slane %v9702, 2
      %v10236 = vsel %vm2702, %v10233, %v10235
      %v10237 = vrot.slane %v9708, 2
      %v10238 = vrot.slane %v9714, 2
      %v10239 = vsel %vm2702, %v10237, %v10238
      %v10240 = vrot.slane %v9720, 2
      %v10241 = vsel %vm2702, %v10238, %v10240
      %v10242 = vrot.slane %v9726, 2
      %v10243 = vrot.slane %v9732, 2
      %v10244 = vsel %vm2702, %v10242, %v10243
      %v10245 = vrot.slane %v9738, 2
      %v10246 = vsel %vm2702, %v10243, %v10245
      %v10247 = vrot.slane %v9744, 2
      %v10248 = vrot.slane %v9750, 2
      %v10249 = vsel %vm2702, %v10247, %v10248
      %v10250 = vrot.slane %v9756, 2
      %v10251 = vsel %vm2702, %v10248, %v10250
      %v10252 = vrot.slane %v9762, 2
      %v10253 = vrot.slane %v9768, 2
      %v10254 = vsel %vm2702, %v10252, %v10253
      %v10255 = vrot.slane %v9774, 2
      %v10256 = vsel %vm2702, %v10253, %v10255
      %v10257 = vrot.slane %v9780, 2
      %v10258 = vrot.slane %v9786, 2
      %v10259 = vsel %vm2702, %v10257, %v10258
      %v10260 = vrot.slane %v9792, 2
      %v10261 = vsel %vm2702, %v10258, %v10260
      %v10262 = vrot.slane %v9798, 2
      %v10263 = vrot.slane %v9804, 2
      %v10264 = vsel %vm2702, %v10262, %v10263
      %v10265 = vrot.slane %v9810, 2
      %v10266 = vsel %vm2702, %v10263, %v10265
      %v10267 = vrot.slane %v9816, 2
      %v10268 = vrot.slane %v9822, 2
      %v10269 = vsel %vm2702, %v10267, %v10268
      %v10270 = vrot.slane %v9828, 2
      %v10271 = vsel %vm2702, %v10268, %v10270
      %v10272 = vrot.slane %v9834, 2
      %v10273 = vrot.slane %v9840, 2
      %v10274 = vsel %vm2702, %v10272, %v10273
      %v10275 = vrot.slane %v9846, 2
      %v10276 = vsel %vm2702, %v10273, %v10275
      %v10277 = vrot.slane %v9852, 2
      %v10278 = vrot.slane %v9858, 2
      %v10279 = vsel %vm2702, %v10277, %v10278
      %v10280 = vrot.slane %v9864, 2
      %v10281 = vsel %vm2702, %v10278, %v10280
      %v10314 = vadd.f32 %v10122, %v10204
      %v10315 = vadd.f32 %v10123, %v10206
      %v10316 = vadd.f32 %v10124, %v10209
      %v10317 = vadd.f32 %v10125, %v10211
      %v10318 = vadd.f32 %v10126, %v10214
      %v10319 = vadd.f32 %v10127, %v10216
      %v10320 = vadd.f32 %v10128, %v10219
      %v10321 = vadd.f32 %v10129, %v10221
      %v10322 = vadd.f32 %v10130, %v10224
      %v10323 = vadd.f32 %v10131, %v10226
      %v10324 = vadd.f32 %v10132, %v10229
      %v10325 = vadd.f32 %v10133, %v10231
      %v10326 = vadd.f32 %v10134, %v10234
      %v10327 = vadd.f32 %v10135, %v10236
      %v10328 = vadd.f32 %v10136, %v10239
      %v10329 = vadd.f32 %v10137, %v10241
      %v10330 = vadd.f32 %v10138, %v10244
      %v10331 = vadd.f32 %v10139, %v10246
      %v10332 = vadd.f32 %v10140, %v10249
      %v10333 = vadd.f32 %v10141, %v10251
      %v10334 = vadd.f32 %v10142, %v10254
      %v10335 = vadd.f32 %v10143, %v10256
      %v10336 = vadd.f32 %v10144, %v10259
      %v10337 = vadd.f32 %v10145, %v10261
      %v10338 = vadd.f32 %v10146, %v10264
      %v10339 = vadd.f32 %v10147, %v10266
      %v10340 = vadd.f32 %v10148, %v10269
      %v10341 = vadd.f32 %v10149, %v10271
      %v10342 = vadd.f32 %v10150, %v10274
      %v10343 = vadd.f32 %v10151, %v10276
      %v10344 = vadd.f32 %v10152, %v10279
      %v10345 = vadd.f32 %v10153, %v10281
      %v10346 = vld [vmem:[%s3889] sm:$0xff]
      %v10347 = vld [vmem:[%s3889 + $0x8] sm:$0xff]
      %v10348 = vld [vmem:[%s3889 + $0x10] sm:$0xff]
      %v10349 = vld [vmem:[%s3889 + $0x18] sm:$0xff]
      %v10350 = vld [vmem:[%s3889 + $0x20] sm:$0xff]
      %v10351 = vld [vmem:[%s3889 + $0x28] sm:$0xff]
      %v10352 = vld [vmem:[%s3889 + $0x30] sm:$0xff]
      %v10353 = vld [vmem:[%s3889 + $0x38] sm:$0xff]
      %v10354 = vld [vmem:[%s3889 + $0x40] sm:$0xff]
      %v10355 = vld [vmem:[%s3889 + $0x48] sm:$0xff]
      %v10356 = vld [vmem:[%s3889 + $0x50] sm:$0xff]
      %v10357 = vld [vmem:[%s3889 + $0x58] sm:$0xff]
      %v10358 = vld [vmem:[%s3889 + $0x60] sm:$0xff]
      %v10359 = vld [vmem:[%s3889 + $0x68] sm:$0xff]
      %v10360 = vld [vmem:[%s3889 + $0x70] sm:$0xff]
      %v10361 = vld [vmem:[%s3889 + $0x78] sm:$0xff]
      %v10362 = vld [vmem:[%s3889 + $0x80] sm:$0xff]
      %v10363 = vld [vmem:[%s3889 + $0x88] sm:$0xff]
      %v10364 = vld [vmem:[%s3889 + $0x90] sm:$0xff]
      %v10365 = vld [vmem:[%s3889 + $0x98] sm:$0xff]
      %v10366 = vld [vmem:[%s3889 + $0xa0] sm:$0xff]
      %v10367 = vld [vmem:[%s3889 + $0xa8] sm:$0xff]
      %v10368 = vld [vmem:[%s3889 + $0xb0] sm:$0xff]
      %v10369 = vld [vmem:[%s3889 + $0xb8] sm:$0xff]
      %v10370 = vld [vmem:[%s3889 + $0xc0] sm:$0xff]
      %v10371 = vld [vmem:[%s3889 + $0xc8] sm:$0xff]
      %v10372 = vld [vmem:[%s3889 + $0xd0] sm:$0xff]
      %v10373 = vld [vmem:[%s3889 + $0xd8] sm:$0xff]
      %v10374 = vld [vmem:[%s3889 + $0xe0] sm:$0xff]
      %v10375 = vld [vmem:[%s3889 + $0xe8] sm:$0xff]
      %v10376 = vld [vmem:[%s3889 + $0xf0] sm:$0xff]
      %v10377 = vld [vmem:[%s3889 + $0xf8] sm:$0xff]
      %v10378 = vld [vmem:[%s3889 + $0x100] sm:$0xff]
      %v10379 = vld [vmem:[%s3889 + $0x108] sm:$0xff]
      %v10380 = vld [vmem:[%s3889 + $0x110] sm:$0xff]
      %v10381 = vld [vmem:[%s3889 + $0x118] sm:$0xff]
      %v10382 = vld [vmem:[%s3889 + $0x120] sm:$0xff]
      %v10383 = vld [vmem:[%s3889 + $0x128] sm:$0xff]
      %v10384 = vld [vmem:[%s3889 + $0x130] sm:$0xff]
      %v10385 = vld [vmem:[%s3889 + $0x138] sm:$0xff]
      %v10386 = vld [vmem:[%s3889 + $0x140] sm:$0xff]
      %v10387 = vld [vmem:[%s3889 + $0x148] sm:$0xff]
      %v10388 = vld [vmem:[%s3889 + $0x150] sm:$0xff]
      %v10389 = vld [vmem:[%s3889 + $0x158] sm:$0xff]
      %v10390 = vld [vmem:[%s3889 + $0x160] sm:$0xff]
      %v10391 = vld [vmem:[%s3889 + $0x168] sm:$0xff]
      %v10392 = vld [vmem:[%s3889 + $0x170] sm:$0xff]
      %v10393 = vld [vmem:[%s3889 + $0x178] sm:$0xff]
      %s10394 = scalar_lea.vmem %s11, 256
      %v10395 = vld [vmem:[%s10394] sm:$0xff]
      %v10396 = vld [vmem:[%s10394 + $0x8] sm:$0xff]
      %v10397 = vld [vmem:[%s10394 + $0x10] sm:$0xff]
      %v10398 = vld [vmem:[%s10394 + $0x18] sm:$0xff]
      %v10399 = vld [vmem:[%s10394 + $0x20] sm:$0xff]
      %v10400 = vld [vmem:[%s10394 + $0x28] sm:$0xff]
      %v10401 = vld [vmem:[%s10394 + $0x30] sm:$0xff]
      %v10402 = vld [vmem:[%s10394 + $0x38] sm:$0xff]
      %v10403 = vld [vmem:[%s10394 + $0x40] sm:$0xff]
      %v10404 = vld [vmem:[%s10394 + $0x48] sm:$0xff]
      %v10405 = vld [vmem:[%s10394 + $0x50] sm:$0xff]
      %v10406 = vld [vmem:[%s10394 + $0x58] sm:$0xff]
      %v10407 = vld [vmem:[%s10394 + $0x60] sm:$0xff]
      %v10408 = vld [vmem:[%s10394 + $0x68] sm:$0xff]
      %v10409 = vld [vmem:[%s10394 + $0x70] sm:$0xff]
      %v10410 = vld [vmem:[%s10394 + $0x78] sm:$0xff]
      %v10412 = vsel %vm569, %v10346, 0
      %v10415 = vsel %vm569, %v10347, 0
      %v10418 = vsel %vm569, %v10348, 0
      %v10421 = vsel %vm569, %v10349, 0
      %v10424 = vsel %vm569, %v10350, 0
      %v10427 = vsel %vm569, %v10351, 0
      %v10430 = vsel %vm569, %v10352, 0
      %v10433 = vsel %vm569, %v10353, 0
      %v10436 = vsel %vm569, %v10354, 0
      %v10439 = vsel %vm569, %v10355, 0
      %v10442 = vsel %vm569, %v10356, 0
      %v10445 = vsel %vm569, %v10357, 0
      %v10448 = vsel %vm569, %v10358, 0
      %v10451 = vsel %vm569, %v10359, 0
      %v10454 = vsel %vm569, %v10360, 0
      %v10457 = vsel %vm569, %v10361, 0
      %v10460 = vsel %vm569, %v10362, 0
      %v10463 = vsel %vm569, %v10363, 0
      %v10466 = vsel %vm569, %v10364, 0
      %v10469 = vsel %vm569, %v10365, 0
      %v10472 = vsel %vm569, %v10366, 0
      %v10475 = vsel %vm569, %v10367, 0
      %v10478 = vsel %vm569, %v10368, 0
      %v10481 = vsel %vm569, %v10369, 0
      %v10484 = vsel %vm569, %v10370, 0
      %v10487 = vsel %vm569, %v10371, 0
      %v10490 = vsel %vm569, %v10372, 0
      %v10493 = vsel %vm569, %v10373, 0
      %v10496 = vsel %vm569, %v10374, 0
      %v10499 = vsel %vm569, %v10375, 0
      %v10502 = vsel %vm569, %v10376, 0
      %v10505 = vsel %vm569, %v10377, 0
      %v10508 = vsel %vm569, %v10378, 0
      %v10511 = vsel %vm569, %v10379, 0
      %v10514 = vsel %vm569, %v10380, 0
      %v10517 = vsel %vm569, %v10381, 0
      %v10520 = vsel %vm569, %v10382, 0
      %v10523 = vsel %vm569, %v10383, 0
      %v10526 = vsel %vm569, %v10384, 0
      %v10529 = vsel %vm569, %v10385, 0
      %v10532 = vsel %vm569, %v10386, 0
      %v10535 = vsel %vm569, %v10387, 0
      %v10538 = vsel %vm569, %v10388, 0
      %v10541 = vsel %vm569, %v10389, 0
      %v10544 = vsel %vm569, %v10390, 0
      %v10547 = vsel %vm569, %v10391, 0
      %v10550 = vsel %vm569, %v10392, 0
      %v10553 = vsel %vm569, %v10393, 0
      %10555 = vmatprep.subr.mxu0 0.0
      %10556 = vmatpush1.msra.mxu0 0.0
      %10557 = vmatprep.subr.mxu0 0.0
      %10558 = vmatpush1.msra.mxu0 0.0
      %10559 = vmatprep.subr.mxu0 0.0
      %10560 = vmatpush1.msra.mxu0 0.0
      %10561 = vmatprep.subr.mxu0 0.0
      %10562 = vmatpush1.msra.mxu0 0.0
      %10563 = vmatprep.subr.mxu0 0.0
      %10564 = vmatpush1.msra.mxu0 0.0
      %10565 = vmatprep.subr.mxu0 0.0
      %10566 = vmatpush1.msra.mxu0 0.0
      %10567 = vmatprep.subr.mxu0 0.0
      %10568 = vmatpush1.msra.mxu0 0.0
      %10569 = vmatprep.subr.mxu0 0.0
      %10570 = vmatpush1.msra.mxu0 0.0
      %10571 = vmatprep.subr.mxu0 %v10410
      %10572 = vmatpush1.msra.mxu0 %v10409
      %10573 = vmatprep.subr.mxu0 %v10408
      %10574 = vmatpush1.msra.mxu0 %v10407
      %10575 = vmatprep.subr.mxu0 %v10406
      %10576 = vmatpush1.msra.mxu0 %v10405
      %10577 = vmatprep.subr.mxu0 %v10404
      %10578 = vmatpush1.msra.mxu0 %v10403
      %10579 = vmatprep.subr.mxu0 %v10402
      %10580 = vmatpush1.msra.mxu0 %v10401
      %10581 = vmatprep.subr.mxu0 %v10400
      %10582 = vmatpush1.msra.mxu0 %v10399
      %10583 = vmatprep.subr.mxu0 %v10398
      %10584 = vmatpush1.msra.mxu0 %v10397
      %10585 = vmatprep.subr.mxu0 %v10396
      %10586 = vmatpush1.msra.mxu0 %v10395
      %10587 = vmatprep.subr.mxu0 0.0
      %10588 = vmatpush2.msra.mxu0 0.0
      %10589 = vmatprep.subr.mxu0 0.0
      %10590 = vmatpush2.msra.mxu0 0.0
      %10591 = vmatprep.subr.mxu0 0.0
      %10592 = vmatpush2.msra.mxu0 0.0
      %10593 = vmatprep.subr.mxu0 0.0
      %10594 = vmatpush2.msra.mxu0 0.0
      %10595 = vmatprep.subr.mxu0 0.0
      %10596 = vmatpush2.msra.mxu0 0.0
      %10597 = vmatprep.subr.mxu0 0.0
      %10598 = vmatpush2.msra.mxu0 0.0
      %10599 = vmatprep.subr.mxu0 0.0
      %10600 = vmatpush2.msra.mxu0 0.0
      %10601 = vmatprep.subr.mxu0 0.0
      %10602 = vmatpush2.msra.mxu0 0.0
      %10603 = vmatprep.subr.mxu0 0.0
      %10604 = vmatpush2.msra.mxu0 0.0
      %10605 = vmatprep.subr.mxu0 0.0
      %10606 = vmatpush2.msra.mxu0 0.0
      %10607 = vmatprep.subr.mxu0 0.0
      %10608 = vmatpush2.msra.mxu0 0.0
      %10609 = vmatprep.subr.mxu0 0.0
      %10610 = vmatpush2.msra.mxu0 0.0
      %10611 = vmatprep.subr.mxu0 0.0
      %10612 = vmatpush2.msra.mxu0 0.0
      %10613 = vmatprep.subr.mxu0 0.0
      %10614 = vmatpush2.msra.mxu0 0.0
      %10615 = vmatprep.subr.mxu0 0.0
      %10616 = vmatpush2.msra.mxu0 0.0
      %10617 = vmatprep.subr.mxu0 0.0
      %10618 = vmatpush2.msra.mxu0 0.0
      %10619 = vmatprep.mubr.f32.mxu0 0.0
      %10620 = vmatmul.mubr.f32.gmra.mxu0 %v10412
      %v10621 = vpop.f32.mrf.mxu0
      %v10622 = vadd.f32 0.0, %v10621
      %v10623 = vpop.f32.mrf.mxu0
      %v10624 = vadd.f32 0.0, %v10623
      %10625 = vmatprep.mubr.f32.mxu0 0.0
      %10626 = vmatmul.mubr.f32.gmra.mxu0 %v10415
      %v10627 = vpop.f32.mrf.mxu0
      %v10628 = vadd.f32 0.0, %v10627
      %v10629 = vpop.f32.mrf.mxu0
      %v10630 = vadd.f32 0.0, %v10629
      %10631 = vmatprep.mubr.f32.mxu0 0.0
      %10632 = vmatmul.mubr.f32.gmra.mxu0 %v10418
      %v10633 = vpop.f32.mrf.mxu0
      %v10634 = vadd.f32 0.0, %v10633
      %v10635 = vpop.f32.mrf.mxu0
      %v10636 = vadd.f32 0.0, %v10635
      %10637 = vmatprep.mubr.f32.mxu0 0.0
      %10638 = vmatmul.mubr.f32.gmra.mxu0 %v10421
      %v10639 = vpop.f32.mrf.mxu0
      %v10640 = vadd.f32 0.0, %v10639
      %v10641 = vpop.f32.mrf.mxu0
      %v10642 = vadd.f32 0.0, %v10641
      %10643 = vmatprep.mubr.f32.mxu0 0.0
      %10644 = vmatmul.mubr.f32.gmra.mxu0 %v10424
      %v10645 = vpop.f32.mrf.mxu0
      %v10646 = vadd.f32 0.0, %v10645
      %v10647 = vpop.f32.mrf.mxu0
      %v10648 = vadd.f32 0.0, %v10647
      %10649 = vmatprep.mubr.f32.mxu0 0.0
      %10650 = vmatmul.mubr.f32.gmra.mxu0 %v10427
      %v10651 = vpop.f32.mrf.mxu0
      %v10652 = vadd.f32 0.0, %v10651
      %v10653 = vpop.f32.mrf.mxu0
      %v10654 = vadd.f32 0.0, %v10653
      %10655 = vmatprep.mubr.f32.mxu0 0.0
      %10656 = vmatmul.mubr.f32.gmra.mxu0 %v10430
      %v10657 = vpop.f32.mrf.mxu0
      %v10658 = vadd.f32 0.0, %v10657
      %v10659 = vpop.f32.mrf.mxu0
      %v10660 = vadd.f32 0.0, %v10659
      %10661 = vmatprep.mubr.f32.mxu0 0.0
      %10662 = vmatmul.mubr.f32.gmra.mxu0 %v10433
      %v10663 = vpop.f32.mrf.mxu0
      %v10664 = vadd.f32 0.0, %v10663
      %v10665 = vpop.f32.mrf.mxu0
      %v10666 = vadd.f32 0.0, %v10665
      %10667 = vmatprep.mubr.f32.mxu0 0.0
      %10668 = vmatmul.mubr.f32.gmra.mxu0 %v10436
      %v10669 = vpop.f32.mrf.mxu0
      %v10670 = vadd.f32 0.0, %v10669
      %v10671 = vpop.f32.mrf.mxu0
      %v10672 = vadd.f32 0.0, %v10671
      %10673 = vmatprep.mubr.f32.mxu0 0.0
      %10674 = vmatmul.mubr.f32.gmra.mxu0 %v10439
      %v10675 = vpop.f32.mrf.mxu0
      %v10676 = vadd.f32 0.0, %v10675
      %v10677 = vpop.f32.mrf.mxu0
      %v10678 = vadd.f32 0.0, %v10677
      %10679 = vmatprep.mubr.f32.mxu0 0.0
      %10680 = vmatmul.mubr.f32.gmra.mxu0 %v10442
      %v10681 = vpop.f32.mrf.mxu0
      %v10682 = vadd.f32 0.0, %v10681
      %v10683 = vpop.f32.mrf.mxu0
      %v10684 = vadd.f32 0.0, %v10683
      %10685 = vmatprep.mubr.f32.mxu0 0.0
      %10686 = vmatmul.mubr.f32.gmra.mxu0 %v10445
      %v10687 = vpop.f32.mrf.mxu0
      %v10688 = vadd.f32 0.0, %v10687
      %v10689 = vpop.f32.mrf.mxu0
      %v10690 = vadd.f32 0.0, %v10689
      %10691 = vmatprep.mubr.f32.mxu0 0.0
      %10692 = vmatmul.mubr.f32.gmra.mxu0 %v10448
      %v10693 = vpop.f32.mrf.mxu0
      %v10694 = vadd.f32 0.0, %v10693
      %v10695 = vpop.f32.mrf.mxu0
      %v10696 = vadd.f32 0.0, %v10695
      %10697 = vmatprep.mubr.f32.mxu0 0.0
      %10698 = vmatmul.mubr.f32.gmra.mxu0 %v10451
      %v10699 = vpop.f32.mrf.mxu0
      %v10700 = vadd.f32 0.0, %v10699
      %v10701 = vpop.f32.mrf.mxu0
      %v10702 = vadd.f32 0.0, %v10701
      %10703 = vmatprep.mubr.f32.mxu0 0.0
      %10704 = vmatmul.mubr.f32.gmra.mxu0 %v10454
      %v10705 = vpop.f32.mrf.mxu0
      %v10706 = vadd.f32 0.0, %v10705
      %v10707 = vpop.f32.mrf.mxu0
      %v10708 = vadd.f32 0.0, %v10707
      %10709 = vmatprep.mubr.f32.mxu0 0.0
      %10710 = vmatmul.mubr.f32.gmra.mxu0 %v10457
      %v10711 = vpop.f32.mrf.mxu0
      %v10712 = vadd.f32 0.0, %v10711
      %v10713 = vpop.f32.mrf.mxu0
      %v10714 = vadd.f32 0.0, %v10713
      %10715 = vmatprep.mubr.f32.mxu0 0.0
      %10716 = vmatmul.mubr.f32.gmra.mxu0 %v10460
      %v10717 = vpop.f32.mrf.mxu0
      %v10718 = vadd.f32 0.0, %v10717
      %v10719 = vpop.f32.mrf.mxu0
      %v10720 = vadd.f32 0.0, %v10719
      %10721 = vmatprep.mubr.f32.mxu0 0.0
      %10722 = vmatmul.mubr.f32.gmra.mxu0 %v10463
      %v10723 = vpop.f32.mrf.mxu0
      %v10724 = vadd.f32 0.0, %v10723
      %v10725 = vpop.f32.mrf.mxu0
      %v10726 = vadd.f32 0.0, %v10725
      %10727 = vmatprep.mubr.f32.mxu0 0.0
      %10728 = vmatmul.mubr.f32.gmra.mxu0 %v10466
      %v10729 = vpop.f32.mrf.mxu0
      %v10730 = vadd.f32 0.0, %v10729
      %v10731 = vpop.f32.mrf.mxu0
      %v10732 = vadd.f32 0.0, %v10731
      %10733 = vmatprep.mubr.f32.mxu0 0.0
      %10734 = vmatmul.mubr.f32.gmra.mxu0 %v10469
      %v10735 = vpop.f32.mrf.mxu0
      %v10736 = vadd.f32 0.0, %v10735
      %v10737 = vpop.f32.mrf.mxu0
      %v10738 = vadd.f32 0.0, %v10737
      %10739 = vmatprep.mubr.f32.mxu0 0.0
      %10740 = vmatmul.mubr.f32.gmra.mxu0 %v10472
      %v10741 = vpop.f32.mrf.mxu0
      %v10742 = vadd.f32 0.0, %v10741
      %v10743 = vpop.f32.mrf.mxu0
      %v10744 = vadd.f32 0.0, %v10743
      %10745 = vmatprep.mubr.f32.mxu0 0.0
      %10746 = vmatmul.mubr.f32.gmra.mxu0 %v10475
      %v10747 = vpop.f32.mrf.mxu0
      %v10748 = vadd.f32 0.0, %v10747
      %v10749 = vpop.f32.mrf.mxu0
      %v10750 = vadd.f32 0.0, %v10749
      %10751 = vmatprep.mubr.f32.mxu0 0.0
      %10752 = vmatmul.mubr.f32.gmra.mxu0 %v10478
      %v10753 = vpop.f32.mrf.mxu0
      %v10754 = vadd.f32 0.0, %v10753
      %v10755 = vpop.f32.mrf.mxu0
      %v10756 = vadd.f32 0.0, %v10755
      %10757 = vmatprep.mubr.f32.mxu0 0.0
      %10758 = vmatmul.mubr.f32.gmra.mxu0 %v10481
      %v10759 = vpop.f32.mrf.mxu0
      %v10760 = vadd.f32 0.0, %v10759
      %v10761 = vpop.f32.mrf.mxu0
      %v10762 = vadd.f32 0.0, %v10761
      %10763 = vmatprep.mubr.f32.mxu0 0.0
      %10764 = vmatmul.mubr.f32.gmra.mxu0 %v10484
      %v10765 = vpop.f32.mrf.mxu0
      %v10766 = vadd.f32 0.0, %v10765
      %v10767 = vpop.f32.mrf.mxu0
      %v10768 = vadd.f32 0.0, %v10767
      %10769 = vmatprep.mubr.f32.mxu0 0.0
      %10770 = vmatmul.mubr.f32.gmra.mxu0 %v10487
      %v10771 = vpop.f32.mrf.mxu0
      %v10772 = vadd.f32 0.0, %v10771
      %v10773 = vpop.f32.mrf.mxu0
      %v10774 = vadd.f32 0.0, %v10773
      %10775 = vmatprep.mubr.f32.mxu0 0.0
      %10776 = vmatmul.mubr.f32.gmra.mxu0 %v10490
      %v10777 = vpop.f32.mrf.mxu0
      %v10778 = vadd.f32 0.0, %v10777
      %v10779 = vpop.f32.mrf.mxu0
      %v10780 = vadd.f32 0.0, %v10779
      %10781 = vmatprep.mubr.f32.mxu0 0.0
      %10782 = vmatmul.mubr.f32.gmra.mxu0 %v10493
      %v10783 = vpop.f32.mrf.mxu0
      %v10784 = vadd.f32 0.0, %v10783
      %v10785 = vpop.f32.mrf.mxu0
      %v10786 = vadd.f32 0.0, %v10785
      %10787 = vmatprep.mubr.f32.mxu0 0.0
      %10788 = vmatmul.mubr.f32.gmra.mxu0 %v10496
      %v10789 = vpop.f32.mrf.mxu0
      %v10790 = vadd.f32 0.0, %v10789
      %v10791 = vpop.f32.mrf.mxu0
      %v10792 = vadd.f32 0.0, %v10791
      %10793 = vmatprep.mubr.f32.mxu0 0.0
      %10794 = vmatmul.mubr.f32.gmra.mxu0 %v10499
      %v10795 = vpop.f32.mrf.mxu0
      %v10796 = vadd.f32 0.0, %v10795
      %v10797 = vpop.f32.mrf.mxu0
      %v10798 = vadd.f32 0.0, %v10797
      %10799 = vmatprep.mubr.f32.mxu0 0.0
      %10800 = vmatmul.mubr.f32.gmra.mxu0 %v10502
      %v10801 = vpop.f32.mrf.mxu0
      %v10802 = vadd.f32 0.0, %v10801
      %v10803 = vpop.f32.mrf.mxu0
      %v10804 = vadd.f32 0.0, %v10803
      %10805 = vmatprep.mubr.f32.mxu0 0.0
      %10806 = vmatmul.mubr.f32.gmra.mxu0 %v10505
      %v10807 = vpop.f32.mrf.mxu0
      %v10808 = vadd.f32 0.0, %v10807
      %v10809 = vpop.f32.mrf.mxu0
      %v10810 = vadd.f32 0.0, %v10809
      %10811 = vmatprep.mubr.f32.mxu0 0.0
      %10812 = vmatmul.mubr.f32.gmra.mxu0 %v10508
      %v10813 = vpop.f32.mrf.mxu0
      %v10814 = vadd.f32 0.0, %v10813
      %v10815 = vpop.f32.mrf.mxu0
      %v10816 = vadd.f32 0.0, %v10815
      %10817 = vmatprep.mubr.f32.mxu0 0.0
      %10818 = vmatmul.mubr.f32.gmra.mxu0 %v10511
      %v10819 = vpop.f32.mrf.mxu0
      %v10820 = vadd.f32 0.0, %v10819
      %v10821 = vpop.f32.mrf.mxu0
      %v10822 = vadd.f32 0.0, %v10821
      %10823 = vmatprep.mubr.f32.mxu0 0.0
      %10824 = vmatmul.mubr.f32.gmra.mxu0 %v10514
      %v10825 = vpop.f32.mrf.mxu0
      %v10826 = vadd.f32 0.0, %v10825
      %v10827 = vpop.f32.mrf.mxu0
      %v10828 = vadd.f32 0.0, %v10827
      %10829 = vmatprep.mubr.f32.mxu0 0.0
      %10830 = vmatmul.mubr.f32.gmra.mxu0 %v10517
      %v10831 = vpop.f32.mrf.mxu0
      %v10832 = vadd.f32 0.0, %v10831
      %v10833 = vpop.f32.mrf.mxu0
      %v10834 = vadd.f32 0.0, %v10833
      %10835 = vmatprep.mubr.f32.mxu0 0.0
      %10836 = vmatmul.mubr.f32.gmra.mxu0 %v10520
      %v10837 = vpop.f32.mrf.mxu0
      %v10838 = vadd.f32 0.0, %v10837
      %v10839 = vpop.f32.mrf.mxu0
      %v10840 = vadd.f32 0.0, %v10839
      %10841 = vmatprep.mubr.f32.mxu0 0.0
      %10842 = vmatmul.mubr.f32.gmra.mxu0 %v10523
      %v10843 = vpop.f32.mrf.mxu0
      %v10844 = vadd.f32 0.0, %v10843
      %v10845 = vpop.f32.mrf.mxu0
      %v10846 = vadd.f32 0.0, %v10845
      %10847 = vmatprep.mubr.f32.mxu0 0.0
      %10848 = vmatmul.mubr.f32.gmra.mxu0 %v10526
      %v10849 = vpop.f32.mrf.mxu0
      %v10850 = vadd.f32 0.0, %v10849
      %v10851 = vpop.f32.mrf.mxu0
      %v10852 = vadd.f32 0.0, %v10851
      %10853 = vmatprep.mubr.f32.mxu0 0.0
      %10854 = vmatmul.mubr.f32.gmra.mxu0 %v10529
      %v10855 = vpop.f32.mrf.mxu0
      %v10856 = vadd.f32 0.0, %v10855
      %v10857 = vpop.f32.mrf.mxu0
      %v10858 = vadd.f32 0.0, %v10857
      %10859 = vmatprep.mubr.f32.mxu0 0.0
      %10860 = vmatmul.mubr.f32.gmra.mxu0 %v10532
      %v10861 = vpop.f32.mrf.mxu0
      %v10862 = vadd.f32 0.0, %v10861
      %v10863 = vpop.f32.mrf.mxu0
      %v10864 = vadd.f32 0.0, %v10863
      %10865 = vmatprep.mubr.f32.mxu0 0.0
      %10866 = vmatmul.mubr.f32.gmra.mxu0 %v10535
      %v10867 = vpop.f32.mrf.mxu0
      %v10868 = vadd.f32 0.0, %v10867
      %v10869 = vpop.f32.mrf.mxu0
      %v10870 = vadd.f32 0.0, %v10869
      %10871 = vmatprep.mubr.f32.mxu0 0.0
      %10872 = vmatmul.mubr.f32.gmra.mxu0 %v10538
      %v10873 = vpop.f32.mrf.mxu0
      %v10874 = vadd.f32 0.0, %v10873
      %v10875 = vpop.f32.mrf.mxu0
      %v10876 = vadd.f32 0.0, %v10875
      %10877 = vmatprep.mubr.f32.mxu0 0.0
      %10878 = vmatmul.mubr.f32.gmra.mxu0 %v10541
      %v10879 = vpop.f32.mrf.mxu0
      %v10880 = vadd.f32 0.0, %v10879
      %v10881 = vpop.f32.mrf.mxu0
      %v10882 = vadd.f32 0.0, %v10881
      %10883 = vmatprep.mubr.f32.mxu0 0.0
      %10884 = vmatmul.mubr.f32.gmra.mxu0 %v10544
      %v10885 = vpop.f32.mrf.mxu0
      %v10886 = vadd.f32 0.0, %v10885
      %v10887 = vpop.f32.mrf.mxu0
      %v10888 = vadd.f32 0.0, %v10887
      %10889 = vmatprep.mubr.f32.mxu0 0.0
      %10890 = vmatmul.mubr.f32.gmra.mxu0 %v10547
      %v10891 = vpop.f32.mrf.mxu0
      %v10892 = vadd.f32 0.0, %v10891
      %v10893 = vpop.f32.mrf.mxu0
      %v10894 = vadd.f32 0.0, %v10893
      %10895 = vmatprep.mubr.f32.mxu0 0.0
      %10896 = vmatmul.mubr.f32.gmra.mxu0 %v10550
      %v10897 = vpop.f32.mrf.mxu0
      %v10898 = vadd.f32 0.0, %v10897
      %v10899 = vpop.f32.mrf.mxu0
      %v10900 = vadd.f32 0.0, %v10899
      %10901 = vmatprep.mubr.f32.mxu0 0.0
      %10902 = vmatmul.mubr.f32.gmra.mxu0 %v10553
      %v10903 = vpop.f32.mrf.mxu0
      %v10904 = vadd.f32 0.0, %v10903
      %v10905 = vpop.f32.mrf.mxu0
      %v10906 = vadd.f32 0.0, %v10905
      %10907 = vdwg.mxu0
      %v10908 = vadd.f32 %v10314, %v10622
      %v10909 = vadd.f32 %v10315, %v10628
      %v10910 = vadd.f32 %v10316, %v10640
      %v10911 = vadd.f32 %v10317, %v10646
      %v10912 = vadd.f32 %v10318, %v10658
      %v10913 = vadd.f32 %v10319, %v10664
      %v10914 = vadd.f32 %v10320, %v10676
      %v10915 = vadd.f32 %v10321, %v10682
      %v10916 = vadd.f32 %v10322, %v10694
      %v10917 = vadd.f32 %v10323, %v10700
      %v10918 = vadd.f32 %v10324, %v10712
      %v10919 = vadd.f32 %v10325, %v10718
      %v10920 = vadd.f32 %v10326, %v10730
      %v10921 = vadd.f32 %v10327, %v10736
      %v10922 = vadd.f32 %v10328, %v10748
      %v10923 = vadd.f32 %v10329, %v10754
      %v10924 = vadd.f32 %v10330, %v10766
      %v10925 = vadd.f32 %v10331, %v10772
      %v10926 = vadd.f32 %v10332, %v10784
      %v10927 = vadd.f32 %v10333, %v10790
      %v10928 = vadd.f32 %v10334, %v10802
      %v10929 = vadd.f32 %v10335, %v10808
      %v10930 = vadd.f32 %v10336, %v10820
      %v10931 = vadd.f32 %v10337, %v10826
      %v10932 = vadd.f32 %v10338, %v10838
      %v10933 = vadd.f32 %v10339, %v10844
      %v10934 = vadd.f32 %v10340, %v10856
      %v10935 = vadd.f32 %v10341, %v10862
      %v10936 = vadd.f32 %v10342, %v10874
      %v10937 = vadd.f32 %v10343, %v10880
      %v10938 = vadd.f32 %v10344, %v10892
      %v10939 = vadd.f32 %v10345, %v10898
      %v10988 = vrot.slane %v10622, 1
      %v10989 = vrot.slane %v10628, 1
      %v10990 = vsel %vm2445, %v10988, %v10989
      %v10991 = vrot.slane %v10634, 1
      %v10992 = vsel %vm2445, %v10989, %v10991
      %v10993 = vrot.slane %v10640, 1
      %v10994 = vrot.slane %v10646, 1
      %v10995 = vsel %vm2445, %v10993, %v10994
      %v10996 = vrot.slane %v10652, 1
      %v10997 = vsel %vm2445, %v10994, %v10996
      %v10998 = vrot.slane %v10658, 1
      %v10999 = vrot.slane %v10664, 1
      %v11000 = vsel %vm2445, %v10998, %v10999
      %v11001 = vrot.slane %v10670, 1
      %v11002 = vsel %vm2445, %v10999, %v11001
      %v11003 = vrot.slane %v10676, 1
      %v11004 = vrot.slane %v10682, 1
      %v11005 = vsel %vm2445, %v11003, %v11004
      %v11006 = vrot.slane %v10688, 1
      %v11007 = vsel %vm2445, %v11004, %v11006
      %v11008 = vrot.slane %v10694, 1
      %v11009 = vrot.slane %v10700, 1
      %v11010 = vsel %vm2445, %v11008, %v11009
      %v11011 = vrot.slane %v10706, 1
      %v11012 = vsel %vm2445, %v11009, %v11011
      %v11013 = vrot.slane %v10712, 1
      %v11014 = vrot.slane %v10718, 1
      %v11015 = vsel %vm2445, %v11013, %v11014
      %v11016 = vrot.slane %v10724, 1
      %v11017 = vsel %vm2445, %v11014, %v11016
      %v11018 = vrot.slane %v10730, 1
      %v11019 = vrot.slane %v10736, 1
      %v11020 = vsel %vm2445, %v11018, %v11019
      %v11021 = vrot.slane %v10742, 1
      %v11022 = vsel %vm2445, %v11019, %v11021
      %v11023 = vrot.slane %v10748, 1
      %v11024 = vrot.slane %v10754, 1
      %v11025 = vsel %vm2445, %v11023, %v11024
      %v11026 = vrot.slane %v10760, 1
      %v11027 = vsel %vm2445, %v11024, %v11026
      %v11028 = vrot.slane %v10766, 1
      %v11029 = vrot.slane %v10772, 1
      %v11030 = vsel %vm2445, %v11028, %v11029
      %v11031 = vrot.slane %v10778, 1
      %v11032 = vsel %vm2445, %v11029, %v11031
      %v11033 = vrot.slane %v10784, 1
      %v11034 = vrot.slane %v10790, 1
      %v11035 = vsel %vm2445, %v11033, %v11034
      %v11036 = vrot.slane %v10796, 1
      %v11037 = vsel %vm2445, %v11034, %v11036
      %v11038 = vrot.slane %v10802, 1
      %v11039 = vrot.slane %v10808, 1
      %v11040 = vsel %vm2445, %v11038, %v11039
      %v11041 = vrot.slane %v10814, 1
      %v11042 = vsel %vm2445, %v11039, %v11041
      %v11043 = vrot.slane %v10820, 1
      %v11044 = vrot.slane %v10826, 1
      %v11045 = vsel %vm2445, %v11043, %v11044
      %v11046 = vrot.slane %v10832, 1
      %v11047 = vsel %vm2445, %v11044, %v11046
      %v11048 = vrot.slane %v10838, 1
      %v11049 = vrot.slane %v10844, 1
      %v11050 = vsel %vm2445, %v11048, %v11049
      %v11051 = vrot.slane %v10850, 1
      %v11052 = vsel %vm2445, %v11049, %v11051
      %v11053 = vrot.slane %v10856, 1
      %v11054 = vrot.slane %v10862, 1
      %v11055 = vsel %vm2445, %v11053, %v11054
      %v11056 = vrot.slane %v10868, 1
      %v11057 = vsel %vm2445, %v11054, %v11056
      %v11058 = vrot.slane %v10874, 1
      %v11059 = vrot.slane %v10880, 1
      %v11060 = vsel %vm2445, %v11058, %v11059
      %v11061 = vrot.slane %v10886, 1
      %v11062 = vsel %vm2445, %v11059, %v11061
      %v11063 = vrot.slane %v10892, 1
      %v11064 = vrot.slane %v10898, 1
      %v11065 = vsel %vm2445, %v11063, %v11064
      %v11066 = vrot.slane %v10904, 1
      %v11067 = vsel %vm2445, %v11064, %v11066
      %11068 = vrot.lane.b32.xlu0 %v10990, 64
      %v11069 = vpop.permute.xlu0 %11068
      %11070 = vrot.lane.b32.xlu0 %v10992, 64
      %v11071 = vpop.permute.xlu0 %11070
      %11072 = vrot.lane.b32.xlu0 %v10995, 64
      %v11073 = vpop.permute.xlu0 %11072
      %11074 = vrot.lane.b32.xlu0 %v10997, 64
      %v11075 = vpop.permute.xlu0 %11074
      %11076 = vrot.lane.b32.xlu0 %v11000, 64
      %v11077 = vpop.permute.xlu0 %11076
      %11078 = vrot.lane.b32.xlu0 %v11002, 64
      %v11079 = vpop.permute.xlu0 %11078
      %11080 = vrot.lane.b32.xlu0 %v11005, 64
      %v11081 = vpop.permute.xlu0 %11080
      %11082 = vrot.lane.b32.xlu0 %v11007, 64
      %v11083 = vpop.permute.xlu0 %11082
      %11084 = vrot.lane.b32.xlu0 %v11010, 64
      %v11085 = vpop.permute.xlu0 %11084
      %11086 = vrot.lane.b32.xlu0 %v11012, 64
      %v11087 = vpop.permute.xlu0 %11086
      %11088 = vrot.lane.b32.xlu0 %v11015, 64
      %v11089 = vpop.permute.xlu0 %11088
      %11090 = vrot.lane.b32.xlu0 %v11017, 64
      %v11091 = vpop.permute.xlu0 %11090
      %11092 = vrot.lane.b32.xlu0 %v11020, 64
      %v11093 = vpop.permute.xlu0 %11092
      %11094 = vrot.lane.b32.xlu0 %v11022, 64
      %v11095 = vpop.permute.xlu0 %11094
      %11096 = vrot.lane.b32.xlu0 %v11025, 64
      %v11097 = vpop.permute.xlu0 %11096
      %11098 = vrot.lane.b32.xlu0 %v11027, 64
      %v11099 = vpop.permute.xlu0 %11098
      %11100 = vrot.lane.b32.xlu0 %v11030, 64
      %v11101 = vpop.permute.xlu0 %11100
      %11102 = vrot.lane.b32.xlu0 %v11032, 64
      %v11103 = vpop.permute.xlu0 %11102
      %11104 = vrot.lane.b32.xlu0 %v11035, 64
      %v11105 = vpop.permute.xlu0 %11104
      %11106 = vrot.lane.b32.xlu0 %v11037, 64
      %v11107 = vpop.permute.xlu0 %11106
      %11108 = vrot.lane.b32.xlu0 %v11040, 64
      %v11109 = vpop.permute.xlu0 %11108
      %11110 = vrot.lane.b32.xlu0 %v11042, 64
      %v11111 = vpop.permute.xlu0 %11110
      %11112 = vrot.lane.b32.xlu0 %v11045, 64
      %v11113 = vpop.permute.xlu0 %11112
      %11114 = vrot.lane.b32.xlu0 %v11047, 64
      %v11115 = vpop.permute.xlu0 %11114
      %11116 = vrot.lane.b32.xlu0 %v11050, 64
      %v11117 = vpop.permute.xlu0 %11116
      %11118 = vrot.lane.b32.xlu0 %v11052, 64
      %v11119 = vpop.permute.xlu0 %11118
      %11120 = vrot.lane.b32.xlu0 %v11055, 64
      %v11121 = vpop.permute.xlu0 %11120
      %11122 = vrot.lane.b32.xlu0 %v11057, 64
      %v11123 = vpop.permute.xlu0 %11122
      %11124 = vrot.lane.b32.xlu0 %v11060, 64
      %v11125 = vpop.permute.xlu0 %11124
      %11126 = vrot.lane.b32.xlu0 %v11062, 64
      %v11127 = vpop.permute.xlu0 %11126
      %11128 = vrot.lane.b32.xlu0 %v11065, 64
      %v11129 = vpop.permute.xlu0 %11128
      %11130 = vrot.lane.b32.xlu0 %v11067, 64
      %v11131 = vpop.permute.xlu0 %11130
      %v11164 = vadd.f32 %v10908, %v11069
      %v11165 = vadd.f32 %v10909, %v11071
      %v11166 = vadd.f32 %v10910, %v11073
      %v11167 = vadd.f32 %v10911, %v11075
      %v11168 = vadd.f32 %v10912, %v11077
      %v11169 = vadd.f32 %v10913, %v11079
      %v11170 = vadd.f32 %v10914, %v11081
      %v11171 = vadd.f32 %v10915, %v11083
      %v11172 = vadd.f32 %v10916, %v11085
      %v11173 = vadd.f32 %v10917, %v11087
      %v11174 = vadd.f32 %v10918, %v11089
      %v11175 = vadd.f32 %v10919, %v11091
      %v11176 = vadd.f32 %v10920, %v11093
      %v11177 = vadd.f32 %v10921, %v11095
      %v11178 = vadd.f32 %v10922, %v11097
      %v11179 = vadd.f32 %v10923, %v11099
      %v11180 = vadd.f32 %v10924, %v11101
      %v11181 = vadd.f32 %v10925, %v11103
      %v11182 = vadd.f32 %v10926, %v11105
      %v11183 = vadd.f32 %v10927, %v11107
      %v11184 = vadd.f32 %v10928, %v11109
      %v11185 = vadd.f32 %v10929, %v11111
      %v11186 = vadd.f32 %v10930, %v11113
      %v11187 = vadd.f32 %v10931, %v11115
      %v11188 = vadd.f32 %v10932, %v11117
      %v11189 = vadd.f32 %v10933, %v11119
      %v11190 = vadd.f32 %v10934, %v11121
      %v11191 = vadd.f32 %v10935, %v11123
      %v11192 = vadd.f32 %v10936, %v11125
      %v11193 = vadd.f32 %v10937, %v11127
      %v11194 = vadd.f32 %v10938, %v11129
      %v11195 = vadd.f32 %v10939, %v11131
      %v11244 = vrot.slane %v10624, 2
      %v11245 = vrot.slane %v10630, 2
      %v11246 = vsel %vm2702, %v11244, %v11245
      %v11247 = vrot.slane %v10636, 2
      %v11248 = vsel %vm2702, %v11245, %v11247
      %v11249 = vrot.slane %v10642, 2
      %v11250 = vrot.slane %v10648, 2
      %v11251 = vsel %vm2702, %v11249, %v11250
      %v11252 = vrot.slane %v10654, 2
      %v11253 = vsel %vm2702, %v11250, %v11252
      %v11254 = vrot.slane %v10660, 2
      %v11255 = vrot.slane %v10666, 2
      %v11256 = vsel %vm2702, %v11254, %v11255
      %v11257 = vrot.slane %v10672, 2
      %v11258 = vsel %vm2702, %v11255, %v11257
      %v11259 = vrot.slane %v10678, 2
      %v11260 = vrot.slane %v10684, 2
      %v11261 = vsel %vm2702, %v11259, %v11260
      %v11262 = vrot.slane %v10690, 2
      %v11263 = vsel %vm2702, %v11260, %v11262
      %v11264 = vrot.slane %v10696, 2
      %v11265 = vrot.slane %v10702, 2
      %v11266 = vsel %vm2702, %v11264, %v11265
      %v11267 = vrot.slane %v10708, 2
      %v11268 = vsel %vm2702, %v11265, %v11267
      %v11269 = vrot.slane %v10714, 2
      %v11270 = vrot.slane %v10720, 2
      %v11271 = vsel %vm2702, %v11269, %v11270
      %v11272 = vrot.slane %v10726, 2
      %v11273 = vsel %vm2702, %v11270, %v11272
      %v11274 = vrot.slane %v10732, 2
      %v11275 = vrot.slane %v10738, 2
      %v11276 = vsel %vm2702, %v11274, %v11275
      %v11277 = vrot.slane %v10744, 2
      %v11278 = vsel %vm2702, %v11275, %v11277
      %v11279 = vrot.slane %v10750, 2
      %v11280 = vrot.slane %v10756, 2
      %v11281 = vsel %vm2702, %v11279, %v11280
      %v11282 = vrot.slane %v10762, 2
      %v11283 = vsel %vm2702, %v11280, %v11282
      %v11284 = vrot.slane %v10768, 2
      %v11285 = vrot.slane %v10774, 2
      %v11286 = vsel %vm2702, %v11284, %v11285
      %v11287 = vrot.slane %v10780, 2
      %v11288 = vsel %vm2702, %v11285, %v11287
      %v11289 = vrot.slane %v10786, 2
      %v11290 = vrot.slane %v10792, 2
      %v11291 = vsel %vm2702, %v11289, %v11290
      %v11292 = vrot.slane %v10798, 2
      %v11293 = vsel %vm2702, %v11290, %v11292
      %v11294 = vrot.slane %v10804, 2
      %v11295 = vrot.slane %v10810, 2
      %v11296 = vsel %vm2702, %v11294, %v11295
      %v11297 = vrot.slane %v10816, 2
      %v11298 = vsel %vm2702, %v11295, %v11297
      %v11299 = vrot.slane %v10822, 2
      %v11300 = vrot.slane %v10828, 2
      %v11301 = vsel %vm2702, %v11299, %v11300
      %v11302 = vrot.slane %v10834, 2
      %v11303 = vsel %vm2702, %v11300, %v11302
      %v11304 = vrot.slane %v10840, 2
      %v11305 = vrot.slane %v10846, 2
      %v11306 = vsel %vm2702, %v11304, %v11305
      %v11307 = vrot.slane %v10852, 2
      %v11308 = vsel %vm2702, %v11305, %v11307
      %v11309 = vrot.slane %v10858, 2
      %v11310 = vrot.slane %v10864, 2
      %v11311 = vsel %vm2702, %v11309, %v11310
      %v11312 = vrot.slane %v10870, 2
      %v11313 = vsel %vm2702, %v11310, %v11312
      %v11314 = vrot.slane %v10876, 2
      %v11315 = vrot.slane %v10882, 2
      %v11316 = vsel %vm2702, %v11314, %v11315
      %v11317 = vrot.slane %v10888, 2
      %v11318 = vsel %vm2702, %v11315, %v11317
      %v11319 = vrot.slane %v10894, 2
      %v11320 = vrot.slane %v10900, 2
      %v11321 = vsel %vm2702, %v11319, %v11320
      %v11322 = vrot.slane %v10906, 2
      %v11323 = vsel %vm2702, %v11320, %v11322
      %v11356 = vadd.f32 %v11164, %v11246
      %v11357 = vadd.f32 %v11165, %v11248
      %v11358 = vadd.f32 %v11166, %v11251
      %v11359 = vadd.f32 %v11167, %v11253
      %v11360 = vadd.f32 %v11168, %v11256
      %v11361 = vadd.f32 %v11169, %v11258
      %v11362 = vadd.f32 %v11170, %v11261
      %v11363 = vadd.f32 %v11171, %v11263
      %v11364 = vadd.f32 %v11172, %v11266
      %v11365 = vadd.f32 %v11173, %v11268
      %v11366 = vadd.f32 %v11174, %v11271
      %v11367 = vadd.f32 %v11175, %v11273
      %v11368 = vadd.f32 %v11176, %v11276
      %v11369 = vadd.f32 %v11177, %v11278
      %v11370 = vadd.f32 %v11178, %v11281
      %v11371 = vadd.f32 %v11179, %v11283
      %v11372 = vadd.f32 %v11180, %v11286
      %v11373 = vadd.f32 %v11181, %v11288
      %v11374 = vadd.f32 %v11182, %v11291
      %v11375 = vadd.f32 %v11183, %v11293
      %v11376 = vadd.f32 %v11184, %v11296
      %v11377 = vadd.f32 %v11185, %v11298
      %v11378 = vadd.f32 %v11186, %v11301
      %v11379 = vadd.f32 %v11187, %v11303
      %v11380 = vadd.f32 %v11188, %v11306
      %v11381 = vadd.f32 %v11189, %v11308
      %v11382 = vadd.f32 %v11190, %v11311
      %v11383 = vadd.f32 %v11191, %v11313
      %v11384 = vadd.f32 %v11192, %v11316
      %v11385 = vadd.f32 %v11193, %v11318
      %v11386 = vadd.f32 %v11194, %v11321
      %v11387 = vadd.f32 %v11195, %v11323
      %v11388 = vld [vmem:[%s12] sm:$0x1]
      %v11390 = vlaneseq
      %v11391 = vshrl.u32 %v11390, 7
      %v11392 = vsub.s32 0, %v11391
      %v11393 = vrot.slane %v11388, %v11392
      %v11395 = vadd.f32 %v11356, %v11393
      %v11396 = vadd.f32 %v11357, %v11393
      %v11397 = vadd.f32 %v11358, %v11393
      %v11398 = vadd.f32 %v11359, %v11393
      %v11399 = vadd.f32 %v11360, %v11393
      %v11400 = vadd.f32 %v11361, %v11393
      %v11401 = vadd.f32 %v11362, %v11393
      %v11402 = vadd.f32 %v11363, %v11393
      %v11403 = vadd.f32 %v11364, %v11393
      %v11404 = vadd.f32 %v11365, %v11393
      %v11405 = vadd.f32 %v11366, %v11393
      %v11406 = vadd.f32 %v11367, %v11393
      %v11407 = vadd.f32 %v11368, %v11393
      %v11408 = vadd.f32 %v11369, %v11393
      %v11409 = vadd.f32 %v11370, %v11393
      %v11410 = vadd.f32 %v11371, %v11393
      %v11411 = vadd.f32 %v11372, %v11393
      %v11412 = vadd.f32 %v11373, %v11393
      %v11413 = vadd.f32 %v11374, %v11393
      %v11414 = vadd.f32 %v11375, %v11393
      %v11415 = vadd.f32 %v11376, %v11393
      %v11416 = vadd.f32 %v11377, %v11393
      %v11417 = vadd.f32 %v11378, %v11393
      %v11418 = vadd.f32 %v11379, %v11393
      %v11419 = vadd.f32 %v11380, %v11393
      %v11420 = vadd.f32 %v11381, %v11393
      %v11421 = vadd.f32 %v11382, %v11393
      %v11422 = vadd.f32 %v11383, %v11393
      %v11423 = vadd.f32 %v11384, %v11393
      %v11424 = vadd.f32 %v11385, %v11393
      %v11425 = vadd.f32 %v11386, %v11393
      %v11426 = vadd.f32 %v11387, %v11393
      %v11427 = vmax.f32 %v11395, 0.0
      %v11428 = vmax.f32 %v11396, 0.0
      %v11429 = vmax.f32 %v11397, 0.0
      %v11430 = vmax.f32 %v11398, 0.0
      %v11431 = vmax.f32 %v11399, 0.0
      %v11432 = vmax.f32 %v11400, 0.0
      %v11433 = vmax.f32 %v11401, 0.0
      %v11434 = vmax.f32 %v11402, 0.0
      %v11435 = vmax.f32 %v11403, 0.0
      %v11436 = vmax.f32 %v11404, 0.0
      %v11437 = vmax.f32 %v11405, 0.0
      %v11438 = vmax.f32 %v11406, 0.0
      %v11439 = vmax.f32 %v11407, 0.0
      %v11440 = vmax.f32 %v11408, 0.0
      %v11441 = vmax.f32 %v11409, 0.0
      %v11442 = vmax.f32 %v11410, 0.0
      %v11443 = vmax.f32 %v11411, 0.0
      %v11444 = vmax.f32 %v11412, 0.0
      %v11445 = vmax.f32 %v11413, 0.0
      %v11446 = vmax.f32 %v11414, 0.0
      %v11447 = vmax.f32 %v11415, 0.0
      %v11448 = vmax.f32 %v11416, 0.0
      %v11449 = vmax.f32 %v11417, 0.0
      %v11450 = vmax.f32 %v11418, 0.0
      %v11451 = vmax.f32 %v11419, 0.0
      %v11452 = vmax.f32 %v11420, 0.0
      %v11453 = vmax.f32 %v11421, 0.0
      %v11454 = vmax.f32 %v11422, 0.0
      %v11455 = vmax.f32 %v11423, 0.0
      %v11456 = vmax.f32 %v11424, 0.0
      %v11457 = vmax.f32 %v11425, 0.0
      %v11458 = vmax.f32 %v11426, 0.0
      %v11459 = vld [vmem:[%s13] sm:$0xff]
      %v11460 = vld [vmem:[%s13 + $0x8] sm:$0xff]
      %v11461 = vld [vmem:[%s13 + $0x10] sm:$0xff]
      %v11462 = vld [vmem:[%s13 + $0x18] sm:$0xff]
      %v11463 = vld [vmem:[%s13 + $0x20] sm:$0xff]
      %v11464 = vld [vmem:[%s13 + $0x28] sm:$0xff]
      %v11465 = vld [vmem:[%s13 + $0x30] sm:$0xff]
      %v11466 = vld [vmem:[%s13 + $0x38] sm:$0xff]
      %v11467 = vld [vmem:[%s14] sm:$0x1]
      %v11469 = vlaneseq
      %v11470 = vshrl.u32 %v11469, 7
      %v11471 = vsub.s32 0, %v11470
      %v11472 = vrot.slane %v11467, %v11471
      %v11475 = vsel %vm569, %v11427, 0
      %v11478 = vsel %vm569, %v11428, 0
      %v11481 = vsel %vm569, %v11429, 0
      %v11484 = vsel %vm569, %v11430, 0
      %v11487 = vsel %vm569, %v11431, 0
      %v11490 = vsel %vm569, %v11432, 0
      %v11493 = vsel %vm569, %v11433, 0
      %v11496 = vsel %vm569, %v11434, 0
      %v11499 = vsel %vm569, %v11435, 0
      %v11502 = vsel %vm569, %v11436, 0
      %v11505 = vsel %vm569, %v11437, 0
      %v11508 = vsel %vm569, %v11438, 0
      %v11511 = vsel %vm569, %v11439, 0
      %v11514 = vsel %vm569, %v11440, 0
      %v11517 = vsel %vm569, %v11441, 0
      %v11520 = vsel %vm569, %v11442, 0
      %v11523 = vsel %vm569, %v11443, 0
      %v11526 = vsel %vm569, %v11444, 0
      %v11529 = vsel %vm569, %v11445, 0
      %v11532 = vsel %vm569, %v11446, 0
      %v11535 = vsel %vm569, %v11447, 0
      %v11538 = vsel %vm569, %v11448, 0
      %v11541 = vsel %vm569, %v11449, 0
      %v11544 = vsel %vm569, %v11450, 0
      %v11547 = vsel %vm569, %v11451, 0
      %v11550 = vsel %vm569, %v11452, 0
      %v11553 = vsel %vm569, %v11453, 0
      %v11556 = vsel %vm569, %v11454, 0
      %v11559 = vsel %vm569, %v11455, 0
      %v11562 = vsel %vm569, %v11456, 0
      %v11565 = vsel %vm569, %v11457, 0
      %v11568 = vsel %vm569, %v11458, 0
      %11570 = vmatprep.subr.mxu0 0.0
      %11571 = vmatpush1.msra.mxu0 0.0
      %11572 = vmatprep.subr.mxu0 0.0
      %11573 = vmatpush1.msra.mxu0 0.0
      %11574 = vmatprep.subr.mxu0 0.0
      %11575 = vmatpush1.msra.mxu0 0.0
      %11576 = vmatprep.subr.mxu0 0.0
      %11577 = vmatpush1.msra.mxu0 0.0
      %11578 = vmatprep.subr.mxu0 0.0
      %11579 = vmatpush1.msra.mxu0 0.0
      %11580 = vmatprep.subr.mxu0 0.0
      %11581 = vmatpush1.msra.mxu0 0.0
      %11582 = vmatprep.subr.mxu0 0.0
      %11583 = vmatpush1.msra.mxu0 0.0
      %11584 = vmatprep.subr.mxu0 0.0
      %11585 = vmatpush1.msra.mxu0 0.0
      %11586 = vmatprep.subr.mxu0 0.0
      %11587 = vmatpush1.msra.mxu0 %v11466
      %11588 = vmatprep.subr.mxu0 0.0
      %11589 = vmatpush1.msra.mxu0 %v11465
      %11590 = vmatprep.subr.mxu0 0.0
      %11591 = vmatpush1.msra.mxu0 %v11464
      %11592 = vmatprep.subr.mxu0 0.0
      %11593 = vmatpush1.msra.mxu0 %v11463
      %11594 = vmatprep.subr.mxu0 0.0
      %11595 = vmatpush1.msra.mxu0 %v11462
      %11596 = vmatprep.subr.mxu0 0.0
      %11597 = vmatpush1.msra.mxu0 %v11461
      %11598 = vmatprep.subr.mxu0 0.0
      %11599 = vmatpush1.msra.mxu0 %v11460
      %11600 = vmatprep.subr.mxu0 0.0
      %11601 = vmatpush1.msra.mxu0 %v11459
      %11602 = vmatprep.subr.mxu0 0.0
      %11603 = vmatpush2.msra.mxu0 0.0
      %11604 = vmatprep.subr.mxu0 0.0
      %11605 = vmatpush2.msra.mxu0 0.0
      %11606 = vmatprep.subr.mxu0 0.0
      %11607 = vmatpush2.msra.mxu0 0.0
      %11608 = vmatprep.subr.mxu0 0.0
      %11609 = vmatpush2.msra.mxu0 0.0
      %11610 = vmatprep.subr.mxu0 0.0
      %11611 = vmatpush2.msra.mxu0 0.0
      %11612 = vmatprep.subr.mxu0 0.0
      %11613 = vmatpush2.msra.mxu0 0.0
      %11614 = vmatprep.subr.mxu0 0.0
      %11615 = vmatpush2.msra.mxu0 0.0
      %11616 = vmatprep.subr.mxu0 0.0
      %11617 = vmatpush2.msra.mxu0 0.0
      %11618 = vmatprep.subr.mxu0 0.0
      %11619 = vmatpush2.msra.mxu0 0.0
      %11620 = vmatprep.subr.mxu0 0.0
      %11621 = vmatpush2.msra.mxu0 0.0
      %11622 = vmatprep.subr.mxu0 0.0
      %11623 = vmatpush2.msra.mxu0 0.0
      %11624 = vmatprep.subr.mxu0 0.0
      %11625 = vmatpush2.msra.mxu0 0.0
      %11626 = vmatprep.subr.mxu0 0.0
      %11627 = vmatpush2.msra.mxu0 0.0
      %11628 = vmatprep.subr.mxu0 0.0
      %11629 = vmatpush2.msra.mxu0 0.0
      %11630 = vmatprep.subr.mxu0 0.0
      %11631 = vmatpush2.msra.mxu0 0.0
      %11632 = vmatprep.subr.mxu0 0.0
      %11633 = vmatpush2.msra.mxu0 0.0
      %11634 = vmatprep.mubr.f32.mxu0 0.0
      %11635 = vmatmul.mubr.f32.gmra.mxu0 %v11475
      %v11636 = vpop.f32.mrf.mxu0
      %v11637 = vadd.f32 %v11472, %v11636
      %v11638 = vpop.f32.mrf.mxu0
      %11639 = vmatprep.mubr.f32.mxu0 0.0
      %11640 = vmatmul.mubr.f32.gmra.mxu0 %v11478
      %v11641 = vpop.f32.mrf.mxu0
      %v11642 = vadd.f32 %v11472, %v11641
      %v11643 = vpop.f32.mrf.mxu0
      %11644 = vmatprep.mubr.f32.mxu0 0.0
      %11645 = vmatmul.mubr.f32.gmra.mxu0 %v11481
      %v11646 = vpop.f32.mrf.mxu0
      %v11647 = vadd.f32 %v11472, %v11646
      %v11648 = vpop.f32.mrf.mxu0
      %11649 = vmatprep.mubr.f32.mxu0 0.0
      %11650 = vmatmul.mubr.f32.gmra.mxu0 %v11484
      %v11651 = vpop.f32.mrf.mxu0
      %v11652 = vadd.f32 %v11472, %v11651
      %v11653 = vpop.f32.mrf.mxu0
      %11654 = vmatprep.mubr.f32.mxu0 0.0
      %11655 = vmatmul.mubr.f32.gmra.mxu0 %v11487
      %v11656 = vpop.f32.mrf.mxu0
      %v11657 = vadd.f32 %v11472, %v11656
      %v11658 = vpop.f32.mrf.mxu0
      %11659 = vmatprep.mubr.f32.mxu0 0.0
      %11660 = vmatmul.mubr.f32.gmra.mxu0 %v11490
      %v11661 = vpop.f32.mrf.mxu0
      %v11662 = vadd.f32 %v11472, %v11661
      %v11663 = vpop.f32.mrf.mxu0
      %11664 = vmatprep.mubr.f32.mxu0 0.0
      %11665 = vmatmul.mubr.f32.gmra.mxu0 %v11493
      %v11666 = vpop.f32.mrf.mxu0
      %v11667 = vadd.f32 %v11472, %v11666
      %v11668 = vpop.f32.mrf.mxu0
      %11669 = vmatprep.mubr.f32.mxu0 0.0
      %11670 = vmatmul.mubr.f32.gmra.mxu0 %v11496
      %v11671 = vpop.f32.mrf.mxu0
      %v11672 = vadd.f32 %v11472, %v11671
      %v11673 = vpop.f32.mrf.mxu0
      %11674 = vmatprep.mubr.f32.mxu0 0.0
      %11675 = vmatmul.mubr.f32.gmra.mxu0 %v11499
      %v11676 = vpop.f32.mrf.mxu0
      %v11677 = vadd.f32 %v11472, %v11676
      %v11678 = vpop.f32.mrf.mxu0
      %11679 = vmatprep.mubr.f32.mxu0 0.0
      %11680 = vmatmul.mubr.f32.gmra.mxu0 %v11502
      %v11681 = vpop.f32.mrf.mxu0
      %v11682 = vadd.f32 %v11472, %v11681
      %v11683 = vpop.f32.mrf.mxu0
      %11684 = vmatprep.mubr.f32.mxu0 0.0
      %11685 = vmatmul.mubr.f32.gmra.mxu0 %v11505
      %v11686 = vpop.f32.mrf.mxu0
      %v11687 = vadd.f32 %v11472, %v11686
      %v11688 = vpop.f32.mrf.mxu0
      %11689 = vmatprep.mubr.f32.mxu0 0.0
      %11690 = vmatmul.mubr.f32.gmra.mxu0 %v11508
      %v11691 = vpop.f32.mrf.mxu0
      %v11692 = vadd.f32 %v11472, %v11691
      %v11693 = vpop.f32.mrf.mxu0
      %11694 = vmatprep.mubr.f32.mxu0 0.0
      %11695 = vmatmul.mubr.f32.gmra.mxu0 %v11511
      %v11696 = vpop.f32.mrf.mxu0
      %v11697 = vadd.f32 %v11472, %v11696
      %v11698 = vpop.f32.mrf.mxu0
      %11699 = vmatprep.mubr.f32.mxu0 0.0
      %11700 = vmatmul.mubr.f32.gmra.mxu0 %v11514
      %v11701 = vpop.f32.mrf.mxu0
      %v11702 = vadd.f32 %v11472, %v11701
      %v11703 = vpop.f32.mrf.mxu0
      %11704 = vmatprep.mubr.f32.mxu0 0.0
      %11705 = vmatmul.mubr.f32.gmra.mxu0 %v11517
      %v11706 = vpop.f32.mrf.mxu0
      %v11707 = vadd.f32 %v11472, %v11706
      %v11708 = vpop.f32.mrf.mxu0
      %11709 = vmatprep.mubr.f32.mxu0 0.0
      %11710 = vmatmul.mubr.f32.gmra.mxu0 %v11520
      %v11711 = vpop.f32.mrf.mxu0
      %v11712 = vadd.f32 %v11472, %v11711
      %v11713 = vpop.f32.mrf.mxu0
      %11714 = vmatprep.mubr.f32.mxu0 0.0
      %11715 = vmatmul.mubr.f32.gmra.mxu0 %v11523
      %v11716 = vpop.f32.mrf.mxu0
      %v11717 = vadd.f32 %v11472, %v11716
      %v11718 = vpop.f32.mrf.mxu0
      %11719 = vmatprep.mubr.f32.mxu0 0.0
      %11720 = vmatmul.mubr.f32.gmra.mxu0 %v11526
      %v11721 = vpop.f32.mrf.mxu0
      %v11722 = vadd.f32 %v11472, %v11721
      %v11723 = vpop.f32.mrf.mxu0
      %11724 = vmatprep.mubr.f32.mxu0 0.0
      %11725 = vmatmul.mubr.f32.gmra.mxu0 %v11529
      %v11726 = vpop.f32.mrf.mxu0
      %v11727 = vadd.f32 %v11472, %v11726
      %v11728 = vpop.f32.mrf.mxu0
      %11729 = vmatprep.mubr.f32.mxu0 0.0
      %11730 = vmatmul.mubr.f32.gmra.mxu0 %v11532
      %v11731 = vpop.f32.mrf.mxu0
      %v11732 = vadd.f32 %v11472, %v11731
      %v11733 = vpop.f32.mrf.mxu0
      %11734 = vmatprep.mubr.f32.mxu0 0.0
      %11735 = vmatmul.mubr.f32.gmra.mxu0 %v11535
      %v11736 = vpop.f32.mrf.mxu0
      %v11737 = vadd.f32 %v11472, %v11736
      %v11738 = vpop.f32.mrf.mxu0
      %11739 = vmatprep.mubr.f32.mxu0 0.0
      %11740 = vmatmul.mubr.f32.gmra.mxu0 %v11538
      %v11741 = vpop.f32.mrf.mxu0
      %v11742 = vadd.f32 %v11472, %v11741
      %v11743 = vpop.f32.mrf.mxu0
      %11744 = vmatprep.mubr.f32.mxu0 0.0
      %11745 = vmatmul.mubr.f32.gmra.mxu0 %v11541
      %v11746 = vpop.f32.mrf.mxu0
      %v11747 = vadd.f32 %v11472, %v11746
      %v11748 = vpop.f32.mrf.mxu0
      %11749 = vmatprep.mubr.f32.mxu0 0.0
      %11750 = vmatmul.mubr.f32.gmra.mxu0 %v11544
      %v11751 = vpop.f32.mrf.mxu0
      %v11752 = vadd.f32 %v11472, %v11751
      %v11753 = vpop.f32.mrf.mxu0
      %11754 = vmatprep.mubr.f32.mxu0 0.0
      %11755 = vmatmul.mubr.f32.gmra.mxu0 %v11547
      %v11756 = vpop.f32.mrf.mxu0
      %v11757 = vadd.f32 %v11472, %v11756
      %v11758 = vpop.f32.mrf.mxu0
      %11759 = vmatprep.mubr.f32.mxu0 0.0
      %11760 = vmatmul.mubr.f32.gmra.mxu0 %v11550
      %v11761 = vpop.f32.mrf.mxu0
      %v11762 = vadd.f32 %v11472, %v11761
      %v11763 = vpop.f32.mrf.mxu0
      %11764 = vmatprep.mubr.f32.mxu0 0.0
      %11765 = vmatmul.mubr.f32.gmra.mxu0 %v11553
      %v11766 = vpop.f32.mrf.mxu0
      %v11767 = vadd.f32 %v11472, %v11766
      %v11768 = vpop.f32.mrf.mxu0
      %11769 = vmatprep.mubr.f32.mxu0 0.0
      %11770 = vmatmul.mubr.f32.gmra.mxu0 %v11556
      %v11771 = vpop.f32.mrf.mxu0
      %v11772 = vadd.f32 %v11472, %v11771
      %v11773 = vpop.f32.mrf.mxu0
      %11774 = vmatprep.mubr.f32.mxu0 0.0
      %11775 = vmatmul.mubr.f32.gmra.mxu0 %v11559
      %v11776 = vpop.f32.mrf.mxu0
      %v11777 = vadd.f32 %v11472, %v11776
      %v11778 = vpop.f32.mrf.mxu0
      %11779 = vmatprep.mubr.f32.mxu0 0.0
      %11780 = vmatmul.mubr.f32.gmra.mxu0 %v11562
      %v11781 = vpop.f32.mrf.mxu0
      %v11782 = vadd.f32 %v11472, %v11781
      %v11783 = vpop.f32.mrf.mxu0
      %11784 = vmatprep.mubr.f32.mxu0 0.0
      %11785 = vmatmul.mubr.f32.gmra.mxu0 %v11565
      %v11786 = vpop.f32.mrf.mxu0
      %v11787 = vadd.f32 %v11472, %v11786
      %v11788 = vpop.f32.mrf.mxu0
      %11789 = vmatprep.mubr.f32.mxu0 0.0
      %11790 = vmatmul.mubr.f32.gmra.mxu0 %v11568
      %v11791 = vpop.f32.mrf.mxu0
      %v11792 = vadd.f32 %v11472, %v11791
      %v11793 = vpop.f32.mrf.mxu0
      %11794 = vdwg.mxu0
      %v11795 = vmax.f32 %v11637, 0.0
      %v11796 = vmax.f32 %v11642, 0.0
      %v11797 = vmax.f32 %v11647, 0.0
      %v11798 = vmax.f32 %v11652, 0.0
      %v11799 = vmax.f32 %v11657, 0.0
      %v11800 = vmax.f32 %v11662, 0.0
      %v11801 = vmax.f32 %v11667, 0.0
      %v11802 = vmax.f32 %v11672, 0.0
      %v11803 = vmax.f32 %v11677, 0.0
      %v11804 = vmax.f32 %v11682, 0.0
      %v11805 = vmax.f32 %v11687, 0.0
      %v11806 = vmax.f32 %v11692, 0.0
      %v11807 = vmax.f32 %v11697, 0.0
      %v11808 = vmax.f32 %v11702, 0.0
      %v11809 = vmax.f32 %v11707, 0.0
      %v11810 = vmax.f32 %v11712, 0.0
      %v11811 = vmax.f32 %v11717, 0.0
      %v11812 = vmax.f32 %v11722, 0.0
      %v11813 = vmax.f32 %v11727, 0.0
      %v11814 = vmax.f32 %v11732, 0.0
      %v11815 = vmax.f32 %v11737, 0.0
      %v11816 = vmax.f32 %v11742, 0.0
      %v11817 = vmax.f32 %v11747, 0.0
      %v11818 = vmax.f32 %v11752, 0.0
      %v11819 = vmax.f32 %v11757, 0.0
      %v11820 = vmax.f32 %v11762, 0.0
      %v11821 = vmax.f32 %v11767, 0.0
      %v11822 = vmax.f32 %v11772, 0.0
      %v11823 = vmax.f32 %v11777, 0.0
      %v11824 = vmax.f32 %v11782, 0.0
      %v11825 = vmax.f32 %v11787, 0.0
      %v11826 = vmax.f32 %v11792, 0.0
      %v11827 = vld [vmem:[%s15] sm:$0xff]
      %v11828 = vld [vmem:[%s15 + $0x8] sm:$0xff]
      %v11829 = vld [vmem:[%s15 + $0x10] sm:$0xff]
      %v11830 = vld [vmem:[%s15 + $0x18] sm:$0xff]
      %v11831 = vld [vmem:[%s15 + $0x20] sm:$0xff]
      %v11832 = vld [vmem:[%s15 + $0x28] sm:$0xff]
      %v11833 = vld [vmem:[%s15 + $0x30] sm:$0xff]
      %v11834 = vld [vmem:[%s15 + $0x38] sm:$0xff]
      %v11835 = vld [vmem:[%s16] sm:$0x1]
      %v11837 = vlaneseq
      %v11838 = vshrl.u32 %v11837, 7
      %v11839 = vsub.s32 0, %v11838
      %v11840 = vrot.slane %v11835, %v11839
      %v11843 = vsel %vm569, %v11795, 0
      %v11846 = vsel %vm569, %v11796, 0
      %v11849 = vsel %vm569, %v11797, 0
      %v11852 = vsel %vm569, %v11798, 0
      %v11855 = vsel %vm569, %v11799, 0
      %v11858 = vsel %vm569, %v11800, 0
      %v11861 = vsel %vm569, %v11801, 0
      %v11864 = vsel %vm569, %v11802, 0
      %v11867 = vsel %vm569, %v11803, 0
      %v11870 = vsel %vm569, %v11804, 0
      %v11873 = vsel %vm569, %v11805, 0
      %v11876 = vsel %vm569, %v11806, 0
      %v11879 = vsel %vm569, %v11807, 0
      %v11882 = vsel %vm569, %v11808, 0
      %v11885 = vsel %vm569, %v11809, 0
      %v11888 = vsel %vm569, %v11810, 0
      %v11891 = vsel %vm569, %v11811, 0
      %v11894 = vsel %vm569, %v11812, 0
      %v11897 = vsel %vm569, %v11813, 0
      %v11900 = vsel %vm569, %v11814, 0
      %v11903 = vsel %vm569, %v11815, 0
      %v11906 = vsel %vm569, %v11816, 0
      %v11909 = vsel %vm569, %v11817, 0
      %v11912 = vsel %vm569, %v11818, 0
      %v11915 = vsel %vm569, %v11819, 0
      %v11918 = vsel %vm569, %v11820, 0
      %v11921 = vsel %vm569, %v11821, 0
      %v11924 = vsel %vm569, %v11822, 0
      %v11927 = vsel %vm569, %v11823, 0
      %v11930 = vsel %vm569, %v11824, 0
      %v11933 = vsel %vm569, %v11825, 0
      %v11936 = vsel %vm569, %v11826, 0
      %11938 = vmatprep.subr.mxu0 0.0
      %11939 = vmatpush1.msra.mxu0 0.0
      %11940 = vmatprep.subr.mxu0 0.0
      %11941 = vmatpush1.msra.mxu0 0.0
      %11942 = vmatprep.subr.mxu0 0.0
      %11943 = vmatpush1.msra.mxu0 0.0
      %11944 = vmatprep.subr.mxu0 0.0
      %11945 = vmatpush1.msra.mxu0 0.0
      %11946 = vmatprep.subr.mxu0 0.0
      %11947 = vmatpush1.msra.mxu0 0.0
      %11948 = vmatprep.subr.mxu0 0.0
      %11949 = vmatpush1.msra.mxu0 0.0
      %11950 = vmatprep.subr.mxu0 0.0
      %11951 = vmatpush1.msra.mxu0 0.0
      %11952 = vmatprep.subr.mxu0 0.0
      %11953 = vmatpush1.msra.mxu0 0.0
      %11954 = vmatprep.subr.mxu0 0.0
      %11955 = vmatpush1.msra.mxu0 %v11834
      %11956 = vmatprep.subr.mxu0 0.0
      %11957 = vmatpush1.msra.mxu0 %v11833
      %11958 = vmatprep.subr.mxu0 0.0
      %11959 = vmatpush1.msra.mxu0 %v11832
      %11960 = vmatprep.subr.mxu0 0.0
      %11961 = vmatpush1.msra.mxu0 %v11831
      %11962 = vmatprep.subr.mxu0 0.0
      %11963 = vmatpush1.msra.mxu0 %v11830
      %11964 = vmatprep.subr.mxu0 0.0
      %11965 = vmatpush1.msra.mxu0 %v11829
      %11966 = vmatprep.subr.mxu0 0.0
      %11967 = vmatpush1.msra.mxu0 %v11828
      %11968 = vmatprep.subr.mxu0 0.0
      %11969 = vmatpush1.msra.mxu0 %v11827
      %11970 = vmatprep.subr.mxu0 0.0
      %11971 = vmatpush2.msra.mxu0 0.0
      %11972 = vmatprep.subr.mxu0 0.0
      %11973 = vmatpush2.msra.mxu0 0.0
      %11974 = vmatprep.subr.mxu0 0.0
      %11975 = vmatpush2.msra.mxu0 0.0
      %11976 = vmatprep.subr.mxu0 0.0
      %11977 = vmatpush2.msra.mxu0 0.0
      %11978 = vmatprep.subr.mxu0 0.0
      %11979 = vmatpush2.msra.mxu0 0.0
      %11980 = vmatprep.subr.mxu0 0.0
      %11981 = vmatpush2.msra.mxu0 0.0
      %11982 = vmatprep.subr.mxu0 0.0
      %11983 = vmatpush2.msra.mxu0 0.0
      %11984 = vmatprep.subr.mxu0 0.0
      %11985 = vmatpush2.msra.mxu0 0.0
      %11986 = vmatprep.subr.mxu0 0.0
      %11987 = vmatpush2.msra.mxu0 0.0
      %11988 = vmatprep.subr.mxu0 0.0
      %11989 = vmatpush2.msra.mxu0 0.0
      %11990 = vmatprep.subr.mxu0 0.0
      %11991 = vmatpush2.msra.mxu0 0.0
      %11992 = vmatprep.subr.mxu0 0.0
      %11993 = vmatpush2.msra.mxu0 0.0
      %11994 = vmatprep.subr.mxu0 0.0
      %11995 = vmatpush2.msra.mxu0 0.0
      %11996 = vmatprep.subr.mxu0 0.0
      %11997 = vmatpush2.msra.mxu0 0.0
      %11998 = vmatprep.subr.mxu0 0.0
      %11999 = vmatpush2.msra.mxu0 0.0
      %12000 = vmatprep.subr.mxu0 0.0
      %12001 = vmatpush2.msra.mxu0 0.0
      %12002 = vmatprep.mubr.f32.mxu0 0.0
      %12003 = vmatmul.mubr.f32.gmra.mxu0 %v11843
      %v12004 = vpop.f32.mrf.mxu0
      %v12005 = vadd.f32 %v11840, %v12004
      %v12006 = vpop.f32.mrf.mxu0
      %12007 = vmatprep.mubr.f32.mxu0 0.0
      %12008 = vmatmul.mubr.f32.gmra.mxu0 %v11846
      %v12009 = vpop.f32.mrf.mxu0
      %v12010 = vadd.f32 %v11840, %v12009
      %v12011 = vpop.f32.mrf.mxu0
      %12012 = vmatprep.mubr.f32.mxu0 0.0
      %12013 = vmatmul.mubr.f32.gmra.mxu0 %v11849
      %v12014 = vpop.f32.mrf.mxu0
      %v12015 = vadd.f32 %v11840, %v12014
      %v12016 = vpop.f32.mrf.mxu0
      %12017 = vmatprep.mubr.f32.mxu0 0.0
      %12018 = vmatmul.mubr.f32.gmra.mxu0 %v11852
      %v12019 = vpop.f32.mrf.mxu0
      %v12020 = vadd.f32 %v11840, %v12019
      %v12021 = vpop.f32.mrf.mxu0
      %12022 = vmatprep.mubr.f32.mxu0 0.0
      %12023 = vmatmul.mubr.f32.gmra.mxu0 %v11855
      %v12024 = vpop.f32.mrf.mxu0
      %v12025 = vadd.f32 %v11840, %v12024
      %v12026 = vpop.f32.mrf.mxu0
      %12027 = vmatprep.mubr.f32.mxu0 0.0
      %12028 = vmatmul.mubr.f32.gmra.mxu0 %v11858
      %v12029 = vpop.f32.mrf.mxu0
      %v12030 = vadd.f32 %v11840, %v12029
      %v12031 = vpop.f32.mrf.mxu0
      %12032 = vmatprep.mubr.f32.mxu0 0.0
      %12033 = vmatmul.mubr.f32.gmra.mxu0 %v11861
      %v12034 = vpop.f32.mrf.mxu0
      %v12035 = vadd.f32 %v11840, %v12034
      %v12036 = vpop.f32.mrf.mxu0
      %12037 = vmatprep.mubr.f32.mxu0 0.0
      %12038 = vmatmul.mubr.f32.gmra.mxu0 %v11864
      %v12039 = vpop.f32.mrf.mxu0
      %v12040 = vadd.f32 %v11840, %v12039
      %v12041 = vpop.f32.mrf.mxu0
      %12042 = vmatprep.mubr.f32.mxu0 0.0
      %12043 = vmatmul.mubr.f32.gmra.mxu0 %v11867
      %v12044 = vpop.f32.mrf.mxu0
      %v12045 = vadd.f32 %v11840, %v12044
      %v12046 = vpop.f32.mrf.mxu0
      %12047 = vmatprep.mubr.f32.mxu0 0.0
      %12048 = vmatmul.mubr.f32.gmra.mxu0 %v11870
      %v12049 = vpop.f32.mrf.mxu0
      %v12050 = vadd.f32 %v11840, %v12049
      %v12051 = vpop.f32.mrf.mxu0
      %12052 = vmatprep.mubr.f32.mxu0 0.0
      %12053 = vmatmul.mubr.f32.gmra.mxu0 %v11873
      %v12054 = vpop.f32.mrf.mxu0
      %v12055 = vadd.f32 %v11840, %v12054
      %v12056 = vpop.f32.mrf.mxu0
      %12057 = vmatprep.mubr.f32.mxu0 0.0
      %12058 = vmatmul.mubr.f32.gmra.mxu0 %v11876
      %v12059 = vpop.f32.mrf.mxu0
      %v12060 = vadd.f32 %v11840, %v12059
      %v12061 = vpop.f32.mrf.mxu0
      %12062 = vmatprep.mubr.f32.mxu0 0.0
      %12063 = vmatmul.mubr.f32.gmra.mxu0 %v11879
      %v12064 = vpop.f32.mrf.mxu0
      %v12065 = vadd.f32 %v11840, %v12064
      %v12066 = vpop.f32.mrf.mxu0
      %12067 = vmatprep.mubr.f32.mxu0 0.0
      %12068 = vmatmul.mubr.f32.gmra.mxu0 %v11882
      %v12069 = vpop.f32.mrf.mxu0
      %v12070 = vadd.f32 %v11840, %v12069
      %v12071 = vpop.f32.mrf.mxu0
      %12072 = vmatprep.mubr.f32.mxu0 0.0
      %12073 = vmatmul.mubr.f32.gmra.mxu0 %v11885
      %v12074 = vpop.f32.mrf.mxu0
      %v12075 = vadd.f32 %v11840, %v12074
      %v12076 = vpop.f32.mrf.mxu0
      %12077 = vmatprep.mubr.f32.mxu0 0.0
      %12078 = vmatmul.mubr.f32.gmra.mxu0 %v11888
      %v12079 = vpop.f32.mrf.mxu0
      %v12080 = vadd.f32 %v11840, %v12079
      %v12081 = vpop.f32.mrf.mxu0
      %12082 = vmatprep.mubr.f32.mxu0 0.0
      %12083 = vmatmul.mubr.f32.gmra.mxu0 %v11891
      %v12084 = vpop.f32.mrf.mxu0
      %v12085 = vadd.f32 %v11840, %v12084
      %v12086 = vpop.f32.mrf.mxu0
      %12087 = vmatprep.mubr.f32.mxu0 0.0
      %12088 = vmatmul.mubr.f32.gmra.mxu0 %v11894
      %v12089 = vpop.f32.mrf.mxu0
      %v12090 = vadd.f32 %v11840, %v12089
      %v12091 = vpop.f32.mrf.mxu0
      %12092 = vmatprep.mubr.f32.mxu0 0.0
      %12093 = vmatmul.mubr.f32.gmra.mxu0 %v11897
      %v12094 = vpop.f32.mrf.mxu0
      %v12095 = vadd.f32 %v11840, %v12094
      %v12096 = vpop.f32.mrf.mxu0
      %12097 = vmatprep.mubr.f32.mxu0 0.0
      %12098 = vmatmul.mubr.f32.gmra.mxu0 %v11900
      %v12099 = vpop.f32.mrf.mxu0
      %v12100 = vadd.f32 %v11840, %v12099
      %v12101 = vpop.f32.mrf.mxu0
      %12102 = vmatprep.mubr.f32.mxu0 0.0
      %12103 = vmatmul.mubr.f32.gmra.mxu0 %v11903
      %v12104 = vpop.f32.mrf.mxu0
      %v12105 = vadd.f32 %v11840, %v12104
      %v12106 = vpop.f32.mrf.mxu0
      %12107 = vmatprep.mubr.f32.mxu0 0.0
      %12108 = vmatmul.mubr.f32.gmra.mxu0 %v11906
      %v12109 = vpop.f32.mrf.mxu0
      %v12110 = vadd.f32 %v11840, %v12109
      %v12111 = vpop.f32.mrf.mxu0
      %12112 = vmatprep.mubr.f32.mxu0 0.0
      %12113 = vmatmul.mubr.f32.gmra.mxu0 %v11909
      %v12114 = vpop.f32.mrf.mxu0
      %v12115 = vadd.f32 %v11840, %v12114
      %v12116 = vpop.f32.mrf.mxu0
      %12117 = vmatprep.mubr.f32.mxu0 0.0
      %12118 = vmatmul.mubr.f32.gmra.mxu0 %v11912
      %v12119 = vpop.f32.mrf.mxu0
      %v12120 = vadd.f32 %v11840, %v12119
      %v12121 = vpop.f32.mrf.mxu0
      %12122 = vmatprep.mubr.f32.mxu0 0.0
      %12123 = vmatmul.mubr.f32.gmra.mxu0 %v11915
      %v12124 = vpop.f32.mrf.mxu0
      %v12125 = vadd.f32 %v11840, %v12124
      %v12126 = vpop.f32.mrf.mxu0
      %12127 = vmatprep.mubr.f32.mxu0 0.0
      %12128 = vmatmul.mubr.f32.gmra.mxu0 %v11918
      %v12129 = vpop.f32.mrf.mxu0
      %v12130 = vadd.f32 %v11840, %v12129
      %v12131 = vpop.f32.mrf.mxu0
      %12132 = vmatprep.mubr.f32.mxu0 0.0
      %12133 = vmatmul.mubr.f32.gmra.mxu0 %v11921
      %v12134 = vpop.f32.mrf.mxu0
      %v12135 = vadd.f32 %v11840, %v12134
      %v12136 = vpop.f32.mrf.mxu0
      %12137 = vmatprep.mubr.f32.mxu0 0.0
      %12138 = vmatmul.mubr.f32.gmra.mxu0 %v11924
      %v12139 = vpop.f32.mrf.mxu0
      %v12140 = vadd.f32 %v11840, %v12139
      %v12141 = vpop.f32.mrf.mxu0
      %12142 = vmatprep.mubr.f32.mxu0 0.0
      %12143 = vmatmul.mubr.f32.gmra.mxu0 %v11927
      %v12144 = vpop.f32.mrf.mxu0
      %v12145 = vadd.f32 %v11840, %v12144
      %v12146 = vpop.f32.mrf.mxu0
      %12147 = vmatprep.mubr.f32.mxu0 0.0
      %12148 = vmatmul.mubr.f32.gmra.mxu0 %v11930
      %v12149 = vpop.f32.mrf.mxu0
      %v12150 = vadd.f32 %v11840, %v12149
      %v12151 = vpop.f32.mrf.mxu0
      %12152 = vmatprep.mubr.f32.mxu0 0.0
      %12153 = vmatmul.mubr.f32.gmra.mxu0 %v11933
      %v12154 = vpop.f32.mrf.mxu0
      %v12155 = vadd.f32 %v11840, %v12154
      %v12156 = vpop.f32.mrf.mxu0
      %12157 = vmatprep.mubr.f32.mxu0 0.0
      %12158 = vmatmul.mubr.f32.gmra.mxu0 %v11936
      %v12159 = vpop.f32.mrf.mxu0
      %v12160 = vadd.f32 %v11840, %v12159
      %v12161 = vpop.f32.mrf.mxu0
      %12162 = vdwg.mxu0
      %12163 = vxpose.xlu0.b32.start [1/16] %v12005, 128
      %12164 = vxpose.xlu0.b32.cont [2/16] %v12010, 128
      %12165 = vxpose.xlu0.b32.cont [3/16] %v12015, 128
      %12166 = vxpose.xlu0.b32.cont [4/16] %v12020, 128
      %12167 = vxpose.xlu0.b32.cont [5/16] %v12025, 128
      %12168 = vxpose.xlu0.b32.cont [6/16] %v12030, 128
      %12169 = vxpose.xlu0.b32.cont [7/16] %v12035, 128
      %12170 = vxpose.xlu0.b32.cont [8/16] %v12040, 128
      %12171 = vxpose.xlu0.b32.cont [9/16] %v12045, 128
      %12172 = vxpose.xlu0.b32.cont [10/16] %v12050, 128
      %12173 = vxpose.xlu0.b32.cont [11/16] %v12055, 128
      %12174 = vxpose.xlu0.b32.cont [12/16] %v12060, 128
      %12175 = vxpose.xlu0.b32.cont [13/16] %v12065, 128
      %12176 = vxpose.xlu0.b32.cont [14/16] %v12070, 128
      %12177 = vxpose.xlu0.b32.cont [15/16] %v12075, 128
      %12178 = vxpose.xlu0.b32.end [16/16] %v12080, 128
      %v12179 = vpop.trf.xlu0
      %v12180 = vpop.trf.xlu0
      %v12181 = vpop.trf.xlu0
      %v12182 = vpop.trf.xlu0
      %v12183 = vpop.trf.xlu0
      %v12184 = vpop.trf.xlu0
      %v12185 = vpop.trf.xlu0
      %v12186 = vpop.trf.xlu0
      %v12187 = vpop.trf.xlu0
      %v12188 = vpop.trf.xlu0
      %v12189 = vpop.trf.xlu0
      %v12190 = vpop.trf.xlu0
      %v12191 = vpop.trf.xlu0
      %v12192 = vpop.trf.xlu0
      %v12193 = vpop.trf.xlu0
      %v12194 = vpop.trf.xlu0
      %12195 = vxpose.xlu0.b32.start [1/16] %v12085, 128
      %12196 = vxpose.xlu0.b32.cont [2/16] %v12090, 128
      %12197 = vxpose.xlu0.b32.cont [3/16] %v12095, 128
      %12198 = vxpose.xlu0.b32.cont [4/16] %v12100, 128
      %12199 = vxpose.xlu0.b32.cont [5/16] %v12105, 128
      %12200 = vxpose.xlu0.b32.cont [6/16] %v12110, 128
      %12201 = vxpose.xlu0.b32.cont [7/16] %v12115, 128
      %12202 = vxpose.xlu0.b32.cont [8/16] %v12120, 128
      %12203 = vxpose.xlu0.b32.cont [9/16] %v12125, 128
      %12204 = vxpose.xlu0.b32.cont [10/16] %v12130, 128
      %12205 = vxpose.xlu0.b32.cont [11/16] %v12135, 128
      %12206 = vxpose.xlu0.b32.cont [12/16] %v12140, 128
      %12207 = vxpose.xlu0.b32.cont [13/16] %v12145, 128
      %12208 = vxpose.xlu0.b32.cont [14/16] %v12150, 128
      %12209 = vxpose.xlu0.b32.cont [15/16] %v12155, 128
      %12210 = vxpose.xlu0.b32.end [16/16] %v12160, 128
      %v12211 = vpop.trf.xlu0
      %v12212 = vpop.trf.xlu0
      %v12213 = vpop.trf.xlu0
      %v12214 = vpop.trf.xlu0
      %v12215 = vpop.trf.xlu0
      %v12216 = vpop.trf.xlu0
      %v12217 = vpop.trf.xlu0
      %v12218 = vpop.trf.xlu0
      %v12219 = vpop.trf.xlu0
      %v12220 = vpop.trf.xlu0
      %v12221 = vpop.trf.xlu0
      %v12222 = vpop.trf.xlu0
      %v12223 = vpop.trf.xlu0
      %v12224 = vpop.trf.xlu0
      %v12225 = vpop.trf.xlu0
      %v12226 = vpop.trf.xlu0
      %v12227 = vld [vmem:[%s558] sm:$0xff]
      %v12228 = vld [vmem:[%s558 + $0x8] sm:$0xff]
      %v12229 = vadd.f32 %v12179, %v12227
      %v12230 = vadd.f32 %v12211, %v12228
      %12231 = vst [vmem:[%s568] sm:$0xff] %v12229
      %12232 = vst [vmem:[%s568 + $0x8] sm:$0xff] %v12230
      %p12233 = scmp.lt.s32.totalorder %s28, 1
      %s12234 = scalar_select %p12233, %s28, 1
      %s12235 = smul.addr %s12234, 2
      %s12236 = smul.addr %s12235, 8
      %s12237 = scalar_lea.vmem %s17, %s12236
      // Predicated region
      $region89: #{hyperpnn_forward.1} parent=87 // pred_check
        %p12238 = pneg %p413
      $region90: #{hyperpnn_forward.1} parent=87 // pred_check_branch
        %12240 = sbr.rel (%p12238) target = $region92
      $region91: #{hyperpnn_forward.1} parent=87 // pred_region
        _
      $region92: #{hyperpnn_forward.1} parent=87 // pred_fallthru
        _
    $region88: #{hyperpnn_forward.1} parent=5 // pred_fallthru
      _
    %p12241 = scmp.le.s32.totalorder 2, %s23
    // Predicated region
    $region93: #{hyperpnn_forward.1} parent=5 // pred_check
      %p12242 = pneg %p12241
    $region94: #{hyperpnn_forward.1} parent=5 // pred_check_branch
      %12244 = sbr.rel (%p12242) target = $region96
    $region95: #{hyperpnn_forward.1} parent=5 // pred_region
      %s12245 = ssub.s32 %s23, 2
      // Predicated region
      $region97: #{hyperpnn_forward.1} parent=95 // pred_check
        %p12246 = pneg %p419
      $region98: #{hyperpnn_forward.1} parent=95 // pred_check_branch
        %12248 = sbr.rel (%p12246) target = $region100
      $region99: #{hyperpnn_forward.1} parent=95 // pred_region
        %p12249 = scmp.lt.s32.totalorder %s29, 1
        %s12250 = scalar_select %p12249, %s29, 1
        %s12251 = smul.addr %s12250, 2
        %s12252 = smul.addr %s12251, 8
        %s12253 = scalar_lea.vmem %s17, %s12252
      $region100: #{hyperpnn_forward.1} parent=95 // pred_fallthru
        _
    $region96: #{hyperpnn_forward.1} parent=5 // pred_fallthru
      _
  $region6: #{hyperpnn_forward.1} parent=0 // loop_footer
    %s27 = sadd.s32 1, %s23
  $region7: #{hyperpnn_forward.1} parent=0 // loop_footer_branch
    %22 = sbr.rel target = $region3
  $region8: #{hyperpnn_forward.1} parent=0 // loop_exit
    _

</llo_original>
